<compile_context>
chip_gen: v6e
topology: v6e:2x2x1
jax: 0.10.0
libtpu: 0.0.40
codegen_flags: <defaults>
</compile_context>

<pallas_src>
import math
from functools import partial

import jax
import jax.numpy as jnp
from jax import lax
from jax.experimental import pallas as pl
from jax.experimental.pallas import tpu as pltpu

BN_EPS = 1e-5

# dot_general dimension numbers (flash-attention-backward convention).
_NN = (((1,), (0,)), ((), ()))   # (m,k) @ (k,n)   -> (m,n)
_TN = (((0,), (0,)), ((), ()))   # (k,m)^T @ (k,n) -> (m,n)
_NT = (((1,), (1,)), ((), ()))   # (m,k) @ (n,k)^T -> (m,n)


# --------------------------------------------------------------------------
# Fused Pallas kernel (one batch element per grid step)
# --------------------------------------------------------------------------
def _senet_bottleneck_kernel(
        x_ref, w1_ref, s1_ref, b1_ref, w2_ref, s2_ref, b2_ref, w3_ref,
        s3_ref, b3_ref, o_ref, xpad_ref, y2_ref, *,
        H, W, Ho, Wo, stride, groups, cin_g, cout_g, compute_dtype):
    """
    x_ref    : (1, Cin, H*W)         f32, channel-major (NCHW flattened)
    w1_ref   : (G, Cin, cin_g)       compute dtype
    s1/b1    : (G, 1, cin_g)         f32 folded BN1
    w2_ref   : (G*9, cin_g, cout_g)  compute dtype (per group / per 3x3 tap)
    s2/b2    : (G, 1, cout_g)        f32 folded BN2
    w3_ref   : (G, Cout, cout_g)     compute dtype
    s3/b3    : (Cout, 1)             f32 folded BN3
    o_ref    : (1, Cout, Ho*Wo)      f32 output, channel-major (NCHW)
    xpad_ref : (H+2, W+2, cin_g)     f32 VMEM scratch (pad=1 halo)
    y2_ref   : (Ho*Wo, cout_g)       f32 VMEM scratch (conv2 accumulator)
    """
    x = x_ref[0].astype(compute_dtype)                       # (Cin, H*W)

    # Zero the pad=1 halo once; the interior is fully rewritten per group.
    xpad_ref[...] = jnp.zeros(xpad_ref.shape, xpad_ref.dtype)

    for g in range(groups):
        # ---- conv1 (1x1) + BN + ReLU for this group's slice of mid channels.
        # Contracting over the channel (sublane) axis of the NCHW input lets
        # the MXU absorb the NCHW -> channels-last transpose.
        y1 = lax.dot_general(x, w1_ref[g], _TN,
                             preferred_element_type=jnp.float32)
        y1 = jnp.maximum(y1 * s1_ref[g] + b1_ref[g], 0.0)     # (H*W, cin_g) f32

        # ---- stage zero-padded activation in VMEM (no HBM pad pass).
        xpad_ref[1:H + 1, 1:W + 1, :] = y1.reshape(H, W, cin_g)
        xpad = xpad_ref[...].astype(compute_dtype)

        # ---- conv2: grouped 3x3 = 9 per-group matmuls, VMEM accumulator.
        for kh in range(3):
            for kw in range(3):
                if stride == 1:
                    patch = xpad[kh:kh + Ho, kw:kw + Wo, :]
                else:
                    # TODO(synk): for stride > 1 resolve the stride at the
                    # DMA/index level instead of a strided in-VMEM slice.
                    patch = lax.slice(
                        xpad, (kh, kw, 0),
                        (kh + (Ho - 1) * stride + 1,
                         kw + (Wo - 1) * stride + 1, cin_g),
                        (stride, stride, 1))
                tap = lax.dot_general(
                    patch.reshape(Ho * Wo, cin_g),
                    w2_ref[g * 9 + kh * 3 + kw], _NN,
                    preferred_element_type=jnp.float32)
                if kh == 0 and kw == 0:
                    y2_ref[...] = tap
                else:
                    y2_ref[...] += tap
        y2 = jnp.maximum(y2_ref[...] * s2_ref[g] + b2_ref[g], 0.0)
        y2 = y2.astype(compute_dtype)                         # (Ho*Wo, cout_g)

        # ---- conv3 (1x1): emit channel-major (Cout, Ho*Wo) directly so the
        # block is already NCHW; accumulate group contributions in the
        # VMEM-resident output block (f32).
        contrib = lax.dot_general(w3_ref[g], y2, _NT,
                                  preferred_element_type=jnp.float32)
        if g == 0:
            o_ref[0] = contrib
        else:
            o_ref[0] += contrib

    # ---- BN3 (no activation), per output channel.
    o_ref[0] = o_ref[0] * s3_ref[...] + b3_ref[...]


def _full_spec(arr):
    """Whole-array block with a constant index map (stays VMEM-resident)."""
    nd = arr.ndim

    def idx(n):
        return (0,) * nd

    return pl.BlockSpec(arr.shape, idx)


# --------------------------------------------------------------------------
# Parameter setup + module wrapper
# --------------------------------------------------------------------------
def fold_bn(gamma, beta, mean, var, eps=BN_EPS):
    scale = gamma / jnp.sqrt(var + eps)
    bias = beta - mean * scale
    return scale, bias


def make_bn_params(key, c):
    k1, k2, k3, k4 = jax.random.split(key, 4)
    gamma = 1.0 + 0.1 * jax.random.normal(k1, (c,), jnp.float32)
    beta = 0.1 * jax.random.normal(k2, (c,), jnp.float32)
    mean = 0.1 * jax.random.normal(k3, (c,), jnp.float32)
    var = jax.random.uniform(k4, (c,), jnp.float32, 0.5, 1.5)
    return gamma, beta, mean, var


class SENetBottleneckPallas:
    def __init__(self, in_channels, out_channels, stride, cardinality,
                 bottleneck_width, key, compute_dtype=jnp.bfloat16):
        mid_channels = out_channels // 4
        D = int(math.floor(mid_channels * (bottleneck_width / 64.0)))
        group_width = cardinality * D
        group_width2 = group_width // 2

        self.in_channels = in_channels
        self.out_channels = out_channels
        self.stride = stride
        self.cardinality = cardinality
        self.cmid1 = group_width2
        self.cmid2 = group_width
        self.cin_g = group_width2 // cardinality
        self.cout_g = group_width // cardinality
        self.compute_dtype = compute_dtype
        G = cardinality

        ks = jax.random.split(key, 6)
        # conv1: 1x1, in -> group_width2 (bias=False), BN, ReLU
        self.w1_oihw = 0.1 * jax.random.normal(
            ks[0], (group_width2, in_channels, 1, 1), jnp.float32)
        self.bn1 = make_bn_params(ks[1], group_width2)
        # conv2: 3x3 grouped, group_width2 -> group_width, stride, pad=1, BN, ReLU
        self.w2_oihw = 0.1 * jax.random.normal(
            ks[2], (group_width, group_width2 // G, 3, 3), jnp.float32)
        self.bn2 = make_bn_params(ks[3], group_width)
        # conv3: 1x1, group_width -> out_channels, BN, no activation
        self.w3_oihw = 0.1 * jax.random.normal(
            ks[4], (out_channels, group_width, 1, 1), jnp.float32)
        self.bn3 = make_bn_params(ks[5], out_channels)

        self.s1, self.b1 = fold_bn(*self.bn1)
        self.s2, self.b2 = fold_bn(*self.bn2)
        self.s3, self.b3 = fold_bn(*self.bn3)

        cd = compute_dtype
        # conv1 weights per group: (G, Cin, cin_g)
        w1_io = jnp.transpose(self.w1_oihw[:, :, 0, 0], (1, 0))        # (Cin, Cmid1)
        self.w1g = (w1_io.reshape(in_channels, G, self.cin_g)
                    .transpose(1, 0, 2).astype(cd))
        self.s1g = self.s1.reshape(G, 1, self.cin_g)
        self.b1g = self.b1.reshape(G, 1, self.cin_g)
        # conv2 weights per group & tap: (G*9, cin_g, cout_g)
        w2 = self.w2_oihw.reshape(G, self.cout_g, self.cin_g, 3, 3)
        w2 = jnp.transpose(w2, (0, 3, 4, 2, 1))                        # (G,3,3,ci,co)
        self.w2g = w2.reshape(G * 9, self.cin_g, self.cout_g).astype(cd)
        self.s2g = self.s2.reshape(G, 1, self.cout_g)
        self.b2g = self.b2.reshape(G, 1, self.cout_g)
        # conv3 weights per group: (G, Cout, cout_g) used as the trans_b lhs
        w3_oi = self.w3_oihw[:, :, 0, 0]                               # (Cout, Cmid2)
        self.w3g = (w3_oi.reshape(out_channels, G, self.cout_g)
                    .transpose(1, 0, 2).astype(cd))
        self.s3c = self.s3.reshape(out_channels, 1)
        self.b3c = self.b3.reshape(out_channels, 1)

    def __call__(self, x_nchw):
        N, Cin, H, W = x_nchw.shape
        s = self.stride
        Ho = (H + 2 - 3) // s + 1
        Wo = (W + 2 - 3) // s + 1
        HW, M, G = H * W, Ho * Wo, self.cardinality

        kernel = partial(_senet_bottleneck_kernel,
                         H=H, W=W, Ho=Ho, Wo=Wo, stride=s, groups=G,
                         cin_g=self.cin_g, cout_g=self.cout_g,
                         compute_dtype=self.compute_dtype)

        flops = 2 * N * (HW * Cin * self.cmid1
                         + M * 9 * self.cin_g * self.cmid2
                         + M * self.cmid2 * self.out_channels)
        param_bytes = sum(int(a.size) * a.dtype.itemsize for a in
                          (self.w1g, self.s1g, self.b1g, self.w2g, self.s2g,
                           self.b2g, self.w3g, self.s3c, self.b3c))
        bytes_accessed = 4 * (int(x_nchw.size) + N * self.out_channels * M) \
            + param_bytes

        out = pl.pallas_call(
            kernel,
            out_shape=jax.ShapeDtypeStruct((N, self.out_channels, M),
                                           jnp.float32),
            grid=(N,),
            in_specs=[
                pl.BlockSpec((1, Cin, HW), lambda n: (n, 0, 0)),
                _full_spec(self.w1g), _full_spec(self.s1g), _full_spec(self.b1g),
                _full_spec(self.w2g), _full_spec(self.s2g), _full_spec(self.b2g),
                _full_spec(self.w3g), _full_spec(self.s3c), _full_spec(self.b3c),
            ],
            out_specs=pl.BlockSpec((1, self.out_channels, M),
                                   lambda n: (n, 0, 0)),
            scratch_shapes=[
                pltpu.VMEM((H + 2, W + 2, self.cin_g), jnp.float32),
                pltpu.VMEM((M, self.cout_g), jnp.float32),
            ],
            compiler_params=pltpu.CompilerParams(
                dimension_semantics=("parallel",),
                vmem_limit_bytes=64 * 1024 * 1024),
            cost_estimate=pl.CostEstimate(flops=flops, transcendentals=0,
                                          bytes_accessed=bytes_accessed),
        )(x_nchw.reshape(N, Cin, HW), self.w1g, self.s1g, self.b1g,
          self.w2g, self.s2g, self.b2g, self.w3g, self.s3c, self.b3c)

        return out.reshape(N, self.out_channels, Ho, Wo)

    # Pure-JAX reference (eval-mode BN, same compute dtype), for verification.
    def reference(self, x_nchw):
        cd = self.compute_dtype

        def block(x, w_oihw, scale, bias, relu, stride=1, groups=1, pad=0):
            y = lax.conv_general_dilated(
                x.astype(cd), w_oihw.astype(cd), (stride, stride),
                [(pad, pad), (pad, pad)],
                dimension_numbers=('NCHW', 'OIHW', 'NCHW'),
                feature_group_count=groups,
                preferred_element_type=jnp.float32)
            y = y * scale[None, :, None, None] + bias[None, :, None, None]
            return jnp.maximum(y, 0.0) if relu else y

        x = block(x_nchw, self.w1_oihw, self.s1, self.b1, True)
        x = block(x, self.w2_oihw, self.s2, self.b2, True,
                  stride=self.stride, groups=self.cardinality, pad=1)
        x = block(x, self.w3_oihw, self.s3, self.b3, False)
        return x


# --------------------------------------------------------------------------
# Self-test
# --------------------------------------------------------------------------
def _run_config(key, *, in_channels, out_channels, stride, cardinality,
                bottleneck_width, N, H, W, compute_dtype, tol):
    k_x, k_p = jax.random.split(key)
    x = jax.random.normal(k_x, (N, in_channels, H, W), jnp.float32)
    block = SENetBottleneckPallas(in_channels, out_channels, stride,
                                  cardinality, bottleneck_width, k_p,
                                  compute_dtype=compute_dtype)
    out = jax.block_until_ready(jax.jit(lambda v: block(v))(x))
    ref = jax.block_until_ready(block.reference(x))
    Ho = (H - 1) // stride + 1
    Wo = (W - 1) // stride + 1
    assert out.shape == (N, out_channels, Ho, Wo), out.shape
    err = float(jnp.max(jnp.abs(out - ref)))
    assert err < tol, (err, tol)
    return err


if __name__ == "__main__":
    root = jax.random.PRNGKey(0)
    k1, k2 = jax.random.split(root)

    # Config A: f32 compute (tight check). in=16 -> out=32, cardinality=2.
    _run_config(k1, in_channels=16, out_channels=32, stride=1, cardinality=2,
                bottleneck_width=64, N=2, H=16, W=16,
                compute_dtype=jnp.float32, tol=1e-3)

    # Config B: bf16 MXU inputs + f32 accumulation (matched-precision ref).
    _run_config(k2, in_channels=32, out_channels=64, stride=1, cardinality=4,
                bottleneck_width=64, N=2, H=16, W=16,
                compute_dtype=jnp.bfloat16, tol=5e-3)

    print("KERNEL_OK")
</pallas_src>

<mosaic_0001>
module attributes {stable_mosaic.version = 11 : i64} {
  func.func @_senet_bottleneck_kernel(%arg0: i32, %arg1: memref<1x16x256xf32, #tpu.memory_space<vmem>>, %arg2: memref<2x16x4xf32, #tpu.memory_space<vmem>>, %arg3: memref<2x1x4xf32, #tpu.memory_space<vmem>>, %arg4: memref<2x1x4xf32, #tpu.memory_space<vmem>>, %arg5: memref<18x4x8xf32, #tpu.memory_space<vmem>>, %arg6: memref<2x1x8xf32, #tpu.memory_space<vmem>>, %arg7: memref<2x1x8xf32, #tpu.memory_space<vmem>>, %arg8: memref<2x32x8xf32, #tpu.memory_space<vmem>>, %arg9: memref<32x1xf32, #tpu.memory_space<vmem>>, %arg10: memref<32x1xf32, #tpu.memory_space<vmem>>, %arg11: memref<1x32x256xf32, #tpu.memory_space<vmem>>, %arg12: memref<18x18x4xf32, #tpu.memory_space<vmem>>, %arg13: memref<256x8xf32, #tpu.memory_space<vmem>>) attributes {dimension_semantics = [#tpu.dimension_semantics<parallel>], iteration_bounds = array<i64: 2>, scalar_prefetch = 0 : i64, scratch_operands = 2 : i64, tpu.core_type = #tpu.core_type<tc>, window_params = [{transform_indices = @transform_0, window_bounds = array<i64: 1, 16, 256>}, {pipeline_mode = #tpu.pipeline_mode<synchronous>, transform_indices = @transform_1, window_bounds = array<i64: 2, 16, 4>}, {pipeline_mode = #tpu.pipeline_mode<synchronous>, transform_indices = @transform_2, window_bounds = array<i64: 2, 1, 4>}, {pipeline_mode = #tpu.pipeline_mode<synchronous>, transform_indices = @transform_3, window_bounds = array<i64: 2, 1, 4>}, {pipeline_mode = #tpu.pipeline_mode<synchronous>, transform_indices = @transform_4, window_bounds = array<i64: 18, 4, 8>}, {pipeline_mode = #tpu.pipeline_mode<synchronous>, transform_indices = @transform_5, window_bounds = array<i64: 2, 1, 8>}, {pipeline_mode = #tpu.pipeline_mode<synchronous>, transform_indices = @transform_6, window_bounds = array<i64: 2, 1, 8>}, {pipeline_mode = #tpu.pipeline_mode<synchronous>, transform_indices = @transform_7, window_bounds = array<i64: 2, 32, 8>}, {pipeline_mode = #tpu.pipeline_mode<synchronous>, transform_indices = @transform_8, window_bounds = array<i64: 32, 1>}, {pipeline_mode = #tpu.pipeline_mode<synchronous>, transform_indices = @transform_9, window_bounds = array<i64: 32, 1>}, {transform_indices = @transform_10, window_bounds = array<i64: 1, 32, 256>}]} {
    %c0 = arith.constant 0 : index
    %c0_0 = arith.constant 0 : index
    %c0_1 = arith.constant 0 : index
    %0 = vector.load %arg1[%c0, %c0_0, %c0_1] : memref<1x16x256xf32, #tpu.memory_space<vmem>>, vector<1x16x256xf32>
    %1 = vector.shape_cast %0 : vector<1x16x256xf32> to vector<16x256xf32>
    %cst = arith.constant 0.000000e+00 : f32
    %2 = vector.broadcast %cst : f32 to vector<18x18x4xf32>
    %c0_2 = arith.constant 0 : index
    %c0_3 = arith.constant 0 : index
    %c0_4 = arith.constant 0 : index
    %3 = vector.load %arg12[%c0_2, %c0_3, %c0_4] : memref<18x18x4xf32, #tpu.memory_space<vmem>>, vector<18x18x4xf32>
    tpu.vector_store %arg12[%c0_2, %c0_3, %c0_4], %2 {strides = array<i32>} : memref<18x18x4xf32, #tpu.memory_space<vmem>>, vector<18x18x4xf32>,
    %c0_5 = arith.constant 0 : index
    %c0_6 = arith.constant 0 : index
    %c0_7 = arith.constant 0 : index
    %4 = vector.load %arg2[%c0_5, %c0_6, %c0_7] : memref<2x16x4xf32, #tpu.memory_space<vmem>>, vector<1x16x4xf32>
    %5 = vector.shape_cast %4 : vector<1x16x4xf32> to vector<16x4xf32>
    %cst_8 = arith.constant dense<0.000000e+00> : vector<256x4xf32>
    %6 = tpu.matmul %1, %5, %cst_8 {dimension_numbers = #tpu.dot_dimension_numbers<[0], [0], [1], [1], [0, 1, 1, 1], [], []>} : vector<16x256xf32>, vector<16x4xf32>, vector<256x4xf32> -> vector<256x4xf32>
    %c0_9 = arith.constant 0 : index
    %c0_10 = arith.constant 0 : index
    %c0_11 = arith.constant 0 : index
    %7 = vector.load %arg3[%c0_9, %c0_10, %c0_11] : memref<2x1x4xf32, #tpu.memory_space<vmem>>, vector<1x1x4xf32>
    %8 = vector.shape_cast %7 : vector<1x1x4xf32> to vector<1x4xf32>
    %9 = vector.broadcast %8 : vector<1x4xf32> to vector<256x4xf32>
    %10 = arith.mulf %6, %9 : vector<256x4xf32>
    %c0_12 = arith.constant 0 : index
    %c0_13 = arith.constant 0 : index
    %c0_14 = arith.constant 0 : index
    %11 = vector.load %arg4[%c0_12, %c0_13, %c0_14] : memref<2x1x4xf32, #tpu.memory_space<vmem>>, vector<1x1x4xf32>
    %12 = vector.shape_cast %11 : vector<1x1x4xf32> to vector<1x4xf32>
    %13 = vector.broadcast %12 : vector<1x4xf32> to vector<256x4xf32>
    %14 = arith.addf %10, %13 : vector<256x4xf32>
    %cst_15 = arith.constant 0.000000e+00 : f32
    %15 = vector.broadcast %cst_15 : f32 to vector<256x4xf32>
    %16 = arith.maximumf %14, %15 : vector<256x4xf32>
    %17 = vector.shape_cast %16 : vector<256x4xf32> to vector<16x16x4xf32>
    %c1 = arith.constant 1 : index
    %c1_16 = arith.constant 1 : index
    %c0_17 = arith.constant 0 : index
    %18 = vector.load %arg12[%c1, %c1_16, %c0_17] : memref<18x18x4xf32, #tpu.memory_space<vmem>>, vector<16x16x4xf32>
    tpu.vector_store %arg12[%c1, %c1_16, %c0_17], %17 {strides = array<i32>} : memref<18x18x4xf32, #tpu.memory_space<vmem>>, vector<16x16x4xf32>,
    %c0_18 = arith.constant 0 : index
    %c0_19 = arith.constant 0 : index
    %c0_20 = arith.constant 0 : index
    %19 = vector.load %arg12[%c0_18, %c0_19, %c0_20] : memref<18x18x4xf32, #tpu.memory_space<vmem>>, vector<18x18x4xf32>
    %20 = vector.extract_strided_slice %19 {offsets = [0, 0, 0], sizes = [16, 16, 4], strides = [1, 1, 1]} : vector<18x18x4xf32> to vector<16x16x4xf32>
    %21 = vector.shape_cast %20 : vector<16x16x4xf32> to vector<256x4xf32>
    %c0_21 = arith.constant 0 : index
    %c0_22 = arith.constant 0 : index
    %c0_23 = arith.constant 0 : index
    %22 = vector.load %arg5[%c0_21, %c0_22, %c0_23] : memref<18x4x8xf32, #tpu.memory_space<vmem>>, vector<1x4x8xf32>
    %23 = vector.shape_cast %22 : vector<1x4x8xf32> to vector<4x8xf32>
    %cst_24 = arith.constant dense<0.000000e+00> : vector<256x8xf32>
    %24 = tpu.matmul %21, %23, %cst_24 {dimension_numbers = #tpu.dot_dimension_numbers<[1], [0], [0], [1], [0, 0, 1, 1], [], []>} : vector<256x4xf32>, vector<4x8xf32>, vector<256x8xf32> -> vector<256x8xf32>
    %c0_25 = arith.constant 0 : index
    %c0_26 = arith.constant 0 : index
    %25 = vector.load %arg13[%c0_25, %c0_26] : memref<256x8xf32, #tpu.memory_space<vmem>>, vector<256x8xf32>
    tpu.vector_store %arg13[%c0_25, %c0_26], %24 {strides = array<i32>} : memref<256x8xf32, #tpu.memory_space<vmem>>, vector<256x8xf32>,
    %26 = vector.extract_strided_slice %19 {offsets = [0, 1, 0], sizes = [16, 16, 4], strides = [1, 1, 1]} : vector<18x18x4xf32> to vector<16x16x4xf32>
    %27 = vector.shape_cast %26 : vector<16x16x4xf32> to vector<256x4xf32>
    %c1_27 = arith.constant 1 : index
    %c0_28 = arith.constant 0 : index
    %c0_29 = arith.constant 0 : index
    %28 = vector.load %arg5[%c1_27, %c0_28, %c0_29] : memref<18x4x8xf32, #tpu.memory_space<vmem>>, vector<1x4x8xf32>
    %29 = vector.shape_cast %28 : vector<1x4x8xf32> to vector<4x8xf32>
    %cst_30 = arith.constant dense<0.000000e+00> : vector<256x8xf32>
    %30 = tpu.matmul %27, %29, %cst_30 {dimension_numbers = #tpu.dot_dimension_numbers<[1], [0], [0], [1], [0, 0, 1, 1], [], []>} : vector<256x4xf32>, vector<4x8xf32>, vector<256x8xf32> -> vector<256x8xf32>
    %c0_31 = arith.constant 0 : index
    %c0_32 = arith.constant 0 : index
    %31 = vector.load %arg13[%c0_31, %c0_32] : memref<256x8xf32, #tpu.memory_space<vmem>>, vector<256x8xf32>
    %32 = arith.addf %31, %30 : vector<256x8xf32>
    %c0_33 = arith.constant 0 : index
    %c0_34 = arith.constant 0 : index
    %33 = vector.load %arg13[%c0_33, %c0_34] : memref<256x8xf32, #tpu.memory_space<vmem>>, vector<256x8xf32>
    tpu.vector_store %arg13[%c0_33, %c0_34], %32 {strides = array<i32>} : memref<256x8xf32, #tpu.memory_space<vmem>>, vector<256x8xf32>,
    %34 = vector.extract_strided_slice %19 {offsets = [0, 2, 0], sizes = [16, 16, 4], strides = [1, 1, 1]} : vector<18x18x4xf32> to vector<16x16x4xf32>
    %35 = vector.shape_cast %34 : vector<16x16x4xf32> to vector<256x4xf32>
    %c2 = arith.constant 2 : index
    %c0_35 = arith.constant 0 : index
    %c0_36 = arith.constant 0 : index
    %36 = vector.load %arg5[%c2, %c0_35, %c0_36] : memref<18x4x8xf32, #tpu.memory_space<vmem>>, vector<1x4x8xf32>
    %37 = vector.shape_cast %36 : vector<1x4x8xf32> to vector<4x8xf32>
    %cst_37 = arith.constant dense<0.000000e+00> : vector<256x8xf32>
    %38 = tpu.matmul %35, %37, %cst_37 {dimension_numbers = #tpu.dot_dimension_numbers<[1], [0], [0], [1], [0, 0, 1, 1], [], []>} : vector<256x4xf32>, vector<4x8xf32>, vector<256x8xf32> -> vector<256x8xf32>
    %c0_38 = arith.constant 0 : index
    %c0_39 = arith.constant 0 : index
    %39 = vector.load %arg13[%c0_38, %c0_39] : memref<256x8xf32, #tpu.memory_space<vmem>>, vector<256x8xf32>
    %40 = arith.addf %39, %38 : vector<256x8xf32>
    %c0_40 = arith.constant 0 : index
    %c0_41 = arith.constant 0 : index
    %41 = vector.load %arg13[%c0_40, %c0_41] : memref<256x8xf32, #tpu.memory_space<vmem>>, vector<256x8xf32>
    tpu.vector_store %arg13[%c0_40, %c0_41], %40 {strides = array<i32>} : memref<256x8xf32, #tpu.memory_space<vmem>>, vector<256x8xf32>,
    %42 = vector.extract_strided_slice %19 {offsets = [1, 0, 0], sizes = [16, 16, 4], strides = [1, 1, 1]} : vector<18x18x4xf32> to vector<16x16x4xf32>
    %43 = vector.shape_cast %42 : vector<16x16x4xf32> to vector<256x4xf32>
    %c3 = arith.constant 3 : index
    %c0_42 = arith.constant 0 : index
    %c0_43 = arith.constant 0 : index
    %44 = vector.load %arg5[%c3, %c0_42, %c0_43] : memref<18x4x8xf32, #tpu.memory_space<vmem>>, vector<1x4x8xf32>
    %45 = vector.shape_cast %44 : vector<1x4x8xf32> to vector<4x8xf32>
    %cst_44 = arith.constant dense<0.000000e+00> : vector<256x8xf32>
    %46 = tpu.matmul %43, %45, %cst_44 {dimension_numbers = #tpu.dot_dimension_numbers<[1], [0], [0], [1], [0, 0, 1, 1], [], []>} : vector<256x4xf32>, vector<4x8xf32>, vector<256x8xf32> -> vector<256x8xf32>
    %c0_45 = arith.constant 0 : index
    %c0_46 = arith.constant 0 : index
    %47 = vector.load %arg13[%c0_45, %c0_46] : memref<256x8xf32, #tpu.memory_space<vmem>>, vector<256x8xf32>
    %48 = arith.addf %47, %46 : vector<256x8xf32>
    %c0_47 = arith.constant 0 : index
    %c0_48 = arith.constant 0 : index
    %49 = vector.load %arg13[%c0_47, %c0_48] : memref<256x8xf32, #tpu.memory_space<vmem>>, vector<256x8xf32>
    tpu.vector_store %arg13[%c0_47, %c0_48], %48 {strides = array<i32>} : memref<256x8xf32, #tpu.memory_space<vmem>>, vector<256x8xf32>,
    %50 = vector.extract_strided_slice %19 {offsets = [1, 1, 0], sizes = [16, 16, 4], strides = [1, 1, 1]} : vector<18x18x4xf32> to vector<16x16x4xf32>
    %51 = vector.shape_cast %50 : vector<16x16x4xf32> to vector<256x4xf32>
    %c4 = arith.constant 4 : index
    %c0_49 = arith.constant 0 : index
    %c0_50 = arith.constant 0 : index
    %52 = vector.load %arg5[%c4, %c0_49, %c0_50] : memref<18x4x8xf32, #tpu.memory_space<vmem>>, vector<1x4x8xf32>
    %53 = vector.shape_cast %52 : vector<1x4x8xf32> to vector<4x8xf32>
    %cst_51 = arith.constant dense<0.000000e+00> : vector<256x8xf32>
    %54 = tpu.matmul %51, %53, %cst_51 {dimension_numbers = #tpu.dot_dimension_numbers<[1], [0], [0], [1], [0, 0, 1, 1], [], []>} : vector<256x4xf32>, vector<4x8xf32>, vector<256x8xf32> -> vector<256x8xf32>
    %c0_52 = arith.constant 0 : index
    %c0_53 = arith.constant 0 : index
    %55 = vector.load %arg13[%c0_52, %c0_53] : memref<256x8xf32, #tpu.memory_space<vmem>>, vector<256x8xf32>
    %56 = arith.addf %55, %54 : vector<256x8xf32>
    %c0_54 = arith.constant 0 : index
    %c0_55 = arith.constant 0 : index
    %57 = vector.load %arg13[%c0_54, %c0_55] : memref<256x8xf32, #tpu.memory_space<vmem>>, vector<256x8xf32>
    tpu.vector_store %arg13[%c0_54, %c0_55], %56 {strides = array<i32>} : memref<256x8xf32, #tpu.memory_space<vmem>>, vector<256x8xf32>,
    %58 = vector.extract_strided_slice %19 {offsets = [1, 2, 0], sizes = [16, 16, 4], strides = [1, 1, 1]} : vector<18x18x4xf32> to vector<16x16x4xf32>
    %59 = vector.shape_cast %58 : vector<16x16x4xf32> to vector<256x4xf32>
    %c5 = arith.constant 5 : index
    %c0_56 = arith.constant 0 : index
    %c0_57 = arith.constant 0 : index
    %60 = vector.load %arg5[%c5, %c0_56, %c0_57] : memref<18x4x8xf32, #tpu.memory_space<vmem>>, vector<1x4x8xf32>
    %61 = vector.shape_cast %60 : vector<1x4x8xf32> to vector<4x8xf32>
    %cst_58 = arith.constant dense<0.000000e+00> : vector<256x8xf32>
    %62 = tpu.matmul %59, %61, %cst_58 {dimension_numbers = #tpu.dot_dimension_numbers<[1], [0], [0], [1], [0, 0, 1, 1], [], []>} : vector<256x4xf32>, vector<4x8xf32>, vector<256x8xf32> -> vector<256x8xf32>
    %c0_59 = arith.constant 0 : index
    %c0_60 = arith.constant 0 : index
    %63 = vector.load %arg13[%c0_59, %c0_60] : memref<256x8xf32, #tpu.memory_space<vmem>>, vector<256x8xf32>
    %64 = arith.addf %63, %62 : vector<256x8xf32>
    %c0_61 = arith.constant 0 : index
    %c0_62 = arith.constant 0 : index
    %65 = vector.load %arg13[%c0_61, %c0_62] : memref<256x8xf32, #tpu.memory_space<vmem>>, vector<256x8xf32>
    tpu.vector_store %arg13[%c0_61, %c0_62], %64 {strides = array<i32>} : memref<256x8xf32, #tpu.memory_space<vmem>>, vector<256x8xf32>,
    %66 = vector.extract_strided_slice %19 {offsets = [2, 0, 0], sizes = [16, 16, 4], strides = [1, 1, 1]} : vector<18x18x4xf32> to vector<16x16x4xf32>
    %67 = vector.shape_cast %66 : vector<16x16x4xf32> to vector<256x4xf32>
    %c6 = arith.constant 6 : index
    %c0_63 = arith.constant 0 : index
    %c0_64 = arith.constant 0 : index
    %68 = vector.load %arg5[%c6, %c0_63, %c0_64] : memref<18x4x8xf32, #tpu.memory_space<vmem>>, vector<1x4x8xf32>
    %69 = vector.shape_cast %68 : vector<1x4x8xf32> to vector<4x8xf32>
    %cst_65 = arith.constant dense<0.000000e+00> : vector<256x8xf32>
    %70 = tpu.matmul %67, %69, %cst_65 {dimension_numbers = #tpu.dot_dimension_numbers<[1], [0], [0], [1], [0, 0, 1, 1], [], []>} : vector<256x4xf32>, vector<4x8xf32>, vector<256x8xf32> -> vector<256x8xf32>
    %c0_66 = arith.constant 0 : index
    %c0_67 = arith.constant 0 : index
    %71 = vector.load %arg13[%c0_66, %c0_67] : memref<256x8xf32, #tpu.memory_space<vmem>>, vector<256x8xf32>
    %72 = arith.addf %71, %70 : vector<256x8xf32>
    %c0_68 = arith.constant 0 : index
    %c0_69 = arith.constant 0 : index
    %73 = vector.load %arg13[%c0_68, %c0_69] : memref<256x8xf32, #tpu.memory_space<vmem>>, vector<256x8xf32>
    tpu.vector_store %arg13[%c0_68, %c0_69], %72 {strides = array<i32>} : memref<256x8xf32, #tpu.memory_space<vmem>>, vector<256x8xf32>,
    %74 = vector.extract_strided_slice %19 {offsets = [2, 1, 0], sizes = [16, 16, 4], strides = [1, 1, 1]} : vector<18x18x4xf32> to vector<16x16x4xf32>
    %75 = vector.shape_cast %74 : vector<16x16x4xf32> to vector<256x4xf32>
    %c7 = arith.constant 7 : index
    %c0_70 = arith.constant 0 : index
    %c0_71 = arith.constant 0 : index
    %76 = vector.load %arg5[%c7, %c0_70, %c0_71] : memref<18x4x8xf32, #tpu.memory_space<vmem>>, vector<1x4x8xf32>
    %77 = vector.shape_cast %76 : vector<1x4x8xf32> to vector<4x8xf32>
    %cst_72 = arith.constant dense<0.000000e+00> : vector<256x8xf32>
    %78 = tpu.matmul %75, %77, %cst_72 {dimension_numbers = #tpu.dot_dimension_numbers<[1], [0], [0], [1], [0, 0, 1, 1], [], []>} : vector<256x4xf32>, vector<4x8xf32>, vector<256x8xf32> -> vector<256x8xf32>
    %c0_73 = arith.constant 0 : index
    %c0_74 = arith.constant 0 : index
    %79 = vector.load %arg13[%c0_73, %c0_74] : memref<256x8xf32, #tpu.memory_space<vmem>>, vector<256x8xf32>
    %80 = arith.addf %79, %78 : vector<256x8xf32>
    %c0_75 = arith.constant 0 : index
    %c0_76 = arith.constant 0 : index
    %81 = vector.load %arg13[%c0_75, %c0_76] : memref<256x8xf32, #tpu.memory_space<vmem>>, vector<256x8xf32>
    tpu.vector_store %arg13[%c0_75, %c0_76], %80 {strides = array<i32>} : memref<256x8xf32, #tpu.memory_space<vmem>>, vector<256x8xf32>,
    %82 = vector.extract_strided_slice %19 {offsets = [2, 2, 0], sizes = [16, 16, 4], strides = [1, 1, 1]} : vector<18x18x4xf32> to vector<16x16x4xf32>
    %83 = vector.shape_cast %82 : vector<16x16x4xf32> to vector<256x4xf32>
    %c8 = arith.constant 8 : index
    %c0_77 = arith.constant 0 : index
    %c0_78 = arith.constant 0 : index
    %84 = vector.load %arg5[%c8, %c0_77, %c0_78] : memref<18x4x8xf32, #tpu.memory_space<vmem>>, vector<1x4x8xf32>
    %85 = vector.shape_cast %84 : vector<1x4x8xf32> to vector<4x8xf32>
    %cst_79 = arith.constant dense<0.000000e+00> : vector<256x8xf32>
    %86 = tpu.matmul %83, %85, %cst_79 {dimension_numbers = #tpu.dot_dimension_numbers<[1], [0], [0], [1], [0, 0, 1, 1], [], []>} : vector<256x4xf32>, vector<4x8xf32>, vector<256x8xf32> -> vector<256x8xf32>
    %c0_80 = arith.constant 0 : index
    %c0_81 = arith.constant 0 : index
    %87 = vector.load %arg13[%c0_80, %c0_81] : memref<256x8xf32, #tpu.memory_space<vmem>>, vector<256x8xf32>
    %88 = arith.addf %87, %86 : vector<256x8xf32>
    %c0_82 = arith.constant 0 : index
    %c0_83 = arith.constant 0 : index
    %89 = vector.load %arg13[%c0_82, %c0_83] : memref<256x8xf32, #tpu.memory_space<vmem>>, vector<256x8xf32>
    tpu.vector_store %arg13[%c0_82, %c0_83], %88 {strides = array<i32>} : memref<256x8xf32, #tpu.memory_space<vmem>>, vector<256x8xf32>,
    %c0_84 = arith.constant 0 : index
    %c0_85 = arith.constant 0 : index
    %90 = vector.load %arg13[%c0_84, %c0_85] : memref<256x8xf32, #tpu.memory_space<vmem>>, vector<256x8xf32>
    %c0_86 = arith.constant 0 : index
    %c0_87 = arith.constant 0 : index
    %c0_88 = arith.constant 0 : index
    %91 = vector.load %arg6[%c0_86, %c0_87, %c0_88] : memref<2x1x8xf32, #tpu.memory_space<vmem>>, vector<1x1x8xf32>
    %92 = vector.shape_cast %91 : vector<1x1x8xf32> to vector<1x8xf32>
    %93 = vector.broadcast %92 : vector<1x8xf32> to vector<256x8xf32>
    %94 = arith.mulf %90, %93 : vector<256x8xf32>
    %c0_89 = arith.constant 0 : index
    %c0_90 = arith.constant 0 : index
    %c0_91 = arith.constant 0 : index
    %95 = vector.load %arg7[%c0_89, %c0_90, %c0_91] : memref<2x1x8xf32, #tpu.memory_space<vmem>>, vector<1x1x8xf32>
    %96 = vector.shape_cast %95 : vector<1x1x8xf32> to vector<1x8xf32>
    %97 = vector.broadcast %96 : vector<1x8xf32> to vector<256x8xf32>
    %98 = arith.addf %94, %97 : vector<256x8xf32>
    %cst_92 = arith.constant 0.000000e+00 : f32
    %99 = vector.broadcast %cst_92 : f32 to vector<256x8xf32>
    %100 = arith.maximumf %98, %99 : vector<256x8xf32>
    %c0_93 = arith.constant 0 : index
    %c0_94 = arith.constant 0 : index
    %c0_95 = arith.constant 0 : index
    %101 = vector.load %arg8[%c0_93, %c0_94, %c0_95] : memref<2x32x8xf32, #tpu.memory_space<vmem>>, vector<1x32x8xf32>
    %102 = vector.shape_cast %101 : vector<1x32x8xf32> to vector<32x8xf32>
    %cst_96 = arith.constant dense<0.000000e+00> : vector<32x256xf32>
    %103 = tpu.matmul %102, %100, %cst_96 {dimension_numbers = #tpu.dot_dimension_numbers<[1], [1], [0], [0], [0, 0, 1, 0], [], []>} : vector<32x8xf32>, vector<256x8xf32>, vector<32x256xf32> -> vector<32x256xf32>
    %c0_97 = arith.constant 0 : index
    %c0_98 = arith.constant 0 : index
    %c0_99 = arith.constant 0 : index
    %104 = vector.load %arg11[%c0_97, %c0_98, %c0_99] : memref<1x32x256xf32, #tpu.memory_space<vmem>>, vector<1x32x256xf32>
    %105 = vector.shape_cast %104 : vector<1x32x256xf32> to vector<32x256xf32>
    %106 = vector.shape_cast %103 : vector<32x256xf32> to vector<1x32x256xf32>
    tpu.vector_store %arg11[%c0_97, %c0_98, %c0_99], %106 {strides = array<i32>} : memref<1x32x256xf32, #tpu.memory_space<vmem>>, vector<1x32x256xf32>,
    %c1_100 = arith.constant 1 : index
    %c0_101 = arith.constant 0 : index
    %c0_102 = arith.constant 0 : index
    %107 = vector.load %arg2[%c1_100, %c0_101, %c0_102] : memref<2x16x4xf32, #tpu.memory_space<vmem>>, vector<1x16x4xf32>
    %108 = vector.shape_cast %107 : vector<1x16x4xf32> to vector<16x4xf32>
    %cst_103 = arith.constant dense<0.000000e+00> : vector<256x4xf32>
    %109 = tpu.matmul %1, %108, %cst_103 {dimension_numbers = #tpu.dot_dimension_numbers<[0], [0], [1], [1], [0, 1, 1, 1], [], []>} : vector<16x256xf32>, vector<16x4xf32>, vector<256x4xf32> -> vector<256x4xf32>
    %c1_104 = arith.constant 1 : index
    %c0_105 = arith.constant 0 : index
    %c0_106 = arith.constant 0 : index
    %110 = vector.load %arg3[%c1_104, %c0_105, %c0_106] : memref<2x1x4xf32, #tpu.memory_space<vmem>>, vector<1x1x4xf32>
    %111 = vector.shape_cast %110 : vector<1x1x4xf32> to vector<1x4xf32>
    %112 = vector.broadcast %111 : vector<1x4xf32> to vector<256x4xf32>
    %113 = arith.mulf %109, %112 : vector<256x4xf32>
    %c1_107 = arith.constant 1 : index
    %c0_108 = arith.constant 0 : index
    %c0_109 = arith.constant 0 : index
    %114 = vector.load %arg4[%c1_107, %c0_108, %c0_109] : memref<2x1x4xf32, #tpu.memory_space<vmem>>, vector<1x1x4xf32>
    %115 = vector.shape_cast %114 : vector<1x1x4xf32> to vector<1x4xf32>
    %116 = vector.broadcast %115 : vector<1x4xf32> to vector<256x4xf32>
    %117 = arith.addf %113, %116 : vector<256x4xf32>
    %cst_110 = arith.constant 0.000000e+00 : f32
    %118 = vector.broadcast %cst_110 : f32 to vector<256x4xf32>
    %119 = arith.maximumf %117, %118 : vector<256x4xf32>
    %120 = vector.shape_cast %119 : vector<256x4xf32> to vector<16x16x4xf32>
    %c1_111 = arith.constant 1 : index
    %c1_112 = arith.constant 1 : index
    %c0_113 = arith.constant 0 : index
    %121 = vector.load %arg12[%c1_111, %c1_112, %c0_113] : memref<18x18x4xf32, #tpu.memory_space<vmem>>, vector<16x16x4xf32>
    tpu.vector_store %arg12[%c1_111, %c1_112, %c0_113], %120 {strides = array<i32>} : memref<18x18x4xf32, #tpu.memory_space<vmem>>, vector<16x16x4xf32>,
    %c0_114 = arith.constant 0 : index
    %c0_115 = arith.constant 0 : index
    %c0_116 = arith.constant 0 : index
    %122 = vector.load %arg12[%c0_114, %c0_115, %c0_116] : memref<18x18x4xf32, #tpu.memory_space<vmem>>, vector<18x18x4xf32>
    %123 = vector.extract_strided_slice %122 {offsets = [0, 0, 0], sizes = [16, 16, 4], strides = [1, 1, 1]} : vector<18x18x4xf32> to vector<16x16x4xf32>
    %124 = vector.shape_cast %123 : vector<16x16x4xf32> to vector<256x4xf32>
    %c9 = arith.constant 9 : index
    %c0_117 = arith.constant 0 : index
    %c0_118 = arith.constant 0 : index
    %125 = vector.load %arg5[%c9, %c0_117, %c0_118] : memref<18x4x8xf32, #tpu.memory_space<vmem>>, vector<1x4x8xf32>
    %126 = vector.shape_cast %125 : vector<1x4x8xf32> to vector<4x8xf32>
    %cst_119 = arith.constant dense<0.000000e+00> : vector<256x8xf32>
    %127 = tpu.matmul %124, %126, %cst_119 {dimension_numbers = #tpu.dot_dimension_numbers<[1], [0], [0], [1], [0, 0, 1, 1], [], []>} : vector<256x4xf32>, vector<4x8xf32>, vector<256x8xf32> -> vector<256x8xf32>
    %c0_120 = arith.constant 0 : index
    %c0_121 = arith.constant 0 : index
    %128 = vector.load %arg13[%c0_120, %c0_121] : memref<256x8xf32, #tpu.memory_space<vmem>>, vector<256x8xf32>
    tpu.vector_store %arg13[%c0_120, %c0_121], %127 {strides = array<i32>} : memref<256x8xf32, #tpu.memory_space<vmem>>, vector<256x8xf32>,
    %129 = vector.extract_strided_slice %122 {offsets = [0, 1, 0], sizes = [16, 16, 4], strides = [1, 1, 1]} : vector<18x18x4xf32> to vector<16x16x4xf32>
    %130 = vector.shape_cast %129 : vector<16x16x4xf32> to vector<256x4xf32>
    %c10 = arith.constant 10 : index
    %c0_122 = arith.constant 0 : index
    %c0_123 = arith.constant 0 : index
    %131 = vector.load %arg5[%c10, %c0_122, %c0_123] : memref<18x4x8xf32, #tpu.memory_space<vmem>>, vector<1x4x8xf32>
    %132 = vector.shape_cast %131 : vector<1x4x8xf32> to vector<4x8xf32>
    %cst_124 = arith.constant dense<0.000000e+00> : vector<256x8xf32>
    %133 = tpu.matmul %130, %132, %cst_124 {dimension_numbers = #tpu.dot_dimension_numbers<[1], [0], [0], [1], [0, 0, 1, 1], [], []>} : vector<256x4xf32>, vector<4x8xf32>, vector<256x8xf32> -> vector<256x8xf32>
    %c0_125 = arith.constant 0 : index
    %c0_126 = arith.constant 0 : index
    %134 = vector.load %arg13[%c0_125, %c0_126] : memref<256x8xf32, #tpu.memory_space<vmem>>, vector<256x8xf32>
    %135 = arith.addf %134, %133 : vector<256x8xf32>
    %c0_127 = arith.constant 0 : index
    %c0_128 = arith.constant 0 : index
    %136 = vector.load %arg13[%c0_127, %c0_128] : memref<256x8xf32, #tpu.memory_space<vmem>>, vector<256x8xf32>
    tpu.vector_store %arg13[%c0_127, %c0_128], %135 {strides = array<i32>} : memref<256x8xf32, #tpu.memory_space<vmem>>, vector<256x8xf32>,
    %137 = vector.extract_strided_slice %122 {offsets = [0, 2, 0], sizes = [16, 16, 4], strides = [1, 1, 1]} : vector<18x18x4xf32> to vector<16x16x4xf32>
    %138 = vector.shape_cast %137 : vector<16x16x4xf32> to vector<256x4xf32>
    %c11 = arith.constant 11 : index
    %c0_129 = arith.constant 0 : index
    %c0_130 = arith.constant 0 : index
    %139 = vector.load %arg5[%c11, %c0_129, %c0_130] : memref<18x4x8xf32, #tpu.memory_space<vmem>>, vector<1x4x8xf32>
    %140 = vector.shape_cast %139 : vector<1x4x8xf32> to vector<4x8xf32>
    %cst_131 = arith.constant dense<0.000000e+00> : vector<256x8xf32>
    %141 = tpu.matmul %138, %140, %cst_131 {dimension_numbers = #tpu.dot_dimension_numbers<[1], [0], [0], [1], [0, 0, 1, 1], [], []>} : vector<256x4xf32>, vector<4x8xf32>, vector<256x8xf32> -> vector<256x8xf32>
    %c0_132 = arith.constant 0 : index
    %c0_133 = arith.constant 0 : index
    %142 = vector.load %arg13[%c0_132, %c0_133] : memref<256x8xf32, #tpu.memory_space<vmem>>, vector<256x8xf32>
    %143 = arith.addf %142, %141 : vector<256x8xf32>
    %c0_134 = arith.constant 0 : index
    %c0_135 = arith.constant 0 : index
    %144 = vector.load %arg13[%c0_134, %c0_135] : memref<256x8xf32, #tpu.memory_space<vmem>>, vector<256x8xf32>
    tpu.vector_store %arg13[%c0_134, %c0_135], %143 {strides = array<i32>} : memref<256x8xf32, #tpu.memory_space<vmem>>, vector<256x8xf32>,
    %145 = vector.extract_strided_slice %122 {offsets = [1, 0, 0], sizes = [16, 16, 4], strides = [1, 1, 1]} : vector<18x18x4xf32> to vector<16x16x4xf32>
    %146 = vector.shape_cast %145 : vector<16x16x4xf32> to vector<256x4xf32>
    %c12 = arith.constant 12 : index
    %c0_136 = arith.constant 0 : index
    %c0_137 = arith.constant 0 : index
    %147 = vector.load %arg5[%c12, %c0_136, %c0_137] : memref<18x4x8xf32, #tpu.memory_space<vmem>>, vector<1x4x8xf32>
    %148 = vector.shape_cast %147 : vector<1x4x8xf32> to vector<4x8xf32>
    %cst_138 = arith.constant dense<0.000000e+00> : vector<256x8xf32>
    %149 = tpu.matmul %146, %148, %cst_138 {dimension_numbers = #tpu.dot_dimension_numbers<[1], [0], [0], [1], [0, 0, 1, 1], [], []>} : vector<256x4xf32>, vector<4x8xf32>, vector<256x8xf32> -> vector<256x8xf32>
    %c0_139 = arith.constant 0 : index
    %c0_140 = arith.constant 0 : index
    %150 = vector.load %arg13[%c0_139, %c0_140] : memref<256x8xf32, #tpu.memory_space<vmem>>, vector<256x8xf32>
    %151 = arith.addf %150, %149 : vector<256x8xf32>
    %c0_141 = arith.constant 0 : index
    %c0_142 = arith.constant 0 : index
    %152 = vector.load %arg13[%c0_141, %c0_142] : memref<256x8xf32, #tpu.memory_space<vmem>>, vector<256x8xf32>
    tpu.vector_store %arg13[%c0_141, %c0_142], %151 {strides = array<i32>} : memref<256x8xf32, #tpu.memory_space<vmem>>, vector<256x8xf32>,
    %153 = vector.extract_strided_slice %122 {offsets = [1, 1, 0], sizes = [16, 16, 4], strides = [1, 1, 1]} : vector<18x18x4xf32> to vector<16x16x4xf32>
    %154 = vector.shape_cast %153 : vector<16x16x4xf32> to vector<256x4xf32>
    %c13 = arith.constant 13 : index
    %c0_143 = arith.constant 0 : index
    %c0_144 = arith.constant 0 : index
    %155 = vector.load %arg5[%c13, %c0_143, %c0_144] : memref<18x4x8xf32, #tpu.memory_space<vmem>>, vector<1x4x8xf32>
    %156 = vector.shape_cast %155 : vector<1x4x8xf32> to vector<4x8xf32>
    %cst_145 = arith.constant dense<0.000000e+00> : vector<256x8xf32>
    %157 = tpu.matmul %154, %156, %cst_145 {dimension_numbers = #tpu.dot_dimension_numbers<[1], [0], [0], [1], [0, 0, 1, 1], [], []>} : vector<256x4xf32>, vector<4x8xf32>, vector<256x8xf32> -> vector<256x8xf32>
    %c0_146 = arith.constant 0 : index
    %c0_147 = arith.constant 0 : index
    %158 = vector.load %arg13[%c0_146, %c0_147] : memref<256x8xf32, #tpu.memory_space<vmem>>, vector<256x8xf32>
    %159 = arith.addf %158, %157 : vector<256x8xf32>
    %c0_148 = arith.constant 0 : index
    %c0_149 = arith.constant 0 : index
    %160 = vector.load %arg13[%c0_148, %c0_149] : memref<256x8xf32, #tpu.memory_space<vmem>>, vector<256x8xf32>
    tpu.vector_store %arg13[%c0_148, %c0_149], %159 {strides = array<i32>} : memref<256x8xf32, #tpu.memory_space<vmem>>, vector<256x8xf32>,
    %161 = vector.extract_strided_slice %122 {offsets = [1, 2, 0], sizes = [16, 16, 4], strides = [1, 1, 1]} : vector<18x18x4xf32> to vector<16x16x4xf32>
    %162 = vector.shape_cast %161 : vector<16x16x4xf32> to vector<256x4xf32>
    %c14 = arith.constant 14 : index
    %c0_150 = arith.constant 0 : index
    %c0_151 = arith.constant 0 : index
    %163 = vector.load %arg5[%c14, %c0_150, %c0_151] : memref<18x4x8xf32, #tpu.memory_space<vmem>>, vector<1x4x8xf32>
    %164 = vector.shape_cast %163 : vector<1x4x8xf32> to vector<4x8xf32>
    %cst_152 = arith.constant dense<0.000000e+00> : vector<256x8xf32>
    %165 = tpu.matmul %162, %164, %cst_152 {dimension_numbers = #tpu.dot_dimension_numbers<[1], [0], [0], [1], [0, 0, 1, 1], [], []>} : vector<256x4xf32>, vector<4x8xf32>, vector<256x8xf32> -> vector<256x8xf32>
    %c0_153 = arith.constant 0 : index
    %c0_154 = arith.constant 0 : index
    %166 = vector.load %arg13[%c0_153, %c0_154] : memref<256x8xf32, #tpu.memory_space<vmem>>, vector<256x8xf32>
    %167 = arith.addf %166, %165 : vector<256x8xf32>
    %c0_155 = arith.constant 0 : index
    %c0_156 = arith.constant 0 : index
    %168 = vector.load %arg13[%c0_155, %c0_156] : memref<256x8xf32, #tpu.memory_space<vmem>>, vector<256x8xf32>
    tpu.vector_store %arg13[%c0_155, %c0_156], %167 {strides = array<i32>} : memref<256x8xf32, #tpu.memory_space<vmem>>, vector<256x8xf32>,
    %169 = vector.extract_strided_slice %122 {offsets = [2, 0, 0], sizes = [16, 16, 4], strides = [1, 1, 1]} : vector<18x18x4xf32> to vector<16x16x4xf32>
    %170 = vector.shape_cast %169 : vector<16x16x4xf32> to vector<256x4xf32>
    %c15 = arith.constant 15 : index
    %c0_157 = arith.constant 0 : index
    %c0_158 = arith.constant 0 : index
    %171 = vector.load %arg5[%c15, %c0_157, %c0_158] : memref<18x4x8xf32, #tpu.memory_space<vmem>>, vector<1x4x8xf32>
    %172 = vector.shape_cast %171 : vector<1x4x8xf32> to vector<4x8xf32>
    %cst_159 = arith.constant dense<0.000000e+00> : vector<256x8xf32>
    %173 = tpu.matmul %170, %172, %cst_159 {dimension_numbers = #tpu.dot_dimension_numbers<[1], [0], [0], [1], [0, 0, 1, 1], [], []>} : vector<256x4xf32>, vector<4x8xf32>, vector<256x8xf32> -> vector<256x8xf32>
    %c0_160 = arith.constant 0 : index
    %c0_161 = arith.constant 0 : index
    %174 = vector.load %arg13[%c0_160, %c0_161] : memref<256x8xf32, #tpu.memory_space<vmem>>, vector<256x8xf32>
    %175 = arith.addf %174, %173 : vector<256x8xf32>
    %c0_162 = arith.constant 0 : index
    %c0_163 = arith.constant 0 : index
    %176 = vector.load %arg13[%c0_162, %c0_163] : memref<256x8xf32, #tpu.memory_space<vmem>>, vector<256x8xf32>
    tpu.vector_store %arg13[%c0_162, %c0_163], %175 {strides = array<i32>} : memref<256x8xf32, #tpu.memory_space<vmem>>, vector<256x8xf32>,
    %177 = vector.extract_strided_slice %122 {offsets = [2, 1, 0], sizes = [16, 16, 4], strides = [1, 1, 1]} : vector<18x18x4xf32> to vector<16x16x4xf32>
    %178 = vector.shape_cast %177 : vector<16x16x4xf32> to vector<256x4xf32>
    %c16 = arith.constant 16 : index
    %c0_164 = arith.constant 0 : index
    %c0_165 = arith.constant 0 : index
    %179 = vector.load %arg5[%c16, %c0_164, %c0_165] : memref<18x4x8xf32, #tpu.memory_space<vmem>>, vector<1x4x8xf32>
    %180 = vector.shape_cast %179 : vector<1x4x8xf32> to vector<4x8xf32>
    %cst_166 = arith.constant dense<0.000000e+00> : vector<256x8xf32>
    %181 = tpu.matmul %178, %180, %cst_166 {dimension_numbers = #tpu.dot_dimension_numbers<[1], [0], [0], [1], [0, 0, 1, 1], [], []>} : vector<256x4xf32>, vector<4x8xf32>, vector<256x8xf32> -> vector<256x8xf32>
    %c0_167 = arith.constant 0 : index
    %c0_168 = arith.constant 0 : index
    %182 = vector.load %arg13[%c0_167, %c0_168] : memref<256x8xf32, #tpu.memory_space<vmem>>, vector<256x8xf32>
    %183 = arith.addf %182, %181 : vector<256x8xf32>
    %c0_169 = arith.constant 0 : index
    %c0_170 = arith.constant 0 : index
    %184 = vector.load %arg13[%c0_169, %c0_170] : memref<256x8xf32, #tpu.memory_space<vmem>>, vector<256x8xf32>
    tpu.vector_store %arg13[%c0_169, %c0_170], %183 {strides = array<i32>} : memref<256x8xf32, #tpu.memory_space<vmem>>, vector<256x8xf32>,
    %185 = vector.extract_strided_slice %122 {offsets = [2, 2, 0], sizes = [16, 16, 4], strides = [1, 1, 1]} : vector<18x18x4xf32> to vector<16x16x4xf32>
    %186 = vector.shape_cast %185 : vector<16x16x4xf32> to vector<256x4xf32>
    %c17 = arith.constant 17 : index
    %c0_171 = arith.constant 0 : index
    %c0_172 = arith.constant 0 : index
    %187 = vector.load %arg5[%c17, %c0_171, %c0_172] : memref<18x4x8xf32, #tpu.memory_space<vmem>>, vector<1x4x8xf32>
    %188 = vector.shape_cast %187 : vector<1x4x8xf32> to vector<4x8xf32>
    %cst_173 = arith.constant dense<0.000000e+00> : vector<256x8xf32>
    %189 = tpu.matmul %186, %188, %cst_173 {dimension_numbers = #tpu.dot_dimension_numbers<[1], [0], [0], [1], [0, 0, 1, 1], [], []>} : vector<256x4xf32>, vector<4x8xf32>, vector<256x8xf32> -> vector<256x8xf32>
    %c0_174 = arith.constant 0 : index
    %c0_175 = arith.constant 0 : index
    %190 = vector.load %arg13[%c0_174, %c0_175] : memref<256x8xf32, #tpu.memory_space<vmem>>, vector<256x8xf32>
    %191 = arith.addf %190, %189 : vector<256x8xf32>
    %c0_176 = arith.constant 0 : index
    %c0_177 = arith.constant 0 : index
    %192 = vector.load %arg13[%c0_176, %c0_177] : memref<256x8xf32, #tpu.memory_space<vmem>>, vector<256x8xf32>
    tpu.vector_store %arg13[%c0_176, %c0_177], %191 {strides = array<i32>} : memref<256x8xf32, #tpu.memory_space<vmem>>, vector<256x8xf32>,
    %c0_178 = arith.constant 0 : index
    %c0_179 = arith.constant 0 : index
    %193 = vector.load %arg13[%c0_178, %c0_179] : memref<256x8xf32, #tpu.memory_space<vmem>>, vector<256x8xf32>
    %c1_180 = arith.constant 1 : index
    %c0_181 = arith.constant 0 : index
    %c0_182 = arith.constant 0 : index
    %194 = vector.load %arg6[%c1_180, %c0_181, %c0_182] : memref<2x1x8xf32, #tpu.memory_space<vmem>>, vector<1x1x8xf32>
    %195 = vector.shape_cast %194 : vector<1x1x8xf32> to vector<1x8xf32>
    %196 = vector.broadcast %195 : vector<1x8xf32> to vector<256x8xf32>
    %197 = arith.mulf %193, %196 : vector<256x8xf32>
    %c1_183 = arith.constant 1 : index
    %c0_184 = arith.constant 0 : index
    %c0_185 = arith.constant 0 : index
    %198 = vector.load %arg7[%c1_183, %c0_184, %c0_185] : memref<2x1x8xf32, #tpu.memory_space<vmem>>, vector<1x1x8xf32>
    %199 = vector.shape_cast %198 : vector<1x1x8xf32> to vector<1x8xf32>
    %200 = vector.broadcast %199 : vector<1x8xf32> to vector<256x8xf32>
    %201 = arith.addf %197, %200 : vector<256x8xf32>
    %cst_186 = arith.constant 0.000000e+00 : f32
    %202 = vector.broadcast %cst_186 : f32 to vector<256x8xf32>
    %203 = arith.maximumf %201, %202 : vector<256x8xf32>
    %c1_187 = arith.constant 1 : index
    %c0_188 = arith.constant 0 : index
    %c0_189 = arith.constant 0 : index
    %204 = vector.load %arg8[%c1_187, %c0_188, %c0_189] : memref<2x32x8xf32, #tpu.memory_space<vmem>>, vector<1x32x8xf32>
    %205 = vector.shape_cast %204 : vector<1x32x8xf32> to vector<32x8xf32>
    %cst_190 = arith.constant dense<0.000000e+00> : vector<32x256xf32>
    %206 = tpu.matmul %205, %203, %cst_190 {dimension_numbers = #tpu.dot_dimension_numbers<[1], [1], [0], [0], [0, 0, 1, 0], [], []>} : vector<32x8xf32>, vector<256x8xf32>, vector<32x256xf32> -> vector<32x256xf32>
    %c0_191 = arith.constant 0 : index
    %c0_192 = arith.constant 0 : index
    %c0_193 = arith.constant 0 : index
    %207 = vector.load %arg11[%c0_191, %c0_192, %c0_193] : memref<1x32x256xf32, #tpu.memory_space<vmem>>, vector<1x32x256xf32>
    %208 = vector.shape_cast %207 : vector<1x32x256xf32> to vector<32x256xf32>
    %209 = arith.addf %208, %206 : vector<32x256xf32>
    %c0_194 = arith.constant 0 : index
    %c0_195 = arith.constant 0 : index
    %c0_196 = arith.constant 0 : index
    %210 = vector.load %arg11[%c0_194, %c0_195, %c0_196] : memref<1x32x256xf32, #tpu.memory_space<vmem>>, vector<1x32x256xf32>
    %211 = vector.shape_cast %210 : vector<1x32x256xf32> to vector<32x256xf32>
    %212 = vector.shape_cast %209 : vector<32x256xf32> to vector<1x32x256xf32>
    tpu.vector_store %arg11[%c0_194, %c0_195, %c0_196], %212 {strides = array<i32>} : memref<1x32x256xf32, #tpu.memory_space<vmem>>, vector<1x32x256xf32>,
    %c0_197 = arith.constant 0 : index
    %c0_198 = arith.constant 0 : index
    %c0_199 = arith.constant 0 : index
    %213 = vector.load %arg11[%c0_197, %c0_198, %c0_199] : memref<1x32x256xf32, #tpu.memory_space<vmem>>, vector<1x32x256xf32>
    %214 = vector.shape_cast %213 : vector<1x32x256xf32> to vector<32x256xf32>
    %c0_200 = arith.constant 0 : index
    %c0_201 = arith.constant 0 : index
    %215 = vector.load %arg9[%c0_200, %c0_201] : memref<32x1xf32, #tpu.memory_space<vmem>>, vector<32x1xf32>
    %216 = vector.broadcast %215 : vector<32x1xf32> to vector<32x256xf32>
    %217 = arith.mulf %214, %216 : vector<32x256xf32>
    %c0_202 = arith.constant 0 : index
    %c0_203 = arith.constant 0 : index
    %218 = vector.load %arg10[%c0_202, %c0_203] : memref<32x1xf32, #tpu.memory_space<vmem>>, vector<32x1xf32>
    %219 = vector.broadcast %218 : vector<32x1xf32> to vector<32x256xf32>
    %220 = arith.addf %217, %219 : vector<32x256xf32>
    %c0_204 = arith.constant 0 : index
    %c0_205 = arith.constant 0 : index
    %c0_206 = arith.constant 0 : index
    %221 = vector.load %arg11[%c0_204, %c0_205, %c0_206] : memref<1x32x256xf32, #tpu.memory_space<vmem>>, vector<1x32x256xf32>
    %222 = vector.shape_cast %221 : vector<1x32x256xf32> to vector<32x256xf32>
    %223 = vector.shape_cast %220 : vector<32x256xf32> to vector<1x32x256xf32>
    tpu.vector_store %arg11[%c0_204, %c0_205, %c0_206], %223 {strides = array<i32>} : memref<1x32x256xf32, #tpu.memory_space<vmem>>, vector<1x32x256xf32>,
    return
  }
  func.func @transform_0(%arg0: i32) -> (i32, i32, i32) {
    %c0_i32 = arith.constant 0 : i32
    %c0_i32_0 = arith.constant 0 : i32
    %c0_i32_1 = arith.constant 0 : i32
    return %arg0, %c0_i32, %c0_i32_0 : i32, i32, i32
  }
  func.func @transform_1(%arg0: i32) -> (i32, i32, i32) {
    %c0_i32 = arith.constant 0 : i32
    %c0_i32_0 = arith.constant 0 : i32
    %c0_i32_1 = arith.constant 0 : i32
    %c0_i32_2 = arith.constant 0 : i32
    return %c0_i32, %c0_i32_0, %c0_i32_1 : i32, i32, i32
  }
  func.func @transform_2(%arg0: i32) -> (i32, i32, i32) {
    %c0_i32 = arith.constant 0 : i32
    %c0_i32_0 = arith.constant 0 : i32
    %c0_i32_1 = arith.constant 0 : i32
    %c0_i32_2 = arith.constant 0 : i32
    return %c0_i32, %c0_i32_0, %c0_i32_1 : i32, i32, i32
  }
  func.func @transform_3(%arg0: i32) -> (i32, i32, i32) {
    %c0_i32 = arith.constant 0 : i32
    %c0_i32_0 = arith.constant 0 : i32
    %c0_i32_1 = arith.constant 0 : i32
    %c0_i32_2 = arith.constant 0 : i32
    return %c0_i32, %c0_i32_0, %c0_i32_1 : i32, i32, i32
  }
  func.func @transform_4(%arg0: i32) -> (i32, i32, i32) {
    %c0_i32 = arith.constant 0 : i32
    %c0_i32_0 = arith.constant 0 : i32
    %c0_i32_1 = arith.constant 0 : i32
    %c0_i32_2 = arith.constant 0 : i32
    return %c0_i32, %c0_i32_0, %c0_i32_1 : i32, i32, i32
  }
  func.func @transform_5(%arg0: i32) -> (i32, i32, i32) {
    %c0_i32 = arith.constant 0 : i32
    %c0_i32_0 = arith.constant 0 : i32
    %c0_i32_1 = arith.constant 0 : i32
    %c0_i32_2 = arith.constant 0 : i32
    return %c0_i32, %c0_i32_0, %c0_i32_1 : i32, i32, i32
  }
  func.func @transform_6(%arg0: i32) -> (i32, i32, i32) {
    %c0_i32 = arith.constant 0 : i32
    %c0_i32_0 = arith.constant 0 : i32
    %c0_i32_1 = arith.constant 0 : i32
    %c0_i32_2 = arith.constant 0 : i32
    return %c0_i32, %c0_i32_0, %c0_i32_1 : i32, i32, i32
  }
  func.func @transform_7(%arg0: i32) -> (i32, i32, i32) {
    %c0_i32 = arith.constant 0 : i32
    %c0_i32_0 = arith.constant 0 : i32
    %c0_i32_1 = arith.constant 0 : i32
    %c0_i32_2 = arith.constant 0 : i32
    return %c0_i32, %c0_i32_0, %c0_i32_1 : i32, i32, i32
  }
  func.func @transform_8(%arg0: i32) -> (i32, i32) {
    %c0_i32 = arith.constant 0 : i32
    %c0_i32_0 = arith.constant 0 : i32
    %c0_i32_1 = arith.constant 0 : i32
    return %c0_i32, %c0_i32_0 : i32, i32
  }
  func.func @transform_9(%arg0: i32) -> (i32, i32) {
    %c0_i32 = arith.constant 0 : i32
    %c0_i32_0 = arith.constant 0 : i32
    %c0_i32_1 = arith.constant 0 : i32
    return %c0_i32, %c0_i32_0 : i32, i32
  }
  func.func @transform_10(%arg0: i32) -> (i32, i32, i32) {
    %c0_i32 = arith.constant 0 : i32
    %c0_i32_0 = arith.constant 0 : i32
    %c0_i32_1 = arith.constant 0 : i32
    return %arg0, %c0_i32, %c0_i32_0 : i32, i32, i32
  }
}

</mosaic_0001>

<llo_original>
// kernel: _lambda_.1
$region0: #{_lambda_.1}
  #allocation0 [shape = 'u32[]', space=smem, size = 0x4, offset = 0x4, fixed_abs, tag = 'smem constant byte address 0x4 - core index']
  #allocation1 [shape = 'u32[144,128]{1,0:T(1,128)}', space=vmem, size = 0x12000, scoped, tag = 'internal scratch']
  #allocation2 [shape = 'f32[18,18,4]{2,1,0:T(8,128)}', space=vmem, size = 0x36000, scoped, tag = 'scratch operand']
  #allocation3 [shape = 'f32[256,8]{1,0:T(8,128)}', space=vmem, size = 0x20000, scoped, tag = 'scratch operand']
  %s0 = inlined_call_operand.vmem [shape: f32[2,16,256], index: 0, kind: input, shape index: {}]
  %s1 = inlined_call_operand.vmem [shape: f32[2,16,4], index: 1, kind: input, shape index: {}]
  %s2 = inlined_call_operand.vmem [shape: f32[2,1,4], index: 2, kind: input, shape index: {}]
  %s3 = inlined_call_operand.vmem [shape: f32[2,1,4], index: 3, kind: input, shape index: {}]
  %s4 = inlined_call_operand.vmem [shape: f32[18,4,8], index: 4, kind: input, shape index: {}]
  %s5 = inlined_call_operand.vmem [shape: f32[2,1,8], index: 5, kind: input, shape index: {}]
  %s6 = inlined_call_operand.vmem [shape: f32[2,1,8], index: 6, kind: input, shape index: {}]
  %s7 = inlined_call_operand.vmem [shape: f32[2,32,8], index: 7, kind: input, shape index: {}]
  %s8 = inlined_call_operand.vmem [shape: f32[32,1], index: 8, kind: input, shape index: {}]
  %s9 = inlined_call_operand.vmem [shape: f32[32,1], index: 9, kind: input, shape index: {}]
  %s10 = inlined_call_operand.vmem [shape: f32[2,32,256], index: 10, kind: output, shape index: {}]
  %s11 = sld [smem:[#allocation0]]
  $region73: #{_lambda_.1} parent=0
    _
  %s13 = ssub.s32 1, %s11
  %s14 = scalar_select 0, %s13, %s11
  loop: start=0, step=1, limit=4
  $region2: #{_lambda_.1} parent=0 // loop_pre_header
    _
  $region3: #{_lambda_.1} parent=0 // loop_header
    %s16 = sphi 0, %s20
    %p17 = scmp.ge.s32.totalorder %s16, 4
    %s26 = sphi 0, %s28
    %s29 = sphi 0, %s26
    %s30 = sphi 0, %s29
    %s46 = sphi 0, %s30
    %s50 = sphi 0, %s50
    %s52 = sphi 0, %s50
    %s53 = sphi 0, %s52
    %s67 = sphi 0, %s53
    %s71 = sphi 0, %s71
    %s73 = sphi 0, %s71
    %s74 = sphi 0, %s73
    %s88 = sphi 0, %s74
    %s92 = sphi 0, %s92
    %s94 = sphi 0, %s92
    %s95 = sphi 0, %s94
    %s109 = sphi 0, %s95
    %s113 = sphi 0, %s113
    %s115 = sphi 0, %s113
    %s116 = sphi 0, %s115
    %s130 = sphi 0, %s116
    %s134 = sphi 0, %s134
    %s136 = sphi 0, %s134
    %s137 = sphi 0, %s136
    %s151 = sphi 0, %s137
    %s155 = sphi 0, %s155
    %s157 = sphi 0, %s155
    %s158 = sphi 0, %s157
    %s172 = sphi 0, %s158
    %s176 = sphi 0, %s176
    %s178 = sphi 0, %s176
    %s179 = sphi 0, %s178
    %s193 = sphi 0, %s179
    %s197 = sphi 0, %s197
    %s199 = sphi 0, %s197
    %s200 = sphi 0, %s199
    %s214 = sphi 0, %s200
    %s218 = sphi 0, %s218
    %s220 = sphi 0, %s218
    %s221 = sphi 0, %s220
    %s235 = sphi 0, %s221
    %s241 = sphi 0, %s243
    %s244 = sphi 0, %s241
    %s245 = sphi 0, %s244
    %s261 = sphi 0, %s245
  $region4: #{_lambda_.1} parent=0 // loop_header_branch
    %19 = sbr.rel (%p17) target = $region8
  $region5: #{_lambda_.1} parent=0 // loop_body
    %s21 = ssub.s32 %s16, 1
    %s22 = ssub.s32 %s16, 2
    %s23 = sadd.s32 %s16, 1
    %s24 = ssub.s32 %s16, %s23
    %p25 = scmp.eq.s32.totalorder %s24, 0
    %s27 = sadd.s32 %s26, 1
    %s28 = scalar_select %p25, %s26, %s27
    %p31 = pneg %p25
    %p32 = scmp.eq.s32.totalorder %s16, 1
    %p33 = por %p31, %p32
    %p34 = scmp.ne.s32.totalorder %s26, %s29
    %p35 = scmp.eq.s32.totalorder %s16, 0
    %p36 = por %p34, %p35
    %p37 = scmp.ne.s32.totalorder %s26, %s29
    %p38 = scmp.eq.s32.totalorder %s21, 1
    %p39 = por %p37, %p38
    %p40 = scmp.ne.s32.totalorder %s29, %s30
    %p41 = scmp.eq.s32.totalorder %s21, 0
    %p42 = por %p40, %p41
    %p43 = scmp.ne.s32.totalorder %s29, %s30
    %p44 = scmp.eq.s32.totalorder %s22, 1
    %p45 = por %p43, %p44
    %p47 = scmp.ne.s32.totalorder %s30, %s46
    %p48 = scmp.eq.s32.totalorder %s22, 0
    %p49 = por %p47, %p48
    %s51 = sadd.s32 %s50, 1
    %p54 = scmp.eq.s32.totalorder %s16, 1
    %p55 = scmp.ne.s32.totalorder %s50, %s52
    %p56 = scmp.eq.s32.totalorder %s16, 0
    %p57 = por %p55, %p56
    %p58 = scmp.ne.s32.totalorder %s50, %s52
    %p59 = scmp.eq.s32.totalorder %s21, 1
    %p60 = por %p58, %p59
    %p61 = scmp.ne.s32.totalorder %s52, %s53
    %p62 = scmp.eq.s32.totalorder %s21, 0
    %p63 = por %p61, %p62
    %p64 = scmp.ne.s32.totalorder %s52, %s53
    %p65 = scmp.eq.s32.totalorder %s22, 1
    %p66 = por %p64, %p65
    %p68 = scmp.ne.s32.totalorder %s53, %s67
    %p69 = scmp.eq.s32.totalorder %s22, 0
    %p70 = por %p68, %p69
    %s72 = sadd.s32 %s71, 1
    %p75 = scmp.eq.s32.totalorder %s16, 1
    %p76 = scmp.ne.s32.totalorder %s71, %s73
    %p77 = scmp.eq.s32.totalorder %s16, 0
    %p78 = por %p76, %p77
    %p79 = scmp.ne.s32.totalorder %s71, %s73
    %p80 = scmp.eq.s32.totalorder %s21, 1
    %p81 = por %p79, %p80
    %p82 = scmp.ne.s32.totalorder %s73, %s74
    %p83 = scmp.eq.s32.totalorder %s21, 0
    %p84 = por %p82, %p83
    %p85 = scmp.ne.s32.totalorder %s73, %s74
    %p86 = scmp.eq.s32.totalorder %s22, 1
    %p87 = por %p85, %p86
    %p89 = scmp.ne.s32.totalorder %s74, %s88
    %p90 = scmp.eq.s32.totalorder %s22, 0
    %p91 = por %p89, %p90
    %s93 = sadd.s32 %s92, 1
    %p96 = scmp.eq.s32.totalorder %s16, 1
    %p97 = scmp.ne.s32.totalorder %s92, %s94
    %p98 = scmp.eq.s32.totalorder %s16, 0
    %p99 = por %p97, %p98
    %p100 = scmp.ne.s32.totalorder %s92, %s94
    %p101 = scmp.eq.s32.totalorder %s21, 1
    %p102 = por %p100, %p101
    %p103 = scmp.ne.s32.totalorder %s94, %s95
    %p104 = scmp.eq.s32.totalorder %s21, 0
    %p105 = por %p103, %p104
    %p106 = scmp.ne.s32.totalorder %s94, %s95
    %p107 = scmp.eq.s32.totalorder %s22, 1
    %p108 = por %p106, %p107
    %p110 = scmp.ne.s32.totalorder %s95, %s109
    %p111 = scmp.eq.s32.totalorder %s22, 0
    %p112 = por %p110, %p111
    %s114 = sadd.s32 %s113, 1
    %p117 = scmp.eq.s32.totalorder %s16, 1
    %p118 = scmp.ne.s32.totalorder %s113, %s115
    %p119 = scmp.eq.s32.totalorder %s16, 0
    %p120 = por %p118, %p119
    %p121 = scmp.ne.s32.totalorder %s113, %s115
    %p122 = scmp.eq.s32.totalorder %s21, 1
    %p123 = por %p121, %p122
    %p124 = scmp.ne.s32.totalorder %s115, %s116
    %p125 = scmp.eq.s32.totalorder %s21, 0
    %p126 = por %p124, %p125
    %p127 = scmp.ne.s32.totalorder %s115, %s116
    %p128 = scmp.eq.s32.totalorder %s22, 1
    %p129 = por %p127, %p128
    %p131 = scmp.ne.s32.totalorder %s116, %s130
    %p132 = scmp.eq.s32.totalorder %s22, 0
    %p133 = por %p131, %p132
    %s135 = sadd.s32 %s134, 1
    %p138 = scmp.eq.s32.totalorder %s16, 1
    %p139 = scmp.ne.s32.totalorder %s134, %s136
    %p140 = scmp.eq.s32.totalorder %s16, 0
    %p141 = por %p139, %p140
    %p142 = scmp.ne.s32.totalorder %s134, %s136
    %p143 = scmp.eq.s32.totalorder %s21, 1
    %p144 = por %p142, %p143
    %p145 = scmp.ne.s32.totalorder %s136, %s137
    %p146 = scmp.eq.s32.totalorder %s21, 0
    %p147 = por %p145, %p146
    %p148 = scmp.ne.s32.totalorder %s136, %s137
    %p149 = scmp.eq.s32.totalorder %s22, 1
    %p150 = por %p148, %p149
    %p152 = scmp.ne.s32.totalorder %s137, %s151
    %p153 = scmp.eq.s32.totalorder %s22, 0
    %p154 = por %p152, %p153
    %s156 = sadd.s32 %s155, 1
    %p159 = scmp.eq.s32.totalorder %s16, 1
    %p160 = scmp.ne.s32.totalorder %s155, %s157
    %p161 = scmp.eq.s32.totalorder %s16, 0
    %p162 = por %p160, %p161
    %p163 = scmp.ne.s32.totalorder %s155, %s157
    %p164 = scmp.eq.s32.totalorder %s21, 1
    %p165 = por %p163, %p164
    %p166 = scmp.ne.s32.totalorder %s157, %s158
    %p167 = scmp.eq.s32.totalorder %s21, 0
    %p168 = por %p166, %p167
    %p169 = scmp.ne.s32.totalorder %s157, %s158
    %p170 = scmp.eq.s32.totalorder %s22, 1
    %p171 = por %p169, %p170
    %p173 = scmp.ne.s32.totalorder %s158, %s172
    %p174 = scmp.eq.s32.totalorder %s22, 0
    %p175 = por %p173, %p174
    %s177 = sadd.s32 %s176, 1
    %p180 = scmp.eq.s32.totalorder %s16, 1
    %p181 = scmp.ne.s32.totalorder %s176, %s178
    %p182 = scmp.eq.s32.totalorder %s16, 0
    %p183 = por %p181, %p182
    %p184 = scmp.ne.s32.totalorder %s176, %s178
    %p185 = scmp.eq.s32.totalorder %s21, 1
    %p186 = por %p184, %p185
    %p187 = scmp.ne.s32.totalorder %s178, %s179
    %p188 = scmp.eq.s32.totalorder %s21, 0
    %p189 = por %p187, %p188
    %p190 = scmp.ne.s32.totalorder %s178, %s179
    %p191 = scmp.eq.s32.totalorder %s22, 1
    %p192 = por %p190, %p191
    %p194 = scmp.ne.s32.totalorder %s179, %s193
    %p195 = scmp.eq.s32.totalorder %s22, 0
    %p196 = por %p194, %p195
    %s198 = sadd.s32 %s197, 1
    %p201 = scmp.eq.s32.totalorder %s16, 1
    %p202 = scmp.ne.s32.totalorder %s197, %s199
    %p203 = scmp.eq.s32.totalorder %s16, 0
    %p204 = por %p202, %p203
    %p205 = scmp.ne.s32.totalorder %s197, %s199
    %p206 = scmp.eq.s32.totalorder %s21, 1
    %p207 = por %p205, %p206
    %p208 = scmp.ne.s32.totalorder %s199, %s200
    %p209 = scmp.eq.s32.totalorder %s21, 0
    %p210 = por %p208, %p209
    %p211 = scmp.ne.s32.totalorder %s199, %s200
    %p212 = scmp.eq.s32.totalorder %s22, 1
    %p213 = por %p211, %p212
    %p215 = scmp.ne.s32.totalorder %s200, %s214
    %p216 = scmp.eq.s32.totalorder %s22, 0
    %p217 = por %p215, %p216
    %s219 = sadd.s32 %s218, 1
    %p222 = scmp.eq.s32.totalorder %s16, 1
    %p223 = scmp.ne.s32.totalorder %s218, %s220
    %p224 = scmp.eq.s32.totalorder %s16, 0
    %p225 = por %p223, %p224
    %p226 = scmp.ne.s32.totalorder %s218, %s220
    %p227 = scmp.eq.s32.totalorder %s21, 1
    %p228 = por %p226, %p227
    %p229 = scmp.ne.s32.totalorder %s220, %s221
    %p230 = scmp.eq.s32.totalorder %s21, 0
    %p231 = por %p229, %p230
    %p232 = scmp.ne.s32.totalorder %s220, %s221
    %p233 = scmp.eq.s32.totalorder %s22, 1
    %p234 = por %p232, %p233
    %p236 = scmp.ne.s32.totalorder %s221, %s235
    %p237 = scmp.eq.s32.totalorder %s22, 0
    %p238 = por %p236, %p237
    %s239 = ssub.s32 %s16, %s23
    %p240 = scmp.eq.s32.totalorder %s239, 0
    %s242 = sadd.s32 %s241, 1
    %s243 = scalar_select %p240, %s241, %s242
    %p246 = pneg %p240
    %p247 = scmp.eq.s32.totalorder %s16, 1
    %p248 = por %p246, %p247
    %p249 = scmp.ne.s32.totalorder %s241, %s244
    %p250 = scmp.eq.s32.totalorder %s16, 0
    %p251 = por %p249, %p250
    %p252 = scmp.ne.s32.totalorder %s241, %s244
    %p253 = scmp.eq.s32.totalorder %s21, 1
    %p254 = por %p252, %p253
    %p255 = scmp.ne.s32.totalorder %s244, %s245
    %p256 = scmp.eq.s32.totalorder %s21, 0
    %p257 = por %p255, %p256
    %p258 = scmp.ne.s32.totalorder %s244, %s245
    %p259 = scmp.eq.s32.totalorder %s22, 1
    %p260 = por %p258, %p259
    %p262 = scmp.ne.s32.totalorder %s245, %s261
    %p263 = scmp.eq.s32.totalorder %s22, 0
    %p264 = por %p262, %p263
    %p265 = scmp.le.s32.totalorder 1, %s16
    %p266 = scmp.lt.s32.totalorder %s16, 3
    %p267 = pnand %p265, %p266
    %p268 = pneg %p267
    // Predicated region
    $region9: #{_lambda_.1} parent=5 // pred_check
      _
    $region10: #{_lambda_.1} parent=5 // pred_check_branch
      %270 = sbr.rel (%p267) target = $region12
    $region11: #{_lambda_.1} parent=5 // pred_region
      %s271 = ssub.s32 %s16, 1
      // Predicated region
      $region13: #{_lambda_.1} parent=11 // pred_check
        %p272 = pneg %p63
      $region14: #{_lambda_.1} parent=11 // pred_check_branch
        %274 = sbr.rel (%p272) target = $region16
      $region15: #{_lambda_.1} parent=11 // pred_region
        _
      $region16: #{_lambda_.1} parent=11 // pred_fallthru
        _
      // Predicated region
      $region17: #{_lambda_.1} parent=11 // pred_check
        %p275 = pneg %p84
      $region18: #{_lambda_.1} parent=11 // pred_check_branch
        %277 = sbr.rel (%p275) target = $region20
      $region19: #{_lambda_.1} parent=11 // pred_region
        _
      $region20: #{_lambda_.1} parent=11 // pred_fallthru
        _
      // Predicated region
      $region21: #{_lambda_.1} parent=11 // pred_check
        %p278 = pneg %p105
      $region22: #{_lambda_.1} parent=11 // pred_check_branch
        %280 = sbr.rel (%p278) target = $region24
      $region23: #{_lambda_.1} parent=11 // pred_region
        _
      $region24: #{_lambda_.1} parent=11 // pred_fallthru
        _
      // Predicated region
      $region25: #{_lambda_.1} parent=11 // pred_check
        %p281 = pneg %p126
      $region26: #{_lambda_.1} parent=11 // pred_check_branch
        %283 = sbr.rel (%p281) target = $region28
      $region27: #{_lambda_.1} parent=11 // pred_region
        _
      $region28: #{_lambda_.1} parent=11 // pred_fallthru
        _
      // Predicated region
      $region29: #{_lambda_.1} parent=11 // pred_check
        %p284 = pneg %p147
      $region30: #{_lambda_.1} parent=11 // pred_check_branch
        %286 = sbr.rel (%p284) target = $region32
      $region31: #{_lambda_.1} parent=11 // pred_region
        _
      $region32: #{_lambda_.1} parent=11 // pred_fallthru
        _
      // Predicated region
      $region33: #{_lambda_.1} parent=11 // pred_check
        %p287 = pneg %p168
      $region34: #{_lambda_.1} parent=11 // pred_check_branch
        %289 = sbr.rel (%p287) target = $region36
      $region35: #{_lambda_.1} parent=11 // pred_region
        _
      $region36: #{_lambda_.1} parent=11 // pred_fallthru
        _
      // Predicated region
      $region37: #{_lambda_.1} parent=11 // pred_check
        %p290 = pneg %p189
      $region38: #{_lambda_.1} parent=11 // pred_check_branch
        %292 = sbr.rel (%p290) target = $region40
      $region39: #{_lambda_.1} parent=11 // pred_region
        _
      $region40: #{_lambda_.1} parent=11 // pred_fallthru
        _
      // Predicated region
      $region41: #{_lambda_.1} parent=11 // pred_check
        %p293 = pneg %p210
      $region42: #{_lambda_.1} parent=11 // pred_check_branch
        %295 = sbr.rel (%p293) target = $region44
      $region43: #{_lambda_.1} parent=11 // pred_region
        _
      $region44: #{_lambda_.1} parent=11 // pred_fallthru
        _
      // Predicated region
      $region45: #{_lambda_.1} parent=11 // pred_check
        %p296 = pneg %p231
      $region46: #{_lambda_.1} parent=11 // pred_check_branch
        %298 = sbr.rel (%p296) target = $region48
      $region47: #{_lambda_.1} parent=11 // pred_region
        _
      $region48: #{_lambda_.1} parent=11 // pred_fallthru
        _
    $region12: #{_lambda_.1} parent=5 // pred_fallthru
      _
    %p299 = scmp.lt.s32.totalorder %s16, 2
    // Predicated region
    $region49: #{_lambda_.1} parent=5 // pred_check
      %p300 = pneg %p299
    $region50: #{_lambda_.1} parent=5 // pred_check_branch
      %302 = sbr.rel (%p300) target = $region52
    $region51: #{_lambda_.1} parent=5 // pred_region
      // Predicated region
      $region53: #{_lambda_.1} parent=51 // pred_check
        %p303 = pneg %p36
      $region54: #{_lambda_.1} parent=51 // pred_check_branch
        %305 = sbr.rel (%p303) target = $region56
      $region55: #{_lambda_.1} parent=51 // pred_region
        %p306 = scmp.lt.s32.totalorder %s16, 1
        %s307 = scalar_select %p306, %s16, 1
        %s308 = smul.addr %s307, 4
        %s309 = smul.addr %s308, 8
        %s310 = scalar_lea.vmem %s0, %s309
      $region56: #{_lambda_.1} parent=51 // pred_fallthru
        _
    $region52: #{_lambda_.1} parent=5 // pred_fallthru
      _
    %p311 = scmp.le.s32.totalorder 1, %s16
    %p312 = scmp.lt.s32.totalorder %s16, 3
    %p313 = pnand %p311, %p312
    %p314 = pneg %p313
    // Predicated region
    $region57: #{_lambda_.1} parent=5 // pred_check
      _
    $region58: #{_lambda_.1} parent=5 // pred_check_branch
      %316 = sbr.rel (%p313) target = $region60
    $region59: #{_lambda_.1} parent=5 // pred_region
      %s317 = ssub.s32 %s16, 1
      %p318 = scmp.lt.s32.totalorder %s21, 1
      %s319 = scalar_select %p318, %s21, 1
      %s320 = smul.addr %s319, 4
      %s321 = smul.addr %s320, 8
      %s322 = scalar_lea.vmem %s0, %s321
      %p323 = pneg %p42
      %p324 = pneg %p39
      %p325 = pneg %p63
      %p326 = pneg %p60
      %p327 = pneg %p84
      %p328 = pneg %p81
      %p329 = pneg %p105
      %p330 = pneg %p102
      %p331 = pneg %p126
      %p332 = pneg %p123
      %p333 = pneg %p147
      %p334 = pneg %p144
      %p335 = pneg %p168
      %p336 = pneg %p165
      %p337 = pneg %p189
      %p338 = pneg %p186
      %p339 = pneg %p210
      %p340 = pneg %p207
      %p341 = pneg %p231
      %p342 = pneg %p228
      %p343 = pneg %p257
      %p344 = pneg %p254
      %p345 = scmp.lt.s32.totalorder %s21, 1
      %s346 = scalar_select %p345, %s21, 1
      %s347 = smul.addr %s346, 8
      %s348 = smul.addr %s347, 8
      %s349 = scalar_lea.vmem %s10, %s348
      %p350 = scmp.lt.s32.totalorder %s21, 1
      %s351 = scalar_select %p350, %s21, 1
      %s352 = smul.addr %s351, 4
      %s353 = smul.addr %s352, 8
      %s354 = scalar_lea.vmem %s0, %s353
      %p355 = scmp.lt.s32.totalorder %s21, 1
      %s356 = scalar_select %p355, %s21, 1
      %s357 = smul.addr %s356, 8
      %s358 = smul.addr %s357, 8
      %s359 = scalar_lea.vmem %s10, %s358
      %v360 = vld [vmem:[%s354] sm:$0xff]
      %v361 = vld [vmem:[%s354 + $0x8] sm:$0xff]
      %v362 = vld [vmem:[%s354 + $0x10] sm:$0xff]
      %v363 = vld [vmem:[%s354 + $0x18] sm:$0xff]
      %vm364 = vcmask 31744
      %365 = vst.msk [vmem:[#allocation2] sm:$0xff] %vm364, 0.0
      %366 = vst.msk [vmem:[#allocation2 + $0x8] sm:$0xff] %vm364, 0.0
      %vm367 = vcmask 25600
      %368 = vst.msk [vmem:[#allocation2 + $0x10] sm:$0x3] %vm367, 0.0
      %369 = vst.msk [vmem:[#allocation2 + $0x18] sm:$0xff] %vm364, 0.0
      %370 = vst.msk [vmem:[#allocation2 + $0x20] sm:$0xff] %vm364, 0.0
      %371 = vst.msk [vmem:[#allocation2 + $0x28] sm:$0x3] %vm367, 0.0
      %372 = vst.msk [vmem:[#allocation2 + $0x30] sm:$0xff] %vm364, 0.0
      %373 = vst.msk [vmem:[#allocation2 + $0x38] sm:$0xff] %vm364, 0.0
      %374 = vst.msk [vmem:[#allocation2 + $0x40] sm:$0x3] %vm367, 0.0
      %375 = vst.msk [vmem:[#allocation2 + $0x48] sm:$0xff] %vm364, 0.0
      %376 = vst.msk [vmem:[#allocation2 + $0x50] sm:$0xff] %vm364, 0.0
      %377 = vst.msk [vmem:[#allocation2 + $0x58] sm:$0x3] %vm367, 0.0
      %378 = vst.msk [vmem:[#allocation2 + $0x60] sm:$0xff] %vm364, 0.0
      %379 = vst.msk [vmem:[#allocation2 + $0x68] sm:$0xff] %vm364, 0.0
      %380 = vst.msk [vmem:[#allocation2 + $0x70] sm:$0x3] %vm367, 0.0
      %381 = vst.msk [vmem:[#allocation2 + $0x78] sm:$0xff] %vm364, 0.0
      %382 = vst.msk [vmem:[#allocation2 + $0x80] sm:$0xff] %vm364, 0.0
      %383 = vst.msk [vmem:[#allocation2 + $0x88] sm:$0x3] %vm367, 0.0
      %384 = vst.msk [vmem:[#allocation2 + $0x90] sm:$0xff] %vm364, 0.0
      %385 = vst.msk [vmem:[#allocation2 + $0x98] sm:$0xff] %vm364, 0.0
      %386 = vst.msk [vmem:[#allocation2 + $0xa0] sm:$0x3] %vm367, 0.0
      %387 = vst.msk [vmem:[#allocation2 + $0xa8] sm:$0xff] %vm364, 0.0
      %388 = vst.msk [vmem:[#allocation2 + $0xb0] sm:$0xff] %vm364, 0.0
      %389 = vst.msk [vmem:[#allocation2 + $0xb8] sm:$0x3] %vm367, 0.0
      %390 = vst.msk [vmem:[#allocation2 + $0xc0] sm:$0xff] %vm364, 0.0
      %391 = vst.msk [vmem:[#allocation2 + $0xc8] sm:$0xff] %vm364, 0.0
      %392 = vst.msk [vmem:[#allocation2 + $0xd0] sm:$0x3] %vm367, 0.0
      %393 = vst.msk [vmem:[#allocation2 + $0xd8] sm:$0xff] %vm364, 0.0
      %394 = vst.msk [vmem:[#allocation2 + $0xe0] sm:$0xff] %vm364, 0.0
      %395 = vst.msk [vmem:[#allocation2 + $0xe8] sm:$0x3] %vm367, 0.0
      %396 = vst.msk [vmem:[#allocation2 + $0xf0] sm:$0xff] %vm364, 0.0
      %397 = vst.msk [vmem:[#allocation2 + $0xf8] sm:$0xff] %vm364, 0.0
      %398 = vst.msk [vmem:[#allocation2 + $0x100] sm:$0x3] %vm367, 0.0
      %399 = vst.msk [vmem:[#allocation2 + $0x108] sm:$0xff] %vm364, 0.0
      %400 = vst.msk [vmem:[#allocation2 + $0x110] sm:$0xff] %vm364, 0.0
      %401 = vst.msk [vmem:[#allocation2 + $0x118] sm:$0x3] %vm367, 0.0
      %402 = vst.msk [vmem:[#allocation2 + $0x120] sm:$0xff] %vm364, 0.0
      %403 = vst.msk [vmem:[#allocation2 + $0x128] sm:$0xff] %vm364, 0.0
      %404 = vst.msk [vmem:[#allocation2 + $0x130] sm:$0x3] %vm367, 0.0
      %405 = vst.msk [vmem:[#allocation2 + $0x138] sm:$0xff] %vm364, 0.0
      %406 = vst.msk [vmem:[#allocation2 + $0x140] sm:$0xff] %vm364, 0.0
      %407 = vst.msk [vmem:[#allocation2 + $0x148] sm:$0x3] %vm367, 0.0
      %408 = vst.msk [vmem:[#allocation2 + $0x150] sm:$0xff] %vm364, 0.0
      %409 = vst.msk [vmem:[#allocation2 + $0x158] sm:$0xff] %vm364, 0.0
      %410 = vst.msk [vmem:[#allocation2 + $0x160] sm:$0x3] %vm367, 0.0
      %411 = vst.msk [vmem:[#allocation2 + $0x168] sm:$0xff] %vm364, 0.0
      %412 = vst.msk [vmem:[#allocation2 + $0x170] sm:$0xff] %vm364, 0.0
      %413 = vst.msk [vmem:[#allocation2 + $0x178] sm:$0x3] %vm367, 0.0
      %414 = vst.msk [vmem:[#allocation2 + $0x180] sm:$0xff] %vm364, 0.0
      %415 = vst.msk [vmem:[#allocation2 + $0x188] sm:$0xff] %vm364, 0.0
      %416 = vst.msk [vmem:[#allocation2 + $0x190] sm:$0x3] %vm367, 0.0
      %417 = vst.msk [vmem:[#allocation2 + $0x198] sm:$0xff] %vm364, 0.0
      %418 = vst.msk [vmem:[#allocation2 + $0x1a0] sm:$0xff] %vm364, 0.0
      %419 = vst.msk [vmem:[#allocation2 + $0x1a8] sm:$0x3] %vm367, 0.0
      %v420 = vld [vmem:[%s1] sm:$0xff]
      %v421 = vld [vmem:[%s1 + $0x8] sm:$0xff]
      %422 = vxpose.xlu0.b32.start [1/16] %v360, 128
      %423 = vxpose.xlu0.b32.cont [2/16] %v362, 128
      %424 = vxpose.xlu0.b32.cont [3/16] 0.0, 128
      %425 = vxpose.xlu0.b32.cont [4/16] 0.0, 128
      %426 = vxpose.xlu0.b32.cont [5/16] 0.0, 128
      %427 = vxpose.xlu0.b32.cont [6/16] 0.0, 128
      %428 = vxpose.xlu0.b32.cont [7/16] 0.0, 128
      %429 = vxpose.xlu0.b32.cont [8/16] 0.0, 128
      %430 = vxpose.xlu0.b32.cont [9/16] 0.0, 128
      %431 = vxpose.xlu0.b32.cont [10/16] 0.0, 128
      %432 = vxpose.xlu0.b32.cont [11/16] 0.0, 128
      %433 = vxpose.xlu0.b32.cont [12/16] 0.0, 128
      %434 = vxpose.xlu0.b32.cont [13/16] 0.0, 128
      %435 = vxpose.xlu0.b32.cont [14/16] 0.0, 128
      %436 = vxpose.xlu0.b32.cont [15/16] 0.0, 128
      %437 = vxpose.xlu0.b32.end [16/16] 0.0, 128
      %v438 = vpop.trf.xlu0
      %v439 = vpop.trf.xlu0
      %v440 = vpop.trf.xlu0
      %v441 = vpop.trf.xlu0
      %v442 = vpop.trf.xlu0
      %v443 = vpop.trf.xlu0
      %v444 = vpop.trf.xlu0
      %v445 = vpop.trf.xlu0
      %v446 = vpop.trf.xlu0
      %v447 = vpop.trf.xlu0
      %v448 = vpop.trf.xlu0
      %v449 = vpop.trf.xlu0
      %v450 = vpop.trf.xlu0
      %v451 = vpop.trf.xlu0
      %v452 = vpop.trf.xlu0
      %v453 = vpop.trf.xlu0
      %454 = vxpose.xlu0.b32.start [1/16] %v361, 128
      %455 = vxpose.xlu0.b32.cont [2/16] %v363, 128
      %456 = vxpose.xlu0.b32.cont [3/16] 0.0, 128
      %457 = vxpose.xlu0.b32.cont [4/16] 0.0, 128
      %458 = vxpose.xlu0.b32.cont [5/16] 0.0, 128
      %459 = vxpose.xlu0.b32.cont [6/16] 0.0, 128
      %460 = vxpose.xlu0.b32.cont [7/16] 0.0, 128
      %461 = vxpose.xlu0.b32.cont [8/16] 0.0, 128
      %462 = vxpose.xlu0.b32.cont [9/16] 0.0, 128
      %463 = vxpose.xlu0.b32.cont [10/16] 0.0, 128
      %464 = vxpose.xlu0.b32.cont [11/16] 0.0, 128
      %465 = vxpose.xlu0.b32.cont [12/16] 0.0, 128
      %466 = vxpose.xlu0.b32.cont [13/16] 0.0, 128
      %467 = vxpose.xlu0.b32.cont [14/16] 0.0, 128
      %468 = vxpose.xlu0.b32.cont [15/16] 0.0, 128
      %469 = vxpose.xlu0.b32.end [16/16] 0.0, 128
      %v470 = vpop.trf.xlu0
      %v471 = vpop.trf.xlu0
      %v472 = vpop.trf.xlu0
      %v473 = vpop.trf.xlu0
      %v474 = vpop.trf.xlu0
      %v475 = vpop.trf.xlu0
      %v476 = vpop.trf.xlu0
      %v477 = vpop.trf.xlu0
      %v478 = vpop.trf.xlu0
      %v479 = vpop.trf.xlu0
      %v480 = vpop.trf.xlu0
      %v481 = vpop.trf.xlu0
      %v482 = vpop.trf.xlu0
      %v483 = vpop.trf.xlu0
      %v484 = vpop.trf.xlu0
      %v485 = vpop.trf.xlu0
      %vm486 = vcmask 130048
      %v488 = vsel %vm486, %v438, 0
      %v491 = vsel %vm486, %v439, 0
      %v494 = vsel %vm486, %v440, 0
      %v497 = vsel %vm486, %v441, 0
      %v500 = vsel %vm486, %v442, 0
      %v503 = vsel %vm486, %v443, 0
      %v506 = vsel %vm486, %v444, 0
      %v509 = vsel %vm486, %v445, 0
      %v512 = vsel %vm486, %v446, 0
      %v515 = vsel %vm486, %v447, 0
      %v518 = vsel %vm486, %v448, 0
      %v521 = vsel %vm486, %v449, 0
      %v524 = vsel %vm486, %v450, 0
      %v527 = vsel %vm486, %v451, 0
      %v530 = vsel %vm486, %v452, 0
      %v533 = vsel %vm486, %v453, 0
      %v536 = vsel %vm486, %v470, 0
      %v539 = vsel %vm486, %v471, 0
      %v542 = vsel %vm486, %v472, 0
      %v545 = vsel %vm486, %v473, 0
      %v548 = vsel %vm486, %v474, 0
      %v551 = vsel %vm486, %v475, 0
      %v554 = vsel %vm486, %v476, 0
      %v557 = vsel %vm486, %v477, 0
      %v560 = vsel %vm486, %v478, 0
      %v563 = vsel %vm486, %v479, 0
      %v566 = vsel %vm486, %v480, 0
      %v569 = vsel %vm486, %v481, 0
      %v572 = vsel %vm486, %v482, 0
      %v575 = vsel %vm486, %v483, 0
      %v578 = vsel %vm486, %v484, 0
      %v581 = vsel %vm486, %v485, 0
      %583 = vmatprep.subr.mxu0 0.0
      %584 = vmatpush1.msra.mxu0 0.0
      %585 = vmatprep.subr.mxu0 0.0
      %586 = vmatpush1.msra.mxu0 0.0
      %587 = vmatprep.subr.mxu0 0.0
      %588 = vmatpush1.msra.mxu0 0.0
      %589 = vmatprep.subr.mxu0 0.0
      %590 = vmatpush1.msra.mxu0 0.0
      %591 = vmatprep.subr.mxu0 0.0
      %592 = vmatpush1.msra.mxu0 0.0
      %593 = vmatprep.subr.mxu0 0.0
      %594 = vmatpush1.msra.mxu0 0.0
      %595 = vmatprep.subr.mxu0 0.0
      %596 = vmatpush1.msra.mxu0 0.0
      %597 = vmatprep.subr.mxu0 0.0
      %598 = vmatpush1.msra.mxu0 0.0
      %599 = vmatprep.subr.mxu0 0.0
      %600 = vmatpush1.msra.mxu0 0.0
      %601 = vmatprep.subr.mxu0 0.0
      %602 = vmatpush1.msra.mxu0 0.0
      %603 = vmatprep.subr.mxu0 0.0
      %604 = vmatpush1.msra.mxu0 0.0
      %605 = vmatprep.subr.mxu0 0.0
      %606 = vmatpush1.msra.mxu0 0.0
      %607 = vmatprep.subr.mxu0 0.0
      %608 = vmatpush1.msra.mxu0 0.0
      %609 = vmatprep.subr.mxu0 0.0
      %610 = vmatpush1.msra.mxu0 0.0
      %611 = vmatprep.subr.mxu0 0.0
      %612 = vmatpush1.msra.mxu0 %v421
      %613 = vmatprep.subr.mxu0 0.0
      %614 = vmatpush1.msra.mxu0 %v420
      %615 = vmatprep.subr.mxu0 0.0
      %616 = vmatpush2.msra.mxu0 0.0
      %617 = vmatprep.subr.mxu0 0.0
      %618 = vmatpush2.msra.mxu0 0.0
      %619 = vmatprep.subr.mxu0 0.0
      %620 = vmatpush2.msra.mxu0 0.0
      %621 = vmatprep.subr.mxu0 0.0
      %622 = vmatpush2.msra.mxu0 0.0
      %623 = vmatprep.subr.mxu0 0.0
      %624 = vmatpush2.msra.mxu0 0.0
      %625 = vmatprep.subr.mxu0 0.0
      %626 = vmatpush2.msra.mxu0 0.0
      %627 = vmatprep.subr.mxu0 0.0
      %628 = vmatpush2.msra.mxu0 0.0
      %629 = vmatprep.subr.mxu0 0.0
      %630 = vmatpush2.msra.mxu0 0.0
      %631 = vmatprep.subr.mxu0 0.0
      %632 = vmatpush2.msra.mxu0 0.0
      %633 = vmatprep.subr.mxu0 0.0
      %634 = vmatpush2.msra.mxu0 0.0
      %635 = vmatprep.subr.mxu0 0.0
      %636 = vmatpush2.msra.mxu0 0.0
      %637 = vmatprep.subr.mxu0 0.0
      %638 = vmatpush2.msra.mxu0 0.0
      %639 = vmatprep.subr.mxu0 0.0
      %640 = vmatpush2.msra.mxu0 0.0
      %641 = vmatprep.subr.mxu0 0.0
      %642 = vmatpush2.msra.mxu0 0.0
      %643 = vmatprep.subr.mxu0 0.0
      %644 = vmatpush2.msra.mxu0 0.0
      %645 = vmatprep.subr.mxu0 0.0
      %646 = vmatpush2.msra.mxu0 0.0
      %647 = vmatprep.mubr.f32.mxu0 0.0
      %648 = vmatmul.mubr.f32.gmra.mxu0 %v488
      %v649 = vpop.f32.mrf.mxu0
      %v650 = vadd.f32 0.0, %v649
      %v651 = vpop.f32.mrf.mxu0
      %652 = vmatprep.mubr.f32.mxu0 0.0
      %653 = vmatmul.mubr.f32.gmra.mxu0 %v491
      %v654 = vpop.f32.mrf.mxu0
      %v655 = vadd.f32 0.0, %v654
      %v656 = vpop.f32.mrf.mxu0
      %657 = vmatprep.mubr.f32.mxu0 0.0
      %658 = vmatmul.mubr.f32.gmra.mxu0 %v494
      %v659 = vpop.f32.mrf.mxu0
      %v660 = vadd.f32 0.0, %v659
      %v661 = vpop.f32.mrf.mxu0
      %662 = vmatprep.mubr.f32.mxu0 0.0
      %663 = vmatmul.mubr.f32.gmra.mxu0 %v497
      %v664 = vpop.f32.mrf.mxu0
      %v665 = vadd.f32 0.0, %v664
      %v666 = vpop.f32.mrf.mxu0
      %667 = vmatprep.mubr.f32.mxu0 0.0
      %668 = vmatmul.mubr.f32.gmra.mxu0 %v500
      %v669 = vpop.f32.mrf.mxu0
      %v670 = vadd.f32 0.0, %v669
      %v671 = vpop.f32.mrf.mxu0
      %672 = vmatprep.mubr.f32.mxu0 0.0
      %673 = vmatmul.mubr.f32.gmra.mxu0 %v503
      %v674 = vpop.f32.mrf.mxu0
      %v675 = vadd.f32 0.0, %v674
      %v676 = vpop.f32.mrf.mxu0
      %677 = vmatprep.mubr.f32.mxu0 0.0
      %678 = vmatmul.mubr.f32.gmra.mxu0 %v506
      %v679 = vpop.f32.mrf.mxu0
      %v680 = vadd.f32 0.0, %v679
      %v681 = vpop.f32.mrf.mxu0
      %682 = vmatprep.mubr.f32.mxu0 0.0
      %683 = vmatmul.mubr.f32.gmra.mxu0 %v509
      %v684 = vpop.f32.mrf.mxu0
      %v685 = vadd.f32 0.0, %v684
      %v686 = vpop.f32.mrf.mxu0
      %687 = vmatprep.mubr.f32.mxu0 0.0
      %688 = vmatmul.mubr.f32.gmra.mxu0 %v512
      %v689 = vpop.f32.mrf.mxu0
      %v690 = vadd.f32 0.0, %v689
      %v691 = vpop.f32.mrf.mxu0
      %692 = vmatprep.mubr.f32.mxu0 0.0
      %693 = vmatmul.mubr.f32.gmra.mxu0 %v515
      %v694 = vpop.f32.mrf.mxu0
      %v695 = vadd.f32 0.0, %v694
      %v696 = vpop.f32.mrf.mxu0
      %697 = vmatprep.mubr.f32.mxu0 0.0
      %698 = vmatmul.mubr.f32.gmra.mxu0 %v518
      %v699 = vpop.f32.mrf.mxu0
      %v700 = vadd.f32 0.0, %v699
      %v701 = vpop.f32.mrf.mxu0
      %702 = vmatprep.mubr.f32.mxu0 0.0
      %703 = vmatmul.mubr.f32.gmra.mxu0 %v521
      %v704 = vpop.f32.mrf.mxu0
      %v705 = vadd.f32 0.0, %v704
      %v706 = vpop.f32.mrf.mxu0
      %707 = vmatprep.mubr.f32.mxu0 0.0
      %708 = vmatmul.mubr.f32.gmra.mxu0 %v524
      %v709 = vpop.f32.mrf.mxu0
      %v710 = vadd.f32 0.0, %v709
      %v711 = vpop.f32.mrf.mxu0
      %712 = vmatprep.mubr.f32.mxu0 0.0
      %713 = vmatmul.mubr.f32.gmra.mxu0 %v527
      %v714 = vpop.f32.mrf.mxu0
      %v715 = vadd.f32 0.0, %v714
      %v716 = vpop.f32.mrf.mxu0
      %717 = vmatprep.mubr.f32.mxu0 0.0
      %718 = vmatmul.mubr.f32.gmra.mxu0 %v530
      %v719 = vpop.f32.mrf.mxu0
      %v720 = vadd.f32 0.0, %v719
      %v721 = vpop.f32.mrf.mxu0
      %722 = vmatprep.mubr.f32.mxu0 0.0
      %723 = vmatmul.mubr.f32.gmra.mxu0 %v533
      %v724 = vpop.f32.mrf.mxu0
      %v725 = vadd.f32 0.0, %v724
      %v726 = vpop.f32.mrf.mxu0
      %727 = vmatprep.mubr.f32.mxu0 0.0
      %728 = vmatmul.mubr.f32.gmra.mxu0 %v536
      %v729 = vpop.f32.mrf.mxu0
      %v730 = vadd.f32 0.0, %v729
      %v731 = vpop.f32.mrf.mxu0
      %732 = vmatprep.mubr.f32.mxu0 0.0
      %733 = vmatmul.mubr.f32.gmra.mxu0 %v539
      %v734 = vpop.f32.mrf.mxu0
      %v735 = vadd.f32 0.0, %v734
      %v736 = vpop.f32.mrf.mxu0
      %737 = vmatprep.mubr.f32.mxu0 0.0
      %738 = vmatmul.mubr.f32.gmra.mxu0 %v542
      %v739 = vpop.f32.mrf.mxu0
      %v740 = vadd.f32 0.0, %v739
      %v741 = vpop.f32.mrf.mxu0
      %742 = vmatprep.mubr.f32.mxu0 0.0
      %743 = vmatmul.mubr.f32.gmra.mxu0 %v545
      %v744 = vpop.f32.mrf.mxu0
      %v745 = vadd.f32 0.0, %v744
      %v746 = vpop.f32.mrf.mxu0
      %747 = vmatprep.mubr.f32.mxu0 0.0
      %748 = vmatmul.mubr.f32.gmra.mxu0 %v548
      %v749 = vpop.f32.mrf.mxu0
      %v750 = vadd.f32 0.0, %v749
      %v751 = vpop.f32.mrf.mxu0
      %752 = vmatprep.mubr.f32.mxu0 0.0
      %753 = vmatmul.mubr.f32.gmra.mxu0 %v551
      %v754 = vpop.f32.mrf.mxu0
      %v755 = vadd.f32 0.0, %v754
      %v756 = vpop.f32.mrf.mxu0
      %757 = vmatprep.mubr.f32.mxu0 0.0
      %758 = vmatmul.mubr.f32.gmra.mxu0 %v554
      %v759 = vpop.f32.mrf.mxu0
      %v760 = vadd.f32 0.0, %v759
      %v761 = vpop.f32.mrf.mxu0
      %762 = vmatprep.mubr.f32.mxu0 0.0
      %763 = vmatmul.mubr.f32.gmra.mxu0 %v557
      %v764 = vpop.f32.mrf.mxu0
      %v765 = vadd.f32 0.0, %v764
      %v766 = vpop.f32.mrf.mxu0
      %767 = vmatprep.mubr.f32.mxu0 0.0
      %768 = vmatmul.mubr.f32.gmra.mxu0 %v560
      %v769 = vpop.f32.mrf.mxu0
      %v770 = vadd.f32 0.0, %v769
      %v771 = vpop.f32.mrf.mxu0
      %772 = vmatprep.mubr.f32.mxu0 0.0
      %773 = vmatmul.mubr.f32.gmra.mxu0 %v563
      %v774 = vpop.f32.mrf.mxu0
      %v775 = vadd.f32 0.0, %v774
      %v776 = vpop.f32.mrf.mxu0
      %777 = vmatprep.mubr.f32.mxu0 0.0
      %778 = vmatmul.mubr.f32.gmra.mxu0 %v566
      %v779 = vpop.f32.mrf.mxu0
      %v780 = vadd.f32 0.0, %v779
      %v781 = vpop.f32.mrf.mxu0
      %782 = vmatprep.mubr.f32.mxu0 0.0
      %783 = vmatmul.mubr.f32.gmra.mxu0 %v569
      %v784 = vpop.f32.mrf.mxu0
      %v785 = vadd.f32 0.0, %v784
      %v786 = vpop.f32.mrf.mxu0
      %787 = vmatprep.mubr.f32.mxu0 0.0
      %788 = vmatmul.mubr.f32.gmra.mxu0 %v572
      %v789 = vpop.f32.mrf.mxu0
      %v790 = vadd.f32 0.0, %v789
      %v791 = vpop.f32.mrf.mxu0
      %792 = vmatprep.mubr.f32.mxu0 0.0
      %793 = vmatmul.mubr.f32.gmra.mxu0 %v575
      %v794 = vpop.f32.mrf.mxu0
      %v795 = vadd.f32 0.0, %v794
      %v796 = vpop.f32.mrf.mxu0
      %797 = vmatprep.mubr.f32.mxu0 0.0
      %798 = vmatmul.mubr.f32.gmra.mxu0 %v578
      %v799 = vpop.f32.mrf.mxu0
      %v800 = vadd.f32 0.0, %v799
      %v801 = vpop.f32.mrf.mxu0
      %802 = vmatprep.mubr.f32.mxu0 0.0
      %803 = vmatmul.mubr.f32.gmra.mxu0 %v581
      %v804 = vpop.f32.mrf.mxu0
      %v805 = vadd.f32 0.0, %v804
      %v806 = vpop.f32.mrf.mxu0
      %807 = vdwg.mxu0
      %v808 = vld [vmem:[%s2] sm:$0x1]
      %v810 = vlaneseq
      %v811 = vshrl.u32 %v810, 7
      %v812 = vsub.s32 0, %v811
      %v813 = vrot.slane %v808, %v812
      %v815 = vmul.f32 %v650, %v813
      %v816 = vmul.f32 %v655, %v813
      %v817 = vmul.f32 %v660, %v813
      %v818 = vmul.f32 %v665, %v813
      %v819 = vmul.f32 %v670, %v813
      %v820 = vmul.f32 %v675, %v813
      %v821 = vmul.f32 %v680, %v813
      %v822 = vmul.f32 %v685, %v813
      %v823 = vmul.f32 %v690, %v813
      %v824 = vmul.f32 %v695, %v813
      %v825 = vmul.f32 %v700, %v813
      %v826 = vmul.f32 %v705, %v813
      %v827 = vmul.f32 %v710, %v813
      %v828 = vmul.f32 %v715, %v813
      %v829 = vmul.f32 %v720, %v813
      %v830 = vmul.f32 %v725, %v813
      %v831 = vmul.f32 %v730, %v813
      %v832 = vmul.f32 %v735, %v813
      %v833 = vmul.f32 %v740, %v813
      %v834 = vmul.f32 %v745, %v813
      %v835 = vmul.f32 %v750, %v813
      %v836 = vmul.f32 %v755, %v813
      %v837 = vmul.f32 %v760, %v813
      %v838 = vmul.f32 %v765, %v813
      %v839 = vmul.f32 %v770, %v813
      %v840 = vmul.f32 %v775, %v813
      %v841 = vmul.f32 %v780, %v813
      %v842 = vmul.f32 %v785, %v813
      %v843 = vmul.f32 %v790, %v813
      %v844 = vmul.f32 %v795, %v813
      %v845 = vmul.f32 %v800, %v813
      %v846 = vmul.f32 %v805, %v813
      %v847 = vld [vmem:[%s3] sm:$0x1]
      %v849 = vlaneseq
      %v850 = vshrl.u32 %v849, 7
      %v851 = vsub.s32 0, %v850
      %v852 = vrot.slane %v847, %v851
      %v854 = vadd.f32 %v815, %v852
      %v855 = vadd.f32 %v816, %v852
      %v856 = vadd.f32 %v817, %v852
      %v857 = vadd.f32 %v818, %v852
      %v858 = vadd.f32 %v819, %v852
      %v859 = vadd.f32 %v820, %v852
      %v860 = vadd.f32 %v821, %v852
      %v861 = vadd.f32 %v822, %v852
      %v862 = vadd.f32 %v823, %v852
      %v863 = vadd.f32 %v824, %v852
      %v864 = vadd.f32 %v825, %v852
      %v865 = vadd.f32 %v826, %v852
      %v866 = vadd.f32 %v827, %v852
      %v867 = vadd.f32 %v828, %v852
      %v868 = vadd.f32 %v829, %v852
      %v869 = vadd.f32 %v830, %v852
      %v870 = vadd.f32 %v831, %v852
      %v871 = vadd.f32 %v832, %v852
      %v872 = vadd.f32 %v833, %v852
      %v873 = vadd.f32 %v834, %v852
      %v874 = vadd.f32 %v835, %v852
      %v875 = vadd.f32 %v836, %v852
      %v876 = vadd.f32 %v837, %v852
      %v877 = vadd.f32 %v838, %v852
      %v878 = vadd.f32 %v839, %v852
      %v879 = vadd.f32 %v840, %v852
      %v880 = vadd.f32 %v841, %v852
      %v881 = vadd.f32 %v842, %v852
      %v882 = vadd.f32 %v843, %v852
      %v883 = vadd.f32 %v844, %v852
      %v884 = vadd.f32 %v845, %v852
      %v885 = vadd.f32 %v846, %v852
      %v886 = vmax.f32 %v854, 0.0
      %v887 = vmax.f32 %v855, 0.0
      %v888 = vmax.f32 %v856, 0.0
      %v889 = vmax.f32 %v857, 0.0
      %v890 = vmax.f32 %v858, 0.0
      %v891 = vmax.f32 %v859, 0.0
      %v892 = vmax.f32 %v860, 0.0
      %v893 = vmax.f32 %v861, 0.0
      %v894 = vmax.f32 %v862, 0.0
      %v895 = vmax.f32 %v863, 0.0
      %v896 = vmax.f32 %v864, 0.0
      %v897 = vmax.f32 %v865, 0.0
      %v898 = vmax.f32 %v866, 0.0
      %v899 = vmax.f32 %v867, 0.0
      %v900 = vmax.f32 %v868, 0.0
      %v901 = vmax.f32 %v869, 0.0
      %v902 = vmax.f32 %v870, 0.0
      %v903 = vmax.f32 %v871, 0.0
      %v904 = vmax.f32 %v872, 0.0
      %v905 = vmax.f32 %v873, 0.0
      %v906 = vmax.f32 %v874, 0.0
      %v907 = vmax.f32 %v875, 0.0
      %v908 = vmax.f32 %v876, 0.0
      %v909 = vmax.f32 %v877, 0.0
      %v910 = vmax.f32 %v878, 0.0
      %v911 = vmax.f32 %v879, 0.0
      %v912 = vmax.f32 %v880, 0.0
      %v913 = vmax.f32 %v881, 0.0
      %v914 = vmax.f32 %v882, 0.0
      %v915 = vmax.f32 %v883, 0.0
      %v916 = vmax.f32 %v884, 0.0
      %v917 = vmax.f32 %v885, 0.0
      %s918 = scalar_lea.vmem [#allocation2], 24
      %919 = vst.msk [vmem:[%s918 + $0x1] sm:$0xff] %vm364, %v886
      %920 = vst.msk [vmem:[%s918 + $0x9] sm:$0xff] %vm364, %v887
      %921 = vst.msk [vmem:[%s918 + $0x19] sm:$0xff] %vm364, %v888
      %922 = vst.msk [vmem:[%s918 + $0x21] sm:$0xff] %vm364, %v889
      %923 = vst.msk [vmem:[%s918 + $0x31] sm:$0xff] %vm364, %v890
      %924 = vst.msk [vmem:[%s918 + $0x39] sm:$0xff] %vm364, %v891
      %925 = vst.msk [vmem:[%s918 + $0x49] sm:$0xff] %vm364, %v892
      %926 = vst.msk [vmem:[%s918 + $0x51] sm:$0xff] %vm364, %v893
      %927 = vst.msk [vmem:[%s918 + $0x61] sm:$0xff] %vm364, %v894
      %928 = vst.msk [vmem:[%s918 + $0x69] sm:$0xff] %vm364, %v895
      %929 = vst.msk [vmem:[%s918 + $0x79] sm:$0xff] %vm364, %v896
      %930 = vst.msk [vmem:[%s918 + $0x81] sm:$0xff] %vm364, %v897
      %931 = vst.msk [vmem:[%s918 + $0x91] sm:$0xff] %vm364, %v898
      %932 = vst.msk [vmem:[%s918 + $0x99] sm:$0xff] %vm364, %v899
      %933 = vst.msk [vmem:[%s918 + $0xa9] sm:$0xff] %vm364, %v900
      %934 = vst.msk [vmem:[%s918 + $0xb1] sm:$0xff] %vm364, %v901
      %935 = vst.msk [vmem:[%s918 + $0xc1] sm:$0xff] %vm364, %v902
      %936 = vst.msk [vmem:[%s918 + $0xc9] sm:$0xff] %vm364, %v903
      %937 = vst.msk [vmem:[%s918 + $0xd9] sm:$0xff] %vm364, %v904
      %938 = vst.msk [vmem:[%s918 + $0xe1] sm:$0xff] %vm364, %v905
      %939 = vst.msk [vmem:[%s918 + $0xf1] sm:$0xff] %vm364, %v906
      %940 = vst.msk [vmem:[%s918 + $0xf9] sm:$0xff] %vm364, %v907
      %941 = vst.msk [vmem:[%s918 + $0x109] sm:$0xff] %vm364, %v908
      %942 = vst.msk [vmem:[%s918 + $0x111] sm:$0xff] %vm364, %v909
      %943 = vst.msk [vmem:[%s918 + $0x121] sm:$0xff] %vm364, %v910
      %944 = vst.msk [vmem:[%s918 + $0x129] sm:$0xff] %vm364, %v911
      %945 = vst.msk [vmem:[%s918 + $0x139] sm:$0xff] %vm364, %v912
      %946 = vst.msk [vmem:[%s918 + $0x141] sm:$0xff] %vm364, %v913
      %947 = vst.msk [vmem:[%s918 + $0x151] sm:$0xff] %vm364, %v914
      %948 = vst.msk [vmem:[%s918 + $0x159] sm:$0xff] %vm364, %v915
      %949 = vst.msk [vmem:[%s918 + $0x169] sm:$0xff] %vm364, %v916
      %950 = vst.msk [vmem:[%s918 + $0x171] sm:$0xff] %vm364, %v917
      %v951 = vld [vmem:[#allocation2] sm:$0xff]
      %v952 = vld [vmem:[#allocation2 + $0x8] sm:$0xff]
      %v953 = vld [vmem:[#allocation2 + $0x10] sm:$0x3]
      %v954 = vld [vmem:[#allocation2 + $0x18] sm:$0xff]
      %v955 = vld [vmem:[#allocation2 + $0x20] sm:$0xff]
      %v956 = vld [vmem:[#allocation2 + $0x28] sm:$0x3]
      %v957 = vld [vmem:[#allocation2 + $0x30] sm:$0xff]
      %v958 = vld [vmem:[#allocation2 + $0x38] sm:$0xff]
      %v959 = vld [vmem:[#allocation2 + $0x40] sm:$0x3]
      %v960 = vld [vmem:[#allocation2 + $0x48] sm:$0xff]
      %v961 = vld [vmem:[#allocation2 + $0x50] sm:$0xff]
      %v962 = vld [vmem:[#allocation2 + $0x58] sm:$0x3]
      %v963 = vld [vmem:[#allocation2 + $0x60] sm:$0xff]
      %v964 = vld [vmem:[#allocation2 + $0x68] sm:$0xff]
      %v965 = vld [vmem:[#allocation2 + $0x70] sm:$0x3]
      %v966 = vld [vmem:[#allocation2 + $0x78] sm:$0xff]
      %v967 = vld [vmem:[#allocation2 + $0x80] sm:$0xff]
      %v968 = vld [vmem:[#allocation2 + $0x88] sm:$0x3]
      %v969 = vld [vmem:[#allocation2 + $0x90] sm:$0xff]
      %v970 = vld [vmem:[#allocation2 + $0x98] sm:$0xff]
      %v971 = vld [vmem:[#allocation2 + $0xa0] sm:$0x3]
      %v972 = vld [vmem:[#allocation2 + $0xa8] sm:$0xff]
      %v973 = vld [vmem:[#allocation2 + $0xb0] sm:$0xff]
      %v974 = vld [vmem:[#allocation2 + $0xb8] sm:$0x3]
      %v975 = vld [vmem:[#allocation2 + $0xc0] sm:$0xff]
      %v976 = vld [vmem:[#allocation2 + $0xc8] sm:$0xff]
      %v977 = vld [vmem:[#allocation2 + $0xd0] sm:$0x3]
      %v978 = vld [vmem:[#allocation2 + $0xd8] sm:$0xff]
      %v979 = vld [vmem:[#allocation2 + $0xe0] sm:$0xff]
      %v980 = vld [vmem:[#allocation2 + $0xe8] sm:$0x3]
      %v981 = vld [vmem:[#allocation2 + $0xf0] sm:$0xff]
      %v982 = vld [vmem:[#allocation2 + $0xf8] sm:$0xff]
      %v983 = vld [vmem:[#allocation2 + $0x100] sm:$0x3]
      %v984 = vld [vmem:[#allocation2 + $0x108] sm:$0xff]
      %v985 = vld [vmem:[#allocation2 + $0x110] sm:$0xff]
      %v986 = vld [vmem:[#allocation2 + $0x118] sm:$0x3]
      %v987 = vld [vmem:[#allocation2 + $0x120] sm:$0xff]
      %v988 = vld [vmem:[#allocation2 + $0x128] sm:$0xff]
      %v989 = vld [vmem:[#allocation2 + $0x130] sm:$0x3]
      %v990 = vld [vmem:[#allocation2 + $0x138] sm:$0xff]
      %v991 = vld [vmem:[#allocation2 + $0x140] sm:$0xff]
      %v992 = vld [vmem:[#allocation2 + $0x148] sm:$0x3]
      %v993 = vld [vmem:[#allocation2 + $0x150] sm:$0xff]
      %v994 = vld [vmem:[#allocation2 + $0x158] sm:$0xff]
      %v995 = vld [vmem:[#allocation2 + $0x160] sm:$0x3]
      %v996 = vld [vmem:[#allocation2 + $0x168] sm:$0xff]
      %v997 = vld [vmem:[#allocation2 + $0x170] sm:$0xff]
      %v998 = vld [vmem:[#allocation2 + $0x178] sm:$0x3]
      %v999 = vld [vmem:[#allocation2 + $0x180] sm:$0xff]
      %v1000 = vld [vmem:[#allocation2 + $0x188] sm:$0xff]
      %v1001 = vld [vmem:[#allocation2 + $0x190] sm:$0x3]
      %v1002 = vld [vmem:[#allocation2 + $0x198] sm:$0xff]
      %v1003 = vld [vmem:[#allocation2 + $0x1a0] sm:$0xff]
      %v1004 = vld [vmem:[#allocation2 + $0x1a8] sm:$0x3]
      %v1005 = vld [vmem:[%s4] sm:$0xf]
      %v1007 = vsel %vm364, %v951, 0
      %v1010 = vsel %vm364, %v952, 0
      %v1013 = vsel %vm364, %v954, 0
      %v1016 = vsel %vm364, %v955, 0
      %v1019 = vsel %vm364, %v957, 0
      %v1022 = vsel %vm364, %v958, 0
      %v1025 = vsel %vm364, %v960, 0
      %v1028 = vsel %vm364, %v961, 0
      %v1031 = vsel %vm364, %v963, 0
      %v1034 = vsel %vm364, %v964, 0
      %v1037 = vsel %vm364, %v966, 0
      %v1040 = vsel %vm364, %v967, 0
      %v1043 = vsel %vm364, %v969, 0
      %v1046 = vsel %vm364, %v970, 0
      %v1049 = vsel %vm364, %v972, 0
      %v1052 = vsel %vm364, %v973, 0
      %v1055 = vsel %vm364, %v975, 0
      %v1058 = vsel %vm364, %v976, 0
      %v1061 = vsel %vm364, %v978, 0
      %v1064 = vsel %vm364, %v979, 0
      %v1067 = vsel %vm364, %v981, 0
      %v1070 = vsel %vm364, %v982, 0
      %v1073 = vsel %vm364, %v984, 0
      %v1076 = vsel %vm364, %v985, 0
      %v1079 = vsel %vm364, %v987, 0
      %v1082 = vsel %vm364, %v988, 0
      %v1085 = vsel %vm364, %v990, 0
      %v1088 = vsel %vm364, %v991, 0
      %v1091 = vsel %vm364, %v993, 0
      %v1094 = vsel %vm364, %v994, 0
      %v1097 = vsel %vm364, %v996, 0
      %v1100 = vsel %vm364, %v997, 0
      %vm1102 = vcmask 1043456
      %v1104 = vsel %vm1102, %v1005, 0
      %1106 = vmatprep.subr.mxu0 0.0
      %1107 = vmatpush1.msra.mxu0 0.0
      %1108 = vmatprep.subr.mxu0 0.0
      %1109 = vmatpush1.msra.mxu0 0.0
      %1110 = vmatprep.subr.mxu0 0.0
      %1111 = vmatpush1.msra.mxu0 0.0
      %1112 = vmatprep.subr.mxu0 0.0
      %1113 = vmatpush1.msra.mxu0 0.0
      %1114 = vmatprep.subr.mxu0 0.0
      %1115 = vmatpush1.msra.mxu0 0.0
      %1116 = vmatprep.subr.mxu0 0.0
      %1117 = vmatpush1.msra.mxu0 0.0
      %1118 = vmatprep.subr.mxu0 0.0
      %1119 = vmatpush1.msra.mxu0 0.0
      %1120 = vmatprep.subr.mxu0 0.0
      %1121 = vmatpush1.msra.mxu0 0.0
      %1122 = vmatprep.subr.mxu0 0.0
      %1123 = vmatpush1.msra.mxu0 0.0
      %1124 = vmatprep.subr.mxu0 0.0
      %1125 = vmatpush1.msra.mxu0 0.0
      %1126 = vmatprep.subr.mxu0 0.0
      %1127 = vmatpush1.msra.mxu0 0.0
      %1128 = vmatprep.subr.mxu0 0.0
      %1129 = vmatpush1.msra.mxu0 0.0
      %1130 = vmatprep.subr.mxu0 0.0
      %1131 = vmatpush1.msra.mxu0 0.0
      %1132 = vmatprep.subr.mxu0 0.0
      %1133 = vmatpush1.msra.mxu0 0.0
      %1134 = vmatprep.subr.mxu0 0.0
      %1135 = vmatpush1.msra.mxu0 0.0
      %1136 = vmatprep.subr.mxu0 0.0
      %1137 = vmatpush1.msra.mxu0 %v1104
      %1138 = vmatprep.subr.mxu0 0.0
      %1139 = vmatpush2.msra.mxu0 0.0
      %1140 = vmatprep.subr.mxu0 0.0
      %1141 = vmatpush2.msra.mxu0 0.0
      %1142 = vmatprep.subr.mxu0 0.0
      %1143 = vmatpush2.msra.mxu0 0.0
      %1144 = vmatprep.subr.mxu0 0.0
      %1145 = vmatpush2.msra.mxu0 0.0
      %1146 = vmatprep.subr.mxu0 0.0
      %1147 = vmatpush2.msra.mxu0 0.0
      %1148 = vmatprep.subr.mxu0 0.0
      %1149 = vmatpush2.msra.mxu0 0.0
      %1150 = vmatprep.subr.mxu0 0.0
      %1151 = vmatpush2.msra.mxu0 0.0
      %1152 = vmatprep.subr.mxu0 0.0
      %1153 = vmatpush2.msra.mxu0 0.0
      %1154 = vmatprep.subr.mxu0 0.0
      %1155 = vmatpush2.msra.mxu0 0.0
      %1156 = vmatprep.subr.mxu0 0.0
      %1157 = vmatpush2.msra.mxu0 0.0
      %1158 = vmatprep.subr.mxu0 0.0
      %1159 = vmatpush2.msra.mxu0 0.0
      %1160 = vmatprep.subr.mxu0 0.0
      %1161 = vmatpush2.msra.mxu0 0.0
      %1162 = vmatprep.subr.mxu0 0.0
      %1163 = vmatpush2.msra.mxu0 0.0
      %1164 = vmatprep.subr.mxu0 0.0
      %1165 = vmatpush2.msra.mxu0 0.0
      %1166 = vmatprep.subr.mxu0 0.0
      %1167 = vmatpush2.msra.mxu0 0.0
      %1168 = vmatprep.subr.mxu0 0.0
      %1169 = vmatpush2.msra.mxu0 0.0
      %1170 = vmatprep.mubr.f32.mxu0 0.0
      %1171 = vmatmul.mubr.f32.gmra.mxu0 %v1007
      %v1172 = vpop.f32.mrf.mxu0
      %v1173 = vadd.f32 0.0, %v1172
      %v1174 = vpop.f32.mrf.mxu0
      %1175 = vmatprep.mubr.f32.mxu0 0.0
      %1176 = vmatmul.mubr.f32.gmra.mxu0 %v1010
      %v1177 = vpop.f32.mrf.mxu0
      %v1178 = vadd.f32 0.0, %v1177
      %v1179 = vpop.f32.mrf.mxu0
      %1180 = vmatprep.mubr.f32.mxu0 0.0
      %1181 = vmatmul.mubr.f32.gmra.mxu0 %v1013
      %v1182 = vpop.f32.mrf.mxu0
      %v1183 = vadd.f32 0.0, %v1182
      %v1184 = vpop.f32.mrf.mxu0
      %1185 = vmatprep.mubr.f32.mxu0 0.0
      %1186 = vmatmul.mubr.f32.gmra.mxu0 %v1016
      %v1187 = vpop.f32.mrf.mxu0
      %v1188 = vadd.f32 0.0, %v1187
      %v1189 = vpop.f32.mrf.mxu0
      %1190 = vmatprep.mubr.f32.mxu0 0.0
      %1191 = vmatmul.mubr.f32.gmra.mxu0 %v1019
      %v1192 = vpop.f32.mrf.mxu0
      %v1193 = vadd.f32 0.0, %v1192
      %v1194 = vpop.f32.mrf.mxu0
      %1195 = vmatprep.mubr.f32.mxu0 0.0
      %1196 = vmatmul.mubr.f32.gmra.mxu0 %v1022
      %v1197 = vpop.f32.mrf.mxu0
      %v1198 = vadd.f32 0.0, %v1197
      %v1199 = vpop.f32.mrf.mxu0
      %1200 = vmatprep.mubr.f32.mxu0 0.0
      %1201 = vmatmul.mubr.f32.gmra.mxu0 %v1025
      %v1202 = vpop.f32.mrf.mxu0
      %v1203 = vadd.f32 0.0, %v1202
      %v1204 = vpop.f32.mrf.mxu0
      %1205 = vmatprep.mubr.f32.mxu0 0.0
      %1206 = vmatmul.mubr.f32.gmra.mxu0 %v1028
      %v1207 = vpop.f32.mrf.mxu0
      %v1208 = vadd.f32 0.0, %v1207
      %v1209 = vpop.f32.mrf.mxu0
      %1210 = vmatprep.mubr.f32.mxu0 0.0
      %1211 = vmatmul.mubr.f32.gmra.mxu0 %v1031
      %v1212 = vpop.f32.mrf.mxu0
      %v1213 = vadd.f32 0.0, %v1212
      %v1214 = vpop.f32.mrf.mxu0
      %1215 = vmatprep.mubr.f32.mxu0 0.0
      %1216 = vmatmul.mubr.f32.gmra.mxu0 %v1034
      %v1217 = vpop.f32.mrf.mxu0
      %v1218 = vadd.f32 0.0, %v1217
      %v1219 = vpop.f32.mrf.mxu0
      %1220 = vmatprep.mubr.f32.mxu0 0.0
      %1221 = vmatmul.mubr.f32.gmra.mxu0 %v1037
      %v1222 = vpop.f32.mrf.mxu0
      %v1223 = vadd.f32 0.0, %v1222
      %v1224 = vpop.f32.mrf.mxu0
      %1225 = vmatprep.mubr.f32.mxu0 0.0
      %1226 = vmatmul.mubr.f32.gmra.mxu0 %v1040
      %v1227 = vpop.f32.mrf.mxu0
      %v1228 = vadd.f32 0.0, %v1227
      %v1229 = vpop.f32.mrf.mxu0
      %1230 = vmatprep.mubr.f32.mxu0 0.0
      %1231 = vmatmul.mubr.f32.gmra.mxu0 %v1043
      %v1232 = vpop.f32.mrf.mxu0
      %v1233 = vadd.f32 0.0, %v1232
      %v1234 = vpop.f32.mrf.mxu0
      %1235 = vmatprep.mubr.f32.mxu0 0.0
      %1236 = vmatmul.mubr.f32.gmra.mxu0 %v1046
      %v1237 = vpop.f32.mrf.mxu0
      %v1238 = vadd.f32 0.0, %v1237
      %v1239 = vpop.f32.mrf.mxu0
      %1240 = vmatprep.mubr.f32.mxu0 0.0
      %1241 = vmatmul.mubr.f32.gmra.mxu0 %v1049
      %v1242 = vpop.f32.mrf.mxu0
      %v1243 = vadd.f32 0.0, %v1242
      %v1244 = vpop.f32.mrf.mxu0
      %1245 = vmatprep.mubr.f32.mxu0 0.0
      %1246 = vmatmul.mubr.f32.gmra.mxu0 %v1052
      %v1247 = vpop.f32.mrf.mxu0
      %v1248 = vadd.f32 0.0, %v1247
      %v1249 = vpop.f32.mrf.mxu0
      %1250 = vmatprep.mubr.f32.mxu0 0.0
      %1251 = vmatmul.mubr.f32.gmra.mxu0 %v1055
      %v1252 = vpop.f32.mrf.mxu0
      %v1253 = vadd.f32 0.0, %v1252
      %v1254 = vpop.f32.mrf.mxu0
      %1255 = vmatprep.mubr.f32.mxu0 0.0
      %1256 = vmatmul.mubr.f32.gmra.mxu0 %v1058
      %v1257 = vpop.f32.mrf.mxu0
      %v1258 = vadd.f32 0.0, %v1257
      %v1259 = vpop.f32.mrf.mxu0
      %1260 = vmatprep.mubr.f32.mxu0 0.0
      %1261 = vmatmul.mubr.f32.gmra.mxu0 %v1061
      %v1262 = vpop.f32.mrf.mxu0
      %v1263 = vadd.f32 0.0, %v1262
      %v1264 = vpop.f32.mrf.mxu0
      %1265 = vmatprep.mubr.f32.mxu0 0.0
      %1266 = vmatmul.mubr.f32.gmra.mxu0 %v1064
      %v1267 = vpop.f32.mrf.mxu0
      %v1268 = vadd.f32 0.0, %v1267
      %v1269 = vpop.f32.mrf.mxu0
      %1270 = vmatprep.mubr.f32.mxu0 0.0
      %1271 = vmatmul.mubr.f32.gmra.mxu0 %v1067
      %v1272 = vpop.f32.mrf.mxu0
      %v1273 = vadd.f32 0.0, %v1272
      %v1274 = vpop.f32.mrf.mxu0
      %1275 = vmatprep.mubr.f32.mxu0 0.0
      %1276 = vmatmul.mubr.f32.gmra.mxu0 %v1070
      %v1277 = vpop.f32.mrf.mxu0
      %v1278 = vadd.f32 0.0, %v1277
      %v1279 = vpop.f32.mrf.mxu0
      %1280 = vmatprep.mubr.f32.mxu0 0.0
      %1281 = vmatmul.mubr.f32.gmra.mxu0 %v1073
      %v1282 = vpop.f32.mrf.mxu0
      %v1283 = vadd.f32 0.0, %v1282
      %v1284 = vpop.f32.mrf.mxu0
      %1285 = vmatprep.mubr.f32.mxu0 0.0
      %1286 = vmatmul.mubr.f32.gmra.mxu0 %v1076
      %v1287 = vpop.f32.mrf.mxu0
      %v1288 = vadd.f32 0.0, %v1287
      %v1289 = vpop.f32.mrf.mxu0
      %1290 = vmatprep.mubr.f32.mxu0 0.0
      %1291 = vmatmul.mubr.f32.gmra.mxu0 %v1079
      %v1292 = vpop.f32.mrf.mxu0
      %v1293 = vadd.f32 0.0, %v1292
      %v1294 = vpop.f32.mrf.mxu0
      %1295 = vmatprep.mubr.f32.mxu0 0.0
      %1296 = vmatmul.mubr.f32.gmra.mxu0 %v1082
      %v1297 = vpop.f32.mrf.mxu0
      %v1298 = vadd.f32 0.0, %v1297
      %v1299 = vpop.f32.mrf.mxu0
      %1300 = vmatprep.mubr.f32.mxu0 0.0
      %1301 = vmatmul.mubr.f32.gmra.mxu0 %v1085
      %v1302 = vpop.f32.mrf.mxu0
      %v1303 = vadd.f32 0.0, %v1302
      %v1304 = vpop.f32.mrf.mxu0
      %1305 = vmatprep.mubr.f32.mxu0 0.0
      %1306 = vmatmul.mubr.f32.gmra.mxu0 %v1088
      %v1307 = vpop.f32.mrf.mxu0
      %v1308 = vadd.f32 0.0, %v1307
      %v1309 = vpop.f32.mrf.mxu0
      %1310 = vmatprep.mubr.f32.mxu0 0.0
      %1311 = vmatmul.mubr.f32.gmra.mxu0 %v1091
      %v1312 = vpop.f32.mrf.mxu0
      %v1313 = vadd.f32 0.0, %v1312
      %v1314 = vpop.f32.mrf.mxu0
      %1315 = vmatprep.mubr.f32.mxu0 0.0
      %1316 = vmatmul.mubr.f32.gmra.mxu0 %v1094
      %v1317 = vpop.f32.mrf.mxu0
      %v1318 = vadd.f32 0.0, %v1317
      %v1319 = vpop.f32.mrf.mxu0
      %1320 = vmatprep.mubr.f32.mxu0 0.0
      %1321 = vmatmul.mubr.f32.gmra.mxu0 %v1097
      %v1322 = vpop.f32.mrf.mxu0
      %v1323 = vadd.f32 0.0, %v1322
      %v1324 = vpop.f32.mrf.mxu0
      %1325 = vmatprep.mubr.f32.mxu0 0.0
      %1326 = vmatmul.mubr.f32.gmra.mxu0 %v1100
      %v1327 = vpop.f32.mrf.mxu0
      %v1328 = vadd.f32 0.0, %v1327
      %v1329 = vpop.f32.mrf.mxu0
      %1330 = vdwg.mxu0
      %vm1331 = vcmask 64512
      %1332 = vst.msk [vmem:[#allocation3] sm:$0xff] %vm1331, %v1173
      %1333 = vst.msk [vmem:[#allocation3 + $0x8] sm:$0xff] %vm1331, %v1178
      %1334 = vst.msk [vmem:[#allocation3 + $0x10] sm:$0xff] %vm1331, %v1183
      %1335 = vst.msk [vmem:[#allocation3 + $0x18] sm:$0xff] %vm1331, %v1188
      %1336 = vst.msk [vmem:[#allocation3 + $0x20] sm:$0xff] %vm1331, %v1193
      %1337 = vst.msk [vmem:[#allocation3 + $0x28] sm:$0xff] %vm1331, %v1198
      %1338 = vst.msk [vmem:[#allocation3 + $0x30] sm:$0xff] %vm1331, %v1203
      %1339 = vst.msk [vmem:[#allocation3 + $0x38] sm:$0xff] %vm1331, %v1208
      %1340 = vst.msk [vmem:[#allocation3 + $0x40] sm:$0xff] %vm1331, %v1213
      %1341 = vst.msk [vmem:[#allocation3 + $0x48] sm:$0xff] %vm1331, %v1218
      %1342 = vst.msk [vmem:[#allocation3 + $0x50] sm:$0xff] %vm1331, %v1223
      %1343 = vst.msk [vmem:[#allocation3 + $0x58] sm:$0xff] %vm1331, %v1228
      %1344 = vst.msk [vmem:[#allocation3 + $0x60] sm:$0xff] %vm1331, %v1233
      %1345 = vst.msk [vmem:[#allocation3 + $0x68] sm:$0xff] %vm1331, %v1238
      %1346 = vst.msk [vmem:[#allocation3 + $0x70] sm:$0xff] %vm1331, %v1243
      %1347 = vst.msk [vmem:[#allocation3 + $0x78] sm:$0xff] %vm1331, %v1248
      %1348 = vst.msk [vmem:[#allocation3 + $0x80] sm:$0xff] %vm1331, %v1253
      %1349 = vst.msk [vmem:[#allocation3 + $0x88] sm:$0xff] %vm1331, %v1258
      %1350 = vst.msk [vmem:[#allocation3 + $0x90] sm:$0xff] %vm1331, %v1263
      %1351 = vst.msk [vmem:[#allocation3 + $0x98] sm:$0xff] %vm1331, %v1268
      %1352 = vst.msk [vmem:[#allocation3 + $0xa0] sm:$0xff] %vm1331, %v1273
      %1353 = vst.msk [vmem:[#allocation3 + $0xa8] sm:$0xff] %vm1331, %v1278
      %1354 = vst.msk [vmem:[#allocation3 + $0xb0] sm:$0xff] %vm1331, %v1283
      %1355 = vst.msk [vmem:[#allocation3 + $0xb8] sm:$0xff] %vm1331, %v1288
      %1356 = vst.msk [vmem:[#allocation3 + $0xc0] sm:$0xff] %vm1331, %v1293
      %1357 = vst.msk [vmem:[#allocation3 + $0xc8] sm:$0xff] %vm1331, %v1298
      %1358 = vst.msk [vmem:[#allocation3 + $0xd0] sm:$0xff] %vm1331, %v1303
      %1359 = vst.msk [vmem:[#allocation3 + $0xd8] sm:$0xff] %vm1331, %v1308
      %1360 = vst.msk [vmem:[#allocation3 + $0xe0] sm:$0xff] %vm1331, %v1313
      %1361 = vst.msk [vmem:[#allocation3 + $0xe8] sm:$0xff] %vm1331, %v1318
      %1362 = vst.msk [vmem:[#allocation3 + $0xf0] sm:$0xff] %vm1331, %v1323
      %1363 = vst.msk [vmem:[#allocation3 + $0xf8] sm:$0xff] %vm1331, %v1328
      %vm1380 = vcmask 1046528
      %v1381 = vrot.slane %v951, 1
      %v1382 = vrot.slane %v952, 1
      %v1383 = vsel %vm1380, %v1381, %v1382
      %v1384 = vrot.slane %v953, 1
      %v1385 = vsel %vm1380, %v1382, %v1384
      %v1386 = vrot.slane %v954, 1
      %v1387 = vrot.slane %v955, 1
      %v1388 = vsel %vm1380, %v1386, %v1387
      %v1389 = vrot.slane %v956, 1
      %v1390 = vsel %vm1380, %v1387, %v1389
      %v1391 = vrot.slane %v957, 1
      %v1392 = vrot.slane %v958, 1
      %v1393 = vsel %vm1380, %v1391, %v1392
      %v1394 = vrot.slane %v959, 1
      %v1395 = vsel %vm1380, %v1392, %v1394
      %v1396 = vrot.slane %v960, 1
      %v1397 = vrot.slane %v961, 1
      %v1398 = vsel %vm1380, %v1396, %v1397
      %v1399 = vrot.slane %v962, 1
      %v1400 = vsel %vm1380, %v1397, %v1399
      %v1401 = vrot.slane %v963, 1
      %v1402 = vrot.slane %v964, 1
      %v1403 = vsel %vm1380, %v1401, %v1402
      %v1404 = vrot.slane %v965, 1
      %v1405 = vsel %vm1380, %v1402, %v1404
      %v1406 = vrot.slane %v966, 1
      %v1407 = vrot.slane %v967, 1
      %v1408 = vsel %vm1380, %v1406, %v1407
      %v1409 = vrot.slane %v968, 1
      %v1410 = vsel %vm1380, %v1407, %v1409
      %v1411 = vrot.slane %v969, 1
      %v1412 = vrot.slane %v970, 1
      %v1413 = vsel %vm1380, %v1411, %v1412
      %v1414 = vrot.slane %v971, 1
      %v1415 = vsel %vm1380, %v1412, %v1414
      %v1416 = vrot.slane %v972, 1
      %v1417 = vrot.slane %v973, 1
      %v1418 = vsel %vm1380, %v1416, %v1417
      %v1419 = vrot.slane %v974, 1
      %v1420 = vsel %vm1380, %v1417, %v1419
      %v1421 = vrot.slane %v975, 1
      %v1422 = vrot.slane %v976, 1
      %v1423 = vsel %vm1380, %v1421, %v1422
      %v1424 = vrot.slane %v977, 1
      %v1425 = vsel %vm1380, %v1422, %v1424
      %v1426 = vrot.slane %v978, 1
      %v1427 = vrot.slane %v979, 1
      %v1428 = vsel %vm1380, %v1426, %v1427
      %v1429 = vrot.slane %v980, 1
      %v1430 = vsel %vm1380, %v1427, %v1429
      %v1431 = vrot.slane %v981, 1
      %v1432 = vrot.slane %v982, 1
      %v1433 = vsel %vm1380, %v1431, %v1432
      %v1434 = vrot.slane %v983, 1
      %v1435 = vsel %vm1380, %v1432, %v1434
      %v1436 = vrot.slane %v984, 1
      %v1437 = vrot.slane %v985, 1
      %v1438 = vsel %vm1380, %v1436, %v1437
      %v1439 = vrot.slane %v986, 1
      %v1440 = vsel %vm1380, %v1437, %v1439
      %v1441 = vrot.slane %v987, 1
      %v1442 = vrot.slane %v988, 1
      %v1443 = vsel %vm1380, %v1441, %v1442
      %v1444 = vrot.slane %v989, 1
      %v1445 = vsel %vm1380, %v1442, %v1444
      %v1446 = vrot.slane %v990, 1
      %v1447 = vrot.slane %v991, 1
      %v1448 = vsel %vm1380, %v1446, %v1447
      %v1449 = vrot.slane %v992, 1
      %v1450 = vsel %vm1380, %v1447, %v1449
      %v1451 = vrot.slane %v993, 1
      %v1452 = vrot.slane %v994, 1
      %v1453 = vsel %vm1380, %v1451, %v1452
      %v1454 = vrot.slane %v995, 1
      %v1455 = vsel %vm1380, %v1452, %v1454
      %v1456 = vrot.slane %v996, 1
      %v1457 = vrot.slane %v997, 1
      %v1458 = vsel %vm1380, %v1456, %v1457
      %v1459 = vrot.slane %v998, 1
      %v1460 = vsel %vm1380, %v1457, %v1459
      %s1461 = scalar_lea.vmem %s4, 4
      %v1462 = vld [vmem:[%s1461] sm:$0xf]
      %v1463 = vsel %vm364, %v1383, 0
      %v1465 = vsel %vm364, %v1385, 0
      %v1467 = vsel %vm364, %v1388, 0
      %v1469 = vsel %vm364, %v1390, 0
      %v1471 = vsel %vm364, %v1393, 0
      %v1473 = vsel %vm364, %v1395, 0
      %v1475 = vsel %vm364, %v1398, 0
      %v1477 = vsel %vm364, %v1400, 0
      %v1479 = vsel %vm364, %v1403, 0
      %v1481 = vsel %vm364, %v1405, 0
      %v1483 = vsel %vm364, %v1408, 0
      %v1485 = vsel %vm364, %v1410, 0
      %v1487 = vsel %vm364, %v1413, 0
      %v1489 = vsel %vm364, %v1415, 0
      %v1491 = vsel %vm364, %v1418, 0
      %v1493 = vsel %vm364, %v1420, 0
      %v1495 = vsel %vm364, %v1423, 0
      %v1497 = vsel %vm364, %v1425, 0
      %v1499 = vsel %vm364, %v1428, 0
      %v1501 = vsel %vm364, %v1430, 0
      %v1503 = vsel %vm364, %v1433, 0
      %v1505 = vsel %vm364, %v1435, 0
      %v1507 = vsel %vm364, %v1438, 0
      %v1509 = vsel %vm364, %v1440, 0
      %v1511 = vsel %vm364, %v1443, 0
      %v1513 = vsel %vm364, %v1445, 0
      %v1515 = vsel %vm364, %v1448, 0
      %v1517 = vsel %vm364, %v1450, 0
      %v1519 = vsel %vm364, %v1453, 0
      %v1521 = vsel %vm364, %v1455, 0
      %v1523 = vsel %vm364, %v1458, 0
      %v1525 = vsel %vm364, %v1460, 0
      %v1528 = vsel %vm1102, %v1462, 0
      %1530 = vmatprep.subr.mxu0 0.0
      %1531 = vmatpush1.msra.mxu0 0.0
      %1532 = vmatprep.subr.mxu0 0.0
      %1533 = vmatpush1.msra.mxu0 0.0
      %1534 = vmatprep.subr.mxu0 0.0
      %1535 = vmatpush1.msra.mxu0 0.0
      %1536 = vmatprep.subr.mxu0 0.0
      %1537 = vmatpush1.msra.mxu0 0.0
      %1538 = vmatprep.subr.mxu0 0.0
      %1539 = vmatpush1.msra.mxu0 0.0
      %1540 = vmatprep.subr.mxu0 0.0
      %1541 = vmatpush1.msra.mxu0 0.0
      %1542 = vmatprep.subr.mxu0 0.0
      %1543 = vmatpush1.msra.mxu0 0.0
      %1544 = vmatprep.subr.mxu0 0.0
      %1545 = vmatpush1.msra.mxu0 0.0
      %1546 = vmatprep.subr.mxu0 0.0
      %1547 = vmatpush1.msra.mxu0 0.0
      %1548 = vmatprep.subr.mxu0 0.0
      %1549 = vmatpush1.msra.mxu0 0.0
      %1550 = vmatprep.subr.mxu0 0.0
      %1551 = vmatpush1.msra.mxu0 0.0
      %1552 = vmatprep.subr.mxu0 0.0
      %1553 = vmatpush1.msra.mxu0 0.0
      %1554 = vmatprep.subr.mxu0 0.0
      %1555 = vmatpush1.msra.mxu0 0.0
      %1556 = vmatprep.subr.mxu0 0.0
      %1557 = vmatpush1.msra.mxu0 0.0
      %1558 = vmatprep.subr.mxu0 0.0
      %1559 = vmatpush1.msra.mxu0 0.0
      %1560 = vmatprep.subr.mxu0 0.0
      %1561 = vmatpush1.msra.mxu0 %v1528
      %1562 = vmatprep.subr.mxu0 0.0
      %1563 = vmatpush2.msra.mxu0 0.0
      %1564 = vmatprep.subr.mxu0 0.0
      %1565 = vmatpush2.msra.mxu0 0.0
      %1566 = vmatprep.subr.mxu0 0.0
      %1567 = vmatpush2.msra.mxu0 0.0
      %1568 = vmatprep.subr.mxu0 0.0
      %1569 = vmatpush2.msra.mxu0 0.0
      %1570 = vmatprep.subr.mxu0 0.0
      %1571 = vmatpush2.msra.mxu0 0.0
      %1572 = vmatprep.subr.mxu0 0.0
      %1573 = vmatpush2.msra.mxu0 0.0
      %1574 = vmatprep.subr.mxu0 0.0
      %1575 = vmatpush2.msra.mxu0 0.0
      %1576 = vmatprep.subr.mxu0 0.0
      %1577 = vmatpush2.msra.mxu0 0.0
      %1578 = vmatprep.subr.mxu0 0.0
      %1579 = vmatpush2.msra.mxu0 0.0
      %1580 = vmatprep.subr.mxu0 0.0
      %1581 = vmatpush2.msra.mxu0 0.0
      %1582 = vmatprep.subr.mxu0 0.0
      %1583 = vmatpush2.msra.mxu0 0.0
      %1584 = vmatprep.subr.mxu0 0.0
      %1585 = vmatpush2.msra.mxu0 0.0
      %1586 = vmatprep.subr.mxu0 0.0
      %1587 = vmatpush2.msra.mxu0 0.0
      %1588 = vmatprep.subr.mxu0 0.0
      %1589 = vmatpush2.msra.mxu0 0.0
      %1590 = vmatprep.subr.mxu0 0.0
      %1591 = vmatpush2.msra.mxu0 0.0
      %1592 = vmatprep.subr.mxu0 0.0
      %1593 = vmatpush2.msra.mxu0 0.0
      %1594 = vmatprep.mubr.f32.mxu0 0.0
      %1595 = vmatmul.mubr.f32.gmra.mxu0 %v1463
      %v1596 = vpop.f32.mrf.mxu0
      %v1597 = vadd.f32 0.0, %v1596
      %v1598 = vpop.f32.mrf.mxu0
      %1599 = vmatprep.mubr.f32.mxu0 0.0
      %1600 = vmatmul.mubr.f32.gmra.mxu0 %v1465
      %v1601 = vpop.f32.mrf.mxu0
      %v1602 = vadd.f32 0.0, %v1601
      %v1603 = vpop.f32.mrf.mxu0
      %1604 = vmatprep.mubr.f32.mxu0 0.0
      %1605 = vmatmul.mubr.f32.gmra.mxu0 %v1467
      %v1606 = vpop.f32.mrf.mxu0
      %v1607 = vadd.f32 0.0, %v1606
      %v1608 = vpop.f32.mrf.mxu0
      %1609 = vmatprep.mubr.f32.mxu0 0.0
      %1610 = vmatmul.mubr.f32.gmra.mxu0 %v1469
      %v1611 = vpop.f32.mrf.mxu0
      %v1612 = vadd.f32 0.0, %v1611
      %v1613 = vpop.f32.mrf.mxu0
      %1614 = vmatprep.mubr.f32.mxu0 0.0
      %1615 = vmatmul.mubr.f32.gmra.mxu0 %v1471
      %v1616 = vpop.f32.mrf.mxu0
      %v1617 = vadd.f32 0.0, %v1616
      %v1618 = vpop.f32.mrf.mxu0
      %1619 = vmatprep.mubr.f32.mxu0 0.0
      %1620 = vmatmul.mubr.f32.gmra.mxu0 %v1473
      %v1621 = vpop.f32.mrf.mxu0
      %v1622 = vadd.f32 0.0, %v1621
      %v1623 = vpop.f32.mrf.mxu0
      %1624 = vmatprep.mubr.f32.mxu0 0.0
      %1625 = vmatmul.mubr.f32.gmra.mxu0 %v1475
      %v1626 = vpop.f32.mrf.mxu0
      %v1627 = vadd.f32 0.0, %v1626
      %v1628 = vpop.f32.mrf.mxu0
      %1629 = vmatprep.mubr.f32.mxu0 0.0
      %1630 = vmatmul.mubr.f32.gmra.mxu0 %v1477
      %v1631 = vpop.f32.mrf.mxu0
      %v1632 = vadd.f32 0.0, %v1631
      %v1633 = vpop.f32.mrf.mxu0
      %1634 = vmatprep.mubr.f32.mxu0 0.0
      %1635 = vmatmul.mubr.f32.gmra.mxu0 %v1479
      %v1636 = vpop.f32.mrf.mxu0
      %v1637 = vadd.f32 0.0, %v1636
      %v1638 = vpop.f32.mrf.mxu0
      %1639 = vmatprep.mubr.f32.mxu0 0.0
      %1640 = vmatmul.mubr.f32.gmra.mxu0 %v1481
      %v1641 = vpop.f32.mrf.mxu0
      %v1642 = vadd.f32 0.0, %v1641
      %v1643 = vpop.f32.mrf.mxu0
      %1644 = vmatprep.mubr.f32.mxu0 0.0
      %1645 = vmatmul.mubr.f32.gmra.mxu0 %v1483
      %v1646 = vpop.f32.mrf.mxu0
      %v1647 = vadd.f32 0.0, %v1646
      %v1648 = vpop.f32.mrf.mxu0
      %1649 = vmatprep.mubr.f32.mxu0 0.0
      %1650 = vmatmul.mubr.f32.gmra.mxu0 %v1485
      %v1651 = vpop.f32.mrf.mxu0
      %v1652 = vadd.f32 0.0, %v1651
      %v1653 = vpop.f32.mrf.mxu0
      %1654 = vmatprep.mubr.f32.mxu0 0.0
      %1655 = vmatmul.mubr.f32.gmra.mxu0 %v1487
      %v1656 = vpop.f32.mrf.mxu0
      %v1657 = vadd.f32 0.0, %v1656
      %v1658 = vpop.f32.mrf.mxu0
      %1659 = vmatprep.mubr.f32.mxu0 0.0
      %1660 = vmatmul.mubr.f32.gmra.mxu0 %v1489
      %v1661 = vpop.f32.mrf.mxu0
      %v1662 = vadd.f32 0.0, %v1661
      %v1663 = vpop.f32.mrf.mxu0
      %1664 = vmatprep.mubr.f32.mxu0 0.0
      %1665 = vmatmul.mubr.f32.gmra.mxu0 %v1491
      %v1666 = vpop.f32.mrf.mxu0
      %v1667 = vadd.f32 0.0, %v1666
      %v1668 = vpop.f32.mrf.mxu0
      %1669 = vmatprep.mubr.f32.mxu0 0.0
      %1670 = vmatmul.mubr.f32.gmra.mxu0 %v1493
      %v1671 = vpop.f32.mrf.mxu0
      %v1672 = vadd.f32 0.0, %v1671
      %v1673 = vpop.f32.mrf.mxu0
      %1674 = vmatprep.mubr.f32.mxu0 0.0
      %1675 = vmatmul.mubr.f32.gmra.mxu0 %v1495
      %v1676 = vpop.f32.mrf.mxu0
      %v1677 = vadd.f32 0.0, %v1676
      %v1678 = vpop.f32.mrf.mxu0
      %1679 = vmatprep.mubr.f32.mxu0 0.0
      %1680 = vmatmul.mubr.f32.gmra.mxu0 %v1497
      %v1681 = vpop.f32.mrf.mxu0
      %v1682 = vadd.f32 0.0, %v1681
      %v1683 = vpop.f32.mrf.mxu0
      %1684 = vmatprep.mubr.f32.mxu0 0.0
      %1685 = vmatmul.mubr.f32.gmra.mxu0 %v1499
      %v1686 = vpop.f32.mrf.mxu0
      %v1687 = vadd.f32 0.0, %v1686
      %v1688 = vpop.f32.mrf.mxu0
      %1689 = vmatprep.mubr.f32.mxu0 0.0
      %1690 = vmatmul.mubr.f32.gmra.mxu0 %v1501
      %v1691 = vpop.f32.mrf.mxu0
      %v1692 = vadd.f32 0.0, %v1691
      %v1693 = vpop.f32.mrf.mxu0
      %1694 = vmatprep.mubr.f32.mxu0 0.0
      %1695 = vmatmul.mubr.f32.gmra.mxu0 %v1503
      %v1696 = vpop.f32.mrf.mxu0
      %v1697 = vadd.f32 0.0, %v1696
      %v1698 = vpop.f32.mrf.mxu0
      %1699 = vmatprep.mubr.f32.mxu0 0.0
      %1700 = vmatmul.mubr.f32.gmra.mxu0 %v1505
      %v1701 = vpop.f32.mrf.mxu0
      %v1702 = vadd.f32 0.0, %v1701
      %v1703 = vpop.f32.mrf.mxu0
      %1704 = vmatprep.mubr.f32.mxu0 0.0
      %1705 = vmatmul.mubr.f32.gmra.mxu0 %v1507
      %v1706 = vpop.f32.mrf.mxu0
      %v1707 = vadd.f32 0.0, %v1706
      %v1708 = vpop.f32.mrf.mxu0
      %1709 = vmatprep.mubr.f32.mxu0 0.0
      %1710 = vmatmul.mubr.f32.gmra.mxu0 %v1509
      %v1711 = vpop.f32.mrf.mxu0
      %v1712 = vadd.f32 0.0, %v1711
      %v1713 = vpop.f32.mrf.mxu0
      %1714 = vmatprep.mubr.f32.mxu0 0.0
      %1715 = vmatmul.mubr.f32.gmra.mxu0 %v1511
      %v1716 = vpop.f32.mrf.mxu0
      %v1717 = vadd.f32 0.0, %v1716
      %v1718 = vpop.f32.mrf.mxu0
      %1719 = vmatprep.mubr.f32.mxu0 0.0
      %1720 = vmatmul.mubr.f32.gmra.mxu0 %v1513
      %v1721 = vpop.f32.mrf.mxu0
      %v1722 = vadd.f32 0.0, %v1721
      %v1723 = vpop.f32.mrf.mxu0
      %1724 = vmatprep.mubr.f32.mxu0 0.0
      %1725 = vmatmul.mubr.f32.gmra.mxu0 %v1515
      %v1726 = vpop.f32.mrf.mxu0
      %v1727 = vadd.f32 0.0, %v1726
      %v1728 = vpop.f32.mrf.mxu0
      %1729 = vmatprep.mubr.f32.mxu0 0.0
      %1730 = vmatmul.mubr.f32.gmra.mxu0 %v1517
      %v1731 = vpop.f32.mrf.mxu0
      %v1732 = vadd.f32 0.0, %v1731
      %v1733 = vpop.f32.mrf.mxu0
      %1734 = vmatprep.mubr.f32.mxu0 0.0
      %1735 = vmatmul.mubr.f32.gmra.mxu0 %v1519
      %v1736 = vpop.f32.mrf.mxu0
      %v1737 = vadd.f32 0.0, %v1736
      %v1738 = vpop.f32.mrf.mxu0
      %1739 = vmatprep.mubr.f32.mxu0 0.0
      %1740 = vmatmul.mubr.f32.gmra.mxu0 %v1521
      %v1741 = vpop.f32.mrf.mxu0
      %v1742 = vadd.f32 0.0, %v1741
      %v1743 = vpop.f32.mrf.mxu0
      %1744 = vmatprep.mubr.f32.mxu0 0.0
      %1745 = vmatmul.mubr.f32.gmra.mxu0 %v1523
      %v1746 = vpop.f32.mrf.mxu0
      %v1747 = vadd.f32 0.0, %v1746
      %v1748 = vpop.f32.mrf.mxu0
      %1749 = vmatprep.mubr.f32.mxu0 0.0
      %1750 = vmatmul.mubr.f32.gmra.mxu0 %v1525
      %v1751 = vpop.f32.mrf.mxu0
      %v1752 = vadd.f32 0.0, %v1751
      %v1753 = vpop.f32.mrf.mxu0
      %1754 = vdwg.mxu0
      %v1755 = vld [vmem:[#allocation3] sm:$0xff]
      %v1756 = vld [vmem:[#allocation3 + $0x8] sm:$0xff]
      %v1757 = vld [vmem:[#allocation3 + $0x10] sm:$0xff]
      %v1758 = vld [vmem:[#allocation3 + $0x18] sm:$0xff]
      %v1759 = vld [vmem:[#allocation3 + $0x20] sm:$0xff]
      %v1760 = vld [vmem:[#allocation3 + $0x28] sm:$0xff]
      %v1761 = vld [vmem:[#allocation3 + $0x30] sm:$0xff]
      %v1762 = vld [vmem:[#allocation3 + $0x38] sm:$0xff]
      %v1763 = vld [vmem:[#allocation3 + $0x40] sm:$0xff]
      %v1764 = vld [vmem:[#allocation3 + $0x48] sm:$0xff]
      %v1765 = vld [vmem:[#allocation3 + $0x50] sm:$0xff]
      %v1766 = vld [vmem:[#allocation3 + $0x58] sm:$0xff]
      %v1767 = vld [vmem:[#allocation3 + $0x60] sm:$0xff]
      %v1768 = vld [vmem:[#allocation3 + $0x68] sm:$0xff]
      %v1769 = vld [vmem:[#allocation3 + $0x70] sm:$0xff]
      %v1770 = vld [vmem:[#allocation3 + $0x78] sm:$0xff]
      %v1771 = vld [vmem:[#allocation3 + $0x80] sm:$0xff]
      %v1772 = vld [vmem:[#allocation3 + $0x88] sm:$0xff]
      %v1773 = vld [vmem:[#allocation3 + $0x90] sm:$0xff]
      %v1774 = vld [vmem:[#allocation3 + $0x98] sm:$0xff]
      %v1775 = vld [vmem:[#allocation3 + $0xa0] sm:$0xff]
      %v1776 = vld [vmem:[#allocation3 + $0xa8] sm:$0xff]
      %v1777 = vld [vmem:[#allocation3 + $0xb0] sm:$0xff]
      %v1778 = vld [vmem:[#allocation3 + $0xb8] sm:$0xff]
      %v1779 = vld [vmem:[#allocation3 + $0xc0] sm:$0xff]
      %v1780 = vld [vmem:[#allocation3 + $0xc8] sm:$0xff]
      %v1781 = vld [vmem:[#allocation3 + $0xd0] sm:$0xff]
      %v1782 = vld [vmem:[#allocation3 + $0xd8] sm:$0xff]
      %v1783 = vld [vmem:[#allocation3 + $0xe0] sm:$0xff]
      %v1784 = vld [vmem:[#allocation3 + $0xe8] sm:$0xff]
      %v1785 = vld [vmem:[#allocation3 + $0xf0] sm:$0xff]
      %v1786 = vld [vmem:[#allocation3 + $0xf8] sm:$0xff]
      %v1787 = vadd.f32 %v1755, %v1597
      %v1788 = vadd.f32 %v1756, %v1602
      %v1789 = vadd.f32 %v1757, %v1607
      %v1790 = vadd.f32 %v1758, %v1612
      %v1791 = vadd.f32 %v1759, %v1617
      %v1792 = vadd.f32 %v1760, %v1622
      %v1793 = vadd.f32 %v1761, %v1627
      %v1794 = vadd.f32 %v1762, %v1632
      %v1795 = vadd.f32 %v1763, %v1637
      %v1796 = vadd.f32 %v1764, %v1642
      %v1797 = vadd.f32 %v1765, %v1647
      %v1798 = vadd.f32 %v1766, %v1652
      %v1799 = vadd.f32 %v1767, %v1657
      %v1800 = vadd.f32 %v1768, %v1662
      %v1801 = vadd.f32 %v1769, %v1667
      %v1802 = vadd.f32 %v1770, %v1672
      %v1803 = vadd.f32 %v1771, %v1677
      %v1804 = vadd.f32 %v1772, %v1682
      %v1805 = vadd.f32 %v1773, %v1687
      %v1806 = vadd.f32 %v1774, %v1692
      %v1807 = vadd.f32 %v1775, %v1697
      %v1808 = vadd.f32 %v1776, %v1702
      %v1809 = vadd.f32 %v1777, %v1707
      %v1810 = vadd.f32 %v1778, %v1712
      %v1811 = vadd.f32 %v1779, %v1717
      %v1812 = vadd.f32 %v1780, %v1722
      %v1813 = vadd.f32 %v1781, %v1727
      %v1814 = vadd.f32 %v1782, %v1732
      %v1815 = vadd.f32 %v1783, %v1737
      %v1816 = vadd.f32 %v1784, %v1742
      %v1817 = vadd.f32 %v1785, %v1747
      %v1818 = vadd.f32 %v1786, %v1752
      %1819 = vst.msk [vmem:[#allocation3] sm:$0xff] %vm1331, %v1787
      %1820 = vst.msk [vmem:[#allocation3 + $0x8] sm:$0xff] %vm1331, %v1788
      %1821 = vst.msk [vmem:[#allocation3 + $0x10] sm:$0xff] %vm1331, %v1789
      %1822 = vst.msk [vmem:[#allocation3 + $0x18] sm:$0xff] %vm1331, %v1790
      %1823 = vst.msk [vmem:[#allocation3 + $0x20] sm:$0xff] %vm1331, %v1791
      %1824 = vst.msk [vmem:[#allocation3 + $0x28] sm:$0xff] %vm1331, %v1792
      %1825 = vst.msk [vmem:[#allocation3 + $0x30] sm:$0xff] %vm1331, %v1793
      %1826 = vst.msk [vmem:[#allocation3 + $0x38] sm:$0xff] %vm1331, %v1794
      %1827 = vst.msk [vmem:[#allocation3 + $0x40] sm:$0xff] %vm1331, %v1795
      %1828 = vst.msk [vmem:[#allocation3 + $0x48] sm:$0xff] %vm1331, %v1796
      %1829 = vst.msk [vmem:[#allocation3 + $0x50] sm:$0xff] %vm1331, %v1797
      %1830 = vst.msk [vmem:[#allocation3 + $0x58] sm:$0xff] %vm1331, %v1798
      %1831 = vst.msk [vmem:[#allocation3 + $0x60] sm:$0xff] %vm1331, %v1799
      %1832 = vst.msk [vmem:[#allocation3 + $0x68] sm:$0xff] %vm1331, %v1800
      %1833 = vst.msk [vmem:[#allocation3 + $0x70] sm:$0xff] %vm1331, %v1801
      %1834 = vst.msk [vmem:[#allocation3 + $0x78] sm:$0xff] %vm1331, %v1802
      %1835 = vst.msk [vmem:[#allocation3 + $0x80] sm:$0xff] %vm1331, %v1803
      %1836 = vst.msk [vmem:[#allocation3 + $0x88] sm:$0xff] %vm1331, %v1804
      %1837 = vst.msk [vmem:[#allocation3 + $0x90] sm:$0xff] %vm1331, %v1805
      %1838 = vst.msk [vmem:[#allocation3 + $0x98] sm:$0xff] %vm1331, %v1806
      %1839 = vst.msk [vmem:[#allocation3 + $0xa0] sm:$0xff] %vm1331, %v1807
      %1840 = vst.msk [vmem:[#allocation3 + $0xa8] sm:$0xff] %vm1331, %v1808
      %1841 = vst.msk [vmem:[#allocation3 + $0xb0] sm:$0xff] %vm1331, %v1809
      %1842 = vst.msk [vmem:[#allocation3 + $0xb8] sm:$0xff] %vm1331, %v1810
      %1843 = vst.msk [vmem:[#allocation3 + $0xc0] sm:$0xff] %vm1331, %v1811
      %1844 = vst.msk [vmem:[#allocation3 + $0xc8] sm:$0xff] %vm1331, %v1812
      %1845 = vst.msk [vmem:[#allocation3 + $0xd0] sm:$0xff] %vm1331, %v1813
      %1846 = vst.msk [vmem:[#allocation3 + $0xd8] sm:$0xff] %vm1331, %v1814
      %1847 = vst.msk [vmem:[#allocation3 + $0xe0] sm:$0xff] %vm1331, %v1815
      %1848 = vst.msk [vmem:[#allocation3 + $0xe8] sm:$0xff] %vm1331, %v1816
      %1849 = vst.msk [vmem:[#allocation3 + $0xf0] sm:$0xff] %vm1331, %v1817
      %1850 = vst.msk [vmem:[#allocation3 + $0xf8] sm:$0xff] %vm1331, %v1818
      %vm1851 = vcmask 1045504
      %v1852 = vrot.slane %v951, 2
      %v1853 = vrot.slane %v952, 2
      %v1854 = vsel %vm1851, %v1852, %v1853
      %v1855 = vrot.slane %v953, 2
      %v1856 = vsel %vm1851, %v1853, %v1855
      %v1857 = vrot.slane %v954, 2
      %v1858 = vrot.slane %v955, 2
      %v1859 = vsel %vm1851, %v1857, %v1858
      %v1860 = vrot.slane %v956, 2
      %v1861 = vsel %vm1851, %v1858, %v1860
      %v1862 = vrot.slane %v957, 2
      %v1863 = vrot.slane %v958, 2
      %v1864 = vsel %vm1851, %v1862, %v1863
      %v1865 = vrot.slane %v959, 2
      %v1866 = vsel %vm1851, %v1863, %v1865
      %v1867 = vrot.slane %v960, 2
      %v1868 = vrot.slane %v961, 2
      %v1869 = vsel %vm1851, %v1867, %v1868
      %v1870 = vrot.slane %v962, 2
      %v1871 = vsel %vm1851, %v1868, %v1870
      %v1872 = vrot.slane %v963, 2
      %v1873 = vrot.slane %v964, 2
      %v1874 = vsel %vm1851, %v1872, %v1873
      %v1875 = vrot.slane %v965, 2
      %v1876 = vsel %vm1851, %v1873, %v1875
      %v1877 = vrot.slane %v966, 2
      %v1878 = vrot.slane %v967, 2
      %v1879 = vsel %vm1851, %v1877, %v1878
      %v1880 = vrot.slane %v968, 2
      %v1881 = vsel %vm1851, %v1878, %v1880
      %v1882 = vrot.slane %v969, 2
      %v1883 = vrot.slane %v970, 2
      %v1884 = vsel %vm1851, %v1882, %v1883
      %v1885 = vrot.slane %v971, 2
      %v1886 = vsel %vm1851, %v1883, %v1885
      %v1887 = vrot.slane %v972, 2
      %v1888 = vrot.slane %v973, 2
      %v1889 = vsel %vm1851, %v1887, %v1888
      %v1890 = vrot.slane %v974, 2
      %v1891 = vsel %vm1851, %v1888, %v1890
      %v1892 = vrot.slane %v975, 2
      %v1893 = vrot.slane %v976, 2
      %v1894 = vsel %vm1851, %v1892, %v1893
      %v1895 = vrot.slane %v977, 2
      %v1896 = vsel %vm1851, %v1893, %v1895
      %v1897 = vrot.slane %v978, 2
      %v1898 = vrot.slane %v979, 2
      %v1899 = vsel %vm1851, %v1897, %v1898
      %v1900 = vrot.slane %v980, 2
      %v1901 = vsel %vm1851, %v1898, %v1900
      %v1902 = vrot.slane %v981, 2
      %v1903 = vrot.slane %v982, 2
      %v1904 = vsel %vm1851, %v1902, %v1903
      %v1905 = vrot.slane %v983, 2
      %v1906 = vsel %vm1851, %v1903, %v1905
      %v1907 = vrot.slane %v984, 2
      %v1908 = vrot.slane %v985, 2
      %v1909 = vsel %vm1851, %v1907, %v1908
      %v1910 = vrot.slane %v986, 2
      %v1911 = vsel %vm1851, %v1908, %v1910
      %v1912 = vrot.slane %v987, 2
      %v1913 = vrot.slane %v988, 2
      %v1914 = vsel %vm1851, %v1912, %v1913
      %v1915 = vrot.slane %v989, 2
      %v1916 = vsel %vm1851, %v1913, %v1915
      %v1917 = vrot.slane %v990, 2
      %v1918 = vrot.slane %v991, 2
      %v1919 = vsel %vm1851, %v1917, %v1918
      %v1920 = vrot.slane %v992, 2
      %v1921 = vsel %vm1851, %v1918, %v1920
      %v1922 = vrot.slane %v993, 2
      %v1923 = vrot.slane %v994, 2
      %v1924 = vsel %vm1851, %v1922, %v1923
      %v1925 = vrot.slane %v995, 2
      %v1926 = vsel %vm1851, %v1923, %v1925
      %v1927 = vrot.slane %v996, 2
      %v1928 = vrot.slane %v997, 2
      %v1929 = vsel %vm1851, %v1927, %v1928
      %v1930 = vrot.slane %v998, 2
      %v1931 = vsel %vm1851, %v1928, %v1930
      %s1932 = scalar_lea.vmem %s4, 8
      %v1933 = vld [vmem:[%s1932] sm:$0xf]
      %v1934 = vsel %vm364, %v1854, 0
      %v1936 = vsel %vm364, %v1856, 0
      %v1938 = vsel %vm364, %v1859, 0
      %v1940 = vsel %vm364, %v1861, 0
      %v1942 = vsel %vm364, %v1864, 0
      %v1944 = vsel %vm364, %v1866, 0
      %v1946 = vsel %vm364, %v1869, 0
      %v1948 = vsel %vm364, %v1871, 0
      %v1950 = vsel %vm364, %v1874, 0
      %v1952 = vsel %vm364, %v1876, 0
      %v1954 = vsel %vm364, %v1879, 0
      %v1956 = vsel %vm364, %v1881, 0
      %v1958 = vsel %vm364, %v1884, 0
      %v1960 = vsel %vm364, %v1886, 0
      %v1962 = vsel %vm364, %v1889, 0
      %v1964 = vsel %vm364, %v1891, 0
      %v1966 = vsel %vm364, %v1894, 0
      %v1968 = vsel %vm364, %v1896, 0
      %v1970 = vsel %vm364, %v1899, 0
      %v1972 = vsel %vm364, %v1901, 0
      %v1974 = vsel %vm364, %v1904, 0
      %v1976 = vsel %vm364, %v1906, 0
      %v1978 = vsel %vm364, %v1909, 0
      %v1980 = vsel %vm364, %v1911, 0
      %v1982 = vsel %vm364, %v1914, 0
      %v1984 = vsel %vm364, %v1916, 0
      %v1986 = vsel %vm364, %v1919, 0
      %v1988 = vsel %vm364, %v1921, 0
      %v1990 = vsel %vm364, %v1924, 0
      %v1992 = vsel %vm364, %v1926, 0
      %v1994 = vsel %vm364, %v1929, 0
      %v1996 = vsel %vm364, %v1931, 0
      %v1999 = vsel %vm1102, %v1933, 0
      %2001 = vmatprep.subr.mxu0 0.0
      %2002 = vmatpush1.msra.mxu0 0.0
      %2003 = vmatprep.subr.mxu0 0.0
      %2004 = vmatpush1.msra.mxu0 0.0
      %2005 = vmatprep.subr.mxu0 0.0
      %2006 = vmatpush1.msra.mxu0 0.0
      %2007 = vmatprep.subr.mxu0 0.0
      %2008 = vmatpush1.msra.mxu0 0.0
      %2009 = vmatprep.subr.mxu0 0.0
      %2010 = vmatpush1.msra.mxu0 0.0
      %2011 = vmatprep.subr.mxu0 0.0
      %2012 = vmatpush1.msra.mxu0 0.0
      %2013 = vmatprep.subr.mxu0 0.0
      %2014 = vmatpush1.msra.mxu0 0.0
      %2015 = vmatprep.subr.mxu0 0.0
      %2016 = vmatpush1.msra.mxu0 0.0
      %2017 = vmatprep.subr.mxu0 0.0
      %2018 = vmatpush1.msra.mxu0 0.0
      %2019 = vmatprep.subr.mxu0 0.0
      %2020 = vmatpush1.msra.mxu0 0.0
      %2021 = vmatprep.subr.mxu0 0.0
      %2022 = vmatpush1.msra.mxu0 0.0
      %2023 = vmatprep.subr.mxu0 0.0
      %2024 = vmatpush1.msra.mxu0 0.0
      %2025 = vmatprep.subr.mxu0 0.0
      %2026 = vmatpush1.msra.mxu0 0.0
      %2027 = vmatprep.subr.mxu0 0.0
      %2028 = vmatpush1.msra.mxu0 0.0
      %2029 = vmatprep.subr.mxu0 0.0
      %2030 = vmatpush1.msra.mxu0 0.0
      %2031 = vmatprep.subr.mxu0 0.0
      %2032 = vmatpush1.msra.mxu0 %v1999
      %2033 = vmatprep.subr.mxu0 0.0
      %2034 = vmatpush2.msra.mxu0 0.0
      %2035 = vmatprep.subr.mxu0 0.0
      %2036 = vmatpush2.msra.mxu0 0.0
      %2037 = vmatprep.subr.mxu0 0.0
      %2038 = vmatpush2.msra.mxu0 0.0
      %2039 = vmatprep.subr.mxu0 0.0
      %2040 = vmatpush2.msra.mxu0 0.0
      %2041 = vmatprep.subr.mxu0 0.0
      %2042 = vmatpush2.msra.mxu0 0.0
      %2043 = vmatprep.subr.mxu0 0.0
      %2044 = vmatpush2.msra.mxu0 0.0
      %2045 = vmatprep.subr.mxu0 0.0
      %2046 = vmatpush2.msra.mxu0 0.0
      %2047 = vmatprep.subr.mxu0 0.0
      %2048 = vmatpush2.msra.mxu0 0.0
      %2049 = vmatprep.subr.mxu0 0.0
      %2050 = vmatpush2.msra.mxu0 0.0
      %2051 = vmatprep.subr.mxu0 0.0
      %2052 = vmatpush2.msra.mxu0 0.0
      %2053 = vmatprep.subr.mxu0 0.0
      %2054 = vmatpush2.msra.mxu0 0.0
      %2055 = vmatprep.subr.mxu0 0.0
      %2056 = vmatpush2.msra.mxu0 0.0
      %2057 = vmatprep.subr.mxu0 0.0
      %2058 = vmatpush2.msra.mxu0 0.0
      %2059 = vmatprep.subr.mxu0 0.0
      %2060 = vmatpush2.msra.mxu0 0.0
      %2061 = vmatprep.subr.mxu0 0.0
      %2062 = vmatpush2.msra.mxu0 0.0
      %2063 = vmatprep.subr.mxu0 0.0
      %2064 = vmatpush2.msra.mxu0 0.0
      %2065 = vmatprep.mubr.f32.mxu0 0.0
      %2066 = vmatmul.mubr.f32.gmra.mxu0 %v1934
      %v2067 = vpop.f32.mrf.mxu0
      %v2068 = vadd.f32 0.0, %v2067
      %v2069 = vpop.f32.mrf.mxu0
      %2070 = vmatprep.mubr.f32.mxu0 0.0
      %2071 = vmatmul.mubr.f32.gmra.mxu0 %v1936
      %v2072 = vpop.f32.mrf.mxu0
      %v2073 = vadd.f32 0.0, %v2072
      %v2074 = vpop.f32.mrf.mxu0
      %2075 = vmatprep.mubr.f32.mxu0 0.0
      %2076 = vmatmul.mubr.f32.gmra.mxu0 %v1938
      %v2077 = vpop.f32.mrf.mxu0
      %v2078 = vadd.f32 0.0, %v2077
      %v2079 = vpop.f32.mrf.mxu0
      %2080 = vmatprep.mubr.f32.mxu0 0.0
      %2081 = vmatmul.mubr.f32.gmra.mxu0 %v1940
      %v2082 = vpop.f32.mrf.mxu0
      %v2083 = vadd.f32 0.0, %v2082
      %v2084 = vpop.f32.mrf.mxu0
      %2085 = vmatprep.mubr.f32.mxu0 0.0
      %2086 = vmatmul.mubr.f32.gmra.mxu0 %v1942
      %v2087 = vpop.f32.mrf.mxu0
      %v2088 = vadd.f32 0.0, %v2087
      %v2089 = vpop.f32.mrf.mxu0
      %2090 = vmatprep.mubr.f32.mxu0 0.0
      %2091 = vmatmul.mubr.f32.gmra.mxu0 %v1944
      %v2092 = vpop.f32.mrf.mxu0
      %v2093 = vadd.f32 0.0, %v2092
      %v2094 = vpop.f32.mrf.mxu0
      %2095 = vmatprep.mubr.f32.mxu0 0.0
      %2096 = vmatmul.mubr.f32.gmra.mxu0 %v1946
      %v2097 = vpop.f32.mrf.mxu0
      %v2098 = vadd.f32 0.0, %v2097
      %v2099 = vpop.f32.mrf.mxu0
      %2100 = vmatprep.mubr.f32.mxu0 0.0
      %2101 = vmatmul.mubr.f32.gmra.mxu0 %v1948
      %v2102 = vpop.f32.mrf.mxu0
      %v2103 = vadd.f32 0.0, %v2102
      %v2104 = vpop.f32.mrf.mxu0
      %2105 = vmatprep.mubr.f32.mxu0 0.0
      %2106 = vmatmul.mubr.f32.gmra.mxu0 %v1950
      %v2107 = vpop.f32.mrf.mxu0
      %v2108 = vadd.f32 0.0, %v2107
      %v2109 = vpop.f32.mrf.mxu0
      %2110 = vmatprep.mubr.f32.mxu0 0.0
      %2111 = vmatmul.mubr.f32.gmra.mxu0 %v1952
      %v2112 = vpop.f32.mrf.mxu0
      %v2113 = vadd.f32 0.0, %v2112
      %v2114 = vpop.f32.mrf.mxu0
      %2115 = vmatprep.mubr.f32.mxu0 0.0
      %2116 = vmatmul.mubr.f32.gmra.mxu0 %v1954
      %v2117 = vpop.f32.mrf.mxu0
      %v2118 = vadd.f32 0.0, %v2117
      %v2119 = vpop.f32.mrf.mxu0
      %2120 = vmatprep.mubr.f32.mxu0 0.0
      %2121 = vmatmul.mubr.f32.gmra.mxu0 %v1956
      %v2122 = vpop.f32.mrf.mxu0
      %v2123 = vadd.f32 0.0, %v2122
      %v2124 = vpop.f32.mrf.mxu0
      %2125 = vmatprep.mubr.f32.mxu0 0.0
      %2126 = vmatmul.mubr.f32.gmra.mxu0 %v1958
      %v2127 = vpop.f32.mrf.mxu0
      %v2128 = vadd.f32 0.0, %v2127
      %v2129 = vpop.f32.mrf.mxu0
      %2130 = vmatprep.mubr.f32.mxu0 0.0
      %2131 = vmatmul.mubr.f32.gmra.mxu0 %v1960
      %v2132 = vpop.f32.mrf.mxu0
      %v2133 = vadd.f32 0.0, %v2132
      %v2134 = vpop.f32.mrf.mxu0
      %2135 = vmatprep.mubr.f32.mxu0 0.0
      %2136 = vmatmul.mubr.f32.gmra.mxu0 %v1962
      %v2137 = vpop.f32.mrf.mxu0
      %v2138 = vadd.f32 0.0, %v2137
      %v2139 = vpop.f32.mrf.mxu0
      %2140 = vmatprep.mubr.f32.mxu0 0.0
      %2141 = vmatmul.mubr.f32.gmra.mxu0 %v1964
      %v2142 = vpop.f32.mrf.mxu0
      %v2143 = vadd.f32 0.0, %v2142
      %v2144 = vpop.f32.mrf.mxu0
      %2145 = vmatprep.mubr.f32.mxu0 0.0
      %2146 = vmatmul.mubr.f32.gmra.mxu0 %v1966
      %v2147 = vpop.f32.mrf.mxu0
      %v2148 = vadd.f32 0.0, %v2147
      %v2149 = vpop.f32.mrf.mxu0
      %2150 = vmatprep.mubr.f32.mxu0 0.0
      %2151 = vmatmul.mubr.f32.gmra.mxu0 %v1968
      %v2152 = vpop.f32.mrf.mxu0
      %v2153 = vadd.f32 0.0, %v2152
      %v2154 = vpop.f32.mrf.mxu0
      %2155 = vmatprep.mubr.f32.mxu0 0.0
      %2156 = vmatmul.mubr.f32.gmra.mxu0 %v1970
      %v2157 = vpop.f32.mrf.mxu0
      %v2158 = vadd.f32 0.0, %v2157
      %v2159 = vpop.f32.mrf.mxu0
      %2160 = vmatprep.mubr.f32.mxu0 0.0
      %2161 = vmatmul.mubr.f32.gmra.mxu0 %v1972
      %v2162 = vpop.f32.mrf.mxu0
      %v2163 = vadd.f32 0.0, %v2162
      %v2164 = vpop.f32.mrf.mxu0
      %2165 = vmatprep.mubr.f32.mxu0 0.0
      %2166 = vmatmul.mubr.f32.gmra.mxu0 %v1974
      %v2167 = vpop.f32.mrf.mxu0
      %v2168 = vadd.f32 0.0, %v2167
      %v2169 = vpop.f32.mrf.mxu0
      %2170 = vmatprep.mubr.f32.mxu0 0.0
      %2171 = vmatmul.mubr.f32.gmra.mxu0 %v1976
      %v2172 = vpop.f32.mrf.mxu0
      %v2173 = vadd.f32 0.0, %v2172
      %v2174 = vpop.f32.mrf.mxu0
      %2175 = vmatprep.mubr.f32.mxu0 0.0
      %2176 = vmatmul.mubr.f32.gmra.mxu0 %v1978
      %v2177 = vpop.f32.mrf.mxu0
      %v2178 = vadd.f32 0.0, %v2177
      %v2179 = vpop.f32.mrf.mxu0
      %2180 = vmatprep.mubr.f32.mxu0 0.0
      %2181 = vmatmul.mubr.f32.gmra.mxu0 %v1980
      %v2182 = vpop.f32.mrf.mxu0
      %v2183 = vadd.f32 0.0, %v2182
      %v2184 = vpop.f32.mrf.mxu0
      %2185 = vmatprep.mubr.f32.mxu0 0.0
      %2186 = vmatmul.mubr.f32.gmra.mxu0 %v1982
      %v2187 = vpop.f32.mrf.mxu0
      %v2188 = vadd.f32 0.0, %v2187
      %v2189 = vpop.f32.mrf.mxu0
      %2190 = vmatprep.mubr.f32.mxu0 0.0
      %2191 = vmatmul.mubr.f32.gmra.mxu0 %v1984
      %v2192 = vpop.f32.mrf.mxu0
      %v2193 = vadd.f32 0.0, %v2192
      %v2194 = vpop.f32.mrf.mxu0
      %2195 = vmatprep.mubr.f32.mxu0 0.0
      %2196 = vmatmul.mubr.f32.gmra.mxu0 %v1986
      %v2197 = vpop.f32.mrf.mxu0
      %v2198 = vadd.f32 0.0, %v2197
      %v2199 = vpop.f32.mrf.mxu0
      %2200 = vmatprep.mubr.f32.mxu0 0.0
      %2201 = vmatmul.mubr.f32.gmra.mxu0 %v1988
      %v2202 = vpop.f32.mrf.mxu0
      %v2203 = vadd.f32 0.0, %v2202
      %v2204 = vpop.f32.mrf.mxu0
      %2205 = vmatprep.mubr.f32.mxu0 0.0
      %2206 = vmatmul.mubr.f32.gmra.mxu0 %v1990
      %v2207 = vpop.f32.mrf.mxu0
      %v2208 = vadd.f32 0.0, %v2207
      %v2209 = vpop.f32.mrf.mxu0
      %2210 = vmatprep.mubr.f32.mxu0 0.0
      %2211 = vmatmul.mubr.f32.gmra.mxu0 %v1992
      %v2212 = vpop.f32.mrf.mxu0
      %v2213 = vadd.f32 0.0, %v2212
      %v2214 = vpop.f32.mrf.mxu0
      %2215 = vmatprep.mubr.f32.mxu0 0.0
      %2216 = vmatmul.mubr.f32.gmra.mxu0 %v1994
      %v2217 = vpop.f32.mrf.mxu0
      %v2218 = vadd.f32 0.0, %v2217
      %v2219 = vpop.f32.mrf.mxu0
      %2220 = vmatprep.mubr.f32.mxu0 0.0
      %2221 = vmatmul.mubr.f32.gmra.mxu0 %v1996
      %v2222 = vpop.f32.mrf.mxu0
      %v2223 = vadd.f32 0.0, %v2222
      %v2224 = vpop.f32.mrf.mxu0
      %2225 = vdwg.mxu0
      %v2226 = vld [vmem:[#allocation3] sm:$0xff]
      %v2227 = vld [vmem:[#allocation3 + $0x8] sm:$0xff]
      %v2228 = vld [vmem:[#allocation3 + $0x10] sm:$0xff]
      %v2229 = vld [vmem:[#allocation3 + $0x18] sm:$0xff]
      %v2230 = vld [vmem:[#allocation3 + $0x20] sm:$0xff]
      %v2231 = vld [vmem:[#allocation3 + $0x28] sm:$0xff]
      %v2232 = vld [vmem:[#allocation3 + $0x30] sm:$0xff]
      %v2233 = vld [vmem:[#allocation3 + $0x38] sm:$0xff]
      %v2234 = vld [vmem:[#allocation3 + $0x40] sm:$0xff]
      %v2235 = vld [vmem:[#allocation3 + $0x48] sm:$0xff]
      %v2236 = vld [vmem:[#allocation3 + $0x50] sm:$0xff]
      %v2237 = vld [vmem:[#allocation3 + $0x58] sm:$0xff]
      %v2238 = vld [vmem:[#allocation3 + $0x60] sm:$0xff]
      %v2239 = vld [vmem:[#allocation3 + $0x68] sm:$0xff]
      %v2240 = vld [vmem:[#allocation3 + $0x70] sm:$0xff]
      %v2241 = vld [vmem:[#allocation3 + $0x78] sm:$0xff]
      %v2242 = vld [vmem:[#allocation3 + $0x80] sm:$0xff]
      %v2243 = vld [vmem:[#allocation3 + $0x88] sm:$0xff]
      %v2244 = vld [vmem:[#allocation3 + $0x90] sm:$0xff]
      %v2245 = vld [vmem:[#allocation3 + $0x98] sm:$0xff]
      %v2246 = vld [vmem:[#allocation3 + $0xa0] sm:$0xff]
      %v2247 = vld [vmem:[#allocation3 + $0xa8] sm:$0xff]
      %v2248 = vld [vmem:[#allocation3 + $0xb0] sm:$0xff]
      %v2249 = vld [vmem:[#allocation3 + $0xb8] sm:$0xff]
      %v2250 = vld [vmem:[#allocation3 + $0xc0] sm:$0xff]
      %v2251 = vld [vmem:[#allocation3 + $0xc8] sm:$0xff]
      %v2252 = vld [vmem:[#allocation3 + $0xd0] sm:$0xff]
      %v2253 = vld [vmem:[#allocation3 + $0xd8] sm:$0xff]
      %v2254 = vld [vmem:[#allocation3 + $0xe0] sm:$0xff]
      %v2255 = vld [vmem:[#allocation3 + $0xe8] sm:$0xff]
      %v2256 = vld [vmem:[#allocation3 + $0xf0] sm:$0xff]
      %v2257 = vld [vmem:[#allocation3 + $0xf8] sm:$0xff]
      %v2258 = vadd.f32 %v2226, %v2068
      %v2259 = vadd.f32 %v2227, %v2073
      %v2260 = vadd.f32 %v2228, %v2078
      %v2261 = vadd.f32 %v2229, %v2083
      %v2262 = vadd.f32 %v2230, %v2088
      %v2263 = vadd.f32 %v2231, %v2093
      %v2264 = vadd.f32 %v2232, %v2098
      %v2265 = vadd.f32 %v2233, %v2103
      %v2266 = vadd.f32 %v2234, %v2108
      %v2267 = vadd.f32 %v2235, %v2113
      %v2268 = vadd.f32 %v2236, %v2118
      %v2269 = vadd.f32 %v2237, %v2123
      %v2270 = vadd.f32 %v2238, %v2128
      %v2271 = vadd.f32 %v2239, %v2133
      %v2272 = vadd.f32 %v2240, %v2138
      %v2273 = vadd.f32 %v2241, %v2143
      %v2274 = vadd.f32 %v2242, %v2148
      %v2275 = vadd.f32 %v2243, %v2153
      %v2276 = vadd.f32 %v2244, %v2158
      %v2277 = vadd.f32 %v2245, %v2163
      %v2278 = vadd.f32 %v2246, %v2168
      %v2279 = vadd.f32 %v2247, %v2173
      %v2280 = vadd.f32 %v2248, %v2178
      %v2281 = vadd.f32 %v2249, %v2183
      %v2282 = vadd.f32 %v2250, %v2188
      %v2283 = vadd.f32 %v2251, %v2193
      %v2284 = vadd.f32 %v2252, %v2198
      %v2285 = vadd.f32 %v2253, %v2203
      %v2286 = vadd.f32 %v2254, %v2208
      %v2287 = vadd.f32 %v2255, %v2213
      %v2288 = vadd.f32 %v2256, %v2218
      %v2289 = vadd.f32 %v2257, %v2223
      %2290 = vst.msk [vmem:[#allocation3] sm:$0xff] %vm1331, %v2258
      %2291 = vst.msk [vmem:[#allocation3 + $0x8] sm:$0xff] %vm1331, %v2259
      %2292 = vst.msk [vmem:[#allocation3 + $0x10] sm:$0xff] %vm1331, %v2260
      %2293 = vst.msk [vmem:[#allocation3 + $0x18] sm:$0xff] %vm1331, %v2261
      %2294 = vst.msk [vmem:[#allocation3 + $0x20] sm:$0xff] %vm1331, %v2262
      %2295 = vst.msk [vmem:[#allocation3 + $0x28] sm:$0xff] %vm1331, %v2263
      %2296 = vst.msk [vmem:[#allocation3 + $0x30] sm:$0xff] %vm1331, %v2264
      %2297 = vst.msk [vmem:[#allocation3 + $0x38] sm:$0xff] %vm1331, %v2265
      %2298 = vst.msk [vmem:[#allocation3 + $0x40] sm:$0xff] %vm1331, %v2266
      %2299 = vst.msk [vmem:[#allocation3 + $0x48] sm:$0xff] %vm1331, %v2267
      %2300 = vst.msk [vmem:[#allocation3 + $0x50] sm:$0xff] %vm1331, %v2268
      %2301 = vst.msk [vmem:[#allocation3 + $0x58] sm:$0xff] %vm1331, %v2269
      %2302 = vst.msk [vmem:[#allocation3 + $0x60] sm:$0xff] %vm1331, %v2270
      %2303 = vst.msk [vmem:[#allocation3 + $0x68] sm:$0xff] %vm1331, %v2271
      %2304 = vst.msk [vmem:[#allocation3 + $0x70] sm:$0xff] %vm1331, %v2272
      %2305 = vst.msk [vmem:[#allocation3 + $0x78] sm:$0xff] %vm1331, %v2273
      %2306 = vst.msk [vmem:[#allocation3 + $0x80] sm:$0xff] %vm1331, %v2274
      %2307 = vst.msk [vmem:[#allocation3 + $0x88] sm:$0xff] %vm1331, %v2275
      %2308 = vst.msk [vmem:[#allocation3 + $0x90] sm:$0xff] %vm1331, %v2276
      %2309 = vst.msk [vmem:[#allocation3 + $0x98] sm:$0xff] %vm1331, %v2277
      %2310 = vst.msk [vmem:[#allocation3 + $0xa0] sm:$0xff] %vm1331, %v2278
      %2311 = vst.msk [vmem:[#allocation3 + $0xa8] sm:$0xff] %vm1331, %v2279
      %2312 = vst.msk [vmem:[#allocation3 + $0xb0] sm:$0xff] %vm1331, %v2280
      %2313 = vst.msk [vmem:[#allocation3 + $0xb8] sm:$0xff] %vm1331, %v2281
      %2314 = vst.msk [vmem:[#allocation3 + $0xc0] sm:$0xff] %vm1331, %v2282
      %2315 = vst.msk [vmem:[#allocation3 + $0xc8] sm:$0xff] %vm1331, %v2283
      %2316 = vst.msk [vmem:[#allocation3 + $0xd0] sm:$0xff] %vm1331, %v2284
      %2317 = vst.msk [vmem:[#allocation3 + $0xd8] sm:$0xff] %vm1331, %v2285
      %2318 = vst.msk [vmem:[#allocation3 + $0xe0] sm:$0xff] %vm1331, %v2286
      %2319 = vst.msk [vmem:[#allocation3 + $0xe8] sm:$0xff] %vm1331, %v2287
      %2320 = vst.msk [vmem:[#allocation3 + $0xf0] sm:$0xff] %vm1331, %v2288
      %2321 = vst.msk [vmem:[#allocation3 + $0xf8] sm:$0xff] %vm1331, %v2289
      %s2322 = scalar_lea.vmem %s4, 12
      %v2323 = vld [vmem:[%s2322] sm:$0xf]
      %v2325 = vsel %vm364, %v999, 0
      %v2328 = vsel %vm364, %v1000, 0
      %v2331 = vsel %vm1102, %v2323, 0
      %2333 = vmatprep.subr.mxu0 0.0
      %2334 = vmatpush1.msra.mxu0 0.0
      %2335 = vmatprep.subr.mxu0 0.0
      %2336 = vmatpush1.msra.mxu0 0.0
      %2337 = vmatprep.subr.mxu0 0.0
      %2338 = vmatpush1.msra.mxu0 0.0
      %2339 = vmatprep.subr.mxu0 0.0
      %2340 = vmatpush1.msra.mxu0 0.0
      %2341 = vmatprep.subr.mxu0 0.0
      %2342 = vmatpush1.msra.mxu0 0.0
      %2343 = vmatprep.subr.mxu0 0.0
      %2344 = vmatpush1.msra.mxu0 0.0
      %2345 = vmatprep.subr.mxu0 0.0
      %2346 = vmatpush1.msra.mxu0 0.0
      %2347 = vmatprep.subr.mxu0 0.0
      %2348 = vmatpush1.msra.mxu0 0.0
      %2349 = vmatprep.subr.mxu0 0.0
      %2350 = vmatpush1.msra.mxu0 0.0
      %2351 = vmatprep.subr.mxu0 0.0
      %2352 = vmatpush1.msra.mxu0 0.0
      %2353 = vmatprep.subr.mxu0 0.0
      %2354 = vmatpush1.msra.mxu0 0.0
      %2355 = vmatprep.subr.mxu0 0.0
      %2356 = vmatpush1.msra.mxu0 0.0
      %2357 = vmatprep.subr.mxu0 0.0
      %2358 = vmatpush1.msra.mxu0 0.0
      %2359 = vmatprep.subr.mxu0 0.0
      %2360 = vmatpush1.msra.mxu0 0.0
      %2361 = vmatprep.subr.mxu0 0.0
      %2362 = vmatpush1.msra.mxu0 0.0
      %2363 = vmatprep.subr.mxu0 0.0
      %2364 = vmatpush1.msra.mxu0 %v2331
      %2365 = vmatprep.subr.mxu0 0.0
      %2366 = vmatpush2.msra.mxu0 0.0
      %2367 = vmatprep.subr.mxu0 0.0
      %2368 = vmatpush2.msra.mxu0 0.0
      %2369 = vmatprep.subr.mxu0 0.0
      %2370 = vmatpush2.msra.mxu0 0.0
      %2371 = vmatprep.subr.mxu0 0.0
      %2372 = vmatpush2.msra.mxu0 0.0
      %2373 = vmatprep.subr.mxu0 0.0
      %2374 = vmatpush2.msra.mxu0 0.0
      %2375 = vmatprep.subr.mxu0 0.0
      %2376 = vmatpush2.msra.mxu0 0.0
      %2377 = vmatprep.subr.mxu0 0.0
      %2378 = vmatpush2.msra.mxu0 0.0
      %2379 = vmatprep.subr.mxu0 0.0
      %2380 = vmatpush2.msra.mxu0 0.0
      %2381 = vmatprep.subr.mxu0 0.0
      %2382 = vmatpush2.msra.mxu0 0.0
      %2383 = vmatprep.subr.mxu0 0.0
      %2384 = vmatpush2.msra.mxu0 0.0
      %2385 = vmatprep.subr.mxu0 0.0
      %2386 = vmatpush2.msra.mxu0 0.0
      %2387 = vmatprep.subr.mxu0 0.0
      %2388 = vmatpush2.msra.mxu0 0.0
      %2389 = vmatprep.subr.mxu0 0.0
      %2390 = vmatpush2.msra.mxu0 0.0
      %2391 = vmatprep.subr.mxu0 0.0
      %2392 = vmatpush2.msra.mxu0 0.0
      %2393 = vmatprep.subr.mxu0 0.0
      %2394 = vmatpush2.msra.mxu0 0.0
      %2395 = vmatprep.subr.mxu0 0.0
      %2396 = vmatpush2.msra.mxu0 0.0
      %2397 = vmatprep.mubr.f32.mxu0 0.0
      %2398 = vmatmul.mubr.f32.gmra.mxu0 %v1013
      %v2399 = vpop.f32.mrf.mxu0
      %v2400 = vadd.f32 0.0, %v2399
      %v2401 = vpop.f32.mrf.mxu0
      %2402 = vmatprep.mubr.f32.mxu0 0.0
      %2403 = vmatmul.mubr.f32.gmra.mxu0 %v1016
      %v2404 = vpop.f32.mrf.mxu0
      %v2405 = vadd.f32 0.0, %v2404
      %v2406 = vpop.f32.mrf.mxu0
      %2407 = vmatprep.mubr.f32.mxu0 0.0
      %2408 = vmatmul.mubr.f32.gmra.mxu0 %v1019
      %v2409 = vpop.f32.mrf.mxu0
      %v2410 = vadd.f32 0.0, %v2409
      %v2411 = vpop.f32.mrf.mxu0
      %2412 = vmatprep.mubr.f32.mxu0 0.0
      %2413 = vmatmul.mubr.f32.gmra.mxu0 %v1022
      %v2414 = vpop.f32.mrf.mxu0
      %v2415 = vadd.f32 0.0, %v2414
      %v2416 = vpop.f32.mrf.mxu0
      %2417 = vmatprep.mubr.f32.mxu0 0.0
      %2418 = vmatmul.mubr.f32.gmra.mxu0 %v1025
      %v2419 = vpop.f32.mrf.mxu0
      %v2420 = vadd.f32 0.0, %v2419
      %v2421 = vpop.f32.mrf.mxu0
      %2422 = vmatprep.mubr.f32.mxu0 0.0
      %2423 = vmatmul.mubr.f32.gmra.mxu0 %v1028
      %v2424 = vpop.f32.mrf.mxu0
      %v2425 = vadd.f32 0.0, %v2424
      %v2426 = vpop.f32.mrf.mxu0
      %2427 = vmatprep.mubr.f32.mxu0 0.0
      %2428 = vmatmul.mubr.f32.gmra.mxu0 %v1031
      %v2429 = vpop.f32.mrf.mxu0
      %v2430 = vadd.f32 0.0, %v2429
      %v2431 = vpop.f32.mrf.mxu0
      %2432 = vmatprep.mubr.f32.mxu0 0.0
      %2433 = vmatmul.mubr.f32.gmra.mxu0 %v1034
      %v2434 = vpop.f32.mrf.mxu0
      %v2435 = vadd.f32 0.0, %v2434
      %v2436 = vpop.f32.mrf.mxu0
      %2437 = vmatprep.mubr.f32.mxu0 0.0
      %2438 = vmatmul.mubr.f32.gmra.mxu0 %v1037
      %v2439 = vpop.f32.mrf.mxu0
      %v2440 = vadd.f32 0.0, %v2439
      %v2441 = vpop.f32.mrf.mxu0
      %2442 = vmatprep.mubr.f32.mxu0 0.0
      %2443 = vmatmul.mubr.f32.gmra.mxu0 %v1040
      %v2444 = vpop.f32.mrf.mxu0
      %v2445 = vadd.f32 0.0, %v2444
      %v2446 = vpop.f32.mrf.mxu0
      %2447 = vmatprep.mubr.f32.mxu0 0.0
      %2448 = vmatmul.mubr.f32.gmra.mxu0 %v1043
      %v2449 = vpop.f32.mrf.mxu0
      %v2450 = vadd.f32 0.0, %v2449
      %v2451 = vpop.f32.mrf.mxu0
      %2452 = vmatprep.mubr.f32.mxu0 0.0
      %2453 = vmatmul.mubr.f32.gmra.mxu0 %v1046
      %v2454 = vpop.f32.mrf.mxu0
      %v2455 = vadd.f32 0.0, %v2454
      %v2456 = vpop.f32.mrf.mxu0
      %2457 = vmatprep.mubr.f32.mxu0 0.0
      %2458 = vmatmul.mubr.f32.gmra.mxu0 %v1049
      %v2459 = vpop.f32.mrf.mxu0
      %v2460 = vadd.f32 0.0, %v2459
      %v2461 = vpop.f32.mrf.mxu0
      %2462 = vmatprep.mubr.f32.mxu0 0.0
      %2463 = vmatmul.mubr.f32.gmra.mxu0 %v1052
      %v2464 = vpop.f32.mrf.mxu0
      %v2465 = vadd.f32 0.0, %v2464
      %v2466 = vpop.f32.mrf.mxu0
      %2467 = vmatprep.mubr.f32.mxu0 0.0
      %2468 = vmatmul.mubr.f32.gmra.mxu0 %v1055
      %v2469 = vpop.f32.mrf.mxu0
      %v2470 = vadd.f32 0.0, %v2469
      %v2471 = vpop.f32.mrf.mxu0
      %2472 = vmatprep.mubr.f32.mxu0 0.0
      %2473 = vmatmul.mubr.f32.gmra.mxu0 %v1058
      %v2474 = vpop.f32.mrf.mxu0
      %v2475 = vadd.f32 0.0, %v2474
      %v2476 = vpop.f32.mrf.mxu0
      %2477 = vmatprep.mubr.f32.mxu0 0.0
      %2478 = vmatmul.mubr.f32.gmra.mxu0 %v1061
      %v2479 = vpop.f32.mrf.mxu0
      %v2480 = vadd.f32 0.0, %v2479
      %v2481 = vpop.f32.mrf.mxu0
      %2482 = vmatprep.mubr.f32.mxu0 0.0
      %2483 = vmatmul.mubr.f32.gmra.mxu0 %v1064
      %v2484 = vpop.f32.mrf.mxu0
      %v2485 = vadd.f32 0.0, %v2484
      %v2486 = vpop.f32.mrf.mxu0
      %2487 = vmatprep.mubr.f32.mxu0 0.0
      %2488 = vmatmul.mubr.f32.gmra.mxu0 %v1067
      %v2489 = vpop.f32.mrf.mxu0
      %v2490 = vadd.f32 0.0, %v2489
      %v2491 = vpop.f32.mrf.mxu0
      %2492 = vmatprep.mubr.f32.mxu0 0.0
      %2493 = vmatmul.mubr.f32.gmra.mxu0 %v1070
      %v2494 = vpop.f32.mrf.mxu0
      %v2495 = vadd.f32 0.0, %v2494
      %v2496 = vpop.f32.mrf.mxu0
      %2497 = vmatprep.mubr.f32.mxu0 0.0
      %2498 = vmatmul.mubr.f32.gmra.mxu0 %v1073
      %v2499 = vpop.f32.mrf.mxu0
      %v2500 = vadd.f32 0.0, %v2499
      %v2501 = vpop.f32.mrf.mxu0
      %2502 = vmatprep.mubr.f32.mxu0 0.0
      %2503 = vmatmul.mubr.f32.gmra.mxu0 %v1076
      %v2504 = vpop.f32.mrf.mxu0
      %v2505 = vadd.f32 0.0, %v2504
      %v2506 = vpop.f32.mrf.mxu0
      %2507 = vmatprep.mubr.f32.mxu0 0.0
      %2508 = vmatmul.mubr.f32.gmra.mxu0 %v1079
      %v2509 = vpop.f32.mrf.mxu0
      %v2510 = vadd.f32 0.0, %v2509
      %v2511 = vpop.f32.mrf.mxu0
      %2512 = vmatprep.mubr.f32.mxu0 0.0
      %2513 = vmatmul.mubr.f32.gmra.mxu0 %v1082
      %v2514 = vpop.f32.mrf.mxu0
      %v2515 = vadd.f32 0.0, %v2514
      %v2516 = vpop.f32.mrf.mxu0
      %2517 = vmatprep.mubr.f32.mxu0 0.0
      %2518 = vmatmul.mubr.f32.gmra.mxu0 %v1085
      %v2519 = vpop.f32.mrf.mxu0
      %v2520 = vadd.f32 0.0, %v2519
      %v2521 = vpop.f32.mrf.mxu0
      %2522 = vmatprep.mubr.f32.mxu0 0.0
      %2523 = vmatmul.mubr.f32.gmra.mxu0 %v1088
      %v2524 = vpop.f32.mrf.mxu0
      %v2525 = vadd.f32 0.0, %v2524
      %v2526 = vpop.f32.mrf.mxu0
      %2527 = vmatprep.mubr.f32.mxu0 0.0
      %2528 = vmatmul.mubr.f32.gmra.mxu0 %v1091
      %v2529 = vpop.f32.mrf.mxu0
      %v2530 = vadd.f32 0.0, %v2529
      %v2531 = vpop.f32.mrf.mxu0
      %2532 = vmatprep.mubr.f32.mxu0 0.0
      %2533 = vmatmul.mubr.f32.gmra.mxu0 %v1094
      %v2534 = vpop.f32.mrf.mxu0
      %v2535 = vadd.f32 0.0, %v2534
      %v2536 = vpop.f32.mrf.mxu0
      %2537 = vmatprep.mubr.f32.mxu0 0.0
      %2538 = vmatmul.mubr.f32.gmra.mxu0 %v1097
      %v2539 = vpop.f32.mrf.mxu0
      %v2540 = vadd.f32 0.0, %v2539
      %v2541 = vpop.f32.mrf.mxu0
      %2542 = vmatprep.mubr.f32.mxu0 0.0
      %2543 = vmatmul.mubr.f32.gmra.mxu0 %v1100
      %v2544 = vpop.f32.mrf.mxu0
      %v2545 = vadd.f32 0.0, %v2544
      %v2546 = vpop.f32.mrf.mxu0
      %2547 = vmatprep.mubr.f32.mxu0 0.0
      %2548 = vmatmul.mubr.f32.gmra.mxu0 %v2325
      %v2549 = vpop.f32.mrf.mxu0
      %v2550 = vadd.f32 0.0, %v2549
      %v2551 = vpop.f32.mrf.mxu0
      %2552 = vmatprep.mubr.f32.mxu0 0.0
      %2553 = vmatmul.mubr.f32.gmra.mxu0 %v2328
      %v2554 = vpop.f32.mrf.mxu0
      %v2555 = vadd.f32 0.0, %v2554
      %v2556 = vpop.f32.mrf.mxu0
      %2557 = vdwg.mxu0
      %v2558 = vld [vmem:[#allocation3] sm:$0xff]
      %v2559 = vld [vmem:[#allocation3 + $0x8] sm:$0xff]
      %v2560 = vld [vmem:[#allocation3 + $0x10] sm:$0xff]
      %v2561 = vld [vmem:[#allocation3 + $0x18] sm:$0xff]
      %v2562 = vld [vmem:[#allocation3 + $0x20] sm:$0xff]
      %v2563 = vld [vmem:[#allocation3 + $0x28] sm:$0xff]
      %v2564 = vld [vmem:[#allocation3 + $0x30] sm:$0xff]
      %v2565 = vld [vmem:[#allocation3 + $0x38] sm:$0xff]
      %v2566 = vld [vmem:[#allocation3 + $0x40] sm:$0xff]
      %v2567 = vld [vmem:[#allocation3 + $0x48] sm:$0xff]
      %v2568 = vld [vmem:[#allocation3 + $0x50] sm:$0xff]
      %v2569 = vld [vmem:[#allocation3 + $0x58] sm:$0xff]
      %v2570 = vld [vmem:[#allocation3 + $0x60] sm:$0xff]
      %v2571 = vld [vmem:[#allocation3 + $0x68] sm:$0xff]
      %v2572 = vld [vmem:[#allocation3 + $0x70] sm:$0xff]
      %v2573 = vld [vmem:[#allocation3 + $0x78] sm:$0xff]
      %v2574 = vld [vmem:[#allocation3 + $0x80] sm:$0xff]
      %v2575 = vld [vmem:[#allocation3 + $0x88] sm:$0xff]
      %v2576 = vld [vmem:[#allocation3 + $0x90] sm:$0xff]
      %v2577 = vld [vmem:[#allocation3 + $0x98] sm:$0xff]
      %v2578 = vld [vmem:[#allocation3 + $0xa0] sm:$0xff]
      %v2579 = vld [vmem:[#allocation3 + $0xa8] sm:$0xff]
      %v2580 = vld [vmem:[#allocation3 + $0xb0] sm:$0xff]
      %v2581 = vld [vmem:[#allocation3 + $0xb8] sm:$0xff]
      %v2582 = vld [vmem:[#allocation3 + $0xc0] sm:$0xff]
      %v2583 = vld [vmem:[#allocation3 + $0xc8] sm:$0xff]
      %v2584 = vld [vmem:[#allocation3 + $0xd0] sm:$0xff]
      %v2585 = vld [vmem:[#allocation3 + $0xd8] sm:$0xff]
      %v2586 = vld [vmem:[#allocation3 + $0xe0] sm:$0xff]
      %v2587 = vld [vmem:[#allocation3 + $0xe8] sm:$0xff]
      %v2588 = vld [vmem:[#allocation3 + $0xf0] sm:$0xff]
      %v2589 = vld [vmem:[#allocation3 + $0xf8] sm:$0xff]
      %v2590 = vadd.f32 %v2558, %v2400
      %v2591 = vadd.f32 %v2559, %v2405
      %v2592 = vadd.f32 %v2560, %v2410
      %v2593 = vadd.f32 %v2561, %v2415
      %v2594 = vadd.f32 %v2562, %v2420
      %v2595 = vadd.f32 %v2563, %v2425
      %v2596 = vadd.f32 %v2564, %v2430
      %v2597 = vadd.f32 %v2565, %v2435
      %v2598 = vadd.f32 %v2566, %v2440
      %v2599 = vadd.f32 %v2567, %v2445
      %v2600 = vadd.f32 %v2568, %v2450
      %v2601 = vadd.f32 %v2569, %v2455
      %v2602 = vadd.f32 %v2570, %v2460
      %v2603 = vadd.f32 %v2571, %v2465
      %v2604 = vadd.f32 %v2572, %v2470
      %v2605 = vadd.f32 %v2573, %v2475
      %v2606 = vadd.f32 %v2574, %v2480
      %v2607 = vadd.f32 %v2575, %v2485
      %v2608 = vadd.f32 %v2576, %v2490
      %v2609 = vadd.f32 %v2577, %v2495
      %v2610 = vadd.f32 %v2578, %v2500
      %v2611 = vadd.f32 %v2579, %v2505
      %v2612 = vadd.f32 %v2580, %v2510
      %v2613 = vadd.f32 %v2581, %v2515
      %v2614 = vadd.f32 %v2582, %v2520
      %v2615 = vadd.f32 %v2583, %v2525
      %v2616 = vadd.f32 %v2584, %v2530
      %v2617 = vadd.f32 %v2585, %v2535
      %v2618 = vadd.f32 %v2586, %v2540
      %v2619 = vadd.f32 %v2587, %v2545
      %v2620 = vadd.f32 %v2588, %v2550
      %v2621 = vadd.f32 %v2589, %v2555
      %2622 = vst.msk [vmem:[#allocation3] sm:$0xff] %vm1331, %v2590
      %2623 = vst.msk [vmem:[#allocation3 + $0x8] sm:$0xff] %vm1331, %v2591
      %2624 = vst.msk [vmem:[#allocation3 + $0x10] sm:$0xff] %vm1331, %v2592
      %2625 = vst.msk [vmem:[#allocation3 + $0x18] sm:$0xff] %vm1331, %v2593
      %2626 = vst.msk [vmem:[#allocation3 + $0x20] sm:$0xff] %vm1331, %v2594
      %2627 = vst.msk [vmem:[#allocation3 + $0x28] sm:$0xff] %vm1331, %v2595
      %2628 = vst.msk [vmem:[#allocation3 + $0x30] sm:$0xff] %vm1331, %v2596
      %2629 = vst.msk [vmem:[#allocation3 + $0x38] sm:$0xff] %vm1331, %v2597
      %2630 = vst.msk [vmem:[#allocation3 + $0x40] sm:$0xff] %vm1331, %v2598
      %2631 = vst.msk [vmem:[#allocation3 + $0x48] sm:$0xff] %vm1331, %v2599
      %2632 = vst.msk [vmem:[#allocation3 + $0x50] sm:$0xff] %vm1331, %v2600
      %2633 = vst.msk [vmem:[#allocation3 + $0x58] sm:$0xff] %vm1331, %v2601
      %2634 = vst.msk [vmem:[#allocation3 + $0x60] sm:$0xff] %vm1331, %v2602
      %2635 = vst.msk [vmem:[#allocation3 + $0x68] sm:$0xff] %vm1331, %v2603
      %2636 = vst.msk [vmem:[#allocation3 + $0x70] sm:$0xff] %vm1331, %v2604
      %2637 = vst.msk [vmem:[#allocation3 + $0x78] sm:$0xff] %vm1331, %v2605
      %2638 = vst.msk [vmem:[#allocation3 + $0x80] sm:$0xff] %vm1331, %v2606
      %2639 = vst.msk [vmem:[#allocation3 + $0x88] sm:$0xff] %vm1331, %v2607
      %2640 = vst.msk [vmem:[#allocation3 + $0x90] sm:$0xff] %vm1331, %v2608
      %2641 = vst.msk [vmem:[#allocation3 + $0x98] sm:$0xff] %vm1331, %v2609
      %2642 = vst.msk [vmem:[#allocation3 + $0xa0] sm:$0xff] %vm1331, %v2610
      %2643 = vst.msk [vmem:[#allocation3 + $0xa8] sm:$0xff] %vm1331, %v2611
      %2644 = vst.msk [vmem:[#allocation3 + $0xb0] sm:$0xff] %vm1331, %v2612
      %2645 = vst.msk [vmem:[#allocation3 + $0xb8] sm:$0xff] %vm1331, %v2613
      %2646 = vst.msk [vmem:[#allocation3 + $0xc0] sm:$0xff] %vm1331, %v2614
      %2647 = vst.msk [vmem:[#allocation3 + $0xc8] sm:$0xff] %vm1331, %v2615
      %2648 = vst.msk [vmem:[#allocation3 + $0xd0] sm:$0xff] %vm1331, %v2616
      %2649 = vst.msk [vmem:[#allocation3 + $0xd8] sm:$0xff] %vm1331, %v2617
      %2650 = vst.msk [vmem:[#allocation3 + $0xe0] sm:$0xff] %vm1331, %v2618
      %2651 = vst.msk [vmem:[#allocation3 + $0xe8] sm:$0xff] %vm1331, %v2619
      %2652 = vst.msk [vmem:[#allocation3 + $0xf0] sm:$0xff] %vm1331, %v2620
      %2653 = vst.msk [vmem:[#allocation3 + $0xf8] sm:$0xff] %vm1331, %v2621
      %v2655 = vrot.slane %v999, 1
      %v2656 = vrot.slane %v1000, 1
      %v2657 = vsel %vm1380, %v2655, %v2656
      %v2658 = vrot.slane %v1001, 1
      %v2659 = vsel %vm1380, %v2656, %v2658
      %s2660 = scalar_lea.vmem %s4, 16
      %v2661 = vld [vmem:[%s2660] sm:$0xf]
      %v2662 = vsel %vm364, %v2657, 0
      %v2664 = vsel %vm364, %v2659, 0
      %v2667 = vsel %vm1102, %v2661, 0
      %2669 = vmatprep.subr.mxu0 0.0
      %2670 = vmatpush1.msra.mxu0 0.0
      %2671 = vmatprep.subr.mxu0 0.0
      %2672 = vmatpush1.msra.mxu0 0.0
      %2673 = vmatprep.subr.mxu0 0.0
      %2674 = vmatpush1.msra.mxu0 0.0
      %2675 = vmatprep.subr.mxu0 0.0
      %2676 = vmatpush1.msra.mxu0 0.0
      %2677 = vmatprep.subr.mxu0 0.0
      %2678 = vmatpush1.msra.mxu0 0.0
      %2679 = vmatprep.subr.mxu0 0.0
      %2680 = vmatpush1.msra.mxu0 0.0
      %2681 = vmatprep.subr.mxu0 0.0
      %2682 = vmatpush1.msra.mxu0 0.0
      %2683 = vmatprep.subr.mxu0 0.0
      %2684 = vmatpush1.msra.mxu0 0.0
      %2685 = vmatprep.subr.mxu0 0.0
      %2686 = vmatpush1.msra.mxu0 0.0
      %2687 = vmatprep.subr.mxu0 0.0
      %2688 = vmatpush1.msra.mxu0 0.0
      %2689 = vmatprep.subr.mxu0 0.0
      %2690 = vmatpush1.msra.mxu0 0.0
      %2691 = vmatprep.subr.mxu0 0.0
      %2692 = vmatpush1.msra.mxu0 0.0
      %2693 = vmatprep.subr.mxu0 0.0
      %2694 = vmatpush1.msra.mxu0 0.0
      %2695 = vmatprep.subr.mxu0 0.0
      %2696 = vmatpush1.msra.mxu0 0.0
      %2697 = vmatprep.subr.mxu0 0.0
      %2698 = vmatpush1.msra.mxu0 0.0
      %2699 = vmatprep.subr.mxu0 0.0
      %2700 = vmatpush1.msra.mxu0 %v2667
      %2701 = vmatprep.subr.mxu0 0.0
      %2702 = vmatpush2.msra.mxu0 0.0
      %2703 = vmatprep.subr.mxu0 0.0
      %2704 = vmatpush2.msra.mxu0 0.0
      %2705 = vmatprep.subr.mxu0 0.0
      %2706 = vmatpush2.msra.mxu0 0.0
      %2707 = vmatprep.subr.mxu0 0.0
      %2708 = vmatpush2.msra.mxu0 0.0
      %2709 = vmatprep.subr.mxu0 0.0
      %2710 = vmatpush2.msra.mxu0 0.0
      %2711 = vmatprep.subr.mxu0 0.0
      %2712 = vmatpush2.msra.mxu0 0.0
      %2713 = vmatprep.subr.mxu0 0.0
      %2714 = vmatpush2.msra.mxu0 0.0
      %2715 = vmatprep.subr.mxu0 0.0
      %2716 = vmatpush2.msra.mxu0 0.0
      %2717 = vmatprep.subr.mxu0 0.0
      %2718 = vmatpush2.msra.mxu0 0.0
      %2719 = vmatprep.subr.mxu0 0.0
      %2720 = vmatpush2.msra.mxu0 0.0
      %2721 = vmatprep.subr.mxu0 0.0
      %2722 = vmatpush2.msra.mxu0 0.0
      %2723 = vmatprep.subr.mxu0 0.0
      %2724 = vmatpush2.msra.mxu0 0.0
      %2725 = vmatprep.subr.mxu0 0.0
      %2726 = vmatpush2.msra.mxu0 0.0
      %2727 = vmatprep.subr.mxu0 0.0
      %2728 = vmatpush2.msra.mxu0 0.0
      %2729 = vmatprep.subr.mxu0 0.0
      %2730 = vmatpush2.msra.mxu0 0.0
      %2731 = vmatprep.subr.mxu0 0.0
      %2732 = vmatpush2.msra.mxu0 0.0
      %2733 = vmatprep.mubr.f32.mxu0 0.0
      %2734 = vmatmul.mubr.f32.gmra.mxu0 %v1467
      %v2735 = vpop.f32.mrf.mxu0
      %v2736 = vadd.f32 0.0, %v2735
      %v2737 = vpop.f32.mrf.mxu0
      %2738 = vmatprep.mubr.f32.mxu0 0.0
      %2739 = vmatmul.mubr.f32.gmra.mxu0 %v1469
      %v2740 = vpop.f32.mrf.mxu0
      %v2741 = vadd.f32 0.0, %v2740
      %v2742 = vpop.f32.mrf.mxu0
      %2743 = vmatprep.mubr.f32.mxu0 0.0
      %2744 = vmatmul.mubr.f32.gmra.mxu0 %v1471
      %v2745 = vpop.f32.mrf.mxu0
      %v2746 = vadd.f32 0.0, %v2745
      %v2747 = vpop.f32.mrf.mxu0
      %2748 = vmatprep.mubr.f32.mxu0 0.0
      %2749 = vmatmul.mubr.f32.gmra.mxu0 %v1473
      %v2750 = vpop.f32.mrf.mxu0
      %v2751 = vadd.f32 0.0, %v2750
      %v2752 = vpop.f32.mrf.mxu0
      %2753 = vmatprep.mubr.f32.mxu0 0.0
      %2754 = vmatmul.mubr.f32.gmra.mxu0 %v1475
      %v2755 = vpop.f32.mrf.mxu0
      %v2756 = vadd.f32 0.0, %v2755
      %v2757 = vpop.f32.mrf.mxu0
      %2758 = vmatprep.mubr.f32.mxu0 0.0
      %2759 = vmatmul.mubr.f32.gmra.mxu0 %v1477
      %v2760 = vpop.f32.mrf.mxu0
      %v2761 = vadd.f32 0.0, %v2760
      %v2762 = vpop.f32.mrf.mxu0
      %2763 = vmatprep.mubr.f32.mxu0 0.0
      %2764 = vmatmul.mubr.f32.gmra.mxu0 %v1479
      %v2765 = vpop.f32.mrf.mxu0
      %v2766 = vadd.f32 0.0, %v2765
      %v2767 = vpop.f32.mrf.mxu0
      %2768 = vmatprep.mubr.f32.mxu0 0.0
      %2769 = vmatmul.mubr.f32.gmra.mxu0 %v1481
      %v2770 = vpop.f32.mrf.mxu0
      %v2771 = vadd.f32 0.0, %v2770
      %v2772 = vpop.f32.mrf.mxu0
      %2773 = vmatprep.mubr.f32.mxu0 0.0
      %2774 = vmatmul.mubr.f32.gmra.mxu0 %v1483
      %v2775 = vpop.f32.mrf.mxu0
      %v2776 = vadd.f32 0.0, %v2775
      %v2777 = vpop.f32.mrf.mxu0
      %2778 = vmatprep.mubr.f32.mxu0 0.0
      %2779 = vmatmul.mubr.f32.gmra.mxu0 %v1485
      %v2780 = vpop.f32.mrf.mxu0
      %v2781 = vadd.f32 0.0, %v2780
      %v2782 = vpop.f32.mrf.mxu0
      %2783 = vmatprep.mubr.f32.mxu0 0.0
      %2784 = vmatmul.mubr.f32.gmra.mxu0 %v1487
      %v2785 = vpop.f32.mrf.mxu0
      %v2786 = vadd.f32 0.0, %v2785
      %v2787 = vpop.f32.mrf.mxu0
      %2788 = vmatprep.mubr.f32.mxu0 0.0
      %2789 = vmatmul.mubr.f32.gmra.mxu0 %v1489
      %v2790 = vpop.f32.mrf.mxu0
      %v2791 = vadd.f32 0.0, %v2790
      %v2792 = vpop.f32.mrf.mxu0
      %2793 = vmatprep.mubr.f32.mxu0 0.0
      %2794 = vmatmul.mubr.f32.gmra.mxu0 %v1491
      %v2795 = vpop.f32.mrf.mxu0
      %v2796 = vadd.f32 0.0, %v2795
      %v2797 = vpop.f32.mrf.mxu0
      %2798 = vmatprep.mubr.f32.mxu0 0.0
      %2799 = vmatmul.mubr.f32.gmra.mxu0 %v1493
      %v2800 = vpop.f32.mrf.mxu0
      %v2801 = vadd.f32 0.0, %v2800
      %v2802 = vpop.f32.mrf.mxu0
      %2803 = vmatprep.mubr.f32.mxu0 0.0
      %2804 = vmatmul.mubr.f32.gmra.mxu0 %v1495
      %v2805 = vpop.f32.mrf.mxu0
      %v2806 = vadd.f32 0.0, %v2805
      %v2807 = vpop.f32.mrf.mxu0
      %2808 = vmatprep.mubr.f32.mxu0 0.0
      %2809 = vmatmul.mubr.f32.gmra.mxu0 %v1497
      %v2810 = vpop.f32.mrf.mxu0
      %v2811 = vadd.f32 0.0, %v2810
      %v2812 = vpop.f32.mrf.mxu0
      %2813 = vmatprep.mubr.f32.mxu0 0.0
      %2814 = vmatmul.mubr.f32.gmra.mxu0 %v1499
      %v2815 = vpop.f32.mrf.mxu0
      %v2816 = vadd.f32 0.0, %v2815
      %v2817 = vpop.f32.mrf.mxu0
      %2818 = vmatprep.mubr.f32.mxu0 0.0
      %2819 = vmatmul.mubr.f32.gmra.mxu0 %v1501
      %v2820 = vpop.f32.mrf.mxu0
      %v2821 = vadd.f32 0.0, %v2820
      %v2822 = vpop.f32.mrf.mxu0
      %2823 = vmatprep.mubr.f32.mxu0 0.0
      %2824 = vmatmul.mubr.f32.gmra.mxu0 %v1503
      %v2825 = vpop.f32.mrf.mxu0
      %v2826 = vadd.f32 0.0, %v2825
      %v2827 = vpop.f32.mrf.mxu0
      %2828 = vmatprep.mubr.f32.mxu0 0.0
      %2829 = vmatmul.mubr.f32.gmra.mxu0 %v1505
      %v2830 = vpop.f32.mrf.mxu0
      %v2831 = vadd.f32 0.0, %v2830
      %v2832 = vpop.f32.mrf.mxu0
      %2833 = vmatprep.mubr.f32.mxu0 0.0
      %2834 = vmatmul.mubr.f32.gmra.mxu0 %v1507
      %v2835 = vpop.f32.mrf.mxu0
      %v2836 = vadd.f32 0.0, %v2835
      %v2837 = vpop.f32.mrf.mxu0
      %2838 = vmatprep.mubr.f32.mxu0 0.0
      %2839 = vmatmul.mubr.f32.gmra.mxu0 %v1509
      %v2840 = vpop.f32.mrf.mxu0
      %v2841 = vadd.f32 0.0, %v2840
      %v2842 = vpop.f32.mrf.mxu0
      %2843 = vmatprep.mubr.f32.mxu0 0.0
      %2844 = vmatmul.mubr.f32.gmra.mxu0 %v1511
      %v2845 = vpop.f32.mrf.mxu0
      %v2846 = vadd.f32 0.0, %v2845
      %v2847 = vpop.f32.mrf.mxu0
      %2848 = vmatprep.mubr.f32.mxu0 0.0
      %2849 = vmatmul.mubr.f32.gmra.mxu0 %v1513
      %v2850 = vpop.f32.mrf.mxu0
      %v2851 = vadd.f32 0.0, %v2850
      %v2852 = vpop.f32.mrf.mxu0
      %2853 = vmatprep.mubr.f32.mxu0 0.0
      %2854 = vmatmul.mubr.f32.gmra.mxu0 %v1515
      %v2855 = vpop.f32.mrf.mxu0
      %v2856 = vadd.f32 0.0, %v2855
      %v2857 = vpop.f32.mrf.mxu0
      %2858 = vmatprep.mubr.f32.mxu0 0.0
      %2859 = vmatmul.mubr.f32.gmra.mxu0 %v1517
      %v2860 = vpop.f32.mrf.mxu0
      %v2861 = vadd.f32 0.0, %v2860
      %v2862 = vpop.f32.mrf.mxu0
      %2863 = vmatprep.mubr.f32.mxu0 0.0
      %2864 = vmatmul.mubr.f32.gmra.mxu0 %v1519
      %v2865 = vpop.f32.mrf.mxu0
      %v2866 = vadd.f32 0.0, %v2865
      %v2867 = vpop.f32.mrf.mxu0
      %2868 = vmatprep.mubr.f32.mxu0 0.0
      %2869 = vmatmul.mubr.f32.gmra.mxu0 %v1521
      %v2870 = vpop.f32.mrf.mxu0
      %v2871 = vadd.f32 0.0, %v2870
      %v2872 = vpop.f32.mrf.mxu0
      %2873 = vmatprep.mubr.f32.mxu0 0.0
      %2874 = vmatmul.mubr.f32.gmra.mxu0 %v1523
      %v2875 = vpop.f32.mrf.mxu0
      %v2876 = vadd.f32 0.0, %v2875
      %v2877 = vpop.f32.mrf.mxu0
      %2878 = vmatprep.mubr.f32.mxu0 0.0
      %2879 = vmatmul.mubr.f32.gmra.mxu0 %v1525
      %v2880 = vpop.f32.mrf.mxu0
      %v2881 = vadd.f32 0.0, %v2880
      %v2882 = vpop.f32.mrf.mxu0
      %2883 = vmatprep.mubr.f32.mxu0 0.0
      %2884 = vmatmul.mubr.f32.gmra.mxu0 %v2662
      %v2885 = vpop.f32.mrf.mxu0
      %v2886 = vadd.f32 0.0, %v2885
      %v2887 = vpop.f32.mrf.mxu0
      %2888 = vmatprep.mubr.f32.mxu0 0.0
      %2889 = vmatmul.mubr.f32.gmra.mxu0 %v2664
      %v2890 = vpop.f32.mrf.mxu0
      %v2891 = vadd.f32 0.0, %v2890
      %v2892 = vpop.f32.mrf.mxu0
      %2893 = vdwg.mxu0
      %v2894 = vld [vmem:[#allocation3] sm:$0xff]
      %v2895 = vld [vmem:[#allocation3 + $0x8] sm:$0xff]
      %v2896 = vld [vmem:[#allocation3 + $0x10] sm:$0xff]
      %v2897 = vld [vmem:[#allocation3 + $0x18] sm:$0xff]
      %v2898 = vld [vmem:[#allocation3 + $0x20] sm:$0xff]
      %v2899 = vld [vmem:[#allocation3 + $0x28] sm:$0xff]
      %v2900 = vld [vmem:[#allocation3 + $0x30] sm:$0xff]
      %v2901 = vld [vmem:[#allocation3 + $0x38] sm:$0xff]
      %v2902 = vld [vmem:[#allocation3 + $0x40] sm:$0xff]
      %v2903 = vld [vmem:[#allocation3 + $0x48] sm:$0xff]
      %v2904 = vld [vmem:[#allocation3 + $0x50] sm:$0xff]
      %v2905 = vld [vmem:[#allocation3 + $0x58] sm:$0xff]
      %v2906 = vld [vmem:[#allocation3 + $0x60] sm:$0xff]
      %v2907 = vld [vmem:[#allocation3 + $0x68] sm:$0xff]
      %v2908 = vld [vmem:[#allocation3 + $0x70] sm:$0xff]
      %v2909 = vld [vmem:[#allocation3 + $0x78] sm:$0xff]
      %v2910 = vld [vmem:[#allocation3 + $0x80] sm:$0xff]
      %v2911 = vld [vmem:[#allocation3 + $0x88] sm:$0xff]
      %v2912 = vld [vmem:[#allocation3 + $0x90] sm:$0xff]
      %v2913 = vld [vmem:[#allocation3 + $0x98] sm:$0xff]
      %v2914 = vld [vmem:[#allocation3 + $0xa0] sm:$0xff]
      %v2915 = vld [vmem:[#allocation3 + $0xa8] sm:$0xff]
      %v2916 = vld [vmem:[#allocation3 + $0xb0] sm:$0xff]
      %v2917 = vld [vmem:[#allocation3 + $0xb8] sm:$0xff]
      %v2918 = vld [vmem:[#allocation3 + $0xc0] sm:$0xff]
      %v2919 = vld [vmem:[#allocation3 + $0xc8] sm:$0xff]
      %v2920 = vld [vmem:[#allocation3 + $0xd0] sm:$0xff]
      %v2921 = vld [vmem:[#allocation3 + $0xd8] sm:$0xff]
      %v2922 = vld [vmem:[#allocation3 + $0xe0] sm:$0xff]
      %v2923 = vld [vmem:[#allocation3 + $0xe8] sm:$0xff]
      %v2924 = vld [vmem:[#allocation3 + $0xf0] sm:$0xff]
      %v2925 = vld [vmem:[#allocation3 + $0xf8] sm:$0xff]
      %v2926 = vadd.f32 %v2894, %v2736
      %v2927 = vadd.f32 %v2895, %v2741
      %v2928 = vadd.f32 %v2896, %v2746
      %v2929 = vadd.f32 %v2897, %v2751
      %v2930 = vadd.f32 %v2898, %v2756
      %v2931 = vadd.f32 %v2899, %v2761
      %v2932 = vadd.f32 %v2900, %v2766
      %v2933 = vadd.f32 %v2901, %v2771
      %v2934 = vadd.f32 %v2902, %v2776
      %v2935 = vadd.f32 %v2903, %v2781
      %v2936 = vadd.f32 %v2904, %v2786
      %v2937 = vadd.f32 %v2905, %v2791
      %v2938 = vadd.f32 %v2906, %v2796
      %v2939 = vadd.f32 %v2907, %v2801
      %v2940 = vadd.f32 %v2908, %v2806
      %v2941 = vadd.f32 %v2909, %v2811
      %v2942 = vadd.f32 %v2910, %v2816
      %v2943 = vadd.f32 %v2911, %v2821
      %v2944 = vadd.f32 %v2912, %v2826
      %v2945 = vadd.f32 %v2913, %v2831
      %v2946 = vadd.f32 %v2914, %v2836
      %v2947 = vadd.f32 %v2915, %v2841
      %v2948 = vadd.f32 %v2916, %v2846
      %v2949 = vadd.f32 %v2917, %v2851
      %v2950 = vadd.f32 %v2918, %v2856
      %v2951 = vadd.f32 %v2919, %v2861
      %v2952 = vadd.f32 %v2920, %v2866
      %v2953 = vadd.f32 %v2921, %v2871
      %v2954 = vadd.f32 %v2922, %v2876
      %v2955 = vadd.f32 %v2923, %v2881
      %v2956 = vadd.f32 %v2924, %v2886
      %v2957 = vadd.f32 %v2925, %v2891
      %2958 = vst.msk [vmem:[#allocation3] sm:$0xff] %vm1331, %v2926
      %2959 = vst.msk [vmem:[#allocation3 + $0x8] sm:$0xff] %vm1331, %v2927
      %2960 = vst.msk [vmem:[#allocation3 + $0x10] sm:$0xff] %vm1331, %v2928
      %2961 = vst.msk [vmem:[#allocation3 + $0x18] sm:$0xff] %vm1331, %v2929
      %2962 = vst.msk [vmem:[#allocation3 + $0x20] sm:$0xff] %vm1331, %v2930
      %2963 = vst.msk [vmem:[#allocation3 + $0x28] sm:$0xff] %vm1331, %v2931
      %2964 = vst.msk [vmem:[#allocation3 + $0x30] sm:$0xff] %vm1331, %v2932
      %2965 = vst.msk [vmem:[#allocation3 + $0x38] sm:$0xff] %vm1331, %v2933
      %2966 = vst.msk [vmem:[#allocation3 + $0x40] sm:$0xff] %vm1331, %v2934
      %2967 = vst.msk [vmem:[#allocation3 + $0x48] sm:$0xff] %vm1331, %v2935
      %2968 = vst.msk [vmem:[#allocation3 + $0x50] sm:$0xff] %vm1331, %v2936
      %2969 = vst.msk [vmem:[#allocation3 + $0x58] sm:$0xff] %vm1331, %v2937
      %2970 = vst.msk [vmem:[#allocation3 + $0x60] sm:$0xff] %vm1331, %v2938
      %2971 = vst.msk [vmem:[#allocation3 + $0x68] sm:$0xff] %vm1331, %v2939
      %2972 = vst.msk [vmem:[#allocation3 + $0x70] sm:$0xff] %vm1331, %v2940
      %2973 = vst.msk [vmem:[#allocation3 + $0x78] sm:$0xff] %vm1331, %v2941
      %2974 = vst.msk [vmem:[#allocation3 + $0x80] sm:$0xff] %vm1331, %v2942
      %2975 = vst.msk [vmem:[#allocation3 + $0x88] sm:$0xff] %vm1331, %v2943
      %2976 = vst.msk [vmem:[#allocation3 + $0x90] sm:$0xff] %vm1331, %v2944
      %2977 = vst.msk [vmem:[#allocation3 + $0x98] sm:$0xff] %vm1331, %v2945
      %2978 = vst.msk [vmem:[#allocation3 + $0xa0] sm:$0xff] %vm1331, %v2946
      %2979 = vst.msk [vmem:[#allocation3 + $0xa8] sm:$0xff] %vm1331, %v2947
      %2980 = vst.msk [vmem:[#allocation3 + $0xb0] sm:$0xff] %vm1331, %v2948
      %2981 = vst.msk [vmem:[#allocation3 + $0xb8] sm:$0xff] %vm1331, %v2949
      %2982 = vst.msk [vmem:[#allocation3 + $0xc0] sm:$0xff] %vm1331, %v2950
      %2983 = vst.msk [vmem:[#allocation3 + $0xc8] sm:$0xff] %vm1331, %v2951
      %2984 = vst.msk [vmem:[#allocation3 + $0xd0] sm:$0xff] %vm1331, %v2952
      %2985 = vst.msk [vmem:[#allocation3 + $0xd8] sm:$0xff] %vm1331, %v2953
      %2986 = vst.msk [vmem:[#allocation3 + $0xe0] sm:$0xff] %vm1331, %v2954
      %2987 = vst.msk [vmem:[#allocation3 + $0xe8] sm:$0xff] %vm1331, %v2955
      %2988 = vst.msk [vmem:[#allocation3 + $0xf0] sm:$0xff] %vm1331, %v2956
      %2989 = vst.msk [vmem:[#allocation3 + $0xf8] sm:$0xff] %vm1331, %v2957
      %v2990 = vrot.slane %v999, 2
      %v2991 = vrot.slane %v1000, 2
      %v2992 = vsel %vm1851, %v2990, %v2991
      %v2993 = vrot.slane %v1001, 2
      %v2994 = vsel %vm1851, %v2991, %v2993
      %s2995 = scalar_lea.vmem %s4, 20
      %v2996 = vld [vmem:[%s2995] sm:$0xf]
      %v2997 = vsel %vm364, %v2992, 0
      %v2999 = vsel %vm364, %v2994, 0
      %v3002 = vsel %vm1102, %v2996, 0
      %3004 = vmatprep.subr.mxu0 0.0
      %3005 = vmatpush1.msra.mxu0 0.0
      %3006 = vmatprep.subr.mxu0 0.0
      %3007 = vmatpush1.msra.mxu0 0.0
      %3008 = vmatprep.subr.mxu0 0.0
      %3009 = vmatpush1.msra.mxu0 0.0
      %3010 = vmatprep.subr.mxu0 0.0
      %3011 = vmatpush1.msra.mxu0 0.0
      %3012 = vmatprep.subr.mxu0 0.0
      %3013 = vmatpush1.msra.mxu0 0.0
      %3014 = vmatprep.subr.mxu0 0.0
      %3015 = vmatpush1.msra.mxu0 0.0
      %3016 = vmatprep.subr.mxu0 0.0
      %3017 = vmatpush1.msra.mxu0 0.0
      %3018 = vmatprep.subr.mxu0 0.0
      %3019 = vmatpush1.msra.mxu0 0.0
      %3020 = vmatprep.subr.mxu0 0.0
      %3021 = vmatpush1.msra.mxu0 0.0
      %3022 = vmatprep.subr.mxu0 0.0
      %3023 = vmatpush1.msra.mxu0 0.0
      %3024 = vmatprep.subr.mxu0 0.0
      %3025 = vmatpush1.msra.mxu0 0.0
      %3026 = vmatprep.subr.mxu0 0.0
      %3027 = vmatpush1.msra.mxu0 0.0
      %3028 = vmatprep.subr.mxu0 0.0
      %3029 = vmatpush1.msra.mxu0 0.0
      %3030 = vmatprep.subr.mxu0 0.0
      %3031 = vmatpush1.msra.mxu0 0.0
      %3032 = vmatprep.subr.mxu0 0.0
      %3033 = vmatpush1.msra.mxu0 0.0
      %3034 = vmatprep.subr.mxu0 0.0
      %3035 = vmatpush1.msra.mxu0 %v3002
      %3036 = vmatprep.subr.mxu0 0.0
      %3037 = vmatpush2.msra.mxu0 0.0
      %3038 = vmatprep.subr.mxu0 0.0
      %3039 = vmatpush2.msra.mxu0 0.0
      %3040 = vmatprep.subr.mxu0 0.0
      %3041 = vmatpush2.msra.mxu0 0.0
      %3042 = vmatprep.subr.mxu0 0.0
      %3043 = vmatpush2.msra.mxu0 0.0
      %3044 = vmatprep.subr.mxu0 0.0
      %3045 = vmatpush2.msra.mxu0 0.0
      %3046 = vmatprep.subr.mxu0 0.0
      %3047 = vmatpush2.msra.mxu0 0.0
      %3048 = vmatprep.subr.mxu0 0.0
      %3049 = vmatpush2.msra.mxu0 0.0
      %3050 = vmatprep.subr.mxu0 0.0
      %3051 = vmatpush2.msra.mxu0 0.0
      %3052 = vmatprep.subr.mxu0 0.0
      %3053 = vmatpush2.msra.mxu0 0.0
      %3054 = vmatprep.subr.mxu0 0.0
      %3055 = vmatpush2.msra.mxu0 0.0
      %3056 = vmatprep.subr.mxu0 0.0
      %3057 = vmatpush2.msra.mxu0 0.0
      %3058 = vmatprep.subr.mxu0 0.0
      %3059 = vmatpush2.msra.mxu0 0.0
      %3060 = vmatprep.subr.mxu0 0.0
      %3061 = vmatpush2.msra.mxu0 0.0
      %3062 = vmatprep.subr.mxu0 0.0
      %3063 = vmatpush2.msra.mxu0 0.0
      %3064 = vmatprep.subr.mxu0 0.0
      %3065 = vmatpush2.msra.mxu0 0.0
      %3066 = vmatprep.subr.mxu0 0.0
      %3067 = vmatpush2.msra.mxu0 0.0
      %3068 = vmatprep.mubr.f32.mxu0 0.0
      %3069 = vmatmul.mubr.f32.gmra.mxu0 %v1938
      %v3070 = vpop.f32.mrf.mxu0
      %v3071 = vadd.f32 0.0, %v3070
      %v3072 = vpop.f32.mrf.mxu0
      %3073 = vmatprep.mubr.f32.mxu0 0.0
      %3074 = vmatmul.mubr.f32.gmra.mxu0 %v1940
      %v3075 = vpop.f32.mrf.mxu0
      %v3076 = vadd.f32 0.0, %v3075
      %v3077 = vpop.f32.mrf.mxu0
      %3078 = vmatprep.mubr.f32.mxu0 0.0
      %3079 = vmatmul.mubr.f32.gmra.mxu0 %v1942
      %v3080 = vpop.f32.mrf.mxu0
      %v3081 = vadd.f32 0.0, %v3080
      %v3082 = vpop.f32.mrf.mxu0
      %3083 = vmatprep.mubr.f32.mxu0 0.0
      %3084 = vmatmul.mubr.f32.gmra.mxu0 %v1944
      %v3085 = vpop.f32.mrf.mxu0
      %v3086 = vadd.f32 0.0, %v3085
      %v3087 = vpop.f32.mrf.mxu0
      %3088 = vmatprep.mubr.f32.mxu0 0.0
      %3089 = vmatmul.mubr.f32.gmra.mxu0 %v1946
      %v3090 = vpop.f32.mrf.mxu0
      %v3091 = vadd.f32 0.0, %v3090
      %v3092 = vpop.f32.mrf.mxu0
      %3093 = vmatprep.mubr.f32.mxu0 0.0
      %3094 = vmatmul.mubr.f32.gmra.mxu0 %v1948
      %v3095 = vpop.f32.mrf.mxu0
      %v3096 = vadd.f32 0.0, %v3095
      %v3097 = vpop.f32.mrf.mxu0
      %3098 = vmatprep.mubr.f32.mxu0 0.0
      %3099 = vmatmul.mubr.f32.gmra.mxu0 %v1950
      %v3100 = vpop.f32.mrf.mxu0
      %v3101 = vadd.f32 0.0, %v3100
      %v3102 = vpop.f32.mrf.mxu0
      %3103 = vmatprep.mubr.f32.mxu0 0.0
      %3104 = vmatmul.mubr.f32.gmra.mxu0 %v1952
      %v3105 = vpop.f32.mrf.mxu0
      %v3106 = vadd.f32 0.0, %v3105
      %v3107 = vpop.f32.mrf.mxu0
      %3108 = vmatprep.mubr.f32.mxu0 0.0
      %3109 = vmatmul.mubr.f32.gmra.mxu0 %v1954
      %v3110 = vpop.f32.mrf.mxu0
      %v3111 = vadd.f32 0.0, %v3110
      %v3112 = vpop.f32.mrf.mxu0
      %3113 = vmatprep.mubr.f32.mxu0 0.0
      %3114 = vmatmul.mubr.f32.gmra.mxu0 %v1956
      %v3115 = vpop.f32.mrf.mxu0
      %v3116 = vadd.f32 0.0, %v3115
      %v3117 = vpop.f32.mrf.mxu0
      %3118 = vmatprep.mubr.f32.mxu0 0.0
      %3119 = vmatmul.mubr.f32.gmra.mxu0 %v1958
      %v3120 = vpop.f32.mrf.mxu0
      %v3121 = vadd.f32 0.0, %v3120
      %v3122 = vpop.f32.mrf.mxu0
      %3123 = vmatprep.mubr.f32.mxu0 0.0
      %3124 = vmatmul.mubr.f32.gmra.mxu0 %v1960
      %v3125 = vpop.f32.mrf.mxu0
      %v3126 = vadd.f32 0.0, %v3125
      %v3127 = vpop.f32.mrf.mxu0
      %3128 = vmatprep.mubr.f32.mxu0 0.0
      %3129 = vmatmul.mubr.f32.gmra.mxu0 %v1962
      %v3130 = vpop.f32.mrf.mxu0
      %v3131 = vadd.f32 0.0, %v3130
      %v3132 = vpop.f32.mrf.mxu0
      %3133 = vmatprep.mubr.f32.mxu0 0.0
      %3134 = vmatmul.mubr.f32.gmra.mxu0 %v1964
      %v3135 = vpop.f32.mrf.mxu0
      %v3136 = vadd.f32 0.0, %v3135
      %v3137 = vpop.f32.mrf.mxu0
      %3138 = vmatprep.mubr.f32.mxu0 0.0
      %3139 = vmatmul.mubr.f32.gmra.mxu0 %v1966
      %v3140 = vpop.f32.mrf.mxu0
      %v3141 = vadd.f32 0.0, %v3140
      %v3142 = vpop.f32.mrf.mxu0
      %3143 = vmatprep.mubr.f32.mxu0 0.0
      %3144 = vmatmul.mubr.f32.gmra.mxu0 %v1968
      %v3145 = vpop.f32.mrf.mxu0
      %v3146 = vadd.f32 0.0, %v3145
      %v3147 = vpop.f32.mrf.mxu0
      %3148 = vmatprep.mubr.f32.mxu0 0.0
      %3149 = vmatmul.mubr.f32.gmra.mxu0 %v1970
      %v3150 = vpop.f32.mrf.mxu0
      %v3151 = vadd.f32 0.0, %v3150
      %v3152 = vpop.f32.mrf.mxu0
      %3153 = vmatprep.mubr.f32.mxu0 0.0
      %3154 = vmatmul.mubr.f32.gmra.mxu0 %v1972
      %v3155 = vpop.f32.mrf.mxu0
      %v3156 = vadd.f32 0.0, %v3155
      %v3157 = vpop.f32.mrf.mxu0
      %3158 = vmatprep.mubr.f32.mxu0 0.0
      %3159 = vmatmul.mubr.f32.gmra.mxu0 %v1974
      %v3160 = vpop.f32.mrf.mxu0
      %v3161 = vadd.f32 0.0, %v3160
      %v3162 = vpop.f32.mrf.mxu0
      %3163 = vmatprep.mubr.f32.mxu0 0.0
      %3164 = vmatmul.mubr.f32.gmra.mxu0 %v1976
      %v3165 = vpop.f32.mrf.mxu0
      %v3166 = vadd.f32 0.0, %v3165
      %v3167 = vpop.f32.mrf.mxu0
      %3168 = vmatprep.mubr.f32.mxu0 0.0
      %3169 = vmatmul.mubr.f32.gmra.mxu0 %v1978
      %v3170 = vpop.f32.mrf.mxu0
      %v3171 = vadd.f32 0.0, %v3170
      %v3172 = vpop.f32.mrf.mxu0
      %3173 = vmatprep.mubr.f32.mxu0 0.0
      %3174 = vmatmul.mubr.f32.gmra.mxu0 %v1980
      %v3175 = vpop.f32.mrf.mxu0
      %v3176 = vadd.f32 0.0, %v3175
      %v3177 = vpop.f32.mrf.mxu0
      %3178 = vmatprep.mubr.f32.mxu0 0.0
      %3179 = vmatmul.mubr.f32.gmra.mxu0 %v1982
      %v3180 = vpop.f32.mrf.mxu0
      %v3181 = vadd.f32 0.0, %v3180
      %v3182 = vpop.f32.mrf.mxu0
      %3183 = vmatprep.mubr.f32.mxu0 0.0
      %3184 = vmatmul.mubr.f32.gmra.mxu0 %v1984
      %v3185 = vpop.f32.mrf.mxu0
      %v3186 = vadd.f32 0.0, %v3185
      %v3187 = vpop.f32.mrf.mxu0
      %3188 = vmatprep.mubr.f32.mxu0 0.0
      %3189 = vmatmul.mubr.f32.gmra.mxu0 %v1986
      %v3190 = vpop.f32.mrf.mxu0
      %v3191 = vadd.f32 0.0, %v3190
      %v3192 = vpop.f32.mrf.mxu0
      %3193 = vmatprep.mubr.f32.mxu0 0.0
      %3194 = vmatmul.mubr.f32.gmra.mxu0 %v1988
      %v3195 = vpop.f32.mrf.mxu0
      %v3196 = vadd.f32 0.0, %v3195
      %v3197 = vpop.f32.mrf.mxu0
      %3198 = vmatprep.mubr.f32.mxu0 0.0
      %3199 = vmatmul.mubr.f32.gmra.mxu0 %v1990
      %v3200 = vpop.f32.mrf.mxu0
      %v3201 = vadd.f32 0.0, %v3200
      %v3202 = vpop.f32.mrf.mxu0
      %3203 = vmatprep.mubr.f32.mxu0 0.0
      %3204 = vmatmul.mubr.f32.gmra.mxu0 %v1992
      %v3205 = vpop.f32.mrf.mxu0
      %v3206 = vadd.f32 0.0, %v3205
      %v3207 = vpop.f32.mrf.mxu0
      %3208 = vmatprep.mubr.f32.mxu0 0.0
      %3209 = vmatmul.mubr.f32.gmra.mxu0 %v1994
      %v3210 = vpop.f32.mrf.mxu0
      %v3211 = vadd.f32 0.0, %v3210
      %v3212 = vpop.f32.mrf.mxu0
      %3213 = vmatprep.mubr.f32.mxu0 0.0
      %3214 = vmatmul.mubr.f32.gmra.mxu0 %v1996
      %v3215 = vpop.f32.mrf.mxu0
      %v3216 = vadd.f32 0.0, %v3215
      %v3217 = vpop.f32.mrf.mxu0
      %3218 = vmatprep.mubr.f32.mxu0 0.0
      %3219 = vmatmul.mubr.f32.gmra.mxu0 %v2997
      %v3220 = vpop.f32.mrf.mxu0
      %v3221 = vadd.f32 0.0, %v3220
      %v3222 = vpop.f32.mrf.mxu0
      %3223 = vmatprep.mubr.f32.mxu0 0.0
      %3224 = vmatmul.mubr.f32.gmra.mxu0 %v2999
      %v3225 = vpop.f32.mrf.mxu0
      %v3226 = vadd.f32 0.0, %v3225
      %v3227 = vpop.f32.mrf.mxu0
      %3228 = vdwg.mxu0
      %v3229 = vld [vmem:[#allocation3] sm:$0xff]
      %v3230 = vld [vmem:[#allocation3 + $0x8] sm:$0xff]
      %v3231 = vld [vmem:[#allocation3 + $0x10] sm:$0xff]
      %v3232 = vld [vmem:[#allocation3 + $0x18] sm:$0xff]
      %v3233 = vld [vmem:[#allocation3 + $0x20] sm:$0xff]
      %v3234 = vld [vmem:[#allocation3 + $0x28] sm:$0xff]
      %v3235 = vld [vmem:[#allocation3 + $0x30] sm:$0xff]
      %v3236 = vld [vmem:[#allocation3 + $0x38] sm:$0xff]
      %v3237 = vld [vmem:[#allocation3 + $0x40] sm:$0xff]
      %v3238 = vld [vmem:[#allocation3 + $0x48] sm:$0xff]
      %v3239 = vld [vmem:[#allocation3 + $0x50] sm:$0xff]
      %v3240 = vld [vmem:[#allocation3 + $0x58] sm:$0xff]
      %v3241 = vld [vmem:[#allocation3 + $0x60] sm:$0xff]
      %v3242 = vld [vmem:[#allocation3 + $0x68] sm:$0xff]
      %v3243 = vld [vmem:[#allocation3 + $0x70] sm:$0xff]
      %v3244 = vld [vmem:[#allocation3 + $0x78] sm:$0xff]
      %v3245 = vld [vmem:[#allocation3 + $0x80] sm:$0xff]
      %v3246 = vld [vmem:[#allocation3 + $0x88] sm:$0xff]
      %v3247 = vld [vmem:[#allocation3 + $0x90] sm:$0xff]
      %v3248 = vld [vmem:[#allocation3 + $0x98] sm:$0xff]
      %v3249 = vld [vmem:[#allocation3 + $0xa0] sm:$0xff]
      %v3250 = vld [vmem:[#allocation3 + $0xa8] sm:$0xff]
      %v3251 = vld [vmem:[#allocation3 + $0xb0] sm:$0xff]
      %v3252 = vld [vmem:[#allocation3 + $0xb8] sm:$0xff]
      %v3253 = vld [vmem:[#allocation3 + $0xc0] sm:$0xff]
      %v3254 = vld [vmem:[#allocation3 + $0xc8] sm:$0xff]
      %v3255 = vld [vmem:[#allocation3 + $0xd0] sm:$0xff]
      %v3256 = vld [vmem:[#allocation3 + $0xd8] sm:$0xff]
      %v3257 = vld [vmem:[#allocation3 + $0xe0] sm:$0xff]
      %v3258 = vld [vmem:[#allocation3 + $0xe8] sm:$0xff]
      %v3259 = vld [vmem:[#allocation3 + $0xf0] sm:$0xff]
      %v3260 = vld [vmem:[#allocation3 + $0xf8] sm:$0xff]
      %v3261 = vadd.f32 %v3229, %v3071
      %v3262 = vadd.f32 %v3230, %v3076
      %v3263 = vadd.f32 %v3231, %v3081
      %v3264 = vadd.f32 %v3232, %v3086
      %v3265 = vadd.f32 %v3233, %v3091
      %v3266 = vadd.f32 %v3234, %v3096
      %v3267 = vadd.f32 %v3235, %v3101
      %v3268 = vadd.f32 %v3236, %v3106
      %v3269 = vadd.f32 %v3237, %v3111
      %v3270 = vadd.f32 %v3238, %v3116
      %v3271 = vadd.f32 %v3239, %v3121
      %v3272 = vadd.f32 %v3240, %v3126
      %v3273 = vadd.f32 %v3241, %v3131
      %v3274 = vadd.f32 %v3242, %v3136
      %v3275 = vadd.f32 %v3243, %v3141
      %v3276 = vadd.f32 %v3244, %v3146
      %v3277 = vadd.f32 %v3245, %v3151
      %v3278 = vadd.f32 %v3246, %v3156
      %v3279 = vadd.f32 %v3247, %v3161
      %v3280 = vadd.f32 %v3248, %v3166
      %v3281 = vadd.f32 %v3249, %v3171
      %v3282 = vadd.f32 %v3250, %v3176
      %v3283 = vadd.f32 %v3251, %v3181
      %v3284 = vadd.f32 %v3252, %v3186
      %v3285 = vadd.f32 %v3253, %v3191
      %v3286 = vadd.f32 %v3254, %v3196
      %v3287 = vadd.f32 %v3255, %v3201
      %v3288 = vadd.f32 %v3256, %v3206
      %v3289 = vadd.f32 %v3257, %v3211
      %v3290 = vadd.f32 %v3258, %v3216
      %v3291 = vadd.f32 %v3259, %v3221
      %v3292 = vadd.f32 %v3260, %v3226
      %3293 = vst.msk [vmem:[#allocation3] sm:$0xff] %vm1331, %v3261
      %3294 = vst.msk [vmem:[#allocation3 + $0x8] sm:$0xff] %vm1331, %v3262
      %3295 = vst.msk [vmem:[#allocation3 + $0x10] sm:$0xff] %vm1331, %v3263
      %3296 = vst.msk [vmem:[#allocation3 + $0x18] sm:$0xff] %vm1331, %v3264
      %3297 = vst.msk [vmem:[#allocation3 + $0x20] sm:$0xff] %vm1331, %v3265
      %3298 = vst.msk [vmem:[#allocation3 + $0x28] sm:$0xff] %vm1331, %v3266
      %3299 = vst.msk [vmem:[#allocation3 + $0x30] sm:$0xff] %vm1331, %v3267
      %3300 = vst.msk [vmem:[#allocation3 + $0x38] sm:$0xff] %vm1331, %v3268
      %3301 = vst.msk [vmem:[#allocation3 + $0x40] sm:$0xff] %vm1331, %v3269
      %3302 = vst.msk [vmem:[#allocation3 + $0x48] sm:$0xff] %vm1331, %v3270
      %3303 = vst.msk [vmem:[#allocation3 + $0x50] sm:$0xff] %vm1331, %v3271
      %3304 = vst.msk [vmem:[#allocation3 + $0x58] sm:$0xff] %vm1331, %v3272
      %3305 = vst.msk [vmem:[#allocation3 + $0x60] sm:$0xff] %vm1331, %v3273
      %3306 = vst.msk [vmem:[#allocation3 + $0x68] sm:$0xff] %vm1331, %v3274
      %3307 = vst.msk [vmem:[#allocation3 + $0x70] sm:$0xff] %vm1331, %v3275
      %3308 = vst.msk [vmem:[#allocation3 + $0x78] sm:$0xff] %vm1331, %v3276
      %3309 = vst.msk [vmem:[#allocation3 + $0x80] sm:$0xff] %vm1331, %v3277
      %3310 = vst.msk [vmem:[#allocation3 + $0x88] sm:$0xff] %vm1331, %v3278
      %3311 = vst.msk [vmem:[#allocation3 + $0x90] sm:$0xff] %vm1331, %v3279
      %3312 = vst.msk [vmem:[#allocation3 + $0x98] sm:$0xff] %vm1331, %v3280
      %3313 = vst.msk [vmem:[#allocation3 + $0xa0] sm:$0xff] %vm1331, %v3281
      %3314 = vst.msk [vmem:[#allocation3 + $0xa8] sm:$0xff] %vm1331, %v3282
      %3315 = vst.msk [vmem:[#allocation3 + $0xb0] sm:$0xff] %vm1331, %v3283
      %3316 = vst.msk [vmem:[#allocation3 + $0xb8] sm:$0xff] %vm1331, %v3284
      %3317 = vst.msk [vmem:[#allocation3 + $0xc0] sm:$0xff] %vm1331, %v3285
      %3318 = vst.msk [vmem:[#allocation3 + $0xc8] sm:$0xff] %vm1331, %v3286
      %3319 = vst.msk [vmem:[#allocation3 + $0xd0] sm:$0xff] %vm1331, %v3287
      %3320 = vst.msk [vmem:[#allocation3 + $0xd8] sm:$0xff] %vm1331, %v3288
      %3321 = vst.msk [vmem:[#allocation3 + $0xe0] sm:$0xff] %vm1331, %v3289
      %3322 = vst.msk [vmem:[#allocation3 + $0xe8] sm:$0xff] %vm1331, %v3290
      %3323 = vst.msk [vmem:[#allocation3 + $0xf0] sm:$0xff] %vm1331, %v3291
      %3324 = vst.msk [vmem:[#allocation3 + $0xf8] sm:$0xff] %vm1331, %v3292
      %s3325 = scalar_lea.vmem %s4, 24
      %v3326 = vld [vmem:[%s3325] sm:$0xf]
      %v3328 = vsel %vm364, %v1002, 0
      %v3331 = vsel %vm364, %v1003, 0
      %v3334 = vsel %vm1102, %v3326, 0
      %3336 = vmatprep.subr.mxu0 0.0
      %3337 = vmatpush1.msra.mxu0 0.0
      %3338 = vmatprep.subr.mxu0 0.0
      %3339 = vmatpush1.msra.mxu0 0.0
      %3340 = vmatprep.subr.mxu0 0.0
      %3341 = vmatpush1.msra.mxu0 0.0
      %3342 = vmatprep.subr.mxu0 0.0
      %3343 = vmatpush1.msra.mxu0 0.0
      %3344 = vmatprep.subr.mxu0 0.0
      %3345 = vmatpush1.msra.mxu0 0.0
      %3346 = vmatprep.subr.mxu0 0.0
      %3347 = vmatpush1.msra.mxu0 0.0
      %3348 = vmatprep.subr.mxu0 0.0
      %3349 = vmatpush1.msra.mxu0 0.0
      %3350 = vmatprep.subr.mxu0 0.0
      %3351 = vmatpush1.msra.mxu0 0.0
      %3352 = vmatprep.subr.mxu0 0.0
      %3353 = vmatpush1.msra.mxu0 0.0
      %3354 = vmatprep.subr.mxu0 0.0
      %3355 = vmatpush1.msra.mxu0 0.0
      %3356 = vmatprep.subr.mxu0 0.0
      %3357 = vmatpush1.msra.mxu0 0.0
      %3358 = vmatprep.subr.mxu0 0.0
      %3359 = vmatpush1.msra.mxu0 0.0
      %3360 = vmatprep.subr.mxu0 0.0
      %3361 = vmatpush1.msra.mxu0 0.0
      %3362 = vmatprep.subr.mxu0 0.0
      %3363 = vmatpush1.msra.mxu0 0.0
      %3364 = vmatprep.subr.mxu0 0.0
      %3365 = vmatpush1.msra.mxu0 0.0
      %3366 = vmatprep.subr.mxu0 0.0
      %3367 = vmatpush1.msra.mxu0 %v3334
      %3368 = vmatprep.subr.mxu0 0.0
      %3369 = vmatpush2.msra.mxu0 0.0
      %3370 = vmatprep.subr.mxu0 0.0
      %3371 = vmatpush2.msra.mxu0 0.0
      %3372 = vmatprep.subr.mxu0 0.0
      %3373 = vmatpush2.msra.mxu0 0.0
      %3374 = vmatprep.subr.mxu0 0.0
      %3375 = vmatpush2.msra.mxu0 0.0
      %3376 = vmatprep.subr.mxu0 0.0
      %3377 = vmatpush2.msra.mxu0 0.0
      %3378 = vmatprep.subr.mxu0 0.0
      %3379 = vmatpush2.msra.mxu0 0.0
      %3380 = vmatprep.subr.mxu0 0.0
      %3381 = vmatpush2.msra.mxu0 0.0
      %3382 = vmatprep.subr.mxu0 0.0
      %3383 = vmatpush2.msra.mxu0 0.0
      %3384 = vmatprep.subr.mxu0 0.0
      %3385 = vmatpush2.msra.mxu0 0.0
      %3386 = vmatprep.subr.mxu0 0.0
      %3387 = vmatpush2.msra.mxu0 0.0
      %3388 = vmatprep.subr.mxu0 0.0
      %3389 = vmatpush2.msra.mxu0 0.0
      %3390 = vmatprep.subr.mxu0 0.0
      %3391 = vmatpush2.msra.mxu0 0.0
      %3392 = vmatprep.subr.mxu0 0.0
      %3393 = vmatpush2.msra.mxu0 0.0
      %3394 = vmatprep.subr.mxu0 0.0
      %3395 = vmatpush2.msra.mxu0 0.0
      %3396 = vmatprep.subr.mxu0 0.0
      %3397 = vmatpush2.msra.mxu0 0.0
      %3398 = vmatprep.subr.mxu0 0.0
      %3399 = vmatpush2.msra.mxu0 0.0
      %3400 = vmatprep.mubr.f32.mxu0 0.0
      %3401 = vmatmul.mubr.f32.gmra.mxu0 %v1019
      %v3402 = vpop.f32.mrf.mxu0
      %v3403 = vadd.f32 0.0, %v3402
      %v3404 = vpop.f32.mrf.mxu0
      %3405 = vmatprep.mubr.f32.mxu0 0.0
      %3406 = vmatmul.mubr.f32.gmra.mxu0 %v1022
      %v3407 = vpop.f32.mrf.mxu0
      %v3408 = vadd.f32 0.0, %v3407
      %v3409 = vpop.f32.mrf.mxu0
      %3410 = vmatprep.mubr.f32.mxu0 0.0
      %3411 = vmatmul.mubr.f32.gmra.mxu0 %v1025
      %v3412 = vpop.f32.mrf.mxu0
      %v3413 = vadd.f32 0.0, %v3412
      %v3414 = vpop.f32.mrf.mxu0
      %3415 = vmatprep.mubr.f32.mxu0 0.0
      %3416 = vmatmul.mubr.f32.gmra.mxu0 %v1028
      %v3417 = vpop.f32.mrf.mxu0
      %v3418 = vadd.f32 0.0, %v3417
      %v3419 = vpop.f32.mrf.mxu0
      %3420 = vmatprep.mubr.f32.mxu0 0.0
      %3421 = vmatmul.mubr.f32.gmra.mxu0 %v1031
      %v3422 = vpop.f32.mrf.mxu0
      %v3423 = vadd.f32 0.0, %v3422
      %v3424 = vpop.f32.mrf.mxu0
      %3425 = vmatprep.mubr.f32.mxu0 0.0
      %3426 = vmatmul.mubr.f32.gmra.mxu0 %v1034
      %v3427 = vpop.f32.mrf.mxu0
      %v3428 = vadd.f32 0.0, %v3427
      %v3429 = vpop.f32.mrf.mxu0
      %3430 = vmatprep.mubr.f32.mxu0 0.0
      %3431 = vmatmul.mubr.f32.gmra.mxu0 %v1037
      %v3432 = vpop.f32.mrf.mxu0
      %v3433 = vadd.f32 0.0, %v3432
      %v3434 = vpop.f32.mrf.mxu0
      %3435 = vmatprep.mubr.f32.mxu0 0.0
      %3436 = vmatmul.mubr.f32.gmra.mxu0 %v1040
      %v3437 = vpop.f32.mrf.mxu0
      %v3438 = vadd.f32 0.0, %v3437
      %v3439 = vpop.f32.mrf.mxu0
      %3440 = vmatprep.mubr.f32.mxu0 0.0
      %3441 = vmatmul.mubr.f32.gmra.mxu0 %v1043
      %v3442 = vpop.f32.mrf.mxu0
      %v3443 = vadd.f32 0.0, %v3442
      %v3444 = vpop.f32.mrf.mxu0
      %3445 = vmatprep.mubr.f32.mxu0 0.0
      %3446 = vmatmul.mubr.f32.gmra.mxu0 %v1046
      %v3447 = vpop.f32.mrf.mxu0
      %v3448 = vadd.f32 0.0, %v3447
      %v3449 = vpop.f32.mrf.mxu0
      %3450 = vmatprep.mubr.f32.mxu0 0.0
      %3451 = vmatmul.mubr.f32.gmra.mxu0 %v1049
      %v3452 = vpop.f32.mrf.mxu0
      %v3453 = vadd.f32 0.0, %v3452
      %v3454 = vpop.f32.mrf.mxu0
      %3455 = vmatprep.mubr.f32.mxu0 0.0
      %3456 = vmatmul.mubr.f32.gmra.mxu0 %v1052
      %v3457 = vpop.f32.mrf.mxu0
      %v3458 = vadd.f32 0.0, %v3457
      %v3459 = vpop.f32.mrf.mxu0
      %3460 = vmatprep.mubr.f32.mxu0 0.0
      %3461 = vmatmul.mubr.f32.gmra.mxu0 %v1055
      %v3462 = vpop.f32.mrf.mxu0
      %v3463 = vadd.f32 0.0, %v3462
      %v3464 = vpop.f32.mrf.mxu0
      %3465 = vmatprep.mubr.f32.mxu0 0.0
      %3466 = vmatmul.mubr.f32.gmra.mxu0 %v1058
      %v3467 = vpop.f32.mrf.mxu0
      %v3468 = vadd.f32 0.0, %v3467
      %v3469 = vpop.f32.mrf.mxu0
      %3470 = vmatprep.mubr.f32.mxu0 0.0
      %3471 = vmatmul.mubr.f32.gmra.mxu0 %v1061
      %v3472 = vpop.f32.mrf.mxu0
      %v3473 = vadd.f32 0.0, %v3472
      %v3474 = vpop.f32.mrf.mxu0
      %3475 = vmatprep.mubr.f32.mxu0 0.0
      %3476 = vmatmul.mubr.f32.gmra.mxu0 %v1064
      %v3477 = vpop.f32.mrf.mxu0
      %v3478 = vadd.f32 0.0, %v3477
      %v3479 = vpop.f32.mrf.mxu0
      %3480 = vmatprep.mubr.f32.mxu0 0.0
      %3481 = vmatmul.mubr.f32.gmra.mxu0 %v1067
      %v3482 = vpop.f32.mrf.mxu0
      %v3483 = vadd.f32 0.0, %v3482
      %v3484 = vpop.f32.mrf.mxu0
      %3485 = vmatprep.mubr.f32.mxu0 0.0
      %3486 = vmatmul.mubr.f32.gmra.mxu0 %v1070
      %v3487 = vpop.f32.mrf.mxu0
      %v3488 = vadd.f32 0.0, %v3487
      %v3489 = vpop.f32.mrf.mxu0
      %3490 = vmatprep.mubr.f32.mxu0 0.0
      %3491 = vmatmul.mubr.f32.gmra.mxu0 %v1073
      %v3492 = vpop.f32.mrf.mxu0
      %v3493 = vadd.f32 0.0, %v3492
      %v3494 = vpop.f32.mrf.mxu0
      %3495 = vmatprep.mubr.f32.mxu0 0.0
      %3496 = vmatmul.mubr.f32.gmra.mxu0 %v1076
      %v3497 = vpop.f32.mrf.mxu0
      %v3498 = vadd.f32 0.0, %v3497
      %v3499 = vpop.f32.mrf.mxu0
      %3500 = vmatprep.mubr.f32.mxu0 0.0
      %3501 = vmatmul.mubr.f32.gmra.mxu0 %v1079
      %v3502 = vpop.f32.mrf.mxu0
      %v3503 = vadd.f32 0.0, %v3502
      %v3504 = vpop.f32.mrf.mxu0
      %3505 = vmatprep.mubr.f32.mxu0 0.0
      %3506 = vmatmul.mubr.f32.gmra.mxu0 %v1082
      %v3507 = vpop.f32.mrf.mxu0
      %v3508 = vadd.f32 0.0, %v3507
      %v3509 = vpop.f32.mrf.mxu0
      %3510 = vmatprep.mubr.f32.mxu0 0.0
      %3511 = vmatmul.mubr.f32.gmra.mxu0 %v1085
      %v3512 = vpop.f32.mrf.mxu0
      %v3513 = vadd.f32 0.0, %v3512
      %v3514 = vpop.f32.mrf.mxu0
      %3515 = vmatprep.mubr.f32.mxu0 0.0
      %3516 = vmatmul.mubr.f32.gmra.mxu0 %v1088
      %v3517 = vpop.f32.mrf.mxu0
      %v3518 = vadd.f32 0.0, %v3517
      %v3519 = vpop.f32.mrf.mxu0
      %3520 = vmatprep.mubr.f32.mxu0 0.0
      %3521 = vmatmul.mubr.f32.gmra.mxu0 %v1091
      %v3522 = vpop.f32.mrf.mxu0
      %v3523 = vadd.f32 0.0, %v3522
      %v3524 = vpop.f32.mrf.mxu0
      %3525 = vmatprep.mubr.f32.mxu0 0.0
      %3526 = vmatmul.mubr.f32.gmra.mxu0 %v1094
      %v3527 = vpop.f32.mrf.mxu0
      %v3528 = vadd.f32 0.0, %v3527
      %v3529 = vpop.f32.mrf.mxu0
      %3530 = vmatprep.mubr.f32.mxu0 0.0
      %3531 = vmatmul.mubr.f32.gmra.mxu0 %v1097
      %v3532 = vpop.f32.mrf.mxu0
      %v3533 = vadd.f32 0.0, %v3532
      %v3534 = vpop.f32.mrf.mxu0
      %3535 = vmatprep.mubr.f32.mxu0 0.0
      %3536 = vmatmul.mubr.f32.gmra.mxu0 %v1100
      %v3537 = vpop.f32.mrf.mxu0
      %v3538 = vadd.f32 0.0, %v3537
      %v3539 = vpop.f32.mrf.mxu0
      %3540 = vmatprep.mubr.f32.mxu0 0.0
      %3541 = vmatmul.mubr.f32.gmra.mxu0 %v2325
      %v3542 = vpop.f32.mrf.mxu0
      %v3543 = vadd.f32 0.0, %v3542
      %v3544 = vpop.f32.mrf.mxu0
      %3545 = vmatprep.mubr.f32.mxu0 0.0
      %3546 = vmatmul.mubr.f32.gmra.mxu0 %v2328
      %v3547 = vpop.f32.mrf.mxu0
      %v3548 = vadd.f32 0.0, %v3547
      %v3549 = vpop.f32.mrf.mxu0
      %3550 = vmatprep.mubr.f32.mxu0 0.0
      %3551 = vmatmul.mubr.f32.gmra.mxu0 %v3328
      %v3552 = vpop.f32.mrf.mxu0
      %v3553 = vadd.f32 0.0, %v3552
      %v3554 = vpop.f32.mrf.mxu0
      %3555 = vmatprep.mubr.f32.mxu0 0.0
      %3556 = vmatmul.mubr.f32.gmra.mxu0 %v3331
      %v3557 = vpop.f32.mrf.mxu0
      %v3558 = vadd.f32 0.0, %v3557
      %v3559 = vpop.f32.mrf.mxu0
      %3560 = vdwg.mxu0
      %v3561 = vld [vmem:[#allocation3] sm:$0xff]
      %v3562 = vld [vmem:[#allocation3 + $0x8] sm:$0xff]
      %v3563 = vld [vmem:[#allocation3 + $0x10] sm:$0xff]
      %v3564 = vld [vmem:[#allocation3 + $0x18] sm:$0xff]
      %v3565 = vld [vmem:[#allocation3 + $0x20] sm:$0xff]
      %v3566 = vld [vmem:[#allocation3 + $0x28] sm:$0xff]
      %v3567 = vld [vmem:[#allocation3 + $0x30] sm:$0xff]
      %v3568 = vld [vmem:[#allocation3 + $0x38] sm:$0xff]
      %v3569 = vld [vmem:[#allocation3 + $0x40] sm:$0xff]
      %v3570 = vld [vmem:[#allocation3 + $0x48] sm:$0xff]
      %v3571 = vld [vmem:[#allocation3 + $0x50] sm:$0xff]
      %v3572 = vld [vmem:[#allocation3 + $0x58] sm:$0xff]
      %v3573 = vld [vmem:[#allocation3 + $0x60] sm:$0xff]
      %v3574 = vld [vmem:[#allocation3 + $0x68] sm:$0xff]
      %v3575 = vld [vmem:[#allocation3 + $0x70] sm:$0xff]
      %v3576 = vld [vmem:[#allocation3 + $0x78] sm:$0xff]
      %v3577 = vld [vmem:[#allocation3 + $0x80] sm:$0xff]
      %v3578 = vld [vmem:[#allocation3 + $0x88] sm:$0xff]
      %v3579 = vld [vmem:[#allocation3 + $0x90] sm:$0xff]
      %v3580 = vld [vmem:[#allocation3 + $0x98] sm:$0xff]
      %v3581 = vld [vmem:[#allocation3 + $0xa0] sm:$0xff]
      %v3582 = vld [vmem:[#allocation3 + $0xa8] sm:$0xff]
      %v3583 = vld [vmem:[#allocation3 + $0xb0] sm:$0xff]
      %v3584 = vld [vmem:[#allocation3 + $0xb8] sm:$0xff]
      %v3585 = vld [vmem:[#allocation3 + $0xc0] sm:$0xff]
      %v3586 = vld [vmem:[#allocation3 + $0xc8] sm:$0xff]
      %v3587 = vld [vmem:[#allocation3 + $0xd0] sm:$0xff]
      %v3588 = vld [vmem:[#allocation3 + $0xd8] sm:$0xff]
      %v3589 = vld [vmem:[#allocation3 + $0xe0] sm:$0xff]
      %v3590 = vld [vmem:[#allocation3 + $0xe8] sm:$0xff]
      %v3591 = vld [vmem:[#allocation3 + $0xf0] sm:$0xff]
      %v3592 = vld [vmem:[#allocation3 + $0xf8] sm:$0xff]
      %v3593 = vadd.f32 %v3561, %v3403
      %v3594 = vadd.f32 %v3562, %v3408
      %v3595 = vadd.f32 %v3563, %v3413
      %v3596 = vadd.f32 %v3564, %v3418
      %v3597 = vadd.f32 %v3565, %v3423
      %v3598 = vadd.f32 %v3566, %v3428
      %v3599 = vadd.f32 %v3567, %v3433
      %v3600 = vadd.f32 %v3568, %v3438
      %v3601 = vadd.f32 %v3569, %v3443
      %v3602 = vadd.f32 %v3570, %v3448
      %v3603 = vadd.f32 %v3571, %v3453
      %v3604 = vadd.f32 %v3572, %v3458
      %v3605 = vadd.f32 %v3573, %v3463
      %v3606 = vadd.f32 %v3574, %v3468
      %v3607 = vadd.f32 %v3575, %v3473
      %v3608 = vadd.f32 %v3576, %v3478
      %v3609 = vadd.f32 %v3577, %v3483
      %v3610 = vadd.f32 %v3578, %v3488
      %v3611 = vadd.f32 %v3579, %v3493
      %v3612 = vadd.f32 %v3580, %v3498
      %v3613 = vadd.f32 %v3581, %v3503
      %v3614 = vadd.f32 %v3582, %v3508
      %v3615 = vadd.f32 %v3583, %v3513
      %v3616 = vadd.f32 %v3584, %v3518
      %v3617 = vadd.f32 %v3585, %v3523
      %v3618 = vadd.f32 %v3586, %v3528
      %v3619 = vadd.f32 %v3587, %v3533
      %v3620 = vadd.f32 %v3588, %v3538
      %v3621 = vadd.f32 %v3589, %v3543
      %v3622 = vadd.f32 %v3590, %v3548
      %v3623 = vadd.f32 %v3591, %v3553
      %v3624 = vadd.f32 %v3592, %v3558
      %3625 = vst.msk [vmem:[#allocation3] sm:$0xff] %vm1331, %v3593
      %3626 = vst.msk [vmem:[#allocation3 + $0x8] sm:$0xff] %vm1331, %v3594
      %3627 = vst.msk [vmem:[#allocation3 + $0x10] sm:$0xff] %vm1331, %v3595
      %3628 = vst.msk [vmem:[#allocation3 + $0x18] sm:$0xff] %vm1331, %v3596
      %3629 = vst.msk [vmem:[#allocation3 + $0x20] sm:$0xff] %vm1331, %v3597
      %3630 = vst.msk [vmem:[#allocation3 + $0x28] sm:$0xff] %vm1331, %v3598
      %3631 = vst.msk [vmem:[#allocation3 + $0x30] sm:$0xff] %vm1331, %v3599
      %3632 = vst.msk [vmem:[#allocation3 + $0x38] sm:$0xff] %vm1331, %v3600
      %3633 = vst.msk [vmem:[#allocation3 + $0x40] sm:$0xff] %vm1331, %v3601
      %3634 = vst.msk [vmem:[#allocation3 + $0x48] sm:$0xff] %vm1331, %v3602
      %3635 = vst.msk [vmem:[#allocation3 + $0x50] sm:$0xff] %vm1331, %v3603
      %3636 = vst.msk [vmem:[#allocation3 + $0x58] sm:$0xff] %vm1331, %v3604
      %3637 = vst.msk [vmem:[#allocation3 + $0x60] sm:$0xff] %vm1331, %v3605
      %3638 = vst.msk [vmem:[#allocation3 + $0x68] sm:$0xff] %vm1331, %v3606
      %3639 = vst.msk [vmem:[#allocation3 + $0x70] sm:$0xff] %vm1331, %v3607
      %3640 = vst.msk [vmem:[#allocation3 + $0x78] sm:$0xff] %vm1331, %v3608
      %3641 = vst.msk [vmem:[#allocation3 + $0x80] sm:$0xff] %vm1331, %v3609
      %3642 = vst.msk [vmem:[#allocation3 + $0x88] sm:$0xff] %vm1331, %v3610
      %3643 = vst.msk [vmem:[#allocation3 + $0x90] sm:$0xff] %vm1331, %v3611
      %3644 = vst.msk [vmem:[#allocation3 + $0x98] sm:$0xff] %vm1331, %v3612
      %3645 = vst.msk [vmem:[#allocation3 + $0xa0] sm:$0xff] %vm1331, %v3613
      %3646 = vst.msk [vmem:[#allocation3 + $0xa8] sm:$0xff] %vm1331, %v3614
      %3647 = vst.msk [vmem:[#allocation3 + $0xb0] sm:$0xff] %vm1331, %v3615
      %3648 = vst.msk [vmem:[#allocation3 + $0xb8] sm:$0xff] %vm1331, %v3616
      %3649 = vst.msk [vmem:[#allocation3 + $0xc0] sm:$0xff] %vm1331, %v3617
      %3650 = vst.msk [vmem:[#allocation3 + $0xc8] sm:$0xff] %vm1331, %v3618
      %3651 = vst.msk [vmem:[#allocation3 + $0xd0] sm:$0xff] %vm1331, %v3619
      %3652 = vst.msk [vmem:[#allocation3 + $0xd8] sm:$0xff] %vm1331, %v3620
      %3653 = vst.msk [vmem:[#allocation3 + $0xe0] sm:$0xff] %vm1331, %v3621
      %3654 = vst.msk [vmem:[#allocation3 + $0xe8] sm:$0xff] %vm1331, %v3622
      %3655 = vst.msk [vmem:[#allocation3 + $0xf0] sm:$0xff] %vm1331, %v3623
      %3656 = vst.msk [vmem:[#allocation3 + $0xf8] sm:$0xff] %vm1331, %v3624
      %v3658 = vrot.slane %v1002, 1
      %v3659 = vrot.slane %v1003, 1
      %v3660 = vsel %vm1380, %v3658, %v3659
      %v3661 = vrot.slane %v1004, 1
      %v3662 = vsel %vm1380, %v3659, %v3661
      %s3663 = scalar_lea.vmem %s4, 28
      %v3664 = vld [vmem:[%s3663] sm:$0xf]
      %v3665 = vsel %vm364, %v3660, 0
      %v3667 = vsel %vm364, %v3662, 0
      %v3670 = vsel %vm1102, %v3664, 0
      %3672 = vmatprep.subr.mxu0 0.0
      %3673 = vmatpush1.msra.mxu0 0.0
      %3674 = vmatprep.subr.mxu0 0.0
      %3675 = vmatpush1.msra.mxu0 0.0
      %3676 = vmatprep.subr.mxu0 0.0
      %3677 = vmatpush1.msra.mxu0 0.0
      %3678 = vmatprep.subr.mxu0 0.0
      %3679 = vmatpush1.msra.mxu0 0.0
      %3680 = vmatprep.subr.mxu0 0.0
      %3681 = vmatpush1.msra.mxu0 0.0
      %3682 = vmatprep.subr.mxu0 0.0
      %3683 = vmatpush1.msra.mxu0 0.0
      %3684 = vmatprep.subr.mxu0 0.0
      %3685 = vmatpush1.msra.mxu0 0.0
      %3686 = vmatprep.subr.mxu0 0.0
      %3687 = vmatpush1.msra.mxu0 0.0
      %3688 = vmatprep.subr.mxu0 0.0
      %3689 = vmatpush1.msra.mxu0 0.0
      %3690 = vmatprep.subr.mxu0 0.0
      %3691 = vmatpush1.msra.mxu0 0.0
      %3692 = vmatprep.subr.mxu0 0.0
      %3693 = vmatpush1.msra.mxu0 0.0
      %3694 = vmatprep.subr.mxu0 0.0
      %3695 = vmatpush1.msra.mxu0 0.0
      %3696 = vmatprep.subr.mxu0 0.0
      %3697 = vmatpush1.msra.mxu0 0.0
      %3698 = vmatprep.subr.mxu0 0.0
      %3699 = vmatpush1.msra.mxu0 0.0
      %3700 = vmatprep.subr.mxu0 0.0
      %3701 = vmatpush1.msra.mxu0 0.0
      %3702 = vmatprep.subr.mxu0 0.0
      %3703 = vmatpush1.msra.mxu0 %v3670
      %3704 = vmatprep.subr.mxu0 0.0
      %3705 = vmatpush2.msra.mxu0 0.0
      %3706 = vmatprep.subr.mxu0 0.0
      %3707 = vmatpush2.msra.mxu0 0.0
      %3708 = vmatprep.subr.mxu0 0.0
      %3709 = vmatpush2.msra.mxu0 0.0
      %3710 = vmatprep.subr.mxu0 0.0
      %3711 = vmatpush2.msra.mxu0 0.0
      %3712 = vmatprep.subr.mxu0 0.0
      %3713 = vmatpush2.msra.mxu0 0.0
      %3714 = vmatprep.subr.mxu0 0.0
      %3715 = vmatpush2.msra.mxu0 0.0
      %3716 = vmatprep.subr.mxu0 0.0
      %3717 = vmatpush2.msra.mxu0 0.0
      %3718 = vmatprep.subr.mxu0 0.0
      %3719 = vmatpush2.msra.mxu0 0.0
      %3720 = vmatprep.subr.mxu0 0.0
      %3721 = vmatpush2.msra.mxu0 0.0
      %3722 = vmatprep.subr.mxu0 0.0
      %3723 = vmatpush2.msra.mxu0 0.0
      %3724 = vmatprep.subr.mxu0 0.0
      %3725 = vmatpush2.msra.mxu0 0.0
      %3726 = vmatprep.subr.mxu0 0.0
      %3727 = vmatpush2.msra.mxu0 0.0
      %3728 = vmatprep.subr.mxu0 0.0
      %3729 = vmatpush2.msra.mxu0 0.0
      %3730 = vmatprep.subr.mxu0 0.0
      %3731 = vmatpush2.msra.mxu0 0.0
      %3732 = vmatprep.subr.mxu0 0.0
      %3733 = vmatpush2.msra.mxu0 0.0
      %3734 = vmatprep.subr.mxu0 0.0
      %3735 = vmatpush2.msra.mxu0 0.0
      %3736 = vmatprep.mubr.f32.mxu0 0.0
      %3737 = vmatmul.mubr.f32.gmra.mxu0 %v1471
      %v3738 = vpop.f32.mrf.mxu0
      %v3739 = vadd.f32 0.0, %v3738
      %v3740 = vpop.f32.mrf.mxu0
      %3741 = vmatprep.mubr.f32.mxu0 0.0
      %3742 = vmatmul.mubr.f32.gmra.mxu0 %v1473
      %v3743 = vpop.f32.mrf.mxu0
      %v3744 = vadd.f32 0.0, %v3743
      %v3745 = vpop.f32.mrf.mxu0
      %3746 = vmatprep.mubr.f32.mxu0 0.0
      %3747 = vmatmul.mubr.f32.gmra.mxu0 %v1475
      %v3748 = vpop.f32.mrf.mxu0
      %v3749 = vadd.f32 0.0, %v3748
      %v3750 = vpop.f32.mrf.mxu0
      %3751 = vmatprep.mubr.f32.mxu0 0.0
      %3752 = vmatmul.mubr.f32.gmra.mxu0 %v1477
      %v3753 = vpop.f32.mrf.mxu0
      %v3754 = vadd.f32 0.0, %v3753
      %v3755 = vpop.f32.mrf.mxu0
      %3756 = vmatprep.mubr.f32.mxu0 0.0
      %3757 = vmatmul.mubr.f32.gmra.mxu0 %v1479
      %v3758 = vpop.f32.mrf.mxu0
      %v3759 = vadd.f32 0.0, %v3758
      %v3760 = vpop.f32.mrf.mxu0
      %3761 = vmatprep.mubr.f32.mxu0 0.0
      %3762 = vmatmul.mubr.f32.gmra.mxu0 %v1481
      %v3763 = vpop.f32.mrf.mxu0
      %v3764 = vadd.f32 0.0, %v3763
      %v3765 = vpop.f32.mrf.mxu0
      %3766 = vmatprep.mubr.f32.mxu0 0.0
      %3767 = vmatmul.mubr.f32.gmra.mxu0 %v1483
      %v3768 = vpop.f32.mrf.mxu0
      %v3769 = vadd.f32 0.0, %v3768
      %v3770 = vpop.f32.mrf.mxu0
      %3771 = vmatprep.mubr.f32.mxu0 0.0
      %3772 = vmatmul.mubr.f32.gmra.mxu0 %v1485
      %v3773 = vpop.f32.mrf.mxu0
      %v3774 = vadd.f32 0.0, %v3773
      %v3775 = vpop.f32.mrf.mxu0
      %3776 = vmatprep.mubr.f32.mxu0 0.0
      %3777 = vmatmul.mubr.f32.gmra.mxu0 %v1487
      %v3778 = vpop.f32.mrf.mxu0
      %v3779 = vadd.f32 0.0, %v3778
      %v3780 = vpop.f32.mrf.mxu0
      %3781 = vmatprep.mubr.f32.mxu0 0.0
      %3782 = vmatmul.mubr.f32.gmra.mxu0 %v1489
      %v3783 = vpop.f32.mrf.mxu0
      %v3784 = vadd.f32 0.0, %v3783
      %v3785 = vpop.f32.mrf.mxu0
      %3786 = vmatprep.mubr.f32.mxu0 0.0
      %3787 = vmatmul.mubr.f32.gmra.mxu0 %v1491
      %v3788 = vpop.f32.mrf.mxu0
      %v3789 = vadd.f32 0.0, %v3788
      %v3790 = vpop.f32.mrf.mxu0
      %3791 = vmatprep.mubr.f32.mxu0 0.0
      %3792 = vmatmul.mubr.f32.gmra.mxu0 %v1493
      %v3793 = vpop.f32.mrf.mxu0
      %v3794 = vadd.f32 0.0, %v3793
      %v3795 = vpop.f32.mrf.mxu0
      %3796 = vmatprep.mubr.f32.mxu0 0.0
      %3797 = vmatmul.mubr.f32.gmra.mxu0 %v1495
      %v3798 = vpop.f32.mrf.mxu0
      %v3799 = vadd.f32 0.0, %v3798
      %v3800 = vpop.f32.mrf.mxu0
      %3801 = vmatprep.mubr.f32.mxu0 0.0
      %3802 = vmatmul.mubr.f32.gmra.mxu0 %v1497
      %v3803 = vpop.f32.mrf.mxu0
      %v3804 = vadd.f32 0.0, %v3803
      %v3805 = vpop.f32.mrf.mxu0
      %3806 = vmatprep.mubr.f32.mxu0 0.0
      %3807 = vmatmul.mubr.f32.gmra.mxu0 %v1499
      %v3808 = vpop.f32.mrf.mxu0
      %v3809 = vadd.f32 0.0, %v3808
      %v3810 = vpop.f32.mrf.mxu0
      %3811 = vmatprep.mubr.f32.mxu0 0.0
      %3812 = vmatmul.mubr.f32.gmra.mxu0 %v1501
      %v3813 = vpop.f32.mrf.mxu0
      %v3814 = vadd.f32 0.0, %v3813
      %v3815 = vpop.f32.mrf.mxu0
      %3816 = vmatprep.mubr.f32.mxu0 0.0
      %3817 = vmatmul.mubr.f32.gmra.mxu0 %v1503
      %v3818 = vpop.f32.mrf.mxu0
      %v3819 = vadd.f32 0.0, %v3818
      %v3820 = vpop.f32.mrf.mxu0
      %3821 = vmatprep.mubr.f32.mxu0 0.0
      %3822 = vmatmul.mubr.f32.gmra.mxu0 %v1505
      %v3823 = vpop.f32.mrf.mxu0
      %v3824 = vadd.f32 0.0, %v3823
      %v3825 = vpop.f32.mrf.mxu0
      %3826 = vmatprep.mubr.f32.mxu0 0.0
      %3827 = vmatmul.mubr.f32.gmra.mxu0 %v1507
      %v3828 = vpop.f32.mrf.mxu0
      %v3829 = vadd.f32 0.0, %v3828
      %v3830 = vpop.f32.mrf.mxu0
      %3831 = vmatprep.mubr.f32.mxu0 0.0
      %3832 = vmatmul.mubr.f32.gmra.mxu0 %v1509
      %v3833 = vpop.f32.mrf.mxu0
      %v3834 = vadd.f32 0.0, %v3833
      %v3835 = vpop.f32.mrf.mxu0
      %3836 = vmatprep.mubr.f32.mxu0 0.0
      %3837 = vmatmul.mubr.f32.gmra.mxu0 %v1511
      %v3838 = vpop.f32.mrf.mxu0
      %v3839 = vadd.f32 0.0, %v3838
      %v3840 = vpop.f32.mrf.mxu0
      %3841 = vmatprep.mubr.f32.mxu0 0.0
      %3842 = vmatmul.mubr.f32.gmra.mxu0 %v1513
      %v3843 = vpop.f32.mrf.mxu0
      %v3844 = vadd.f32 0.0, %v3843
      %v3845 = vpop.f32.mrf.mxu0
      %3846 = vmatprep.mubr.f32.mxu0 0.0
      %3847 = vmatmul.mubr.f32.gmra.mxu0 %v1515
      %v3848 = vpop.f32.mrf.mxu0
      %v3849 = vadd.f32 0.0, %v3848
      %v3850 = vpop.f32.mrf.mxu0
      %3851 = vmatprep.mubr.f32.mxu0 0.0
      %3852 = vmatmul.mubr.f32.gmra.mxu0 %v1517
      %v3853 = vpop.f32.mrf.mxu0
      %v3854 = vadd.f32 0.0, %v3853
      %v3855 = vpop.f32.mrf.mxu0
      %3856 = vmatprep.mubr.f32.mxu0 0.0
      %3857 = vmatmul.mubr.f32.gmra.mxu0 %v1519
      %v3858 = vpop.f32.mrf.mxu0
      %v3859 = vadd.f32 0.0, %v3858
      %v3860 = vpop.f32.mrf.mxu0
      %3861 = vmatprep.mubr.f32.mxu0 0.0
      %3862 = vmatmul.mubr.f32.gmra.mxu0 %v1521
      %v3863 = vpop.f32.mrf.mxu0
      %v3864 = vadd.f32 0.0, %v3863
      %v3865 = vpop.f32.mrf.mxu0
      %3866 = vmatprep.mubr.f32.mxu0 0.0
      %3867 = vmatmul.mubr.f32.gmra.mxu0 %v1523
      %v3868 = vpop.f32.mrf.mxu0
      %v3869 = vadd.f32 0.0, %v3868
      %v3870 = vpop.f32.mrf.mxu0
      %3871 = vmatprep.mubr.f32.mxu0 0.0
      %3872 = vmatmul.mubr.f32.gmra.mxu0 %v1525
      %v3873 = vpop.f32.mrf.mxu0
      %v3874 = vadd.f32 0.0, %v3873
      %v3875 = vpop.f32.mrf.mxu0
      %3876 = vmatprep.mubr.f32.mxu0 0.0
      %3877 = vmatmul.mubr.f32.gmra.mxu0 %v2662
      %v3878 = vpop.f32.mrf.mxu0
      %v3879 = vadd.f32 0.0, %v3878
      %v3880 = vpop.f32.mrf.mxu0
      %3881 = vmatprep.mubr.f32.mxu0 0.0
      %3882 = vmatmul.mubr.f32.gmra.mxu0 %v2664
      %v3883 = vpop.f32.mrf.mxu0
      %v3884 = vadd.f32 0.0, %v3883
      %v3885 = vpop.f32.mrf.mxu0
      %3886 = vmatprep.mubr.f32.mxu0 0.0
      %3887 = vmatmul.mubr.f32.gmra.mxu0 %v3665
      %v3888 = vpop.f32.mrf.mxu0
      %v3889 = vadd.f32 0.0, %v3888
      %v3890 = vpop.f32.mrf.mxu0
      %3891 = vmatprep.mubr.f32.mxu0 0.0
      %3892 = vmatmul.mubr.f32.gmra.mxu0 %v3667
      %v3893 = vpop.f32.mrf.mxu0
      %v3894 = vadd.f32 0.0, %v3893
      %v3895 = vpop.f32.mrf.mxu0
      %3896 = vdwg.mxu0
      %v3897 = vld [vmem:[#allocation3] sm:$0xff]
      %v3898 = vld [vmem:[#allocation3 + $0x8] sm:$0xff]
      %v3899 = vld [vmem:[#allocation3 + $0x10] sm:$0xff]
      %v3900 = vld [vmem:[#allocation3 + $0x18] sm:$0xff]
      %v3901 = vld [vmem:[#allocation3 + $0x20] sm:$0xff]
      %v3902 = vld [vmem:[#allocation3 + $0x28] sm:$0xff]
      %v3903 = vld [vmem:[#allocation3 + $0x30] sm:$0xff]
      %v3904 = vld [vmem:[#allocation3 + $0x38] sm:$0xff]
      %v3905 = vld [vmem:[#allocation3 + $0x40] sm:$0xff]
      %v3906 = vld [vmem:[#allocation3 + $0x48] sm:$0xff]
      %v3907 = vld [vmem:[#allocation3 + $0x50] sm:$0xff]
      %v3908 = vld [vmem:[#allocation3 + $0x58] sm:$0xff]
      %v3909 = vld [vmem:[#allocation3 + $0x60] sm:$0xff]
      %v3910 = vld [vmem:[#allocation3 + $0x68] sm:$0xff]
      %v3911 = vld [vmem:[#allocation3 + $0x70] sm:$0xff]
      %v3912 = vld [vmem:[#allocation3 + $0x78] sm:$0xff]
      %v3913 = vld [vmem:[#allocation3 + $0x80] sm:$0xff]
      %v3914 = vld [vmem:[#allocation3 + $0x88] sm:$0xff]
      %v3915 = vld [vmem:[#allocation3 + $0x90] sm:$0xff]
      %v3916 = vld [vmem:[#allocation3 + $0x98] sm:$0xff]
      %v3917 = vld [vmem:[#allocation3 + $0xa0] sm:$0xff]
      %v3918 = vld [vmem:[#allocation3 + $0xa8] sm:$0xff]
      %v3919 = vld [vmem:[#allocation3 + $0xb0] sm:$0xff]
      %v3920 = vld [vmem:[#allocation3 + $0xb8] sm:$0xff]
      %v3921 = vld [vmem:[#allocation3 + $0xc0] sm:$0xff]
      %v3922 = vld [vmem:[#allocation3 + $0xc8] sm:$0xff]
      %v3923 = vld [vmem:[#allocation3 + $0xd0] sm:$0xff]
      %v3924 = vld [vmem:[#allocation3 + $0xd8] sm:$0xff]
      %v3925 = vld [vmem:[#allocation3 + $0xe0] sm:$0xff]
      %v3926 = vld [vmem:[#allocation3 + $0xe8] sm:$0xff]
      %v3927 = vld [vmem:[#allocation3 + $0xf0] sm:$0xff]
      %v3928 = vld [vmem:[#allocation3 + $0xf8] sm:$0xff]
      %v3929 = vadd.f32 %v3897, %v3739
      %v3930 = vadd.f32 %v3898, %v3744
      %v3931 = vadd.f32 %v3899, %v3749
      %v3932 = vadd.f32 %v3900, %v3754
      %v3933 = vadd.f32 %v3901, %v3759
      %v3934 = vadd.f32 %v3902, %v3764
      %v3935 = vadd.f32 %v3903, %v3769
      %v3936 = vadd.f32 %v3904, %v3774
      %v3937 = vadd.f32 %v3905, %v3779
      %v3938 = vadd.f32 %v3906, %v3784
      %v3939 = vadd.f32 %v3907, %v3789
      %v3940 = vadd.f32 %v3908, %v3794
      %v3941 = vadd.f32 %v3909, %v3799
      %v3942 = vadd.f32 %v3910, %v3804
      %v3943 = vadd.f32 %v3911, %v3809
      %v3944 = vadd.f32 %v3912, %v3814
      %v3945 = vadd.f32 %v3913, %v3819
      %v3946 = vadd.f32 %v3914, %v3824
      %v3947 = vadd.f32 %v3915, %v3829
      %v3948 = vadd.f32 %v3916, %v3834
      %v3949 = vadd.f32 %v3917, %v3839
      %v3950 = vadd.f32 %v3918, %v3844
      %v3951 = vadd.f32 %v3919, %v3849
      %v3952 = vadd.f32 %v3920, %v3854
      %v3953 = vadd.f32 %v3921, %v3859
      %v3954 = vadd.f32 %v3922, %v3864
      %v3955 = vadd.f32 %v3923, %v3869
      %v3956 = vadd.f32 %v3924, %v3874
      %v3957 = vadd.f32 %v3925, %v3879
      %v3958 = vadd.f32 %v3926, %v3884
      %v3959 = vadd.f32 %v3927, %v3889
      %v3960 = vadd.f32 %v3928, %v3894
      %3961 = vst.msk [vmem:[#allocation3] sm:$0xff] %vm1331, %v3929
      %3962 = vst.msk [vmem:[#allocation3 + $0x8] sm:$0xff] %vm1331, %v3930
      %3963 = vst.msk [vmem:[#allocation3 + $0x10] sm:$0xff] %vm1331, %v3931
      %3964 = vst.msk [vmem:[#allocation3 + $0x18] sm:$0xff] %vm1331, %v3932
      %3965 = vst.msk [vmem:[#allocation3 + $0x20] sm:$0xff] %vm1331, %v3933
      %3966 = vst.msk [vmem:[#allocation3 + $0x28] sm:$0xff] %vm1331, %v3934
      %3967 = vst.msk [vmem:[#allocation3 + $0x30] sm:$0xff] %vm1331, %v3935
      %3968 = vst.msk [vmem:[#allocation3 + $0x38] sm:$0xff] %vm1331, %v3936
      %3969 = vst.msk [vmem:[#allocation3 + $0x40] sm:$0xff] %vm1331, %v3937
      %3970 = vst.msk [vmem:[#allocation3 + $0x48] sm:$0xff] %vm1331, %v3938
      %3971 = vst.msk [vmem:[#allocation3 + $0x50] sm:$0xff] %vm1331, %v3939
      %3972 = vst.msk [vmem:[#allocation3 + $0x58] sm:$0xff] %vm1331, %v3940
      %3973 = vst.msk [vmem:[#allocation3 + $0x60] sm:$0xff] %vm1331, %v3941
      %3974 = vst.msk [vmem:[#allocation3 + $0x68] sm:$0xff] %vm1331, %v3942
      %3975 = vst.msk [vmem:[#allocation3 + $0x70] sm:$0xff] %vm1331, %v3943
      %3976 = vst.msk [vmem:[#allocation3 + $0x78] sm:$0xff] %vm1331, %v3944
      %3977 = vst.msk [vmem:[#allocation3 + $0x80] sm:$0xff] %vm1331, %v3945
      %3978 = vst.msk [vmem:[#allocation3 + $0x88] sm:$0xff] %vm1331, %v3946
      %3979 = vst.msk [vmem:[#allocation3 + $0x90] sm:$0xff] %vm1331, %v3947
      %3980 = vst.msk [vmem:[#allocation3 + $0x98] sm:$0xff] %vm1331, %v3948
      %3981 = vst.msk [vmem:[#allocation3 + $0xa0] sm:$0xff] %vm1331, %v3949
      %3982 = vst.msk [vmem:[#allocation3 + $0xa8] sm:$0xff] %vm1331, %v3950
      %3983 = vst.msk [vmem:[#allocation3 + $0xb0] sm:$0xff] %vm1331, %v3951
      %3984 = vst.msk [vmem:[#allocation3 + $0xb8] sm:$0xff] %vm1331, %v3952
      %3985 = vst.msk [vmem:[#allocation3 + $0xc0] sm:$0xff] %vm1331, %v3953
      %3986 = vst.msk [vmem:[#allocation3 + $0xc8] sm:$0xff] %vm1331, %v3954
      %3987 = vst.msk [vmem:[#allocation3 + $0xd0] sm:$0xff] %vm1331, %v3955
      %3988 = vst.msk [vmem:[#allocation3 + $0xd8] sm:$0xff] %vm1331, %v3956
      %3989 = vst.msk [vmem:[#allocation3 + $0xe0] sm:$0xff] %vm1331, %v3957
      %3990 = vst.msk [vmem:[#allocation3 + $0xe8] sm:$0xff] %vm1331, %v3958
      %3991 = vst.msk [vmem:[#allocation3 + $0xf0] sm:$0xff] %vm1331, %v3959
      %3992 = vst.msk [vmem:[#allocation3 + $0xf8] sm:$0xff] %vm1331, %v3960
      %v3993 = vrot.slane %v1002, 2
      %v3994 = vrot.slane %v1003, 2
      %v3995 = vsel %vm1851, %v3993, %v3994
      %v3996 = vrot.slane %v1004, 2
      %v3997 = vsel %vm1851, %v3994, %v3996
      %s3998 = scalar_lea.vmem %s4, 32
      %v3999 = vld [vmem:[%s3998] sm:$0xf]
      %v4000 = vsel %vm364, %v3995, 0
      %v4002 = vsel %vm364, %v3997, 0
      %v4005 = vsel %vm1102, %v3999, 0
      %4007 = vmatprep.subr.mxu0 0.0
      %4008 = vmatpush1.msra.mxu0 0.0
      %4009 = vmatprep.subr.mxu0 0.0
      %4010 = vmatpush1.msra.mxu0 0.0
      %4011 = vmatprep.subr.mxu0 0.0
      %4012 = vmatpush1.msra.mxu0 0.0
      %4013 = vmatprep.subr.mxu0 0.0
      %4014 = vmatpush1.msra.mxu0 0.0
      %4015 = vmatprep.subr.mxu0 0.0
      %4016 = vmatpush1.msra.mxu0 0.0
      %4017 = vmatprep.subr.mxu0 0.0
      %4018 = vmatpush1.msra.mxu0 0.0
      %4019 = vmatprep.subr.mxu0 0.0
      %4020 = vmatpush1.msra.mxu0 0.0
      %4021 = vmatprep.subr.mxu0 0.0
      %4022 = vmatpush1.msra.mxu0 0.0
      %4023 = vmatprep.subr.mxu0 0.0
      %4024 = vmatpush1.msra.mxu0 0.0
      %4025 = vmatprep.subr.mxu0 0.0
      %4026 = vmatpush1.msra.mxu0 0.0
      %4027 = vmatprep.subr.mxu0 0.0
      %4028 = vmatpush1.msra.mxu0 0.0
      %4029 = vmatprep.subr.mxu0 0.0
      %4030 = vmatpush1.msra.mxu0 0.0
      %4031 = vmatprep.subr.mxu0 0.0
      %4032 = vmatpush1.msra.mxu0 0.0
      %4033 = vmatprep.subr.mxu0 0.0
      %4034 = vmatpush1.msra.mxu0 0.0
      %4035 = vmatprep.subr.mxu0 0.0
      %4036 = vmatpush1.msra.mxu0 0.0
      %4037 = vmatprep.subr.mxu0 0.0
      %4038 = vmatpush1.msra.mxu0 %v4005
      %4039 = vmatprep.subr.mxu0 0.0
      %4040 = vmatpush2.msra.mxu0 0.0
      %4041 = vmatprep.subr.mxu0 0.0
      %4042 = vmatpush2.msra.mxu0 0.0
      %4043 = vmatprep.subr.mxu0 0.0
      %4044 = vmatpush2.msra.mxu0 0.0
      %4045 = vmatprep.subr.mxu0 0.0
      %4046 = vmatpush2.msra.mxu0 0.0
      %4047 = vmatprep.subr.mxu0 0.0
      %4048 = vmatpush2.msra.mxu0 0.0
      %4049 = vmatprep.subr.mxu0 0.0
      %4050 = vmatpush2.msra.mxu0 0.0
      %4051 = vmatprep.subr.mxu0 0.0
      %4052 = vmatpush2.msra.mxu0 0.0
      %4053 = vmatprep.subr.mxu0 0.0
      %4054 = vmatpush2.msra.mxu0 0.0
      %4055 = vmatprep.subr.mxu0 0.0
      %4056 = vmatpush2.msra.mxu0 0.0
      %4057 = vmatprep.subr.mxu0 0.0
      %4058 = vmatpush2.msra.mxu0 0.0
      %4059 = vmatprep.subr.mxu0 0.0
      %4060 = vmatpush2.msra.mxu0 0.0
      %4061 = vmatprep.subr.mxu0 0.0
      %4062 = vmatpush2.msra.mxu0 0.0
      %4063 = vmatprep.subr.mxu0 0.0
      %4064 = vmatpush2.msra.mxu0 0.0
      %4065 = vmatprep.subr.mxu0 0.0
      %4066 = vmatpush2.msra.mxu0 0.0
      %4067 = vmatprep.subr.mxu0 0.0
      %4068 = vmatpush2.msra.mxu0 0.0
      %4069 = vmatprep.subr.mxu0 0.0
      %4070 = vmatpush2.msra.mxu0 0.0
      %4071 = vmatprep.mubr.f32.mxu0 0.0
      %4072 = vmatmul.mubr.f32.gmra.mxu0 %v1942
      %v4073 = vpop.f32.mrf.mxu0
      %v4074 = vadd.f32 0.0, %v4073
      %v4075 = vpop.f32.mrf.mxu0
      %4076 = vmatprep.mubr.f32.mxu0 0.0
      %4077 = vmatmul.mubr.f32.gmra.mxu0 %v1944
      %v4078 = vpop.f32.mrf.mxu0
      %v4079 = vadd.f32 0.0, %v4078
      %v4080 = vpop.f32.mrf.mxu0
      %4081 = vmatprep.mubr.f32.mxu0 0.0
      %4082 = vmatmul.mubr.f32.gmra.mxu0 %v1946
      %v4083 = vpop.f32.mrf.mxu0
      %v4084 = vadd.f32 0.0, %v4083
      %v4085 = vpop.f32.mrf.mxu0
      %4086 = vmatprep.mubr.f32.mxu0 0.0
      %4087 = vmatmul.mubr.f32.gmra.mxu0 %v1948
      %v4088 = vpop.f32.mrf.mxu0
      %v4089 = vadd.f32 0.0, %v4088
      %v4090 = vpop.f32.mrf.mxu0
      %4091 = vmatprep.mubr.f32.mxu0 0.0
      %4092 = vmatmul.mubr.f32.gmra.mxu0 %v1950
      %v4093 = vpop.f32.mrf.mxu0
      %v4094 = vadd.f32 0.0, %v4093
      %v4095 = vpop.f32.mrf.mxu0
      %4096 = vmatprep.mubr.f32.mxu0 0.0
      %4097 = vmatmul.mubr.f32.gmra.mxu0 %v1952
      %v4098 = vpop.f32.mrf.mxu0
      %v4099 = vadd.f32 0.0, %v4098
      %v4100 = vpop.f32.mrf.mxu0
      %4101 = vmatprep.mubr.f32.mxu0 0.0
      %4102 = vmatmul.mubr.f32.gmra.mxu0 %v1954
      %v4103 = vpop.f32.mrf.mxu0
      %v4104 = vadd.f32 0.0, %v4103
      %v4105 = vpop.f32.mrf.mxu0
      %4106 = vmatprep.mubr.f32.mxu0 0.0
      %4107 = vmatmul.mubr.f32.gmra.mxu0 %v1956
      %v4108 = vpop.f32.mrf.mxu0
      %v4109 = vadd.f32 0.0, %v4108
      %v4110 = vpop.f32.mrf.mxu0
      %4111 = vmatprep.mubr.f32.mxu0 0.0
      %4112 = vmatmul.mubr.f32.gmra.mxu0 %v1958
      %v4113 = vpop.f32.mrf.mxu0
      %v4114 = vadd.f32 0.0, %v4113
      %v4115 = vpop.f32.mrf.mxu0
      %4116 = vmatprep.mubr.f32.mxu0 0.0
      %4117 = vmatmul.mubr.f32.gmra.mxu0 %v1960
      %v4118 = vpop.f32.mrf.mxu0
      %v4119 = vadd.f32 0.0, %v4118
      %v4120 = vpop.f32.mrf.mxu0
      %4121 = vmatprep.mubr.f32.mxu0 0.0
      %4122 = vmatmul.mubr.f32.gmra.mxu0 %v1962
      %v4123 = vpop.f32.mrf.mxu0
      %v4124 = vadd.f32 0.0, %v4123
      %v4125 = vpop.f32.mrf.mxu0
      %4126 = vmatprep.mubr.f32.mxu0 0.0
      %4127 = vmatmul.mubr.f32.gmra.mxu0 %v1964
      %v4128 = vpop.f32.mrf.mxu0
      %v4129 = vadd.f32 0.0, %v4128
      %v4130 = vpop.f32.mrf.mxu0
      %4131 = vmatprep.mubr.f32.mxu0 0.0
      %4132 = vmatmul.mubr.f32.gmra.mxu0 %v1966
      %v4133 = vpop.f32.mrf.mxu0
      %v4134 = vadd.f32 0.0, %v4133
      %v4135 = vpop.f32.mrf.mxu0
      %4136 = vmatprep.mubr.f32.mxu0 0.0
      %4137 = vmatmul.mubr.f32.gmra.mxu0 %v1968
      %v4138 = vpop.f32.mrf.mxu0
      %v4139 = vadd.f32 0.0, %v4138
      %v4140 = vpop.f32.mrf.mxu0
      %4141 = vmatprep.mubr.f32.mxu0 0.0
      %4142 = vmatmul.mubr.f32.gmra.mxu0 %v1970
      %v4143 = vpop.f32.mrf.mxu0
      %v4144 = vadd.f32 0.0, %v4143
      %v4145 = vpop.f32.mrf.mxu0
      %4146 = vmatprep.mubr.f32.mxu0 0.0
      %4147 = vmatmul.mubr.f32.gmra.mxu0 %v1972
      %v4148 = vpop.f32.mrf.mxu0
      %v4149 = vadd.f32 0.0, %v4148
      %v4150 = vpop.f32.mrf.mxu0
      %4151 = vmatprep.mubr.f32.mxu0 0.0
      %4152 = vmatmul.mubr.f32.gmra.mxu0 %v1974
      %v4153 = vpop.f32.mrf.mxu0
      %v4154 = vadd.f32 0.0, %v4153
      %v4155 = vpop.f32.mrf.mxu0
      %4156 = vmatprep.mubr.f32.mxu0 0.0
      %4157 = vmatmul.mubr.f32.gmra.mxu0 %v1976
      %v4158 = vpop.f32.mrf.mxu0
      %v4159 = vadd.f32 0.0, %v4158
      %v4160 = vpop.f32.mrf.mxu0
      %4161 = vmatprep.mubr.f32.mxu0 0.0
      %4162 = vmatmul.mubr.f32.gmra.mxu0 %v1978
      %v4163 = vpop.f32.mrf.mxu0
      %v4164 = vadd.f32 0.0, %v4163
      %v4165 = vpop.f32.mrf.mxu0
      %4166 = vmatprep.mubr.f32.mxu0 0.0
      %4167 = vmatmul.mubr.f32.gmra.mxu0 %v1980
      %v4168 = vpop.f32.mrf.mxu0
      %v4169 = vadd.f32 0.0, %v4168
      %v4170 = vpop.f32.mrf.mxu0
      %4171 = vmatprep.mubr.f32.mxu0 0.0
      %4172 = vmatmul.mubr.f32.gmra.mxu0 %v1982
      %v4173 = vpop.f32.mrf.mxu0
      %v4174 = vadd.f32 0.0, %v4173
      %v4175 = vpop.f32.mrf.mxu0
      %4176 = vmatprep.mubr.f32.mxu0 0.0
      %4177 = vmatmul.mubr.f32.gmra.mxu0 %v1984
      %v4178 = vpop.f32.mrf.mxu0
      %v4179 = vadd.f32 0.0, %v4178
      %v4180 = vpop.f32.mrf.mxu0
      %4181 = vmatprep.mubr.f32.mxu0 0.0
      %4182 = vmatmul.mubr.f32.gmra.mxu0 %v1986
      %v4183 = vpop.f32.mrf.mxu0
      %v4184 = vadd.f32 0.0, %v4183
      %v4185 = vpop.f32.mrf.mxu0
      %4186 = vmatprep.mubr.f32.mxu0 0.0
      %4187 = vmatmul.mubr.f32.gmra.mxu0 %v1988
      %v4188 = vpop.f32.mrf.mxu0
      %v4189 = vadd.f32 0.0, %v4188
      %v4190 = vpop.f32.mrf.mxu0
      %4191 = vmatprep.mubr.f32.mxu0 0.0
      %4192 = vmatmul.mubr.f32.gmra.mxu0 %v1990
      %v4193 = vpop.f32.mrf.mxu0
      %v4194 = vadd.f32 0.0, %v4193
      %v4195 = vpop.f32.mrf.mxu0
      %4196 = vmatprep.mubr.f32.mxu0 0.0
      %4197 = vmatmul.mubr.f32.gmra.mxu0 %v1992
      %v4198 = vpop.f32.mrf.mxu0
      %v4199 = vadd.f32 0.0, %v4198
      %v4200 = vpop.f32.mrf.mxu0
      %4201 = vmatprep.mubr.f32.mxu0 0.0
      %4202 = vmatmul.mubr.f32.gmra.mxu0 %v1994
      %v4203 = vpop.f32.mrf.mxu0
      %v4204 = vadd.f32 0.0, %v4203
      %v4205 = vpop.f32.mrf.mxu0
      %4206 = vmatprep.mubr.f32.mxu0 0.0
      %4207 = vmatmul.mubr.f32.gmra.mxu0 %v1996
      %v4208 = vpop.f32.mrf.mxu0
      %v4209 = vadd.f32 0.0, %v4208
      %v4210 = vpop.f32.mrf.mxu0
      %4211 = vmatprep.mubr.f32.mxu0 0.0
      %4212 = vmatmul.mubr.f32.gmra.mxu0 %v2997
      %v4213 = vpop.f32.mrf.mxu0
      %v4214 = vadd.f32 0.0, %v4213
      %v4215 = vpop.f32.mrf.mxu0
      %4216 = vmatprep.mubr.f32.mxu0 0.0
      %4217 = vmatmul.mubr.f32.gmra.mxu0 %v2999
      %v4218 = vpop.f32.mrf.mxu0
      %v4219 = vadd.f32 0.0, %v4218
      %v4220 = vpop.f32.mrf.mxu0
      %4221 = vmatprep.mubr.f32.mxu0 0.0
      %4222 = vmatmul.mubr.f32.gmra.mxu0 %v4000
      %v4223 = vpop.f32.mrf.mxu0
      %v4224 = vadd.f32 0.0, %v4223
      %v4225 = vpop.f32.mrf.mxu0
      %4226 = vmatprep.mubr.f32.mxu0 0.0
      %4227 = vmatmul.mubr.f32.gmra.mxu0 %v4002
      %v4228 = vpop.f32.mrf.mxu0
      %v4229 = vadd.f32 0.0, %v4228
      %v4230 = vpop.f32.mrf.mxu0
      %4231 = vdwg.mxu0
      %v4232 = vld [vmem:[#allocation3] sm:$0xff]
      %v4233 = vld [vmem:[#allocation3 + $0x8] sm:$0xff]
      %v4234 = vld [vmem:[#allocation3 + $0x10] sm:$0xff]
      %v4235 = vld [vmem:[#allocation3 + $0x18] sm:$0xff]
      %v4236 = vld [vmem:[#allocation3 + $0x20] sm:$0xff]
      %v4237 = vld [vmem:[#allocation3 + $0x28] sm:$0xff]
      %v4238 = vld [vmem:[#allocation3 + $0x30] sm:$0xff]
      %v4239 = vld [vmem:[#allocation3 + $0x38] sm:$0xff]
      %v4240 = vld [vmem:[#allocation3 + $0x40] sm:$0xff]
      %v4241 = vld [vmem:[#allocation3 + $0x48] sm:$0xff]
      %v4242 = vld [vmem:[#allocation3 + $0x50] sm:$0xff]
      %v4243 = vld [vmem:[#allocation3 + $0x58] sm:$0xff]
      %v4244 = vld [vmem:[#allocation3 + $0x60] sm:$0xff]
      %v4245 = vld [vmem:[#allocation3 + $0x68] sm:$0xff]
      %v4246 = vld [vmem:[#allocation3 + $0x70] sm:$0xff]
      %v4247 = vld [vmem:[#allocation3 + $0x78] sm:$0xff]
      %v4248 = vld [vmem:[#allocation3 + $0x80] sm:$0xff]
      %v4249 = vld [vmem:[#allocation3 + $0x88] sm:$0xff]
      %v4250 = vld [vmem:[#allocation3 + $0x90] sm:$0xff]
      %v4251 = vld [vmem:[#allocation3 + $0x98] sm:$0xff]
      %v4252 = vld [vmem:[#allocation3 + $0xa0] sm:$0xff]
      %v4253 = vld [vmem:[#allocation3 + $0xa8] sm:$0xff]
      %v4254 = vld [vmem:[#allocation3 + $0xb0] sm:$0xff]
      %v4255 = vld [vmem:[#allocation3 + $0xb8] sm:$0xff]
      %v4256 = vld [vmem:[#allocation3 + $0xc0] sm:$0xff]
      %v4257 = vld [vmem:[#allocation3 + $0xc8] sm:$0xff]
      %v4258 = vld [vmem:[#allocation3 + $0xd0] sm:$0xff]
      %v4259 = vld [vmem:[#allocation3 + $0xd8] sm:$0xff]
      %v4260 = vld [vmem:[#allocation3 + $0xe0] sm:$0xff]
      %v4261 = vld [vmem:[#allocation3 + $0xe8] sm:$0xff]
      %v4262 = vld [vmem:[#allocation3 + $0xf0] sm:$0xff]
      %v4263 = vld [vmem:[#allocation3 + $0xf8] sm:$0xff]
      %v4264 = vadd.f32 %v4232, %v4074
      %v4265 = vadd.f32 %v4233, %v4079
      %v4266 = vadd.f32 %v4234, %v4084
      %v4267 = vadd.f32 %v4235, %v4089
      %v4268 = vadd.f32 %v4236, %v4094
      %v4269 = vadd.f32 %v4237, %v4099
      %v4270 = vadd.f32 %v4238, %v4104
      %v4271 = vadd.f32 %v4239, %v4109
      %v4272 = vadd.f32 %v4240, %v4114
      %v4273 = vadd.f32 %v4241, %v4119
      %v4274 = vadd.f32 %v4242, %v4124
      %v4275 = vadd.f32 %v4243, %v4129
      %v4276 = vadd.f32 %v4244, %v4134
      %v4277 = vadd.f32 %v4245, %v4139
      %v4278 = vadd.f32 %v4246, %v4144
      %v4279 = vadd.f32 %v4247, %v4149
      %v4280 = vadd.f32 %v4248, %v4154
      %v4281 = vadd.f32 %v4249, %v4159
      %v4282 = vadd.f32 %v4250, %v4164
      %v4283 = vadd.f32 %v4251, %v4169
      %v4284 = vadd.f32 %v4252, %v4174
      %v4285 = vadd.f32 %v4253, %v4179
      %v4286 = vadd.f32 %v4254, %v4184
      %v4287 = vadd.f32 %v4255, %v4189
      %v4288 = vadd.f32 %v4256, %v4194
      %v4289 = vadd.f32 %v4257, %v4199
      %v4290 = vadd.f32 %v4258, %v4204
      %v4291 = vadd.f32 %v4259, %v4209
      %v4292 = vadd.f32 %v4260, %v4214
      %v4293 = vadd.f32 %v4261, %v4219
      %v4294 = vadd.f32 %v4262, %v4224
      %v4295 = vadd.f32 %v4263, %v4229
      %4296 = vst.msk [vmem:[#allocation3] sm:$0xff] %vm1331, %v4264
      %4297 = vst.msk [vmem:[#allocation3 + $0x8] sm:$0xff] %vm1331, %v4265
      %4298 = vst.msk [vmem:[#allocation3 + $0x10] sm:$0xff] %vm1331, %v4266
      %4299 = vst.msk [vmem:[#allocation3 + $0x18] sm:$0xff] %vm1331, %v4267
      %4300 = vst.msk [vmem:[#allocation3 + $0x20] sm:$0xff] %vm1331, %v4268
      %4301 = vst.msk [vmem:[#allocation3 + $0x28] sm:$0xff] %vm1331, %v4269
      %4302 = vst.msk [vmem:[#allocation3 + $0x30] sm:$0xff] %vm1331, %v4270
      %4303 = vst.msk [vmem:[#allocation3 + $0x38] sm:$0xff] %vm1331, %v4271
      %4304 = vst.msk [vmem:[#allocation3 + $0x40] sm:$0xff] %vm1331, %v4272
      %4305 = vst.msk [vmem:[#allocation3 + $0x48] sm:$0xff] %vm1331, %v4273
      %4306 = vst.msk [vmem:[#allocation3 + $0x50] sm:$0xff] %vm1331, %v4274
      %4307 = vst.msk [vmem:[#allocation3 + $0x58] sm:$0xff] %vm1331, %v4275
      %4308 = vst.msk [vmem:[#allocation3 + $0x60] sm:$0xff] %vm1331, %v4276
      %4309 = vst.msk [vmem:[#allocation3 + $0x68] sm:$0xff] %vm1331, %v4277
      %4310 = vst.msk [vmem:[#allocation3 + $0x70] sm:$0xff] %vm1331, %v4278
      %4311 = vst.msk [vmem:[#allocation3 + $0x78] sm:$0xff] %vm1331, %v4279
      %4312 = vst.msk [vmem:[#allocation3 + $0x80] sm:$0xff] %vm1331, %v4280
      %4313 = vst.msk [vmem:[#allocation3 + $0x88] sm:$0xff] %vm1331, %v4281
      %4314 = vst.msk [vmem:[#allocation3 + $0x90] sm:$0xff] %vm1331, %v4282
      %4315 = vst.msk [vmem:[#allocation3 + $0x98] sm:$0xff] %vm1331, %v4283
      %4316 = vst.msk [vmem:[#allocation3 + $0xa0] sm:$0xff] %vm1331, %v4284
      %4317 = vst.msk [vmem:[#allocation3 + $0xa8] sm:$0xff] %vm1331, %v4285
      %4318 = vst.msk [vmem:[#allocation3 + $0xb0] sm:$0xff] %vm1331, %v4286
      %4319 = vst.msk [vmem:[#allocation3 + $0xb8] sm:$0xff] %vm1331, %v4287
      %4320 = vst.msk [vmem:[#allocation3 + $0xc0] sm:$0xff] %vm1331, %v4288
      %4321 = vst.msk [vmem:[#allocation3 + $0xc8] sm:$0xff] %vm1331, %v4289
      %4322 = vst.msk [vmem:[#allocation3 + $0xd0] sm:$0xff] %vm1331, %v4290
      %4323 = vst.msk [vmem:[#allocation3 + $0xd8] sm:$0xff] %vm1331, %v4291
      %4324 = vst.msk [vmem:[#allocation3 + $0xe0] sm:$0xff] %vm1331, %v4292
      %4325 = vst.msk [vmem:[#allocation3 + $0xe8] sm:$0xff] %vm1331, %v4293
      %4326 = vst.msk [vmem:[#allocation3 + $0xf0] sm:$0xff] %vm1331, %v4294
      %4327 = vst.msk [vmem:[#allocation3 + $0xf8] sm:$0xff] %vm1331, %v4295
      %v4328 = vld [vmem:[#allocation3] sm:$0xff]
      %v4329 = vld [vmem:[#allocation3 + $0x8] sm:$0xff]
      %v4330 = vld [vmem:[#allocation3 + $0x10] sm:$0xff]
      %v4331 = vld [vmem:[#allocation3 + $0x18] sm:$0xff]
      %v4332 = vld [vmem:[#allocation3 + $0x20] sm:$0xff]
      %v4333 = vld [vmem:[#allocation3 + $0x28] sm:$0xff]
      %v4334 = vld [vmem:[#allocation3 + $0x30] sm:$0xff]
      %v4335 = vld [vmem:[#allocation3 + $0x38] sm:$0xff]
      %v4336 = vld [vmem:[#allocation3 + $0x40] sm:$0xff]
      %v4337 = vld [vmem:[#allocation3 + $0x48] sm:$0xff]
      %v4338 = vld [vmem:[#allocation3 + $0x50] sm:$0xff]
      %v4339 = vld [vmem:[#allocation3 + $0x58] sm:$0xff]
      %v4340 = vld [vmem:[#allocation3 + $0x60] sm:$0xff]
      %v4341 = vld [vmem:[#allocation3 + $0x68] sm:$0xff]
      %v4342 = vld [vmem:[#allocation3 + $0x70] sm:$0xff]
      %v4343 = vld [vmem:[#allocation3 + $0x78] sm:$0xff]
      %v4344 = vld [vmem:[#allocation3 + $0x80] sm:$0xff]
      %v4345 = vld [vmem:[#allocation3 + $0x88] sm:$0xff]
      %v4346 = vld [vmem:[#allocation3 + $0x90] sm:$0xff]
      %v4347 = vld [vmem:[#allocation3 + $0x98] sm:$0xff]
      %v4348 = vld [vmem:[#allocation3 + $0xa0] sm:$0xff]
      %v4349 = vld [vmem:[#allocation3 + $0xa8] sm:$0xff]
      %v4350 = vld [vmem:[#allocation3 + $0xb0] sm:$0xff]
      %v4351 = vld [vmem:[#allocation3 + $0xb8] sm:$0xff]
      %v4352 = vld [vmem:[#allocation3 + $0xc0] sm:$0xff]
      %v4353 = vld [vmem:[#allocation3 + $0xc8] sm:$0xff]
      %v4354 = vld [vmem:[#allocation3 + $0xd0] sm:$0xff]
      %v4355 = vld [vmem:[#allocation3 + $0xd8] sm:$0xff]
      %v4356 = vld [vmem:[#allocation3 + $0xe0] sm:$0xff]
      %v4357 = vld [vmem:[#allocation3 + $0xe8] sm:$0xff]
      %v4358 = vld [vmem:[#allocation3 + $0xf0] sm:$0xff]
      %v4359 = vld [vmem:[#allocation3 + $0xf8] sm:$0xff]
      %v4360 = vld [vmem:[%s5] sm:$0x1]
      %v4362 = vlaneseq
      %v4363 = vshrl.u32 %v4362, 7
      %v4364 = vsub.s32 0, %v4363
      %v4365 = vrot.slane %v4360, %v4364
      %v4367 = vmul.f32 %v4328, %v4365
      %v4368 = vmul.f32 %v4329, %v4365
      %v4369 = vmul.f32 %v4330, %v4365
      %v4370 = vmul.f32 %v4331, %v4365
      %v4371 = vmul.f32 %v4332, %v4365
      %v4372 = vmul.f32 %v4333, %v4365
      %v4373 = vmul.f32 %v4334, %v4365
      %v4374 = vmul.f32 %v4335, %v4365
      %v4375 = vmul.f32 %v4336, %v4365
      %v4376 = vmul.f32 %v4337, %v4365
      %v4377 = vmul.f32 %v4338, %v4365
      %v4378 = vmul.f32 %v4339, %v4365
      %v4379 = vmul.f32 %v4340, %v4365
      %v4380 = vmul.f32 %v4341, %v4365
      %v4381 = vmul.f32 %v4342, %v4365
      %v4382 = vmul.f32 %v4343, %v4365
      %v4383 = vmul.f32 %v4344, %v4365
      %v4384 = vmul.f32 %v4345, %v4365
      %v4385 = vmul.f32 %v4346, %v4365
      %v4386 = vmul.f32 %v4347, %v4365
      %v4387 = vmul.f32 %v4348, %v4365
      %v4388 = vmul.f32 %v4349, %v4365
      %v4389 = vmul.f32 %v4350, %v4365
      %v4390 = vmul.f32 %v4351, %v4365
      %v4391 = vmul.f32 %v4352, %v4365
      %v4392 = vmul.f32 %v4353, %v4365
      %v4393 = vmul.f32 %v4354, %v4365
      %v4394 = vmul.f32 %v4355, %v4365
      %v4395 = vmul.f32 %v4356, %v4365
      %v4396 = vmul.f32 %v4357, %v4365
      %v4397 = vmul.f32 %v4358, %v4365
      %v4398 = vmul.f32 %v4359, %v4365
      %v4399 = vld [vmem:[%s6] sm:$0x1]
      %v4401 = vlaneseq
      %v4402 = vshrl.u32 %v4401, 7
      %v4403 = vsub.s32 0, %v4402
      %v4404 = vrot.slane %v4399, %v4403
      %v4406 = vadd.f32 %v4367, %v4404
      %v4407 = vadd.f32 %v4368, %v4404
      %v4408 = vadd.f32 %v4369, %v4404
      %v4409 = vadd.f32 %v4370, %v4404
      %v4410 = vadd.f32 %v4371, %v4404
      %v4411 = vadd.f32 %v4372, %v4404
      %v4412 = vadd.f32 %v4373, %v4404
      %v4413 = vadd.f32 %v4374, %v4404
      %v4414 = vadd.f32 %v4375, %v4404
      %v4415 = vadd.f32 %v4376, %v4404
      %v4416 = vadd.f32 %v4377, %v4404
      %v4417 = vadd.f32 %v4378, %v4404
      %v4418 = vadd.f32 %v4379, %v4404
      %v4419 = vadd.f32 %v4380, %v4404
      %v4420 = vadd.f32 %v4381, %v4404
      %v4421 = vadd.f32 %v4382, %v4404
      %v4422 = vadd.f32 %v4383, %v4404
      %v4423 = vadd.f32 %v4384, %v4404
      %v4424 = vadd.f32 %v4385, %v4404
      %v4425 = vadd.f32 %v4386, %v4404
      %v4426 = vadd.f32 %v4387, %v4404
      %v4427 = vadd.f32 %v4388, %v4404
      %v4428 = vadd.f32 %v4389, %v4404
      %v4429 = vadd.f32 %v4390, %v4404
      %v4430 = vadd.f32 %v4391, %v4404
      %v4431 = vadd.f32 %v4392, %v4404
      %v4432 = vadd.f32 %v4393, %v4404
      %v4433 = vadd.f32 %v4394, %v4404
      %v4434 = vadd.f32 %v4395, %v4404
      %v4435 = vadd.f32 %v4396, %v4404
      %v4436 = vadd.f32 %v4397, %v4404
      %v4437 = vadd.f32 %v4398, %v4404
      %v4438 = vmax.f32 %v4406, 0.0
      %v4439 = vmax.f32 %v4407, 0.0
      %v4440 = vmax.f32 %v4408, 0.0
      %v4441 = vmax.f32 %v4409, 0.0
      %v4442 = vmax.f32 %v4410, 0.0
      %v4443 = vmax.f32 %v4411, 0.0
      %v4444 = vmax.f32 %v4412, 0.0
      %v4445 = vmax.f32 %v4413, 0.0
      %v4446 = vmax.f32 %v4414, 0.0
      %v4447 = vmax.f32 %v4415, 0.0
      %v4448 = vmax.f32 %v4416, 0.0
      %v4449 = vmax.f32 %v4417, 0.0
      %v4450 = vmax.f32 %v4418, 0.0
      %v4451 = vmax.f32 %v4419, 0.0
      %v4452 = vmax.f32 %v4420, 0.0
      %v4453 = vmax.f32 %v4421, 0.0
      %v4454 = vmax.f32 %v4422, 0.0
      %v4455 = vmax.f32 %v4423, 0.0
      %v4456 = vmax.f32 %v4424, 0.0
      %v4457 = vmax.f32 %v4425, 0.0
      %v4458 = vmax.f32 %v4426, 0.0
      %v4459 = vmax.f32 %v4427, 0.0
      %v4460 = vmax.f32 %v4428, 0.0
      %v4461 = vmax.f32 %v4429, 0.0
      %v4462 = vmax.f32 %v4430, 0.0
      %v4463 = vmax.f32 %v4431, 0.0
      %v4464 = vmax.f32 %v4432, 0.0
      %v4465 = vmax.f32 %v4433, 0.0
      %v4466 = vmax.f32 %v4434, 0.0
      %v4467 = vmax.f32 %v4435, 0.0
      %v4468 = vmax.f32 %v4436, 0.0
      %v4469 = vmax.f32 %v4437, 0.0
      %v4470 = vld [vmem:[%s7] sm:$0xff]
      %v4471 = vld [vmem:[%s7 + $0x8] sm:$0xff]
      %v4472 = vld [vmem:[%s7 + $0x10] sm:$0xff]
      %v4473 = vld [vmem:[%s7 + $0x18] sm:$0xff]
      %v4475 = vsel %vm1331, %v4470, 0
      %v4478 = vsel %vm1331, %v4471, 0
      %v4481 = vsel %vm1331, %v4472, 0
      %v4484 = vsel %vm1331, %v4473, 0
      %v4487 = vsel %vm1331, %v4438, 0
      %v4490 = vsel %vm1331, %v4439, 0
      %v4493 = vsel %vm1331, %v4440, 0
      %v4496 = vsel %vm1331, %v4441, 0
      %v4499 = vsel %vm1331, %v4442, 0
      %v4502 = vsel %vm1331, %v4443, 0
      %v4505 = vsel %vm1331, %v4444, 0
      %v4508 = vsel %vm1331, %v4445, 0
      %v4511 = vsel %vm1331, %v4446, 0
      %v4514 = vsel %vm1331, %v4447, 0
      %v4517 = vsel %vm1331, %v4448, 0
      %v4520 = vsel %vm1331, %v4449, 0
      %v4523 = vsel %vm1331, %v4450, 0
      %v4526 = vsel %vm1331, %v4451, 0
      %v4529 = vsel %vm1331, %v4452, 0
      %v4532 = vsel %vm1331, %v4453, 0
      %v4535 = vsel %vm1331, %v4454, 0
      %v4538 = vsel %vm1331, %v4455, 0
      %v4541 = vsel %vm1331, %v4456, 0
      %v4544 = vsel %vm1331, %v4457, 0
      %v4547 = vsel %vm1331, %v4458, 0
      %v4550 = vsel %vm1331, %v4459, 0
      %v4553 = vsel %vm1331, %v4460, 0
      %v4556 = vsel %vm1331, %v4461, 0
      %v4559 = vsel %vm1331, %v4462, 0
      %v4562 = vsel %vm1331, %v4463, 0
      %v4565 = vsel %vm1331, %v4464, 0
      %v4568 = vsel %vm1331, %v4465, 0
      %v4571 = vsel %vm1331, %v4466, 0
      %v4574 = vsel %vm1331, %v4467, 0
      %v4577 = vsel %vm1331, %v4468, 0
      %v4580 = vsel %vm1331, %v4469, 0
      %4582 = vmatprep.subr.mxu0 0.0
      %4583 = vmatpush1.xpose.msra.mxu0 %v4532
      %4584 = vmatprep.subr.mxu0 0.0
      %4585 = vmatpush1.xpose.msra.mxu0 %v4529
      %4586 = vmatprep.subr.mxu0 0.0
      %4587 = vmatpush1.xpose.msra.mxu0 %v4526
      %4588 = vmatprep.subr.mxu0 0.0
      %4589 = vmatpush1.xpose.msra.mxu0 %v4523
      %4590 = vmatprep.subr.mxu0 0.0
      %4591 = vmatpush1.xpose.msra.mxu0 %v4520
      %4592 = vmatprep.subr.mxu0 0.0
      %4593 = vmatpush1.xpose.msra.mxu0 %v4517
      %4594 = vmatprep.subr.mxu0 0.0
      %4595 = vmatpush1.xpose.msra.mxu0 %v4514
      %4596 = vmatprep.subr.mxu0 0.0
      %4597 = vmatpush1.xpose.msra.mxu0 %v4511
      %4598 = vmatprep.subr.mxu0 0.0
      %4599 = vmatpush1.xpose.msra.mxu0 %v4508
      %4600 = vmatprep.subr.mxu0 0.0
      %4601 = vmatpush1.xpose.msra.mxu0 %v4505
      %4602 = vmatprep.subr.mxu0 0.0
      %4603 = vmatpush1.xpose.msra.mxu0 %v4502
      %4604 = vmatprep.subr.mxu0 0.0
      %4605 = vmatpush1.xpose.msra.mxu0 %v4499
      %4606 = vmatprep.subr.mxu0 0.0
      %4607 = vmatpush1.xpose.msra.mxu0 %v4496
      %4608 = vmatprep.subr.mxu0 0.0
      %4609 = vmatpush1.xpose.msra.mxu0 %v4493
      %4610 = vmatprep.subr.mxu0 0.0
      %4611 = vmatpush1.xpose.msra.mxu0 %v4490
      %4612 = vmatprep.subr.mxu0 0.0
      %4613 = vmatpush1.xpose.msra.mxu0 %v4487
      %4614 = vmatprep.subr.mxu0 0.0
      %4615 = vmatpush2.xpose.msra.mxu0 %v4580
      %4616 = vmatprep.subr.mxu0 0.0
      %4617 = vmatpush2.xpose.msra.mxu0 %v4577
      %4618 = vmatprep.subr.mxu0 0.0
      %4619 = vmatpush2.xpose.msra.mxu0 %v4574
      %4620 = vmatprep.subr.mxu0 0.0
      %4621 = vmatpush2.xpose.msra.mxu0 %v4571
      %4622 = vmatprep.subr.mxu0 0.0
      %4623 = vmatpush2.xpose.msra.mxu0 %v4568
      %4624 = vmatprep.subr.mxu0 0.0
      %4625 = vmatpush2.xpose.msra.mxu0 %v4565
      %4626 = vmatprep.subr.mxu0 0.0
      %4627 = vmatpush2.xpose.msra.mxu0 %v4562
      %4628 = vmatprep.subr.mxu0 0.0
      %4629 = vmatpush2.xpose.msra.mxu0 %v4559
      %4630 = vmatprep.subr.mxu0 0.0
      %4631 = vmatpush2.xpose.msra.mxu0 %v4556
      %4632 = vmatprep.subr.mxu0 0.0
      %4633 = vmatpush2.xpose.msra.mxu0 %v4553
      %4634 = vmatprep.subr.mxu0 0.0
      %4635 = vmatpush2.xpose.msra.mxu0 %v4550
      %4636 = vmatprep.subr.mxu0 0.0
      %4637 = vmatpush2.xpose.msra.mxu0 %v4547
      %4638 = vmatprep.subr.mxu0 0.0
      %4639 = vmatpush2.xpose.msra.mxu0 %v4544
      %4640 = vmatprep.subr.mxu0 0.0
      %4641 = vmatpush2.xpose.msra.mxu0 %v4541
      %4642 = vmatprep.subr.mxu0 0.0
      %4643 = vmatpush2.xpose.msra.mxu0 %v4538
      %4644 = vmatprep.subr.mxu0 0.0
      %4645 = vmatpush2.xpose.msra.mxu0 %v4535
      %4646 = vmatprep.mubr.f32.mxu0 0.0
      %4647 = vmatmul.mubr.f32.gmra.mxu0 %v4475
      %v4648 = vpop.f32.mrf.mxu0
      %v4649 = vadd.f32 0.0, %v4648
      %v4650 = vpop.f32.mrf.mxu0
      %v4651 = vadd.f32 0.0, %v4650
      %4652 = vmatprep.mubr.f32.mxu0 0.0
      %4653 = vmatmul.mubr.f32.gmra.mxu0 %v4478
      %v4654 = vpop.f32.mrf.mxu0
      %v4655 = vadd.f32 0.0, %v4654
      %v4656 = vpop.f32.mrf.mxu0
      %v4657 = vadd.f32 0.0, %v4656
      %4658 = vmatprep.mubr.f32.mxu0 0.0
      %4659 = vmatmul.mubr.f32.gmra.mxu0 %v4481
      %v4660 = vpop.f32.mrf.mxu0
      %v4661 = vadd.f32 0.0, %v4660
      %v4662 = vpop.f32.mrf.mxu0
      %v4663 = vadd.f32 0.0, %v4662
      %4664 = vmatprep.mubr.f32.mxu0 0.0
      %4665 = vmatmul.mubr.f32.gmra.mxu0 %v4484
      %v4666 = vpop.f32.mrf.mxu0
      %v4667 = vadd.f32 0.0, %v4666
      %v4668 = vpop.f32.mrf.mxu0
      %v4669 = vadd.f32 0.0, %v4668
      %4670 = vdwg.mxu0
      %4671 = vst [vmem:[%s359] sm:$0xff] %v4649
      %4672 = vst [vmem:[%s359 + $0x8] sm:$0xff] %v4651
      %4673 = vst [vmem:[%s359 + $0x10] sm:$0xff] %v4655
      %4674 = vst [vmem:[%s359 + $0x18] sm:$0xff] %v4657
      %4675 = vst [vmem:[%s359 + $0x20] sm:$0xff] %v4661
      %4676 = vst [vmem:[%s359 + $0x28] sm:$0xff] %v4663
      %4677 = vst [vmem:[%s359 + $0x30] sm:$0xff] %v4667
      %4678 = vst [vmem:[%s359 + $0x38] sm:$0xff] %v4669
      %s4679 = scalar_lea.vmem %s1, 16
      %v4680 = vld [vmem:[%s4679] sm:$0xff]
      %v4681 = vld [vmem:[%s4679 + $0x8] sm:$0xff]
      %4682 = vmatprep.subr.mxu0 0.0
      %4683 = vmatpush1.msra.mxu0 0.0
      %4684 = vmatprep.subr.mxu0 0.0
      %4685 = vmatpush1.msra.mxu0 0.0
      %4686 = vmatprep.subr.mxu0 0.0
      %4687 = vmatpush1.msra.mxu0 0.0
      %4688 = vmatprep.subr.mxu0 0.0
      %4689 = vmatpush1.msra.mxu0 0.0
      %4690 = vmatprep.subr.mxu0 0.0
      %4691 = vmatpush1.msra.mxu0 0.0
      %4692 = vmatprep.subr.mxu0 0.0
      %4693 = vmatpush1.msra.mxu0 0.0
      %4694 = vmatprep.subr.mxu0 0.0
      %4695 = vmatpush1.msra.mxu0 0.0
      %4696 = vmatprep.subr.mxu0 0.0
      %4697 = vmatpush1.msra.mxu0 0.0
      %4698 = vmatprep.subr.mxu0 0.0
      %4699 = vmatpush1.msra.mxu0 0.0
      %4700 = vmatprep.subr.mxu0 0.0
      %4701 = vmatpush1.msra.mxu0 0.0
      %4702 = vmatprep.subr.mxu0 0.0
      %4703 = vmatpush1.msra.mxu0 0.0
      %4704 = vmatprep.subr.mxu0 0.0
      %4705 = vmatpush1.msra.mxu0 0.0
      %4706 = vmatprep.subr.mxu0 0.0
      %4707 = vmatpush1.msra.mxu0 0.0
      %4708 = vmatprep.subr.mxu0 0.0
      %4709 = vmatpush1.msra.mxu0 0.0
      %4710 = vmatprep.subr.mxu0 0.0
      %4711 = vmatpush1.msra.mxu0 %v4681
      %4712 = vmatprep.subr.mxu0 0.0
      %4713 = vmatpush1.msra.mxu0 %v4680
      %4714 = vmatprep.subr.mxu0 0.0
      %4715 = vmatpush2.msra.mxu0 0.0
      %4716 = vmatprep.subr.mxu0 0.0
      %4717 = vmatpush2.msra.mxu0 0.0
      %4718 = vmatprep.subr.mxu0 0.0
      %4719 = vmatpush2.msra.mxu0 0.0
      %4720 = vmatprep.subr.mxu0 0.0
      %4721 = vmatpush2.msra.mxu0 0.0
      %4722 = vmatprep.subr.mxu0 0.0
      %4723 = vmatpush2.msra.mxu0 0.0
      %4724 = vmatprep.subr.mxu0 0.0
      %4725 = vmatpush2.msra.mxu0 0.0
      %4726 = vmatprep.subr.mxu0 0.0
      %4727 = vmatpush2.msra.mxu0 0.0
      %4728 = vmatprep.subr.mxu0 0.0
      %4729 = vmatpush2.msra.mxu0 0.0
      %4730 = vmatprep.subr.mxu0 0.0
      %4731 = vmatpush2.msra.mxu0 0.0
      %4732 = vmatprep.subr.mxu0 0.0
      %4733 = vmatpush2.msra.mxu0 0.0
      %4734 = vmatprep.subr.mxu0 0.0
      %4735 = vmatpush2.msra.mxu0 0.0
      %4736 = vmatprep.subr.mxu0 0.0
      %4737 = vmatpush2.msra.mxu0 0.0
      %4738 = vmatprep.subr.mxu0 0.0
      %4739 = vmatpush2.msra.mxu0 0.0
      %4740 = vmatprep.subr.mxu0 0.0
      %4741 = vmatpush2.msra.mxu0 0.0
      %4742 = vmatprep.subr.mxu0 0.0
      %4743 = vmatpush2.msra.mxu0 0.0
      %4744 = vmatprep.subr.mxu0 0.0
      %4745 = vmatpush2.msra.mxu0 0.0
      %4746 = vmatprep.mubr.f32.mxu0 0.0
      %4747 = vmatmul.mubr.f32.gmra.mxu0 %v488
      %v4748 = vpop.f32.mrf.mxu0
      %v4749 = vadd.f32 0.0, %v4748
      %v4750 = vpop.f32.mrf.mxu0
      %4751 = vmatprep.mubr.f32.mxu0 0.0
      %4752 = vmatmul.mubr.f32.gmra.mxu0 %v491
      %v4753 = vpop.f32.mrf.mxu0
      %v4754 = vadd.f32 0.0, %v4753
      %v4755 = vpop.f32.mrf.mxu0
      %4756 = vmatprep.mubr.f32.mxu0 0.0
      %4757 = vmatmul.mubr.f32.gmra.mxu0 %v494
      %v4758 = vpop.f32.mrf.mxu0
      %v4759 = vadd.f32 0.0, %v4758
      %v4760 = vpop.f32.mrf.mxu0
      %4761 = vmatprep.mubr.f32.mxu0 0.0
      %4762 = vmatmul.mubr.f32.gmra.mxu0 %v497
      %v4763 = vpop.f32.mrf.mxu0
      %v4764 = vadd.f32 0.0, %v4763
      %v4765 = vpop.f32.mrf.mxu0
      %4766 = vmatprep.mubr.f32.mxu0 0.0
      %4767 = vmatmul.mubr.f32.gmra.mxu0 %v500
      %v4768 = vpop.f32.mrf.mxu0
      %v4769 = vadd.f32 0.0, %v4768
      %v4770 = vpop.f32.mrf.mxu0
      %4771 = vmatprep.mubr.f32.mxu0 0.0
      %4772 = vmatmul.mubr.f32.gmra.mxu0 %v503
      %v4773 = vpop.f32.mrf.mxu0
      %v4774 = vadd.f32 0.0, %v4773
      %v4775 = vpop.f32.mrf.mxu0
      %4776 = vmatprep.mubr.f32.mxu0 0.0
      %4777 = vmatmul.mubr.f32.gmra.mxu0 %v506
      %v4778 = vpop.f32.mrf.mxu0
      %v4779 = vadd.f32 0.0, %v4778
      %v4780 = vpop.f32.mrf.mxu0
      %4781 = vmatprep.mubr.f32.mxu0 0.0
      %4782 = vmatmul.mubr.f32.gmra.mxu0 %v509
      %v4783 = vpop.f32.mrf.mxu0
      %v4784 = vadd.f32 0.0, %v4783
      %v4785 = vpop.f32.mrf.mxu0
      %4786 = vmatprep.mubr.f32.mxu0 0.0
      %4787 = vmatmul.mubr.f32.gmra.mxu0 %v512
      %v4788 = vpop.f32.mrf.mxu0
      %v4789 = vadd.f32 0.0, %v4788
      %v4790 = vpop.f32.mrf.mxu0
      %4791 = vmatprep.mubr.f32.mxu0 0.0
      %4792 = vmatmul.mubr.f32.gmra.mxu0 %v515
      %v4793 = vpop.f32.mrf.mxu0
      %v4794 = vadd.f32 0.0, %v4793
      %v4795 = vpop.f32.mrf.mxu0
      %4796 = vmatprep.mubr.f32.mxu0 0.0
      %4797 = vmatmul.mubr.f32.gmra.mxu0 %v518
      %v4798 = vpop.f32.mrf.mxu0
      %v4799 = vadd.f32 0.0, %v4798
      %v4800 = vpop.f32.mrf.mxu0
      %4801 = vmatprep.mubr.f32.mxu0 0.0
      %4802 = vmatmul.mubr.f32.gmra.mxu0 %v521
      %v4803 = vpop.f32.mrf.mxu0
      %v4804 = vadd.f32 0.0, %v4803
      %v4805 = vpop.f32.mrf.mxu0
      %4806 = vmatprep.mubr.f32.mxu0 0.0
      %4807 = vmatmul.mubr.f32.gmra.mxu0 %v524
      %v4808 = vpop.f32.mrf.mxu0
      %v4809 = vadd.f32 0.0, %v4808
      %v4810 = vpop.f32.mrf.mxu0
      %4811 = vmatprep.mubr.f32.mxu0 0.0
      %4812 = vmatmul.mubr.f32.gmra.mxu0 %v527
      %v4813 = vpop.f32.mrf.mxu0
      %v4814 = vadd.f32 0.0, %v4813
      %v4815 = vpop.f32.mrf.mxu0
      %4816 = vmatprep.mubr.f32.mxu0 0.0
      %4817 = vmatmul.mubr.f32.gmra.mxu0 %v530
      %v4818 = vpop.f32.mrf.mxu0
      %v4819 = vadd.f32 0.0, %v4818
      %v4820 = vpop.f32.mrf.mxu0
      %4821 = vmatprep.mubr.f32.mxu0 0.0
      %4822 = vmatmul.mubr.f32.gmra.mxu0 %v533
      %v4823 = vpop.f32.mrf.mxu0
      %v4824 = vadd.f32 0.0, %v4823
      %v4825 = vpop.f32.mrf.mxu0
      %4826 = vmatprep.mubr.f32.mxu0 0.0
      %4827 = vmatmul.mubr.f32.gmra.mxu0 %v536
      %v4828 = vpop.f32.mrf.mxu0
      %v4829 = vadd.f32 0.0, %v4828
      %v4830 = vpop.f32.mrf.mxu0
      %4831 = vmatprep.mubr.f32.mxu0 0.0
      %4832 = vmatmul.mubr.f32.gmra.mxu0 %v539
      %v4833 = vpop.f32.mrf.mxu0
      %v4834 = vadd.f32 0.0, %v4833
      %v4835 = vpop.f32.mrf.mxu0
      %4836 = vmatprep.mubr.f32.mxu0 0.0
      %4837 = vmatmul.mubr.f32.gmra.mxu0 %v542
      %v4838 = vpop.f32.mrf.mxu0
      %v4839 = vadd.f32 0.0, %v4838
      %v4840 = vpop.f32.mrf.mxu0
      %4841 = vmatprep.mubr.f32.mxu0 0.0
      %4842 = vmatmul.mubr.f32.gmra.mxu0 %v545
      %v4843 = vpop.f32.mrf.mxu0
      %v4844 = vadd.f32 0.0, %v4843
      %v4845 = vpop.f32.mrf.mxu0
      %4846 = vmatprep.mubr.f32.mxu0 0.0
      %4847 = vmatmul.mubr.f32.gmra.mxu0 %v548
      %v4848 = vpop.f32.mrf.mxu0
      %v4849 = vadd.f32 0.0, %v4848
      %v4850 = vpop.f32.mrf.mxu0
      %4851 = vmatprep.mubr.f32.mxu0 0.0
      %4852 = vmatmul.mubr.f32.gmra.mxu0 %v551
      %v4853 = vpop.f32.mrf.mxu0
      %v4854 = vadd.f32 0.0, %v4853
      %v4855 = vpop.f32.mrf.mxu0
      %4856 = vmatprep.mubr.f32.mxu0 0.0
      %4857 = vmatmul.mubr.f32.gmra.mxu0 %v554
      %v4858 = vpop.f32.mrf.mxu0
      %v4859 = vadd.f32 0.0, %v4858
      %v4860 = vpop.f32.mrf.mxu0
      %4861 = vmatprep.mubr.f32.mxu0 0.0
      %4862 = vmatmul.mubr.f32.gmra.mxu0 %v557
      %v4863 = vpop.f32.mrf.mxu0
      %v4864 = vadd.f32 0.0, %v4863
      %v4865 = vpop.f32.mrf.mxu0
      %4866 = vmatprep.mubr.f32.mxu0 0.0
      %4867 = vmatmul.mubr.f32.gmra.mxu0 %v560
      %v4868 = vpop.f32.mrf.mxu0
      %v4869 = vadd.f32 0.0, %v4868
      %v4870 = vpop.f32.mrf.mxu0
      %4871 = vmatprep.mubr.f32.mxu0 0.0
      %4872 = vmatmul.mubr.f32.gmra.mxu0 %v563
      %v4873 = vpop.f32.mrf.mxu0
      %v4874 = vadd.f32 0.0, %v4873
      %v4875 = vpop.f32.mrf.mxu0
      %4876 = vmatprep.mubr.f32.mxu0 0.0
      %4877 = vmatmul.mubr.f32.gmra.mxu0 %v566
      %v4878 = vpop.f32.mrf.mxu0
      %v4879 = vadd.f32 0.0, %v4878
      %v4880 = vpop.f32.mrf.mxu0
      %4881 = vmatprep.mubr.f32.mxu0 0.0
      %4882 = vmatmul.mubr.f32.gmra.mxu0 %v569
      %v4883 = vpop.f32.mrf.mxu0
      %v4884 = vadd.f32 0.0, %v4883
      %v4885 = vpop.f32.mrf.mxu0
      %4886 = vmatprep.mubr.f32.mxu0 0.0
      %4887 = vmatmul.mubr.f32.gmra.mxu0 %v572
      %v4888 = vpop.f32.mrf.mxu0
      %v4889 = vadd.f32 0.0, %v4888
      %v4890 = vpop.f32.mrf.mxu0
      %4891 = vmatprep.mubr.f32.mxu0 0.0
      %4892 = vmatmul.mubr.f32.gmra.mxu0 %v575
      %v4893 = vpop.f32.mrf.mxu0
      %v4894 = vadd.f32 0.0, %v4893
      %v4895 = vpop.f32.mrf.mxu0
      %4896 = vmatprep.mubr.f32.mxu0 0.0
      %4897 = vmatmul.mubr.f32.gmra.mxu0 %v578
      %v4898 = vpop.f32.mrf.mxu0
      %v4899 = vadd.f32 0.0, %v4898
      %v4900 = vpop.f32.mrf.mxu0
      %4901 = vmatprep.mubr.f32.mxu0 0.0
      %4902 = vmatmul.mubr.f32.gmra.mxu0 %v581
      %v4903 = vpop.f32.mrf.mxu0
      %v4904 = vadd.f32 0.0, %v4903
      %v4905 = vpop.f32.mrf.mxu0
      %4906 = vdwg.mxu0
      %s4907 = scalar_lea.vmem %s2, 1
      %v4908 = vld [vmem:[%s4907] sm:$0x1]
      %v4910 = vlaneseq
      %v4911 = vshrl.u32 %v4910, 7
      %v4912 = vsub.s32 0, %v4911
      %v4913 = vrot.slane %v4908, %v4912
      %v4915 = vmul.f32 %v4749, %v4913
      %v4916 = vmul.f32 %v4754, %v4913
      %v4917 = vmul.f32 %v4759, %v4913
      %v4918 = vmul.f32 %v4764, %v4913
      %v4919 = vmul.f32 %v4769, %v4913
      %v4920 = vmul.f32 %v4774, %v4913
      %v4921 = vmul.f32 %v4779, %v4913
      %v4922 = vmul.f32 %v4784, %v4913
      %v4923 = vmul.f32 %v4789, %v4913
      %v4924 = vmul.f32 %v4794, %v4913
      %v4925 = vmul.f32 %v4799, %v4913
      %v4926 = vmul.f32 %v4804, %v4913
      %v4927 = vmul.f32 %v4809, %v4913
      %v4928 = vmul.f32 %v4814, %v4913
      %v4929 = vmul.f32 %v4819, %v4913
      %v4930 = vmul.f32 %v4824, %v4913
      %v4931 = vmul.f32 %v4829, %v4913
      %v4932 = vmul.f32 %v4834, %v4913
      %v4933 = vmul.f32 %v4839, %v4913
      %v4934 = vmul.f32 %v4844, %v4913
      %v4935 = vmul.f32 %v4849, %v4913
      %v4936 = vmul.f32 %v4854, %v4913
      %v4937 = vmul.f32 %v4859, %v4913
      %v4938 = vmul.f32 %v4864, %v4913
      %v4939 = vmul.f32 %v4869, %v4913
      %v4940 = vmul.f32 %v4874, %v4913
      %v4941 = vmul.f32 %v4879, %v4913
      %v4942 = vmul.f32 %v4884, %v4913
      %v4943 = vmul.f32 %v4889, %v4913
      %v4944 = vmul.f32 %v4894, %v4913
      %v4945 = vmul.f32 %v4899, %v4913
      %v4946 = vmul.f32 %v4904, %v4913
      %s4947 = scalar_lea.vmem %s3, 1
      %v4948 = vld [vmem:[%s4947] sm:$0x1]
      %v4950 = vlaneseq
      %v4951 = vshrl.u32 %v4950, 7
      %v4952 = vsub.s32 0, %v4951
      %v4953 = vrot.slane %v4948, %v4952
      %v4955 = vadd.f32 %v4915, %v4953
      %v4956 = vadd.f32 %v4916, %v4953
      %v4957 = vadd.f32 %v4917, %v4953
      %v4958 = vadd.f32 %v4918, %v4953
      %v4959 = vadd.f32 %v4919, %v4953
      %v4960 = vadd.f32 %v4920, %v4953
      %v4961 = vadd.f32 %v4921, %v4953
      %v4962 = vadd.f32 %v4922, %v4953
      %v4963 = vadd.f32 %v4923, %v4953
      %v4964 = vadd.f32 %v4924, %v4953
      %v4965 = vadd.f32 %v4925, %v4953
      %v4966 = vadd.f32 %v4926, %v4953
      %v4967 = vadd.f32 %v4927, %v4953
      %v4968 = vadd.f32 %v4928, %v4953
      %v4969 = vadd.f32 %v4929, %v4953
      %v4970 = vadd.f32 %v4930, %v4953
      %v4971 = vadd.f32 %v4931, %v4953
      %v4972 = vadd.f32 %v4932, %v4953
      %v4973 = vadd.f32 %v4933, %v4953
      %v4974 = vadd.f32 %v4934, %v4953
      %v4975 = vadd.f32 %v4935, %v4953
      %v4976 = vadd.f32 %v4936, %v4953
      %v4977 = vadd.f32 %v4937, %v4953
      %v4978 = vadd.f32 %v4938, %v4953
      %v4979 = vadd.f32 %v4939, %v4953
      %v4980 = vadd.f32 %v4940, %v4953
      %v4981 = vadd.f32 %v4941, %v4953
      %v4982 = vadd.f32 %v4942, %v4953
      %v4983 = vadd.f32 %v4943, %v4953
      %v4984 = vadd.f32 %v4944, %v4953
      %v4985 = vadd.f32 %v4945, %v4953
      %v4986 = vadd.f32 %v4946, %v4953
      %v4987 = vmax.f32 %v4955, 0.0
      %v4988 = vmax.f32 %v4956, 0.0
      %v4989 = vmax.f32 %v4957, 0.0
      %v4990 = vmax.f32 %v4958, 0.0
      %v4991 = vmax.f32 %v4959, 0.0
      %v4992 = vmax.f32 %v4960, 0.0
      %v4993 = vmax.f32 %v4961, 0.0
      %v4994 = vmax.f32 %v4962, 0.0
      %v4995 = vmax.f32 %v4963, 0.0
      %v4996 = vmax.f32 %v4964, 0.0
      %v4997 = vmax.f32 %v4965, 0.0
      %v4998 = vmax.f32 %v4966, 0.0
      %v4999 = vmax.f32 %v4967, 0.0
      %v5000 = vmax.f32 %v4968, 0.0
      %v5001 = vmax.f32 %v4969, 0.0
      %v5002 = vmax.f32 %v4970, 0.0
      %v5003 = vmax.f32 %v4971, 0.0
      %v5004 = vmax.f32 %v4972, 0.0
      %v5005 = vmax.f32 %v4973, 0.0
      %v5006 = vmax.f32 %v4974, 0.0
      %v5007 = vmax.f32 %v4975, 0.0
      %v5008 = vmax.f32 %v4976, 0.0
      %v5009 = vmax.f32 %v4977, 0.0
      %v5010 = vmax.f32 %v4978, 0.0
      %v5011 = vmax.f32 %v4979, 0.0
      %v5012 = vmax.f32 %v4980, 0.0
      %v5013 = vmax.f32 %v4981, 0.0
      %v5014 = vmax.f32 %v4982, 0.0
      %v5015 = vmax.f32 %v4983, 0.0
      %v5016 = vmax.f32 %v4984, 0.0
      %v5017 = vmax.f32 %v4985, 0.0
      %v5018 = vmax.f32 %v4986, 0.0
      %5019 = vst.msk [vmem:[%s918 + $0x1] sm:$0xff] %vm364, %v4987
      %5020 = vst.msk [vmem:[%s918 + $0x9] sm:$0xff] %vm364, %v4988
      %5021 = vst.msk [vmem:[%s918 + $0x19] sm:$0xff] %vm364, %v4989
      %5022 = vst.msk [vmem:[%s918 + $0x21] sm:$0xff] %vm364, %v4990
      %5023 = vst.msk [vmem:[%s918 + $0x31] sm:$0xff] %vm364, %v4991
      %5024 = vst.msk [vmem:[%s918 + $0x39] sm:$0xff] %vm364, %v4992
      %5025 = vst.msk [vmem:[%s918 + $0x49] sm:$0xff] %vm364, %v4993
      %5026 = vst.msk [vmem:[%s918 + $0x51] sm:$0xff] %vm364, %v4994
      %5027 = vst.msk [vmem:[%s918 + $0x61] sm:$0xff] %vm364, %v4995
      %5028 = vst.msk [vmem:[%s918 + $0x69] sm:$0xff] %vm364, %v4996
      %5029 = vst.msk [vmem:[%s918 + $0x79] sm:$0xff] %vm364, %v4997
      %5030 = vst.msk [vmem:[%s918 + $0x81] sm:$0xff] %vm364, %v4998
      %5031 = vst.msk [vmem:[%s918 + $0x91] sm:$0xff] %vm364, %v4999
      %5032 = vst.msk [vmem:[%s918 + $0x99] sm:$0xff] %vm364, %v5000
      %5033 = vst.msk [vmem:[%s918 + $0xa9] sm:$0xff] %vm364, %v5001
      %5034 = vst.msk [vmem:[%s918 + $0xb1] sm:$0xff] %vm364, %v5002
      %5035 = vst.msk [vmem:[%s918 + $0xc1] sm:$0xff] %vm364, %v5003
      %5036 = vst.msk [vmem:[%s918 + $0xc9] sm:$0xff] %vm364, %v5004
      %5037 = vst.msk [vmem:[%s918 + $0xd9] sm:$0xff] %vm364, %v5005
      %5038 = vst.msk [vmem:[%s918 + $0xe1] sm:$0xff] %vm364, %v5006
      %5039 = vst.msk [vmem:[%s918 + $0xf1] sm:$0xff] %vm364, %v5007
      %5040 = vst.msk [vmem:[%s918 + $0xf9] sm:$0xff] %vm364, %v5008
      %5041 = vst.msk [vmem:[%s918 + $0x109] sm:$0xff] %vm364, %v5009
      %5042 = vst.msk [vmem:[%s918 + $0x111] sm:$0xff] %vm364, %v5010
      %5043 = vst.msk [vmem:[%s918 + $0x121] sm:$0xff] %vm364, %v5011
      %5044 = vst.msk [vmem:[%s918 + $0x129] sm:$0xff] %vm364, %v5012
      %5045 = vst.msk [vmem:[%s918 + $0x139] sm:$0xff] %vm364, %v5013
      %5046 = vst.msk [vmem:[%s918 + $0x141] sm:$0xff] %vm364, %v5014
      %5047 = vst.msk [vmem:[%s918 + $0x151] sm:$0xff] %vm364, %v5015
      %5048 = vst.msk [vmem:[%s918 + $0x159] sm:$0xff] %vm364, %v5016
      %5049 = vst.msk [vmem:[%s918 + $0x169] sm:$0xff] %vm364, %v5017
      %5050 = vst.msk [vmem:[%s918 + $0x171] sm:$0xff] %vm364, %v5018
      %v5051 = vld [vmem:[#allocation2] sm:$0xff]
      %v5052 = vld [vmem:[#allocation2 + $0x8] sm:$0xff]
      %v5053 = vld [vmem:[#allocation2 + $0x10] sm:$0x3]
      %v5054 = vld [vmem:[#allocation2 + $0x18] sm:$0xff]
      %v5055 = vld [vmem:[#allocation2 + $0x20] sm:$0xff]
      %v5056 = vld [vmem:[#allocation2 + $0x28] sm:$0x3]
      %v5057 = vld [vmem:[#allocation2 + $0x30] sm:$0xff]
      %v5058 = vld [vmem:[#allocation2 + $0x38] sm:$0xff]
      %v5059 = vld [vmem:[#allocation2 + $0x40] sm:$0x3]
      %v5060 = vld [vmem:[#allocation2 + $0x48] sm:$0xff]
      %v5061 = vld [vmem:[#allocation2 + $0x50] sm:$0xff]
      %v5062 = vld [vmem:[#allocation2 + $0x58] sm:$0x3]
      %v5063 = vld [vmem:[#allocation2 + $0x60] sm:$0xff]
      %v5064 = vld [vmem:[#allocation2 + $0x68] sm:$0xff]
      %v5065 = vld [vmem:[#allocation2 + $0x70] sm:$0x3]
      %v5066 = vld [vmem:[#allocation2 + $0x78] sm:$0xff]
      %v5067 = vld [vmem:[#allocation2 + $0x80] sm:$0xff]
      %v5068 = vld [vmem:[#allocation2 + $0x88] sm:$0x3]
      %v5069 = vld [vmem:[#allocation2 + $0x90] sm:$0xff]
      %v5070 = vld [vmem:[#allocation2 + $0x98] sm:$0xff]
      %v5071 = vld [vmem:[#allocation2 + $0xa0] sm:$0x3]
      %v5072 = vld [vmem:[#allocation2 + $0xa8] sm:$0xff]
      %v5073 = vld [vmem:[#allocation2 + $0xb0] sm:$0xff]
      %v5074 = vld [vmem:[#allocation2 + $0xb8] sm:$0x3]
      %v5075 = vld [vmem:[#allocation2 + $0xc0] sm:$0xff]
      %v5076 = vld [vmem:[#allocation2 + $0xc8] sm:$0xff]
      %v5077 = vld [vmem:[#allocation2 + $0xd0] sm:$0x3]
      %v5078 = vld [vmem:[#allocation2 + $0xd8] sm:$0xff]
      %v5079 = vld [vmem:[#allocation2 + $0xe0] sm:$0xff]
      %v5080 = vld [vmem:[#allocation2 + $0xe8] sm:$0x3]
      %v5081 = vld [vmem:[#allocation2 + $0xf0] sm:$0xff]
      %v5082 = vld [vmem:[#allocation2 + $0xf8] sm:$0xff]
      %v5083 = vld [vmem:[#allocation2 + $0x100] sm:$0x3]
      %v5084 = vld [vmem:[#allocation2 + $0x108] sm:$0xff]
      %v5085 = vld [vmem:[#allocation2 + $0x110] sm:$0xff]
      %v5086 = vld [vmem:[#allocation2 + $0x118] sm:$0x3]
      %v5087 = vld [vmem:[#allocation2 + $0x120] sm:$0xff]
      %v5088 = vld [vmem:[#allocation2 + $0x128] sm:$0xff]
      %v5089 = vld [vmem:[#allocation2 + $0x130] sm:$0x3]
      %v5090 = vld [vmem:[#allocation2 + $0x138] sm:$0xff]
      %v5091 = vld [vmem:[#allocation2 + $0x140] sm:$0xff]
      %v5092 = vld [vmem:[#allocation2 + $0x148] sm:$0x3]
      %v5093 = vld [vmem:[#allocation2 + $0x150] sm:$0xff]
      %v5094 = vld [vmem:[#allocation2 + $0x158] sm:$0xff]
      %v5095 = vld [vmem:[#allocation2 + $0x160] sm:$0x3]
      %v5096 = vld [vmem:[#allocation2 + $0x168] sm:$0xff]
      %v5097 = vld [vmem:[#allocation2 + $0x170] sm:$0xff]
      %v5098 = vld [vmem:[#allocation2 + $0x178] sm:$0x3]
      %v5099 = vld [vmem:[#allocation2 + $0x180] sm:$0xff]
      %v5100 = vld [vmem:[#allocation2 + $0x188] sm:$0xff]
      %v5101 = vld [vmem:[#allocation2 + $0x190] sm:$0x3]
      %v5102 = vld [vmem:[#allocation2 + $0x198] sm:$0xff]
      %v5103 = vld [vmem:[#allocation2 + $0x1a0] sm:$0xff]
      %v5104 = vld [vmem:[#allocation2 + $0x1a8] sm:$0x3]
      %s5105 = scalar_lea.vmem %s4, 36
      %v5106 = vld [vmem:[%s5105] sm:$0xf]
      %v5108 = vsel %vm364, %v5051, 0
      %v5111 = vsel %vm364, %v5052, 0
      %v5114 = vsel %vm364, %v5054, 0
      %v5117 = vsel %vm364, %v5055, 0
      %v5120 = vsel %vm364, %v5057, 0
      %v5123 = vsel %vm364, %v5058, 0
      %v5126 = vsel %vm364, %v5060, 0
      %v5129 = vsel %vm364, %v5061, 0
      %v5132 = vsel %vm364, %v5063, 0
      %v5135 = vsel %vm364, %v5064, 0
      %v5138 = vsel %vm364, %v5066, 0
      %v5141 = vsel %vm364, %v5067, 0
      %v5144 = vsel %vm364, %v5069, 0
      %v5147 = vsel %vm364, %v5070, 0
      %v5150 = vsel %vm364, %v5072, 0
      %v5153 = vsel %vm364, %v5073, 0
      %v5156 = vsel %vm364, %v5075, 0
      %v5159 = vsel %vm364, %v5076, 0
      %v5162 = vsel %vm364, %v5078, 0
      %v5165 = vsel %vm364, %v5079, 0
      %v5168 = vsel %vm364, %v5081, 0
      %v5171 = vsel %vm364, %v5082, 0
      %v5174 = vsel %vm364, %v5084, 0
      %v5177 = vsel %vm364, %v5085, 0
      %v5180 = vsel %vm364, %v5087, 0
      %v5183 = vsel %vm364, %v5088, 0
      %v5186 = vsel %vm364, %v5090, 0
      %v5189 = vsel %vm364, %v5091, 0
      %v5192 = vsel %vm364, %v5093, 0
      %v5195 = vsel %vm364, %v5094, 0
      %v5198 = vsel %vm364, %v5096, 0
      %v5201 = vsel %vm364, %v5097, 0
      %v5204 = vsel %vm1102, %v5106, 0
      %5206 = vmatprep.subr.mxu0 0.0
      %5207 = vmatpush1.msra.mxu0 0.0
      %5208 = vmatprep.subr.mxu0 0.0
      %5209 = vmatpush1.msra.mxu0 0.0
      %5210 = vmatprep.subr.mxu0 0.0
      %5211 = vmatpush1.msra.mxu0 0.0
      %5212 = vmatprep.subr.mxu0 0.0
      %5213 = vmatpush1.msra.mxu0 0.0
      %5214 = vmatprep.subr.mxu0 0.0
      %5215 = vmatpush1.msra.mxu0 0.0
      %5216 = vmatprep.subr.mxu0 0.0
      %5217 = vmatpush1.msra.mxu0 0.0
      %5218 = vmatprep.subr.mxu0 0.0
      %5219 = vmatpush1.msra.mxu0 0.0
      %5220 = vmatprep.subr.mxu0 0.0
      %5221 = vmatpush1.msra.mxu0 0.0
      %5222 = vmatprep.subr.mxu0 0.0
      %5223 = vmatpush1.msra.mxu0 0.0
      %5224 = vmatprep.subr.mxu0 0.0
      %5225 = vmatpush1.msra.mxu0 0.0
      %5226 = vmatprep.subr.mxu0 0.0
      %5227 = vmatpush1.msra.mxu0 0.0
      %5228 = vmatprep.subr.mxu0 0.0
      %5229 = vmatpush1.msra.mxu0 0.0
      %5230 = vmatprep.subr.mxu0 0.0
      %5231 = vmatpush1.msra.mxu0 0.0
      %5232 = vmatprep.subr.mxu0 0.0
      %5233 = vmatpush1.msra.mxu0 0.0
      %5234 = vmatprep.subr.mxu0 0.0
      %5235 = vmatpush1.msra.mxu0 0.0
      %5236 = vmatprep.subr.mxu0 0.0
      %5237 = vmatpush1.msra.mxu0 %v5204
      %5238 = vmatprep.subr.mxu0 0.0
      %5239 = vmatpush2.msra.mxu0 0.0
      %5240 = vmatprep.subr.mxu0 0.0
      %5241 = vmatpush2.msra.mxu0 0.0
      %5242 = vmatprep.subr.mxu0 0.0
      %5243 = vmatpush2.msra.mxu0 0.0
      %5244 = vmatprep.subr.mxu0 0.0
      %5245 = vmatpush2.msra.mxu0 0.0
      %5246 = vmatprep.subr.mxu0 0.0
      %5247 = vmatpush2.msra.mxu0 0.0
      %5248 = vmatprep.subr.mxu0 0.0
      %5249 = vmatpush2.msra.mxu0 0.0
      %5250 = vmatprep.subr.mxu0 0.0
      %5251 = vmatpush2.msra.mxu0 0.0
      %5252 = vmatprep.subr.mxu0 0.0
      %5253 = vmatpush2.msra.mxu0 0.0
      %5254 = vmatprep.subr.mxu0 0.0
      %5255 = vmatpush2.msra.mxu0 0.0
      %5256 = vmatprep.subr.mxu0 0.0
      %5257 = vmatpush2.msra.mxu0 0.0
      %5258 = vmatprep.subr.mxu0 0.0
      %5259 = vmatpush2.msra.mxu0 0.0
      %5260 = vmatprep.subr.mxu0 0.0
      %5261 = vmatpush2.msra.mxu0 0.0
      %5262 = vmatprep.subr.mxu0 0.0
      %5263 = vmatpush2.msra.mxu0 0.0
      %5264 = vmatprep.subr.mxu0 0.0
      %5265 = vmatpush2.msra.mxu0 0.0
      %5266 = vmatprep.subr.mxu0 0.0
      %5267 = vmatpush2.msra.mxu0 0.0
      %5268 = vmatprep.subr.mxu0 0.0
      %5269 = vmatpush2.msra.mxu0 0.0
      %5270 = vmatprep.mubr.f32.mxu0 0.0
      %5271 = vmatmul.mubr.f32.gmra.mxu0 %v5108
      %v5272 = vpop.f32.mrf.mxu0
      %v5273 = vadd.f32 0.0, %v5272
      %v5274 = vpop.f32.mrf.mxu0
      %5275 = vmatprep.mubr.f32.mxu0 0.0
      %5276 = vmatmul.mubr.f32.gmra.mxu0 %v5111
      %v5277 = vpop.f32.mrf.mxu0
      %v5278 = vadd.f32 0.0, %v5277
      %v5279 = vpop.f32.mrf.mxu0
      %5280 = vmatprep.mubr.f32.mxu0 0.0
      %5281 = vmatmul.mubr.f32.gmra.mxu0 %v5114
      %v5282 = vpop.f32.mrf.mxu0
      %v5283 = vadd.f32 0.0, %v5282
      %v5284 = vpop.f32.mrf.mxu0
      %5285 = vmatprep.mubr.f32.mxu0 0.0
      %5286 = vmatmul.mubr.f32.gmra.mxu0 %v5117
      %v5287 = vpop.f32.mrf.mxu0
      %v5288 = vadd.f32 0.0, %v5287
      %v5289 = vpop.f32.mrf.mxu0
      %5290 = vmatprep.mubr.f32.mxu0 0.0
      %5291 = vmatmul.mubr.f32.gmra.mxu0 %v5120
      %v5292 = vpop.f32.mrf.mxu0
      %v5293 = vadd.f32 0.0, %v5292
      %v5294 = vpop.f32.mrf.mxu0
      %5295 = vmatprep.mubr.f32.mxu0 0.0
      %5296 = vmatmul.mubr.f32.gmra.mxu0 %v5123
      %v5297 = vpop.f32.mrf.mxu0
      %v5298 = vadd.f32 0.0, %v5297
      %v5299 = vpop.f32.mrf.mxu0
      %5300 = vmatprep.mubr.f32.mxu0 0.0
      %5301 = vmatmul.mubr.f32.gmra.mxu0 %v5126
      %v5302 = vpop.f32.mrf.mxu0
      %v5303 = vadd.f32 0.0, %v5302
      %v5304 = vpop.f32.mrf.mxu0
      %5305 = vmatprep.mubr.f32.mxu0 0.0
      %5306 = vmatmul.mubr.f32.gmra.mxu0 %v5129
      %v5307 = vpop.f32.mrf.mxu0
      %v5308 = vadd.f32 0.0, %v5307
      %v5309 = vpop.f32.mrf.mxu0
      %5310 = vmatprep.mubr.f32.mxu0 0.0
      %5311 = vmatmul.mubr.f32.gmra.mxu0 %v5132
      %v5312 = vpop.f32.mrf.mxu0
      %v5313 = vadd.f32 0.0, %v5312
      %v5314 = vpop.f32.mrf.mxu0
      %5315 = vmatprep.mubr.f32.mxu0 0.0
      %5316 = vmatmul.mubr.f32.gmra.mxu0 %v5135
      %v5317 = vpop.f32.mrf.mxu0
      %v5318 = vadd.f32 0.0, %v5317
      %v5319 = vpop.f32.mrf.mxu0
      %5320 = vmatprep.mubr.f32.mxu0 0.0
      %5321 = vmatmul.mubr.f32.gmra.mxu0 %v5138
      %v5322 = vpop.f32.mrf.mxu0
      %v5323 = vadd.f32 0.0, %v5322
      %v5324 = vpop.f32.mrf.mxu0
      %5325 = vmatprep.mubr.f32.mxu0 0.0
      %5326 = vmatmul.mubr.f32.gmra.mxu0 %v5141
      %v5327 = vpop.f32.mrf.mxu0
      %v5328 = vadd.f32 0.0, %v5327
      %v5329 = vpop.f32.mrf.mxu0
      %5330 = vmatprep.mubr.f32.mxu0 0.0
      %5331 = vmatmul.mubr.f32.gmra.mxu0 %v5144
      %v5332 = vpop.f32.mrf.mxu0
      %v5333 = vadd.f32 0.0, %v5332
      %v5334 = vpop.f32.mrf.mxu0
      %5335 = vmatprep.mubr.f32.mxu0 0.0
      %5336 = vmatmul.mubr.f32.gmra.mxu0 %v5147
      %v5337 = vpop.f32.mrf.mxu0
      %v5338 = vadd.f32 0.0, %v5337
      %v5339 = vpop.f32.mrf.mxu0
      %5340 = vmatprep.mubr.f32.mxu0 0.0
      %5341 = vmatmul.mubr.f32.gmra.mxu0 %v5150
      %v5342 = vpop.f32.mrf.mxu0
      %v5343 = vadd.f32 0.0, %v5342
      %v5344 = vpop.f32.mrf.mxu0
      %5345 = vmatprep.mubr.f32.mxu0 0.0
      %5346 = vmatmul.mubr.f32.gmra.mxu0 %v5153
      %v5347 = vpop.f32.mrf.mxu0
      %v5348 = vadd.f32 0.0, %v5347
      %v5349 = vpop.f32.mrf.mxu0
      %5350 = vmatprep.mubr.f32.mxu0 0.0
      %5351 = vmatmul.mubr.f32.gmra.mxu0 %v5156
      %v5352 = vpop.f32.mrf.mxu0
      %v5353 = vadd.f32 0.0, %v5352
      %v5354 = vpop.f32.mrf.mxu0
      %5355 = vmatprep.mubr.f32.mxu0 0.0
      %5356 = vmatmul.mubr.f32.gmra.mxu0 %v5159
      %v5357 = vpop.f32.mrf.mxu0
      %v5358 = vadd.f32 0.0, %v5357
      %v5359 = vpop.f32.mrf.mxu0
      %5360 = vmatprep.mubr.f32.mxu0 0.0
      %5361 = vmatmul.mubr.f32.gmra.mxu0 %v5162
      %v5362 = vpop.f32.mrf.mxu0
      %v5363 = vadd.f32 0.0, %v5362
      %v5364 = vpop.f32.mrf.mxu0
      %5365 = vmatprep.mubr.f32.mxu0 0.0
      %5366 = vmatmul.mubr.f32.gmra.mxu0 %v5165
      %v5367 = vpop.f32.mrf.mxu0
      %v5368 = vadd.f32 0.0, %v5367
      %v5369 = vpop.f32.mrf.mxu0
      %5370 = vmatprep.mubr.f32.mxu0 0.0
      %5371 = vmatmul.mubr.f32.gmra.mxu0 %v5168
      %v5372 = vpop.f32.mrf.mxu0
      %v5373 = vadd.f32 0.0, %v5372
      %v5374 = vpop.f32.mrf.mxu0
      %5375 = vmatprep.mubr.f32.mxu0 0.0
      %5376 = vmatmul.mubr.f32.gmra.mxu0 %v5171
      %v5377 = vpop.f32.mrf.mxu0
      %v5378 = vadd.f32 0.0, %v5377
      %v5379 = vpop.f32.mrf.mxu0
      %5380 = vmatprep.mubr.f32.mxu0 0.0
      %5381 = vmatmul.mubr.f32.gmra.mxu0 %v5174
      %v5382 = vpop.f32.mrf.mxu0
      %v5383 = vadd.f32 0.0, %v5382
      %v5384 = vpop.f32.mrf.mxu0
      %5385 = vmatprep.mubr.f32.mxu0 0.0
      %5386 = vmatmul.mubr.f32.gmra.mxu0 %v5177
      %v5387 = vpop.f32.mrf.mxu0
      %v5388 = vadd.f32 0.0, %v5387
      %v5389 = vpop.f32.mrf.mxu0
      %5390 = vmatprep.mubr.f32.mxu0 0.0
      %5391 = vmatmul.mubr.f32.gmra.mxu0 %v5180
      %v5392 = vpop.f32.mrf.mxu0
      %v5393 = vadd.f32 0.0, %v5392
      %v5394 = vpop.f32.mrf.mxu0
      %5395 = vmatprep.mubr.f32.mxu0 0.0
      %5396 = vmatmul.mubr.f32.gmra.mxu0 %v5183
      %v5397 = vpop.f32.mrf.mxu0
      %v5398 = vadd.f32 0.0, %v5397
      %v5399 = vpop.f32.mrf.mxu0
      %5400 = vmatprep.mubr.f32.mxu0 0.0
      %5401 = vmatmul.mubr.f32.gmra.mxu0 %v5186
      %v5402 = vpop.f32.mrf.mxu0
      %v5403 = vadd.f32 0.0, %v5402
      %v5404 = vpop.f32.mrf.mxu0
      %5405 = vmatprep.mubr.f32.mxu0 0.0
      %5406 = vmatmul.mubr.f32.gmra.mxu0 %v5189
      %v5407 = vpop.f32.mrf.mxu0
      %v5408 = vadd.f32 0.0, %v5407
      %v5409 = vpop.f32.mrf.mxu0
      %5410 = vmatprep.mubr.f32.mxu0 0.0
      %5411 = vmatmul.mubr.f32.gmra.mxu0 %v5192
      %v5412 = vpop.f32.mrf.mxu0
      %v5413 = vadd.f32 0.0, %v5412
      %v5414 = vpop.f32.mrf.mxu0
      %5415 = vmatprep.mubr.f32.mxu0 0.0
      %5416 = vmatmul.mubr.f32.gmra.mxu0 %v5195
      %v5417 = vpop.f32.mrf.mxu0
      %v5418 = vadd.f32 0.0, %v5417
      %v5419 = vpop.f32.mrf.mxu0
      %5420 = vmatprep.mubr.f32.mxu0 0.0
      %5421 = vmatmul.mubr.f32.gmra.mxu0 %v5198
      %v5422 = vpop.f32.mrf.mxu0
      %v5423 = vadd.f32 0.0, %v5422
      %v5424 = vpop.f32.mrf.mxu0
      %5425 = vmatprep.mubr.f32.mxu0 0.0
      %5426 = vmatmul.mubr.f32.gmra.mxu0 %v5201
      %v5427 = vpop.f32.mrf.mxu0
      %v5428 = vadd.f32 0.0, %v5427
      %v5429 = vpop.f32.mrf.mxu0
      %5430 = vdwg.mxu0
      %5431 = vst.msk [vmem:[#allocation3] sm:$0xff] %vm1331, %v5273
      %5432 = vst.msk [vmem:[#allocation3 + $0x8] sm:$0xff] %vm1331, %v5278
      %5433 = vst.msk [vmem:[#allocation3 + $0x10] sm:$0xff] %vm1331, %v5283
      %5434 = vst.msk [vmem:[#allocation3 + $0x18] sm:$0xff] %vm1331, %v5288
      %5435 = vst.msk [vmem:[#allocation3 + $0x20] sm:$0xff] %vm1331, %v5293
      %5436 = vst.msk [vmem:[#allocation3 + $0x28] sm:$0xff] %vm1331, %v5298
      %5437 = vst.msk [vmem:[#allocation3 + $0x30] sm:$0xff] %vm1331, %v5303
      %5438 = vst.msk [vmem:[#allocation3 + $0x38] sm:$0xff] %vm1331, %v5308
      %5439 = vst.msk [vmem:[#allocation3 + $0x40] sm:$0xff] %vm1331, %v5313
      %5440 = vst.msk [vmem:[#allocation3 + $0x48] sm:$0xff] %vm1331, %v5318
      %5441 = vst.msk [vmem:[#allocation3 + $0x50] sm:$0xff] %vm1331, %v5323
      %5442 = vst.msk [vmem:[#allocation3 + $0x58] sm:$0xff] %vm1331, %v5328
      %5443 = vst.msk [vmem:[#allocation3 + $0x60] sm:$0xff] %vm1331, %v5333
      %5444 = vst.msk [vmem:[#allocation3 + $0x68] sm:$0xff] %vm1331, %v5338
      %5445 = vst.msk [vmem:[#allocation3 + $0x70] sm:$0xff] %vm1331, %v5343
      %5446 = vst.msk [vmem:[#allocation3 + $0x78] sm:$0xff] %vm1331, %v5348
      %5447 = vst.msk [vmem:[#allocation3 + $0x80] sm:$0xff] %vm1331, %v5353
      %5448 = vst.msk [vmem:[#allocation3 + $0x88] sm:$0xff] %vm1331, %v5358
      %5449 = vst.msk [vmem:[#allocation3 + $0x90] sm:$0xff] %vm1331, %v5363
      %5450 = vst.msk [vmem:[#allocation3 + $0x98] sm:$0xff] %vm1331, %v5368
      %5451 = vst.msk [vmem:[#allocation3 + $0xa0] sm:$0xff] %vm1331, %v5373
      %5452 = vst.msk [vmem:[#allocation3 + $0xa8] sm:$0xff] %vm1331, %v5378
      %5453 = vst.msk [vmem:[#allocation3 + $0xb0] sm:$0xff] %vm1331, %v5383
      %5454 = vst.msk [vmem:[#allocation3 + $0xb8] sm:$0xff] %vm1331, %v5388
      %5455 = vst.msk [vmem:[#allocation3 + $0xc0] sm:$0xff] %vm1331, %v5393
      %5456 = vst.msk [vmem:[#allocation3 + $0xc8] sm:$0xff] %vm1331, %v5398
      %5457 = vst.msk [vmem:[#allocation3 + $0xd0] sm:$0xff] %vm1331, %v5403
      %5458 = vst.msk [vmem:[#allocation3 + $0xd8] sm:$0xff] %vm1331, %v5408
      %5459 = vst.msk [vmem:[#allocation3 + $0xe0] sm:$0xff] %vm1331, %v5413
      %5460 = vst.msk [vmem:[#allocation3 + $0xe8] sm:$0xff] %vm1331, %v5418
      %5461 = vst.msk [vmem:[#allocation3 + $0xf0] sm:$0xff] %vm1331, %v5423
      %5462 = vst.msk [vmem:[#allocation3 + $0xf8] sm:$0xff] %vm1331, %v5428
      %v5479 = vrot.slane %v5051, 1
      %v5480 = vrot.slane %v5052, 1
      %v5481 = vsel %vm1380, %v5479, %v5480
      %v5482 = vrot.slane %v5053, 1
      %v5483 = vsel %vm1380, %v5480, %v5482
      %v5484 = vrot.slane %v5054, 1
      %v5485 = vrot.slane %v5055, 1
      %v5486 = vsel %vm1380, %v5484, %v5485
      %v5487 = vrot.slane %v5056, 1
      %v5488 = vsel %vm1380, %v5485, %v5487
      %v5489 = vrot.slane %v5057, 1
      %v5490 = vrot.slane %v5058, 1
      %v5491 = vsel %vm1380, %v5489, %v5490
      %v5492 = vrot.slane %v5059, 1
      %v5493 = vsel %vm1380, %v5490, %v5492
      %v5494 = vrot.slane %v5060, 1
      %v5495 = vrot.slane %v5061, 1
      %v5496 = vsel %vm1380, %v5494, %v5495
      %v5497 = vrot.slane %v5062, 1
      %v5498 = vsel %vm1380, %v5495, %v5497
      %v5499 = vrot.slane %v5063, 1
      %v5500 = vrot.slane %v5064, 1
      %v5501 = vsel %vm1380, %v5499, %v5500
      %v5502 = vrot.slane %v5065, 1
      %v5503 = vsel %vm1380, %v5500, %v5502
      %v5504 = vrot.slane %v5066, 1
      %v5505 = vrot.slane %v5067, 1
      %v5506 = vsel %vm1380, %v5504, %v5505
      %v5507 = vrot.slane %v5068, 1
      %v5508 = vsel %vm1380, %v5505, %v5507
      %v5509 = vrot.slane %v5069, 1
      %v5510 = vrot.slane %v5070, 1
      %v5511 = vsel %vm1380, %v5509, %v5510
      %v5512 = vrot.slane %v5071, 1
      %v5513 = vsel %vm1380, %v5510, %v5512
      %v5514 = vrot.slane %v5072, 1
      %v5515 = vrot.slane %v5073, 1
      %v5516 = vsel %vm1380, %v5514, %v5515
      %v5517 = vrot.slane %v5074, 1
      %v5518 = vsel %vm1380, %v5515, %v5517
      %v5519 = vrot.slane %v5075, 1
      %v5520 = vrot.slane %v5076, 1
      %v5521 = vsel %vm1380, %v5519, %v5520
      %v5522 = vrot.slane %v5077, 1
      %v5523 = vsel %vm1380, %v5520, %v5522
      %v5524 = vrot.slane %v5078, 1
      %v5525 = vrot.slane %v5079, 1
      %v5526 = vsel %vm1380, %v5524, %v5525
      %v5527 = vrot.slane %v5080, 1
      %v5528 = vsel %vm1380, %v5525, %v5527
      %v5529 = vrot.slane %v5081, 1
      %v5530 = vrot.slane %v5082, 1
      %v5531 = vsel %vm1380, %v5529, %v5530
      %v5532 = vrot.slane %v5083, 1
      %v5533 = vsel %vm1380, %v5530, %v5532
      %v5534 = vrot.slane %v5084, 1
      %v5535 = vrot.slane %v5085, 1
      %v5536 = vsel %vm1380, %v5534, %v5535
      %v5537 = vrot.slane %v5086, 1
      %v5538 = vsel %vm1380, %v5535, %v5537
      %v5539 = vrot.slane %v5087, 1
      %v5540 = vrot.slane %v5088, 1
      %v5541 = vsel %vm1380, %v5539, %v5540
      %v5542 = vrot.slane %v5089, 1
      %v5543 = vsel %vm1380, %v5540, %v5542
      %v5544 = vrot.slane %v5090, 1
      %v5545 = vrot.slane %v5091, 1
      %v5546 = vsel %vm1380, %v5544, %v5545
      %v5547 = vrot.slane %v5092, 1
      %v5548 = vsel %vm1380, %v5545, %v5547
      %v5549 = vrot.slane %v5093, 1
      %v5550 = vrot.slane %v5094, 1
      %v5551 = vsel %vm1380, %v5549, %v5550
      %v5552 = vrot.slane %v5095, 1
      %v5553 = vsel %vm1380, %v5550, %v5552
      %v5554 = vrot.slane %v5096, 1
      %v5555 = vrot.slane %v5097, 1
      %v5556 = vsel %vm1380, %v5554, %v5555
      %v5557 = vrot.slane %v5098, 1
      %v5558 = vsel %vm1380, %v5555, %v5557
      %s5559 = scalar_lea.vmem %s4, 40
      %v5560 = vld [vmem:[%s5559] sm:$0xf]
      %v5561 = vsel %vm364, %v5481, 0
      %v5563 = vsel %vm364, %v5483, 0
      %v5565 = vsel %vm364, %v5486, 0
      %v5567 = vsel %vm364, %v5488, 0
      %v5569 = vsel %vm364, %v5491, 0
      %v5571 = vsel %vm364, %v5493, 0
      %v5573 = vsel %vm364, %v5496, 0
      %v5575 = vsel %vm364, %v5498, 0
      %v5577 = vsel %vm364, %v5501, 0
      %v5579 = vsel %vm364, %v5503, 0
      %v5581 = vsel %vm364, %v5506, 0
      %v5583 = vsel %vm364, %v5508, 0
      %v5585 = vsel %vm364, %v5511, 0
      %v5587 = vsel %vm364, %v5513, 0
      %v5589 = vsel %vm364, %v5516, 0
      %v5591 = vsel %vm364, %v5518, 0
      %v5593 = vsel %vm364, %v5521, 0
      %v5595 = vsel %vm364, %v5523, 0
      %v5597 = vsel %vm364, %v5526, 0
      %v5599 = vsel %vm364, %v5528, 0
      %v5601 = vsel %vm364, %v5531, 0
      %v5603 = vsel %vm364, %v5533, 0
      %v5605 = vsel %vm364, %v5536, 0
      %v5607 = vsel %vm364, %v5538, 0
      %v5609 = vsel %vm364, %v5541, 0
      %v5611 = vsel %vm364, %v5543, 0
      %v5613 = vsel %vm364, %v5546, 0
      %v5615 = vsel %vm364, %v5548, 0
      %v5617 = vsel %vm364, %v5551, 0
      %v5619 = vsel %vm364, %v5553, 0
      %v5621 = vsel %vm364, %v5556, 0
      %v5623 = vsel %vm364, %v5558, 0
      %v5626 = vsel %vm1102, %v5560, 0
      %5628 = vmatprep.subr.mxu0 0.0
      %5629 = vmatpush1.msra.mxu0 0.0
      %5630 = vmatprep.subr.mxu0 0.0
      %5631 = vmatpush1.msra.mxu0 0.0
      %5632 = vmatprep.subr.mxu0 0.0
      %5633 = vmatpush1.msra.mxu0 0.0
      %5634 = vmatprep.subr.mxu0 0.0
      %5635 = vmatpush1.msra.mxu0 0.0
      %5636 = vmatprep.subr.mxu0 0.0
      %5637 = vmatpush1.msra.mxu0 0.0
      %5638 = vmatprep.subr.mxu0 0.0
      %5639 = vmatpush1.msra.mxu0 0.0
      %5640 = vmatprep.subr.mxu0 0.0
      %5641 = vmatpush1.msra.mxu0 0.0
      %5642 = vmatprep.subr.mxu0 0.0
      %5643 = vmatpush1.msra.mxu0 0.0
      %5644 = vmatprep.subr.mxu0 0.0
      %5645 = vmatpush1.msra.mxu0 0.0
      %5646 = vmatprep.subr.mxu0 0.0
      %5647 = vmatpush1.msra.mxu0 0.0
      %5648 = vmatprep.subr.mxu0 0.0
      %5649 = vmatpush1.msra.mxu0 0.0
      %5650 = vmatprep.subr.mxu0 0.0
      %5651 = vmatpush1.msra.mxu0 0.0
      %5652 = vmatprep.subr.mxu0 0.0
      %5653 = vmatpush1.msra.mxu0 0.0
      %5654 = vmatprep.subr.mxu0 0.0
      %5655 = vmatpush1.msra.mxu0 0.0
      %5656 = vmatprep.subr.mxu0 0.0
      %5657 = vmatpush1.msra.mxu0 0.0
      %5658 = vmatprep.subr.mxu0 0.0
      %5659 = vmatpush1.msra.mxu0 %v5626
      %5660 = vmatprep.subr.mxu0 0.0
      %5661 = vmatpush2.msra.mxu0 0.0
      %5662 = vmatprep.subr.mxu0 0.0
      %5663 = vmatpush2.msra.mxu0 0.0
      %5664 = vmatprep.subr.mxu0 0.0
      %5665 = vmatpush2.msra.mxu0 0.0
      %5666 = vmatprep.subr.mxu0 0.0
      %5667 = vmatpush2.msra.mxu0 0.0
      %5668 = vmatprep.subr.mxu0 0.0
      %5669 = vmatpush2.msra.mxu0 0.0
      %5670 = vmatprep.subr.mxu0 0.0
      %5671 = vmatpush2.msra.mxu0 0.0
      %5672 = vmatprep.subr.mxu0 0.0
      %5673 = vmatpush2.msra.mxu0 0.0
      %5674 = vmatprep.subr.mxu0 0.0
      %5675 = vmatpush2.msra.mxu0 0.0
      %5676 = vmatprep.subr.mxu0 0.0
      %5677 = vmatpush2.msra.mxu0 0.0
      %5678 = vmatprep.subr.mxu0 0.0
      %5679 = vmatpush2.msra.mxu0 0.0
      %5680 = vmatprep.subr.mxu0 0.0
      %5681 = vmatpush2.msra.mxu0 0.0
      %5682 = vmatprep.subr.mxu0 0.0
      %5683 = vmatpush2.msra.mxu0 0.0
      %5684 = vmatprep.subr.mxu0 0.0
      %5685 = vmatpush2.msra.mxu0 0.0
      %5686 = vmatprep.subr.mxu0 0.0
      %5687 = vmatpush2.msra.mxu0 0.0
      %5688 = vmatprep.subr.mxu0 0.0
      %5689 = vmatpush2.msra.mxu0 0.0
      %5690 = vmatprep.subr.mxu0 0.0
      %5691 = vmatpush2.msra.mxu0 0.0
      %5692 = vmatprep.mubr.f32.mxu0 0.0
      %5693 = vmatmul.mubr.f32.gmra.mxu0 %v5561
      %v5694 = vpop.f32.mrf.mxu0
      %v5695 = vadd.f32 0.0, %v5694
      %v5696 = vpop.f32.mrf.mxu0
      %5697 = vmatprep.mubr.f32.mxu0 0.0
      %5698 = vmatmul.mubr.f32.gmra.mxu0 %v5563
      %v5699 = vpop.f32.mrf.mxu0
      %v5700 = vadd.f32 0.0, %v5699
      %v5701 = vpop.f32.mrf.mxu0
      %5702 = vmatprep.mubr.f32.mxu0 0.0
      %5703 = vmatmul.mubr.f32.gmra.mxu0 %v5565
      %v5704 = vpop.f32.mrf.mxu0
      %v5705 = vadd.f32 0.0, %v5704
      %v5706 = vpop.f32.mrf.mxu0
      %5707 = vmatprep.mubr.f32.mxu0 0.0
      %5708 = vmatmul.mubr.f32.gmra.mxu0 %v5567
      %v5709 = vpop.f32.mrf.mxu0
      %v5710 = vadd.f32 0.0, %v5709
      %v5711 = vpop.f32.mrf.mxu0
      %5712 = vmatprep.mubr.f32.mxu0 0.0
      %5713 = vmatmul.mubr.f32.gmra.mxu0 %v5569
      %v5714 = vpop.f32.mrf.mxu0
      %v5715 = vadd.f32 0.0, %v5714
      %v5716 = vpop.f32.mrf.mxu0
      %5717 = vmatprep.mubr.f32.mxu0 0.0
      %5718 = vmatmul.mubr.f32.gmra.mxu0 %v5571
      %v5719 = vpop.f32.mrf.mxu0
      %v5720 = vadd.f32 0.0, %v5719
      %v5721 = vpop.f32.mrf.mxu0
      %5722 = vmatprep.mubr.f32.mxu0 0.0
      %5723 = vmatmul.mubr.f32.gmra.mxu0 %v5573
      %v5724 = vpop.f32.mrf.mxu0
      %v5725 = vadd.f32 0.0, %v5724
      %v5726 = vpop.f32.mrf.mxu0
      %5727 = vmatprep.mubr.f32.mxu0 0.0
      %5728 = vmatmul.mubr.f32.gmra.mxu0 %v5575
      %v5729 = vpop.f32.mrf.mxu0
      %v5730 = vadd.f32 0.0, %v5729
      %v5731 = vpop.f32.mrf.mxu0
      %5732 = vmatprep.mubr.f32.mxu0 0.0
      %5733 = vmatmul.mubr.f32.gmra.mxu0 %v5577
      %v5734 = vpop.f32.mrf.mxu0
      %v5735 = vadd.f32 0.0, %v5734
      %v5736 = vpop.f32.mrf.mxu0
      %5737 = vmatprep.mubr.f32.mxu0 0.0
      %5738 = vmatmul.mubr.f32.gmra.mxu0 %v5579
      %v5739 = vpop.f32.mrf.mxu0
      %v5740 = vadd.f32 0.0, %v5739
      %v5741 = vpop.f32.mrf.mxu0
      %5742 = vmatprep.mubr.f32.mxu0 0.0
      %5743 = vmatmul.mubr.f32.gmra.mxu0 %v5581
      %v5744 = vpop.f32.mrf.mxu0
      %v5745 = vadd.f32 0.0, %v5744
      %v5746 = vpop.f32.mrf.mxu0
      %5747 = vmatprep.mubr.f32.mxu0 0.0
      %5748 = vmatmul.mubr.f32.gmra.mxu0 %v5583
      %v5749 = vpop.f32.mrf.mxu0
      %v5750 = vadd.f32 0.0, %v5749
      %v5751 = vpop.f32.mrf.mxu0
      %5752 = vmatprep.mubr.f32.mxu0 0.0
      %5753 = vmatmul.mubr.f32.gmra.mxu0 %v5585
      %v5754 = vpop.f32.mrf.mxu0
      %v5755 = vadd.f32 0.0, %v5754
      %v5756 = vpop.f32.mrf.mxu0
      %5757 = vmatprep.mubr.f32.mxu0 0.0
      %5758 = vmatmul.mubr.f32.gmra.mxu0 %v5587
      %v5759 = vpop.f32.mrf.mxu0
      %v5760 = vadd.f32 0.0, %v5759
      %v5761 = vpop.f32.mrf.mxu0
      %5762 = vmatprep.mubr.f32.mxu0 0.0
      %5763 = vmatmul.mubr.f32.gmra.mxu0 %v5589
      %v5764 = vpop.f32.mrf.mxu0
      %v5765 = vadd.f32 0.0, %v5764
      %v5766 = vpop.f32.mrf.mxu0
      %5767 = vmatprep.mubr.f32.mxu0 0.0
      %5768 = vmatmul.mubr.f32.gmra.mxu0 %v5591
      %v5769 = vpop.f32.mrf.mxu0
      %v5770 = vadd.f32 0.0, %v5769
      %v5771 = vpop.f32.mrf.mxu0
      %5772 = vmatprep.mubr.f32.mxu0 0.0
      %5773 = vmatmul.mubr.f32.gmra.mxu0 %v5593
      %v5774 = vpop.f32.mrf.mxu0
      %v5775 = vadd.f32 0.0, %v5774
      %v5776 = vpop.f32.mrf.mxu0
      %5777 = vmatprep.mubr.f32.mxu0 0.0
      %5778 = vmatmul.mubr.f32.gmra.mxu0 %v5595
      %v5779 = vpop.f32.mrf.mxu0
      %v5780 = vadd.f32 0.0, %v5779
      %v5781 = vpop.f32.mrf.mxu0
      %5782 = vmatprep.mubr.f32.mxu0 0.0
      %5783 = vmatmul.mubr.f32.gmra.mxu0 %v5597
      %v5784 = vpop.f32.mrf.mxu0
      %v5785 = vadd.f32 0.0, %v5784
      %v5786 = vpop.f32.mrf.mxu0
      %5787 = vmatprep.mubr.f32.mxu0 0.0
      %5788 = vmatmul.mubr.f32.gmra.mxu0 %v5599
      %v5789 = vpop.f32.mrf.mxu0
      %v5790 = vadd.f32 0.0, %v5789
      %v5791 = vpop.f32.mrf.mxu0
      %5792 = vmatprep.mubr.f32.mxu0 0.0
      %5793 = vmatmul.mubr.f32.gmra.mxu0 %v5601
      %v5794 = vpop.f32.mrf.mxu0
      %v5795 = vadd.f32 0.0, %v5794
      %v5796 = vpop.f32.mrf.mxu0
      %5797 = vmatprep.mubr.f32.mxu0 0.0
      %5798 = vmatmul.mubr.f32.gmra.mxu0 %v5603
      %v5799 = vpop.f32.mrf.mxu0
      %v5800 = vadd.f32 0.0, %v5799
      %v5801 = vpop.f32.mrf.mxu0
      %5802 = vmatprep.mubr.f32.mxu0 0.0
      %5803 = vmatmul.mubr.f32.gmra.mxu0 %v5605
      %v5804 = vpop.f32.mrf.mxu0
      %v5805 = vadd.f32 0.0, %v5804
      %v5806 = vpop.f32.mrf.mxu0
      %5807 = vmatprep.mubr.f32.mxu0 0.0
      %5808 = vmatmul.mubr.f32.gmra.mxu0 %v5607
      %v5809 = vpop.f32.mrf.mxu0
      %v5810 = vadd.f32 0.0, %v5809
      %v5811 = vpop.f32.mrf.mxu0
      %5812 = vmatprep.mubr.f32.mxu0 0.0
      %5813 = vmatmul.mubr.f32.gmra.mxu0 %v5609
      %v5814 = vpop.f32.mrf.mxu0
      %v5815 = vadd.f32 0.0, %v5814
      %v5816 = vpop.f32.mrf.mxu0
      %5817 = vmatprep.mubr.f32.mxu0 0.0
      %5818 = vmatmul.mubr.f32.gmra.mxu0 %v5611
      %v5819 = vpop.f32.mrf.mxu0
      %v5820 = vadd.f32 0.0, %v5819
      %v5821 = vpop.f32.mrf.mxu0
      %5822 = vmatprep.mubr.f32.mxu0 0.0
      %5823 = vmatmul.mubr.f32.gmra.mxu0 %v5613
      %v5824 = vpop.f32.mrf.mxu0
      %v5825 = vadd.f32 0.0, %v5824
      %v5826 = vpop.f32.mrf.mxu0
      %5827 = vmatprep.mubr.f32.mxu0 0.0
      %5828 = vmatmul.mubr.f32.gmra.mxu0 %v5615
      %v5829 = vpop.f32.mrf.mxu0
      %v5830 = vadd.f32 0.0, %v5829
      %v5831 = vpop.f32.mrf.mxu0
      %5832 = vmatprep.mubr.f32.mxu0 0.0
      %5833 = vmatmul.mubr.f32.gmra.mxu0 %v5617
      %v5834 = vpop.f32.mrf.mxu0
      %v5835 = vadd.f32 0.0, %v5834
      %v5836 = vpop.f32.mrf.mxu0
      %5837 = vmatprep.mubr.f32.mxu0 0.0
      %5838 = vmatmul.mubr.f32.gmra.mxu0 %v5619
      %v5839 = vpop.f32.mrf.mxu0
      %v5840 = vadd.f32 0.0, %v5839
      %v5841 = vpop.f32.mrf.mxu0
      %5842 = vmatprep.mubr.f32.mxu0 0.0
      %5843 = vmatmul.mubr.f32.gmra.mxu0 %v5621
      %v5844 = vpop.f32.mrf.mxu0
      %v5845 = vadd.f32 0.0, %v5844
      %v5846 = vpop.f32.mrf.mxu0
      %5847 = vmatprep.mubr.f32.mxu0 0.0
      %5848 = vmatmul.mubr.f32.gmra.mxu0 %v5623
      %v5849 = vpop.f32.mrf.mxu0
      %v5850 = vadd.f32 0.0, %v5849
      %v5851 = vpop.f32.mrf.mxu0
      %5852 = vdwg.mxu0
      %v5853 = vld [vmem:[#allocation3] sm:$0xff]
      %v5854 = vld [vmem:[#allocation3 + $0x8] sm:$0xff]
      %v5855 = vld [vmem:[#allocation3 + $0x10] sm:$0xff]
      %v5856 = vld [vmem:[#allocation3 + $0x18] sm:$0xff]
      %v5857 = vld [vmem:[#allocation3 + $0x20] sm:$0xff]
      %v5858 = vld [vmem:[#allocation3 + $0x28] sm:$0xff]
      %v5859 = vld [vmem:[#allocation3 + $0x30] sm:$0xff]
      %v5860 = vld [vmem:[#allocation3 + $0x38] sm:$0xff]
      %v5861 = vld [vmem:[#allocation3 + $0x40] sm:$0xff]
      %v5862 = vld [vmem:[#allocation3 + $0x48] sm:$0xff]
      %v5863 = vld [vmem:[#allocation3 + $0x50] sm:$0xff]
      %v5864 = vld [vmem:[#allocation3 + $0x58] sm:$0xff]
      %v5865 = vld [vmem:[#allocation3 + $0x60] sm:$0xff]
      %v5866 = vld [vmem:[#allocation3 + $0x68] sm:$0xff]
      %v5867 = vld [vmem:[#allocation3 + $0x70] sm:$0xff]
      %v5868 = vld [vmem:[#allocation3 + $0x78] sm:$0xff]
      %v5869 = vld [vmem:[#allocation3 + $0x80] sm:$0xff]
      %v5870 = vld [vmem:[#allocation3 + $0x88] sm:$0xff]
      %v5871 = vld [vmem:[#allocation3 + $0x90] sm:$0xff]
      %v5872 = vld [vmem:[#allocation3 + $0x98] sm:$0xff]
      %v5873 = vld [vmem:[#allocation3 + $0xa0] sm:$0xff]
      %v5874 = vld [vmem:[#allocation3 + $0xa8] sm:$0xff]
      %v5875 = vld [vmem:[#allocation3 + $0xb0] sm:$0xff]
      %v5876 = vld [vmem:[#allocation3 + $0xb8] sm:$0xff]
      %v5877 = vld [vmem:[#allocation3 + $0xc0] sm:$0xff]
      %v5878 = vld [vmem:[#allocation3 + $0xc8] sm:$0xff]
      %v5879 = vld [vmem:[#allocation3 + $0xd0] sm:$0xff]
      %v5880 = vld [vmem:[#allocation3 + $0xd8] sm:$0xff]
      %v5881 = vld [vmem:[#allocation3 + $0xe0] sm:$0xff]
      %v5882 = vld [vmem:[#allocation3 + $0xe8] sm:$0xff]
      %v5883 = vld [vmem:[#allocation3 + $0xf0] sm:$0xff]
      %v5884 = vld [vmem:[#allocation3 + $0xf8] sm:$0xff]
      %v5885 = vadd.f32 %v5853, %v5695
      %v5886 = vadd.f32 %v5854, %v5700
      %v5887 = vadd.f32 %v5855, %v5705
      %v5888 = vadd.f32 %v5856, %v5710
      %v5889 = vadd.f32 %v5857, %v5715
      %v5890 = vadd.f32 %v5858, %v5720
      %v5891 = vadd.f32 %v5859, %v5725
      %v5892 = vadd.f32 %v5860, %v5730
      %v5893 = vadd.f32 %v5861, %v5735
      %v5894 = vadd.f32 %v5862, %v5740
      %v5895 = vadd.f32 %v5863, %v5745
      %v5896 = vadd.f32 %v5864, %v5750
      %v5897 = vadd.f32 %v5865, %v5755
      %v5898 = vadd.f32 %v5866, %v5760
      %v5899 = vadd.f32 %v5867, %v5765
      %v5900 = vadd.f32 %v5868, %v5770
      %v5901 = vadd.f32 %v5869, %v5775
      %v5902 = vadd.f32 %v5870, %v5780
      %v5903 = vadd.f32 %v5871, %v5785
      %v5904 = vadd.f32 %v5872, %v5790
      %v5905 = vadd.f32 %v5873, %v5795
      %v5906 = vadd.f32 %v5874, %v5800
      %v5907 = vadd.f32 %v5875, %v5805
      %v5908 = vadd.f32 %v5876, %v5810
      %v5909 = vadd.f32 %v5877, %v5815
      %v5910 = vadd.f32 %v5878, %v5820
      %v5911 = vadd.f32 %v5879, %v5825
      %v5912 = vadd.f32 %v5880, %v5830
      %v5913 = vadd.f32 %v5881, %v5835
      %v5914 = vadd.f32 %v5882, %v5840
      %v5915 = vadd.f32 %v5883, %v5845
      %v5916 = vadd.f32 %v5884, %v5850
      %5917 = vst.msk [vmem:[#allocation3] sm:$0xff] %vm1331, %v5885
      %5918 = vst.msk [vmem:[#allocation3 + $0x8] sm:$0xff] %vm1331, %v5886
      %5919 = vst.msk [vmem:[#allocation3 + $0x10] sm:$0xff] %vm1331, %v5887
      %5920 = vst.msk [vmem:[#allocation3 + $0x18] sm:$0xff] %vm1331, %v5888
      %5921 = vst.msk [vmem:[#allocation3 + $0x20] sm:$0xff] %vm1331, %v5889
      %5922 = vst.msk [vmem:[#allocation3 + $0x28] sm:$0xff] %vm1331, %v5890
      %5923 = vst.msk [vmem:[#allocation3 + $0x30] sm:$0xff] %vm1331, %v5891
      %5924 = vst.msk [vmem:[#allocation3 + $0x38] sm:$0xff] %vm1331, %v5892
      %5925 = vst.msk [vmem:[#allocation3 + $0x40] sm:$0xff] %vm1331, %v5893
      %5926 = vst.msk [vmem:[#allocation3 + $0x48] sm:$0xff] %vm1331, %v5894
      %5927 = vst.msk [vmem:[#allocation3 + $0x50] sm:$0xff] %vm1331, %v5895
      %5928 = vst.msk [vmem:[#allocation3 + $0x58] sm:$0xff] %vm1331, %v5896
      %5929 = vst.msk [vmem:[#allocation3 + $0x60] sm:$0xff] %vm1331, %v5897
      %5930 = vst.msk [vmem:[#allocation3 + $0x68] sm:$0xff] %vm1331, %v5898
      %5931 = vst.msk [vmem:[#allocation3 + $0x70] sm:$0xff] %vm1331, %v5899
      %5932 = vst.msk [vmem:[#allocation3 + $0x78] sm:$0xff] %vm1331, %v5900
      %5933 = vst.msk [vmem:[#allocation3 + $0x80] sm:$0xff] %vm1331, %v5901
      %5934 = vst.msk [vmem:[#allocation3 + $0x88] sm:$0xff] %vm1331, %v5902
      %5935 = vst.msk [vmem:[#allocation3 + $0x90] sm:$0xff] %vm1331, %v5903
      %5936 = vst.msk [vmem:[#allocation3 + $0x98] sm:$0xff] %vm1331, %v5904
      %5937 = vst.msk [vmem:[#allocation3 + $0xa0] sm:$0xff] %vm1331, %v5905
      %5938 = vst.msk [vmem:[#allocation3 + $0xa8] sm:$0xff] %vm1331, %v5906
      %5939 = vst.msk [vmem:[#allocation3 + $0xb0] sm:$0xff] %vm1331, %v5907
      %5940 = vst.msk [vmem:[#allocation3 + $0xb8] sm:$0xff] %vm1331, %v5908
      %5941 = vst.msk [vmem:[#allocation3 + $0xc0] sm:$0xff] %vm1331, %v5909
      %5942 = vst.msk [vmem:[#allocation3 + $0xc8] sm:$0xff] %vm1331, %v5910
      %5943 = vst.msk [vmem:[#allocation3 + $0xd0] sm:$0xff] %vm1331, %v5911
      %5944 = vst.msk [vmem:[#allocation3 + $0xd8] sm:$0xff] %vm1331, %v5912
      %5945 = vst.msk [vmem:[#allocation3 + $0xe0] sm:$0xff] %vm1331, %v5913
      %5946 = vst.msk [vmem:[#allocation3 + $0xe8] sm:$0xff] %vm1331, %v5914
      %5947 = vst.msk [vmem:[#allocation3 + $0xf0] sm:$0xff] %vm1331, %v5915
      %5948 = vst.msk [vmem:[#allocation3 + $0xf8] sm:$0xff] %vm1331, %v5916
      %v5949 = vrot.slane %v5051, 2
      %v5950 = vrot.slane %v5052, 2
      %v5951 = vsel %vm1851, %v5949, %v5950
      %v5952 = vrot.slane %v5053, 2
      %v5953 = vsel %vm1851, %v5950, %v5952
      %v5954 = vrot.slane %v5054, 2
      %v5955 = vrot.slane %v5055, 2
      %v5956 = vsel %vm1851, %v5954, %v5955
      %v5957 = vrot.slane %v5056, 2
      %v5958 = vsel %vm1851, %v5955, %v5957
      %v5959 = vrot.slane %v5057, 2
      %v5960 = vrot.slane %v5058, 2
      %v5961 = vsel %vm1851, %v5959, %v5960
      %v5962 = vrot.slane %v5059, 2
      %v5963 = vsel %vm1851, %v5960, %v5962
      %v5964 = vrot.slane %v5060, 2
      %v5965 = vrot.slane %v5061, 2
      %v5966 = vsel %vm1851, %v5964, %v5965
      %v5967 = vrot.slane %v5062, 2
      %v5968 = vsel %vm1851, %v5965, %v5967
      %v5969 = vrot.slane %v5063, 2
      %v5970 = vrot.slane %v5064, 2
      %v5971 = vsel %vm1851, %v5969, %v5970
      %v5972 = vrot.slane %v5065, 2
      %v5973 = vsel %vm1851, %v5970, %v5972
      %v5974 = vrot.slane %v5066, 2
      %v5975 = vrot.slane %v5067, 2
      %v5976 = vsel %vm1851, %v5974, %v5975
      %v5977 = vrot.slane %v5068, 2
      %v5978 = vsel %vm1851, %v5975, %v5977
      %v5979 = vrot.slane %v5069, 2
      %v5980 = vrot.slane %v5070, 2
      %v5981 = vsel %vm1851, %v5979, %v5980
      %v5982 = vrot.slane %v5071, 2
      %v5983 = vsel %vm1851, %v5980, %v5982
      %v5984 = vrot.slane %v5072, 2
      %v5985 = vrot.slane %v5073, 2
      %v5986 = vsel %vm1851, %v5984, %v5985
      %v5987 = vrot.slane %v5074, 2
      %v5988 = vsel %vm1851, %v5985, %v5987
      %v5989 = vrot.slane %v5075, 2
      %v5990 = vrot.slane %v5076, 2
      %v5991 = vsel %vm1851, %v5989, %v5990
      %v5992 = vrot.slane %v5077, 2
      %v5993 = vsel %vm1851, %v5990, %v5992
      %v5994 = vrot.slane %v5078, 2
      %v5995 = vrot.slane %v5079, 2
      %v5996 = vsel %vm1851, %v5994, %v5995
      %v5997 = vrot.slane %v5080, 2
      %v5998 = vsel %vm1851, %v5995, %v5997
      %v5999 = vrot.slane %v5081, 2
      %v6000 = vrot.slane %v5082, 2
      %v6001 = vsel %vm1851, %v5999, %v6000
      %v6002 = vrot.slane %v5083, 2
      %v6003 = vsel %vm1851, %v6000, %v6002
      %v6004 = vrot.slane %v5084, 2
      %v6005 = vrot.slane %v5085, 2
      %v6006 = vsel %vm1851, %v6004, %v6005
      %v6007 = vrot.slane %v5086, 2
      %v6008 = vsel %vm1851, %v6005, %v6007
      %v6009 = vrot.slane %v5087, 2
      %v6010 = vrot.slane %v5088, 2
      %v6011 = vsel %vm1851, %v6009, %v6010
      %v6012 = vrot.slane %v5089, 2
      %v6013 = vsel %vm1851, %v6010, %v6012
      %v6014 = vrot.slane %v5090, 2
      %v6015 = vrot.slane %v5091, 2
      %v6016 = vsel %vm1851, %v6014, %v6015
      %v6017 = vrot.slane %v5092, 2
      %v6018 = vsel %vm1851, %v6015, %v6017
      %v6019 = vrot.slane %v5093, 2
      %v6020 = vrot.slane %v5094, 2
      %v6021 = vsel %vm1851, %v6019, %v6020
      %v6022 = vrot.slane %v5095, 2
      %v6023 = vsel %vm1851, %v6020, %v6022
      %v6024 = vrot.slane %v5096, 2
      %v6025 = vrot.slane %v5097, 2
      %v6026 = vsel %vm1851, %v6024, %v6025
      %v6027 = vrot.slane %v5098, 2
      %v6028 = vsel %vm1851, %v6025, %v6027
      %s6029 = scalar_lea.vmem %s4, 44
      %v6030 = vld [vmem:[%s6029] sm:$0xf]
      %v6031 = vsel %vm364, %v5951, 0
      %v6033 = vsel %vm364, %v5953, 0
      %v6035 = vsel %vm364, %v5956, 0
      %v6037 = vsel %vm364, %v5958, 0
      %v6039 = vsel %vm364, %v5961, 0
      %v6041 = vsel %vm364, %v5963, 0
      %v6043 = vsel %vm364, %v5966, 0
      %v6045 = vsel %vm364, %v5968, 0
      %v6047 = vsel %vm364, %v5971, 0
      %v6049 = vsel %vm364, %v5973, 0
      %v6051 = vsel %vm364, %v5976, 0
      %v6053 = vsel %vm364, %v5978, 0
      %v6055 = vsel %vm364, %v5981, 0
      %v6057 = vsel %vm364, %v5983, 0
      %v6059 = vsel %vm364, %v5986, 0
      %v6061 = vsel %vm364, %v5988, 0
      %v6063 = vsel %vm364, %v5991, 0
      %v6065 = vsel %vm364, %v5993, 0
      %v6067 = vsel %vm364, %v5996, 0
      %v6069 = vsel %vm364, %v5998, 0
      %v6071 = vsel %vm364, %v6001, 0
      %v6073 = vsel %vm364, %v6003, 0
      %v6075 = vsel %vm364, %v6006, 0
      %v6077 = vsel %vm364, %v6008, 0
      %v6079 = vsel %vm364, %v6011, 0
      %v6081 = vsel %vm364, %v6013, 0
      %v6083 = vsel %vm364, %v6016, 0
      %v6085 = vsel %vm364, %v6018, 0
      %v6087 = vsel %vm364, %v6021, 0
      %v6089 = vsel %vm364, %v6023, 0
      %v6091 = vsel %vm364, %v6026, 0
      %v6093 = vsel %vm364, %v6028, 0
      %v6096 = vsel %vm1102, %v6030, 0
      %6098 = vmatprep.subr.mxu0 0.0
      %6099 = vmatpush1.msra.mxu0 0.0
      %6100 = vmatprep.subr.mxu0 0.0
      %6101 = vmatpush1.msra.mxu0 0.0
      %6102 = vmatprep.subr.mxu0 0.0
      %6103 = vmatpush1.msra.mxu0 0.0
      %6104 = vmatprep.subr.mxu0 0.0
      %6105 = vmatpush1.msra.mxu0 0.0
      %6106 = vmatprep.subr.mxu0 0.0
      %6107 = vmatpush1.msra.mxu0 0.0
      %6108 = vmatprep.subr.mxu0 0.0
      %6109 = vmatpush1.msra.mxu0 0.0
      %6110 = vmatprep.subr.mxu0 0.0
      %6111 = vmatpush1.msra.mxu0 0.0
      %6112 = vmatprep.subr.mxu0 0.0
      %6113 = vmatpush1.msra.mxu0 0.0
      %6114 = vmatprep.subr.mxu0 0.0
      %6115 = vmatpush1.msra.mxu0 0.0
      %6116 = vmatprep.subr.mxu0 0.0
      %6117 = vmatpush1.msra.mxu0 0.0
      %6118 = vmatprep.subr.mxu0 0.0
      %6119 = vmatpush1.msra.mxu0 0.0
      %6120 = vmatprep.subr.mxu0 0.0
      %6121 = vmatpush1.msra.mxu0 0.0
      %6122 = vmatprep.subr.mxu0 0.0
      %6123 = vmatpush1.msra.mxu0 0.0
      %6124 = vmatprep.subr.mxu0 0.0
      %6125 = vmatpush1.msra.mxu0 0.0
      %6126 = vmatprep.subr.mxu0 0.0
      %6127 = vmatpush1.msra.mxu0 0.0
      %6128 = vmatprep.subr.mxu0 0.0
      %6129 = vmatpush1.msra.mxu0 %v6096
      %6130 = vmatprep.subr.mxu0 0.0
      %6131 = vmatpush2.msra.mxu0 0.0
      %6132 = vmatprep.subr.mxu0 0.0
      %6133 = vmatpush2.msra.mxu0 0.0
      %6134 = vmatprep.subr.mxu0 0.0
      %6135 = vmatpush2.msra.mxu0 0.0
      %6136 = vmatprep.subr.mxu0 0.0
      %6137 = vmatpush2.msra.mxu0 0.0
      %6138 = vmatprep.subr.mxu0 0.0
      %6139 = vmatpush2.msra.mxu0 0.0
      %6140 = vmatprep.subr.mxu0 0.0
      %6141 = vmatpush2.msra.mxu0 0.0
      %6142 = vmatprep.subr.mxu0 0.0
      %6143 = vmatpush2.msra.mxu0 0.0
      %6144 = vmatprep.subr.mxu0 0.0
      %6145 = vmatpush2.msra.mxu0 0.0
      %6146 = vmatprep.subr.mxu0 0.0
      %6147 = vmatpush2.msra.mxu0 0.0
      %6148 = vmatprep.subr.mxu0 0.0
      %6149 = vmatpush2.msra.mxu0 0.0
      %6150 = vmatprep.subr.mxu0 0.0
      %6151 = vmatpush2.msra.mxu0 0.0
      %6152 = vmatprep.subr.mxu0 0.0
      %6153 = vmatpush2.msra.mxu0 0.0
      %6154 = vmatprep.subr.mxu0 0.0
      %6155 = vmatpush2.msra.mxu0 0.0
      %6156 = vmatprep.subr.mxu0 0.0
      %6157 = vmatpush2.msra.mxu0 0.0
      %6158 = vmatprep.subr.mxu0 0.0
      %6159 = vmatpush2.msra.mxu0 0.0
      %6160 = vmatprep.subr.mxu0 0.0
      %6161 = vmatpush2.msra.mxu0 0.0
      %6162 = vmatprep.mubr.f32.mxu0 0.0
      %6163 = vmatmul.mubr.f32.gmra.mxu0 %v6031
      %v6164 = vpop.f32.mrf.mxu0
      %v6165 = vadd.f32 0.0, %v6164
      %v6166 = vpop.f32.mrf.mxu0
      %6167 = vmatprep.mubr.f32.mxu0 0.0
      %6168 = vmatmul.mubr.f32.gmra.mxu0 %v6033
      %v6169 = vpop.f32.mrf.mxu0
      %v6170 = vadd.f32 0.0, %v6169
      %v6171 = vpop.f32.mrf.mxu0
      %6172 = vmatprep.mubr.f32.mxu0 0.0
      %6173 = vmatmul.mubr.f32.gmra.mxu0 %v6035
      %v6174 = vpop.f32.mrf.mxu0
      %v6175 = vadd.f32 0.0, %v6174
      %v6176 = vpop.f32.mrf.mxu0
      %6177 = vmatprep.mubr.f32.mxu0 0.0
      %6178 = vmatmul.mubr.f32.gmra.mxu0 %v6037
      %v6179 = vpop.f32.mrf.mxu0
      %v6180 = vadd.f32 0.0, %v6179
      %v6181 = vpop.f32.mrf.mxu0
      %6182 = vmatprep.mubr.f32.mxu0 0.0
      %6183 = vmatmul.mubr.f32.gmra.mxu0 %v6039
      %v6184 = vpop.f32.mrf.mxu0
      %v6185 = vadd.f32 0.0, %v6184
      %v6186 = vpop.f32.mrf.mxu0
      %6187 = vmatprep.mubr.f32.mxu0 0.0
      %6188 = vmatmul.mubr.f32.gmra.mxu0 %v6041
      %v6189 = vpop.f32.mrf.mxu0
      %v6190 = vadd.f32 0.0, %v6189
      %v6191 = vpop.f32.mrf.mxu0
      %6192 = vmatprep.mubr.f32.mxu0 0.0
      %6193 = vmatmul.mubr.f32.gmra.mxu0 %v6043
      %v6194 = vpop.f32.mrf.mxu0
      %v6195 = vadd.f32 0.0, %v6194
      %v6196 = vpop.f32.mrf.mxu0
      %6197 = vmatprep.mubr.f32.mxu0 0.0
      %6198 = vmatmul.mubr.f32.gmra.mxu0 %v6045
      %v6199 = vpop.f32.mrf.mxu0
      %v6200 = vadd.f32 0.0, %v6199
      %v6201 = vpop.f32.mrf.mxu0
      %6202 = vmatprep.mubr.f32.mxu0 0.0
      %6203 = vmatmul.mubr.f32.gmra.mxu0 %v6047
      %v6204 = vpop.f32.mrf.mxu0
      %v6205 = vadd.f32 0.0, %v6204
      %v6206 = vpop.f32.mrf.mxu0
      %6207 = vmatprep.mubr.f32.mxu0 0.0
      %6208 = vmatmul.mubr.f32.gmra.mxu0 %v6049
      %v6209 = vpop.f32.mrf.mxu0
      %v6210 = vadd.f32 0.0, %v6209
      %v6211 = vpop.f32.mrf.mxu0
      %6212 = vmatprep.mubr.f32.mxu0 0.0
      %6213 = vmatmul.mubr.f32.gmra.mxu0 %v6051
      %v6214 = vpop.f32.mrf.mxu0
      %v6215 = vadd.f32 0.0, %v6214
      %v6216 = vpop.f32.mrf.mxu0
      %6217 = vmatprep.mubr.f32.mxu0 0.0
      %6218 = vmatmul.mubr.f32.gmra.mxu0 %v6053
      %v6219 = vpop.f32.mrf.mxu0
      %v6220 = vadd.f32 0.0, %v6219
      %v6221 = vpop.f32.mrf.mxu0
      %6222 = vmatprep.mubr.f32.mxu0 0.0
      %6223 = vmatmul.mubr.f32.gmra.mxu0 %v6055
      %v6224 = vpop.f32.mrf.mxu0
      %v6225 = vadd.f32 0.0, %v6224
      %v6226 = vpop.f32.mrf.mxu0
      %6227 = vmatprep.mubr.f32.mxu0 0.0
      %6228 = vmatmul.mubr.f32.gmra.mxu0 %v6057
      %v6229 = vpop.f32.mrf.mxu0
      %v6230 = vadd.f32 0.0, %v6229
      %v6231 = vpop.f32.mrf.mxu0
      %6232 = vmatprep.mubr.f32.mxu0 0.0
      %6233 = vmatmul.mubr.f32.gmra.mxu0 %v6059
      %v6234 = vpop.f32.mrf.mxu0
      %v6235 = vadd.f32 0.0, %v6234
      %v6236 = vpop.f32.mrf.mxu0
      %6237 = vmatprep.mubr.f32.mxu0 0.0
      %6238 = vmatmul.mubr.f32.gmra.mxu0 %v6061
      %v6239 = vpop.f32.mrf.mxu0
      %v6240 = vadd.f32 0.0, %v6239
      %v6241 = vpop.f32.mrf.mxu0
      %6242 = vmatprep.mubr.f32.mxu0 0.0
      %6243 = vmatmul.mubr.f32.gmra.mxu0 %v6063
      %v6244 = vpop.f32.mrf.mxu0
      %v6245 = vadd.f32 0.0, %v6244
      %v6246 = vpop.f32.mrf.mxu0
      %6247 = vmatprep.mubr.f32.mxu0 0.0
      %6248 = vmatmul.mubr.f32.gmra.mxu0 %v6065
      %v6249 = vpop.f32.mrf.mxu0
      %v6250 = vadd.f32 0.0, %v6249
      %v6251 = vpop.f32.mrf.mxu0
      %6252 = vmatprep.mubr.f32.mxu0 0.0
      %6253 = vmatmul.mubr.f32.gmra.mxu0 %v6067
      %v6254 = vpop.f32.mrf.mxu0
      %v6255 = vadd.f32 0.0, %v6254
      %v6256 = vpop.f32.mrf.mxu0
      %6257 = vmatprep.mubr.f32.mxu0 0.0
      %6258 = vmatmul.mubr.f32.gmra.mxu0 %v6069
      %v6259 = vpop.f32.mrf.mxu0
      %v6260 = vadd.f32 0.0, %v6259
      %v6261 = vpop.f32.mrf.mxu0
      %6262 = vmatprep.mubr.f32.mxu0 0.0
      %6263 = vmatmul.mubr.f32.gmra.mxu0 %v6071
      %v6264 = vpop.f32.mrf.mxu0
      %v6265 = vadd.f32 0.0, %v6264
      %v6266 = vpop.f32.mrf.mxu0
      %6267 = vmatprep.mubr.f32.mxu0 0.0
      %6268 = vmatmul.mubr.f32.gmra.mxu0 %v6073
      %v6269 = vpop.f32.mrf.mxu0
      %v6270 = vadd.f32 0.0, %v6269
      %v6271 = vpop.f32.mrf.mxu0
      %6272 = vmatprep.mubr.f32.mxu0 0.0
      %6273 = vmatmul.mubr.f32.gmra.mxu0 %v6075
      %v6274 = vpop.f32.mrf.mxu0
      %v6275 = vadd.f32 0.0, %v6274
      %v6276 = vpop.f32.mrf.mxu0
      %6277 = vmatprep.mubr.f32.mxu0 0.0
      %6278 = vmatmul.mubr.f32.gmra.mxu0 %v6077
      %v6279 = vpop.f32.mrf.mxu0
      %v6280 = vadd.f32 0.0, %v6279
      %v6281 = vpop.f32.mrf.mxu0
      %6282 = vmatprep.mubr.f32.mxu0 0.0
      %6283 = vmatmul.mubr.f32.gmra.mxu0 %v6079
      %v6284 = vpop.f32.mrf.mxu0
      %v6285 = vadd.f32 0.0, %v6284
      %v6286 = vpop.f32.mrf.mxu0
      %6287 = vmatprep.mubr.f32.mxu0 0.0
      %6288 = vmatmul.mubr.f32.gmra.mxu0 %v6081
      %v6289 = vpop.f32.mrf.mxu0
      %v6290 = vadd.f32 0.0, %v6289
      %v6291 = vpop.f32.mrf.mxu0
      %6292 = vmatprep.mubr.f32.mxu0 0.0
      %6293 = vmatmul.mubr.f32.gmra.mxu0 %v6083
      %v6294 = vpop.f32.mrf.mxu0
      %v6295 = vadd.f32 0.0, %v6294
      %v6296 = vpop.f32.mrf.mxu0
      %6297 = vmatprep.mubr.f32.mxu0 0.0
      %6298 = vmatmul.mubr.f32.gmra.mxu0 %v6085
      %v6299 = vpop.f32.mrf.mxu0
      %v6300 = vadd.f32 0.0, %v6299
      %v6301 = vpop.f32.mrf.mxu0
      %6302 = vmatprep.mubr.f32.mxu0 0.0
      %6303 = vmatmul.mubr.f32.gmra.mxu0 %v6087
      %v6304 = vpop.f32.mrf.mxu0
      %v6305 = vadd.f32 0.0, %v6304
      %v6306 = vpop.f32.mrf.mxu0
      %6307 = vmatprep.mubr.f32.mxu0 0.0
      %6308 = vmatmul.mubr.f32.gmra.mxu0 %v6089
      %v6309 = vpop.f32.mrf.mxu0
      %v6310 = vadd.f32 0.0, %v6309
      %v6311 = vpop.f32.mrf.mxu0
      %6312 = vmatprep.mubr.f32.mxu0 0.0
      %6313 = vmatmul.mubr.f32.gmra.mxu0 %v6091
      %v6314 = vpop.f32.mrf.mxu0
      %v6315 = vadd.f32 0.0, %v6314
      %v6316 = vpop.f32.mrf.mxu0
      %6317 = vmatprep.mubr.f32.mxu0 0.0
      %6318 = vmatmul.mubr.f32.gmra.mxu0 %v6093
      %v6319 = vpop.f32.mrf.mxu0
      %v6320 = vadd.f32 0.0, %v6319
      %v6321 = vpop.f32.mrf.mxu0
      %6322 = vdwg.mxu0
      %v6323 = vld [vmem:[#allocation3] sm:$0xff]
      %v6324 = vld [vmem:[#allocation3 + $0x8] sm:$0xff]
      %v6325 = vld [vmem:[#allocation3 + $0x10] sm:$0xff]
      %v6326 = vld [vmem:[#allocation3 + $0x18] sm:$0xff]
      %v6327 = vld [vmem:[#allocation3 + $0x20] sm:$0xff]
      %v6328 = vld [vmem:[#allocation3 + $0x28] sm:$0xff]
      %v6329 = vld [vmem:[#allocation3 + $0x30] sm:$0xff]
      %v6330 = vld [vmem:[#allocation3 + $0x38] sm:$0xff]
      %v6331 = vld [vmem:[#allocation3 + $0x40] sm:$0xff]
      %v6332 = vld [vmem:[#allocation3 + $0x48] sm:$0xff]
      %v6333 = vld [vmem:[#allocation3 + $0x50] sm:$0xff]
      %v6334 = vld [vmem:[#allocation3 + $0x58] sm:$0xff]
      %v6335 = vld [vmem:[#allocation3 + $0x60] sm:$0xff]
      %v6336 = vld [vmem:[#allocation3 + $0x68] sm:$0xff]
      %v6337 = vld [vmem:[#allocation3 + $0x70] sm:$0xff]
      %v6338 = vld [vmem:[#allocation3 + $0x78] sm:$0xff]
      %v6339 = vld [vmem:[#allocation3 + $0x80] sm:$0xff]
      %v6340 = vld [vmem:[#allocation3 + $0x88] sm:$0xff]
      %v6341 = vld [vmem:[#allocation3 + $0x90] sm:$0xff]
      %v6342 = vld [vmem:[#allocation3 + $0x98] sm:$0xff]
      %v6343 = vld [vmem:[#allocation3 + $0xa0] sm:$0xff]
      %v6344 = vld [vmem:[#allocation3 + $0xa8] sm:$0xff]
      %v6345 = vld [vmem:[#allocation3 + $0xb0] sm:$0xff]
      %v6346 = vld [vmem:[#allocation3 + $0xb8] sm:$0xff]
      %v6347 = vld [vmem:[#allocation3 + $0xc0] sm:$0xff]
      %v6348 = vld [vmem:[#allocation3 + $0xc8] sm:$0xff]
      %v6349 = vld [vmem:[#allocation3 + $0xd0] sm:$0xff]
      %v6350 = vld [vmem:[#allocation3 + $0xd8] sm:$0xff]
      %v6351 = vld [vmem:[#allocation3 + $0xe0] sm:$0xff]
      %v6352 = vld [vmem:[#allocation3 + $0xe8] sm:$0xff]
      %v6353 = vld [vmem:[#allocation3 + $0xf0] sm:$0xff]
      %v6354 = vld [vmem:[#allocation3 + $0xf8] sm:$0xff]
      %v6355 = vadd.f32 %v6323, %v6165
      %v6356 = vadd.f32 %v6324, %v6170
      %v6357 = vadd.f32 %v6325, %v6175
      %v6358 = vadd.f32 %v6326, %v6180
      %v6359 = vadd.f32 %v6327, %v6185
      %v6360 = vadd.f32 %v6328, %v6190
      %v6361 = vadd.f32 %v6329, %v6195
      %v6362 = vadd.f32 %v6330, %v6200
      %v6363 = vadd.f32 %v6331, %v6205
      %v6364 = vadd.f32 %v6332, %v6210
      %v6365 = vadd.f32 %v6333, %v6215
      %v6366 = vadd.f32 %v6334, %v6220
      %v6367 = vadd.f32 %v6335, %v6225
      %v6368 = vadd.f32 %v6336, %v6230
      %v6369 = vadd.f32 %v6337, %v6235
      %v6370 = vadd.f32 %v6338, %v6240
      %v6371 = vadd.f32 %v6339, %v6245
      %v6372 = vadd.f32 %v6340, %v6250
      %v6373 = vadd.f32 %v6341, %v6255
      %v6374 = vadd.f32 %v6342, %v6260
      %v6375 = vadd.f32 %v6343, %v6265
      %v6376 = vadd.f32 %v6344, %v6270
      %v6377 = vadd.f32 %v6345, %v6275
      %v6378 = vadd.f32 %v6346, %v6280
      %v6379 = vadd.f32 %v6347, %v6285
      %v6380 = vadd.f32 %v6348, %v6290
      %v6381 = vadd.f32 %v6349, %v6295
      %v6382 = vadd.f32 %v6350, %v6300
      %v6383 = vadd.f32 %v6351, %v6305
      %v6384 = vadd.f32 %v6352, %v6310
      %v6385 = vadd.f32 %v6353, %v6315
      %v6386 = vadd.f32 %v6354, %v6320
      %6387 = vst.msk [vmem:[#allocation3] sm:$0xff] %vm1331, %v6355
      %6388 = vst.msk [vmem:[#allocation3 + $0x8] sm:$0xff] %vm1331, %v6356
      %6389 = vst.msk [vmem:[#allocation3 + $0x10] sm:$0xff] %vm1331, %v6357
      %6390 = vst.msk [vmem:[#allocation3 + $0x18] sm:$0xff] %vm1331, %v6358
      %6391 = vst.msk [vmem:[#allocation3 + $0x20] sm:$0xff] %vm1331, %v6359
      %6392 = vst.msk [vmem:[#allocation3 + $0x28] sm:$0xff] %vm1331, %v6360
      %6393 = vst.msk [vmem:[#allocation3 + $0x30] sm:$0xff] %vm1331, %v6361
      %6394 = vst.msk [vmem:[#allocation3 + $0x38] sm:$0xff] %vm1331, %v6362
      %6395 = vst.msk [vmem:[#allocation3 + $0x40] sm:$0xff] %vm1331, %v6363
      %6396 = vst.msk [vmem:[#allocation3 + $0x48] sm:$0xff] %vm1331, %v6364
      %6397 = vst.msk [vmem:[#allocation3 + $0x50] sm:$0xff] %vm1331, %v6365
      %6398 = vst.msk [vmem:[#allocation3 + $0x58] sm:$0xff] %vm1331, %v6366
      %6399 = vst.msk [vmem:[#allocation3 + $0x60] sm:$0xff] %vm1331, %v6367
      %6400 = vst.msk [vmem:[#allocation3 + $0x68] sm:$0xff] %vm1331, %v6368
      %6401 = vst.msk [vmem:[#allocation3 + $0x70] sm:$0xff] %vm1331, %v6369
      %6402 = vst.msk [vmem:[#allocation3 + $0x78] sm:$0xff] %vm1331, %v6370
      %6403 = vst.msk [vmem:[#allocation3 + $0x80] sm:$0xff] %vm1331, %v6371
      %6404 = vst.msk [vmem:[#allocation3 + $0x88] sm:$0xff] %vm1331, %v6372
      %6405 = vst.msk [vmem:[#allocation3 + $0x90] sm:$0xff] %vm1331, %v6373
      %6406 = vst.msk [vmem:[#allocation3 + $0x98] sm:$0xff] %vm1331, %v6374
      %6407 = vst.msk [vmem:[#allocation3 + $0xa0] sm:$0xff] %vm1331, %v6375
      %6408 = vst.msk [vmem:[#allocation3 + $0xa8] sm:$0xff] %vm1331, %v6376
      %6409 = vst.msk [vmem:[#allocation3 + $0xb0] sm:$0xff] %vm1331, %v6377
      %6410 = vst.msk [vmem:[#allocation3 + $0xb8] sm:$0xff] %vm1331, %v6378
      %6411 = vst.msk [vmem:[#allocation3 + $0xc0] sm:$0xff] %vm1331, %v6379
      %6412 = vst.msk [vmem:[#allocation3 + $0xc8] sm:$0xff] %vm1331, %v6380
      %6413 = vst.msk [vmem:[#allocation3 + $0xd0] sm:$0xff] %vm1331, %v6381
      %6414 = vst.msk [vmem:[#allocation3 + $0xd8] sm:$0xff] %vm1331, %v6382
      %6415 = vst.msk [vmem:[#allocation3 + $0xe0] sm:$0xff] %vm1331, %v6383
      %6416 = vst.msk [vmem:[#allocation3 + $0xe8] sm:$0xff] %vm1331, %v6384
      %6417 = vst.msk [vmem:[#allocation3 + $0xf0] sm:$0xff] %vm1331, %v6385
      %6418 = vst.msk [vmem:[#allocation3 + $0xf8] sm:$0xff] %vm1331, %v6386
      %s6419 = scalar_lea.vmem %s4, 48
      %v6420 = vld [vmem:[%s6419] sm:$0xf]
      %v6422 = vsel %vm364, %v5099, 0
      %v6425 = vsel %vm364, %v5100, 0
      %v6428 = vsel %vm1102, %v6420, 0
      %6430 = vmatprep.subr.mxu0 0.0
      %6431 = vmatpush1.msra.mxu0 0.0
      %6432 = vmatprep.subr.mxu0 0.0
      %6433 = vmatpush1.msra.mxu0 0.0
      %6434 = vmatprep.subr.mxu0 0.0
      %6435 = vmatpush1.msra.mxu0 0.0
      %6436 = vmatprep.subr.mxu0 0.0
      %6437 = vmatpush1.msra.mxu0 0.0
      %6438 = vmatprep.subr.mxu0 0.0
      %6439 = vmatpush1.msra.mxu0 0.0
      %6440 = vmatprep.subr.mxu0 0.0
      %6441 = vmatpush1.msra.mxu0 0.0
      %6442 = vmatprep.subr.mxu0 0.0
      %6443 = vmatpush1.msra.mxu0 0.0
      %6444 = vmatprep.subr.mxu0 0.0
      %6445 = vmatpush1.msra.mxu0 0.0
      %6446 = vmatprep.subr.mxu0 0.0
      %6447 = vmatpush1.msra.mxu0 0.0
      %6448 = vmatprep.subr.mxu0 0.0
      %6449 = vmatpush1.msra.mxu0 0.0
      %6450 = vmatprep.subr.mxu0 0.0
      %6451 = vmatpush1.msra.mxu0 0.0
      %6452 = vmatprep.subr.mxu0 0.0
      %6453 = vmatpush1.msra.mxu0 0.0
      %6454 = vmatprep.subr.mxu0 0.0
      %6455 = vmatpush1.msra.mxu0 0.0
      %6456 = vmatprep.subr.mxu0 0.0
      %6457 = vmatpush1.msra.mxu0 0.0
      %6458 = vmatprep.subr.mxu0 0.0
      %6459 = vmatpush1.msra.mxu0 0.0
      %6460 = vmatprep.subr.mxu0 0.0
      %6461 = vmatpush1.msra.mxu0 %v6428
      %6462 = vmatprep.subr.mxu0 0.0
      %6463 = vmatpush2.msra.mxu0 0.0
      %6464 = vmatprep.subr.mxu0 0.0
      %6465 = vmatpush2.msra.mxu0 0.0
      %6466 = vmatprep.subr.mxu0 0.0
      %6467 = vmatpush2.msra.mxu0 0.0
      %6468 = vmatprep.subr.mxu0 0.0
      %6469 = vmatpush2.msra.mxu0 0.0
      %6470 = vmatprep.subr.mxu0 0.0
      %6471 = vmatpush2.msra.mxu0 0.0
      %6472 = vmatprep.subr.mxu0 0.0
      %6473 = vmatpush2.msra.mxu0 0.0
      %6474 = vmatprep.subr.mxu0 0.0
      %6475 = vmatpush2.msra.mxu0 0.0
      %6476 = vmatprep.subr.mxu0 0.0
      %6477 = vmatpush2.msra.mxu0 0.0
      %6478 = vmatprep.subr.mxu0 0.0
      %6479 = vmatpush2.msra.mxu0 0.0
      %6480 = vmatprep.subr.mxu0 0.0
      %6481 = vmatpush2.msra.mxu0 0.0
      %6482 = vmatprep.subr.mxu0 0.0
      %6483 = vmatpush2.msra.mxu0 0.0
      %6484 = vmatprep.subr.mxu0 0.0
      %6485 = vmatpush2.msra.mxu0 0.0
      %6486 = vmatprep.subr.mxu0 0.0
      %6487 = vmatpush2.msra.mxu0 0.0
      %6488 = vmatprep.subr.mxu0 0.0
      %6489 = vmatpush2.msra.mxu0 0.0
      %6490 = vmatprep.subr.mxu0 0.0
      %6491 = vmatpush2.msra.mxu0 0.0
      %6492 = vmatprep.subr.mxu0 0.0
      %6493 = vmatpush2.msra.mxu0 0.0
      %6494 = vmatprep.mubr.f32.mxu0 0.0
      %6495 = vmatmul.mubr.f32.gmra.mxu0 %v5114
      %v6496 = vpop.f32.mrf.mxu0
      %v6497 = vadd.f32 0.0, %v6496
      %v6498 = vpop.f32.mrf.mxu0
      %6499 = vmatprep.mubr.f32.mxu0 0.0
      %6500 = vmatmul.mubr.f32.gmra.mxu0 %v5117
      %v6501 = vpop.f32.mrf.mxu0
      %v6502 = vadd.f32 0.0, %v6501
      %v6503 = vpop.f32.mrf.mxu0
      %6504 = vmatprep.mubr.f32.mxu0 0.0
      %6505 = vmatmul.mubr.f32.gmra.mxu0 %v5120
      %v6506 = vpop.f32.mrf.mxu0
      %v6507 = vadd.f32 0.0, %v6506
      %v6508 = vpop.f32.mrf.mxu0
      %6509 = vmatprep.mubr.f32.mxu0 0.0
      %6510 = vmatmul.mubr.f32.gmra.mxu0 %v5123
      %v6511 = vpop.f32.mrf.mxu0
      %v6512 = vadd.f32 0.0, %v6511
      %v6513 = vpop.f32.mrf.mxu0
      %6514 = vmatprep.mubr.f32.mxu0 0.0
      %6515 = vmatmul.mubr.f32.gmra.mxu0 %v5126
      %v6516 = vpop.f32.mrf.mxu0
      %v6517 = vadd.f32 0.0, %v6516
      %v6518 = vpop.f32.mrf.mxu0
      %6519 = vmatprep.mubr.f32.mxu0 0.0
      %6520 = vmatmul.mubr.f32.gmra.mxu0 %v5129
      %v6521 = vpop.f32.mrf.mxu0
      %v6522 = vadd.f32 0.0, %v6521
      %v6523 = vpop.f32.mrf.mxu0
      %6524 = vmatprep.mubr.f32.mxu0 0.0
      %6525 = vmatmul.mubr.f32.gmra.mxu0 %v5132
      %v6526 = vpop.f32.mrf.mxu0
      %v6527 = vadd.f32 0.0, %v6526
      %v6528 = vpop.f32.mrf.mxu0
      %6529 = vmatprep.mubr.f32.mxu0 0.0
      %6530 = vmatmul.mubr.f32.gmra.mxu0 %v5135
      %v6531 = vpop.f32.mrf.mxu0
      %v6532 = vadd.f32 0.0, %v6531
      %v6533 = vpop.f32.mrf.mxu0
      %6534 = vmatprep.mubr.f32.mxu0 0.0
      %6535 = vmatmul.mubr.f32.gmra.mxu0 %v5138
      %v6536 = vpop.f32.mrf.mxu0
      %v6537 = vadd.f32 0.0, %v6536
      %v6538 = vpop.f32.mrf.mxu0
      %6539 = vmatprep.mubr.f32.mxu0 0.0
      %6540 = vmatmul.mubr.f32.gmra.mxu0 %v5141
      %v6541 = vpop.f32.mrf.mxu0
      %v6542 = vadd.f32 0.0, %v6541
      %v6543 = vpop.f32.mrf.mxu0
      %6544 = vmatprep.mubr.f32.mxu0 0.0
      %6545 = vmatmul.mubr.f32.gmra.mxu0 %v5144
      %v6546 = vpop.f32.mrf.mxu0
      %v6547 = vadd.f32 0.0, %v6546
      %v6548 = vpop.f32.mrf.mxu0
      %6549 = vmatprep.mubr.f32.mxu0 0.0
      %6550 = vmatmul.mubr.f32.gmra.mxu0 %v5147
      %v6551 = vpop.f32.mrf.mxu0
      %v6552 = vadd.f32 0.0, %v6551
      %v6553 = vpop.f32.mrf.mxu0
      %6554 = vmatprep.mubr.f32.mxu0 0.0
      %6555 = vmatmul.mubr.f32.gmra.mxu0 %v5150
      %v6556 = vpop.f32.mrf.mxu0
      %v6557 = vadd.f32 0.0, %v6556
      %v6558 = vpop.f32.mrf.mxu0
      %6559 = vmatprep.mubr.f32.mxu0 0.0
      %6560 = vmatmul.mubr.f32.gmra.mxu0 %v5153
      %v6561 = vpop.f32.mrf.mxu0
      %v6562 = vadd.f32 0.0, %v6561
      %v6563 = vpop.f32.mrf.mxu0
      %6564 = vmatprep.mubr.f32.mxu0 0.0
      %6565 = vmatmul.mubr.f32.gmra.mxu0 %v5156
      %v6566 = vpop.f32.mrf.mxu0
      %v6567 = vadd.f32 0.0, %v6566
      %v6568 = vpop.f32.mrf.mxu0
      %6569 = vmatprep.mubr.f32.mxu0 0.0
      %6570 = vmatmul.mubr.f32.gmra.mxu0 %v5159
      %v6571 = vpop.f32.mrf.mxu0
      %v6572 = vadd.f32 0.0, %v6571
      %v6573 = vpop.f32.mrf.mxu0
      %6574 = vmatprep.mubr.f32.mxu0 0.0
      %6575 = vmatmul.mubr.f32.gmra.mxu0 %v5162
      %v6576 = vpop.f32.mrf.mxu0
      %v6577 = vadd.f32 0.0, %v6576
      %v6578 = vpop.f32.mrf.mxu0
      %6579 = vmatprep.mubr.f32.mxu0 0.0
      %6580 = vmatmul.mubr.f32.gmra.mxu0 %v5165
      %v6581 = vpop.f32.mrf.mxu0
      %v6582 = vadd.f32 0.0, %v6581
      %v6583 = vpop.f32.mrf.mxu0
      %6584 = vmatprep.mubr.f32.mxu0 0.0
      %6585 = vmatmul.mubr.f32.gmra.mxu0 %v5168
      %v6586 = vpop.f32.mrf.mxu0
      %v6587 = vadd.f32 0.0, %v6586
      %v6588 = vpop.f32.mrf.mxu0
      %6589 = vmatprep.mubr.f32.mxu0 0.0
      %6590 = vmatmul.mubr.f32.gmra.mxu0 %v5171
      %v6591 = vpop.f32.mrf.mxu0
      %v6592 = vadd.f32 0.0, %v6591
      %v6593 = vpop.f32.mrf.mxu0
      %6594 = vmatprep.mubr.f32.mxu0 0.0
      %6595 = vmatmul.mubr.f32.gmra.mxu0 %v5174
      %v6596 = vpop.f32.mrf.mxu0
      %v6597 = vadd.f32 0.0, %v6596
      %v6598 = vpop.f32.mrf.mxu0
      %6599 = vmatprep.mubr.f32.mxu0 0.0
      %6600 = vmatmul.mubr.f32.gmra.mxu0 %v5177
      %v6601 = vpop.f32.mrf.mxu0
      %v6602 = vadd.f32 0.0, %v6601
      %v6603 = vpop.f32.mrf.mxu0
      %6604 = vmatprep.mubr.f32.mxu0 0.0
      %6605 = vmatmul.mubr.f32.gmra.mxu0 %v5180
      %v6606 = vpop.f32.mrf.mxu0
      %v6607 = vadd.f32 0.0, %v6606
      %v6608 = vpop.f32.mrf.mxu0
      %6609 = vmatprep.mubr.f32.mxu0 0.0
      %6610 = vmatmul.mubr.f32.gmra.mxu0 %v5183
      %v6611 = vpop.f32.mrf.mxu0
      %v6612 = vadd.f32 0.0, %v6611
      %v6613 = vpop.f32.mrf.mxu0
      %6614 = vmatprep.mubr.f32.mxu0 0.0
      %6615 = vmatmul.mubr.f32.gmra.mxu0 %v5186
      %v6616 = vpop.f32.mrf.mxu0
      %v6617 = vadd.f32 0.0, %v6616
      %v6618 = vpop.f32.mrf.mxu0
      %6619 = vmatprep.mubr.f32.mxu0 0.0
      %6620 = vmatmul.mubr.f32.gmra.mxu0 %v5189
      %v6621 = vpop.f32.mrf.mxu0
      %v6622 = vadd.f32 0.0, %v6621
      %v6623 = vpop.f32.mrf.mxu0
      %6624 = vmatprep.mubr.f32.mxu0 0.0
      %6625 = vmatmul.mubr.f32.gmra.mxu0 %v5192
      %v6626 = vpop.f32.mrf.mxu0
      %v6627 = vadd.f32 0.0, %v6626
      %v6628 = vpop.f32.mrf.mxu0
      %6629 = vmatprep.mubr.f32.mxu0 0.0
      %6630 = vmatmul.mubr.f32.gmra.mxu0 %v5195
      %v6631 = vpop.f32.mrf.mxu0
      %v6632 = vadd.f32 0.0, %v6631
      %v6633 = vpop.f32.mrf.mxu0
      %6634 = vmatprep.mubr.f32.mxu0 0.0
      %6635 = vmatmul.mubr.f32.gmra.mxu0 %v5198
      %v6636 = vpop.f32.mrf.mxu0
      %v6637 = vadd.f32 0.0, %v6636
      %v6638 = vpop.f32.mrf.mxu0
      %6639 = vmatprep.mubr.f32.mxu0 0.0
      %6640 = vmatmul.mubr.f32.gmra.mxu0 %v5201
      %v6641 = vpop.f32.mrf.mxu0
      %v6642 = vadd.f32 0.0, %v6641
      %v6643 = vpop.f32.mrf.mxu0
      %6644 = vmatprep.mubr.f32.mxu0 0.0
      %6645 = vmatmul.mubr.f32.gmra.mxu0 %v6422
      %v6646 = vpop.f32.mrf.mxu0
      %v6647 = vadd.f32 0.0, %v6646
      %v6648 = vpop.f32.mrf.mxu0
      %6649 = vmatprep.mubr.f32.mxu0 0.0
      %6650 = vmatmul.mubr.f32.gmra.mxu0 %v6425
      %v6651 = vpop.f32.mrf.mxu0
      %v6652 = vadd.f32 0.0, %v6651
      %v6653 = vpop.f32.mrf.mxu0
      %6654 = vdwg.mxu0
      %v6655 = vld [vmem:[#allocation3] sm:$0xff]
      %v6656 = vld [vmem:[#allocation3 + $0x8] sm:$0xff]
      %v6657 = vld [vmem:[#allocation3 + $0x10] sm:$0xff]
      %v6658 = vld [vmem:[#allocation3 + $0x18] sm:$0xff]
      %v6659 = vld [vmem:[#allocation3 + $0x20] sm:$0xff]
      %v6660 = vld [vmem:[#allocation3 + $0x28] sm:$0xff]
      %v6661 = vld [vmem:[#allocation3 + $0x30] sm:$0xff]
      %v6662 = vld [vmem:[#allocation3 + $0x38] sm:$0xff]
      %v6663 = vld [vmem:[#allocation3 + $0x40] sm:$0xff]
      %v6664 = vld [vmem:[#allocation3 + $0x48] sm:$0xff]
      %v6665 = vld [vmem:[#allocation3 + $0x50] sm:$0xff]
      %v6666 = vld [vmem:[#allocation3 + $0x58] sm:$0xff]
      %v6667 = vld [vmem:[#allocation3 + $0x60] sm:$0xff]
      %v6668 = vld [vmem:[#allocation3 + $0x68] sm:$0xff]
      %v6669 = vld [vmem:[#allocation3 + $0x70] sm:$0xff]
      %v6670 = vld [vmem:[#allocation3 + $0x78] sm:$0xff]
      %v6671 = vld [vmem:[#allocation3 + $0x80] sm:$0xff]
      %v6672 = vld [vmem:[#allocation3 + $0x88] sm:$0xff]
      %v6673 = vld [vmem:[#allocation3 + $0x90] sm:$0xff]
      %v6674 = vld [vmem:[#allocation3 + $0x98] sm:$0xff]
      %v6675 = vld [vmem:[#allocation3 + $0xa0] sm:$0xff]
      %v6676 = vld [vmem:[#allocation3 + $0xa8] sm:$0xff]
      %v6677 = vld [vmem:[#allocation3 + $0xb0] sm:$0xff]
      %v6678 = vld [vmem:[#allocation3 + $0xb8] sm:$0xff]
      %v6679 = vld [vmem:[#allocation3 + $0xc0] sm:$0xff]
      %v6680 = vld [vmem:[#allocation3 + $0xc8] sm:$0xff]
      %v6681 = vld [vmem:[#allocation3 + $0xd0] sm:$0xff]
      %v6682 = vld [vmem:[#allocation3 + $0xd8] sm:$0xff]
      %v6683 = vld [vmem:[#allocation3 + $0xe0] sm:$0xff]
      %v6684 = vld [vmem:[#allocation3 + $0xe8] sm:$0xff]
      %v6685 = vld [vmem:[#allocation3 + $0xf0] sm:$0xff]
      %v6686 = vld [vmem:[#allocation3 + $0xf8] sm:$0xff]
      %v6687 = vadd.f32 %v6655, %v6497
      %v6688 = vadd.f32 %v6656, %v6502
      %v6689 = vadd.f32 %v6657, %v6507
      %v6690 = vadd.f32 %v6658, %v6512
      %v6691 = vadd.f32 %v6659, %v6517
      %v6692 = vadd.f32 %v6660, %v6522
      %v6693 = vadd.f32 %v6661, %v6527
      %v6694 = vadd.f32 %v6662, %v6532
      %v6695 = vadd.f32 %v6663, %v6537
      %v6696 = vadd.f32 %v6664, %v6542
      %v6697 = vadd.f32 %v6665, %v6547
      %v6698 = vadd.f32 %v6666, %v6552
      %v6699 = vadd.f32 %v6667, %v6557
      %v6700 = vadd.f32 %v6668, %v6562
      %v6701 = vadd.f32 %v6669, %v6567
      %v6702 = vadd.f32 %v6670, %v6572
      %v6703 = vadd.f32 %v6671, %v6577
      %v6704 = vadd.f32 %v6672, %v6582
      %v6705 = vadd.f32 %v6673, %v6587
      %v6706 = vadd.f32 %v6674, %v6592
      %v6707 = vadd.f32 %v6675, %v6597
      %v6708 = vadd.f32 %v6676, %v6602
      %v6709 = vadd.f32 %v6677, %v6607
      %v6710 = vadd.f32 %v6678, %v6612
      %v6711 = vadd.f32 %v6679, %v6617
      %v6712 = vadd.f32 %v6680, %v6622
      %v6713 = vadd.f32 %v6681, %v6627
      %v6714 = vadd.f32 %v6682, %v6632
      %v6715 = vadd.f32 %v6683, %v6637
      %v6716 = vadd.f32 %v6684, %v6642
      %v6717 = vadd.f32 %v6685, %v6647
      %v6718 = vadd.f32 %v6686, %v6652
      %6719 = vst.msk [vmem:[#allocation3] sm:$0xff] %vm1331, %v6687
      %6720 = vst.msk [vmem:[#allocation3 + $0x8] sm:$0xff] %vm1331, %v6688
      %6721 = vst.msk [vmem:[#allocation3 + $0x10] sm:$0xff] %vm1331, %v6689
      %6722 = vst.msk [vmem:[#allocation3 + $0x18] sm:$0xff] %vm1331, %v6690
      %6723 = vst.msk [vmem:[#allocation3 + $0x20] sm:$0xff] %vm1331, %v6691
      %6724 = vst.msk [vmem:[#allocation3 + $0x28] sm:$0xff] %vm1331, %v6692
      %6725 = vst.msk [vmem:[#allocation3 + $0x30] sm:$0xff] %vm1331, %v6693
      %6726 = vst.msk [vmem:[#allocation3 + $0x38] sm:$0xff] %vm1331, %v6694
      %6727 = vst.msk [vmem:[#allocation3 + $0x40] sm:$0xff] %vm1331, %v6695
      %6728 = vst.msk [vmem:[#allocation3 + $0x48] sm:$0xff] %vm1331, %v6696
      %6729 = vst.msk [vmem:[#allocation3 + $0x50] sm:$0xff] %vm1331, %v6697
      %6730 = vst.msk [vmem:[#allocation3 + $0x58] sm:$0xff] %vm1331, %v6698
      %6731 = vst.msk [vmem:[#allocation3 + $0x60] sm:$0xff] %vm1331, %v6699
      %6732 = vst.msk [vmem:[#allocation3 + $0x68] sm:$0xff] %vm1331, %v6700
      %6733 = vst.msk [vmem:[#allocation3 + $0x70] sm:$0xff] %vm1331, %v6701
      %6734 = vst.msk [vmem:[#allocation3 + $0x78] sm:$0xff] %vm1331, %v6702
      %6735 = vst.msk [vmem:[#allocation3 + $0x80] sm:$0xff] %vm1331, %v6703
      %6736 = vst.msk [vmem:[#allocation3 + $0x88] sm:$0xff] %vm1331, %v6704
      %6737 = vst.msk [vmem:[#allocation3 + $0x90] sm:$0xff] %vm1331, %v6705
      %6738 = vst.msk [vmem:[#allocation3 + $0x98] sm:$0xff] %vm1331, %v6706
      %6739 = vst.msk [vmem:[#allocation3 + $0xa0] sm:$0xff] %vm1331, %v6707
      %6740 = vst.msk [vmem:[#allocation3 + $0xa8] sm:$0xff] %vm1331, %v6708
      %6741 = vst.msk [vmem:[#allocation3 + $0xb0] sm:$0xff] %vm1331, %v6709
      %6742 = vst.msk [vmem:[#allocation3 + $0xb8] sm:$0xff] %vm1331, %v6710
      %6743 = vst.msk [vmem:[#allocation3 + $0xc0] sm:$0xff] %vm1331, %v6711
      %6744 = vst.msk [vmem:[#allocation3 + $0xc8] sm:$0xff] %vm1331, %v6712
      %6745 = vst.msk [vmem:[#allocation3 + $0xd0] sm:$0xff] %vm1331, %v6713
      %6746 = vst.msk [vmem:[#allocation3 + $0xd8] sm:$0xff] %vm1331, %v6714
      %6747 = vst.msk [vmem:[#allocation3 + $0xe0] sm:$0xff] %vm1331, %v6715
      %6748 = vst.msk [vmem:[#allocation3 + $0xe8] sm:$0xff] %vm1331, %v6716
      %6749 = vst.msk [vmem:[#allocation3 + $0xf0] sm:$0xff] %vm1331, %v6717
      %6750 = vst.msk [vmem:[#allocation3 + $0xf8] sm:$0xff] %vm1331, %v6718
      %v6752 = vrot.slane %v5099, 1
      %v6753 = vrot.slane %v5100, 1
      %v6754 = vsel %vm1380, %v6752, %v6753
      %v6755 = vrot.slane %v5101, 1
      %v6756 = vsel %vm1380, %v6753, %v6755
      %s6757 = scalar_lea.vmem %s4, 52
      %v6758 = vld [vmem:[%s6757] sm:$0xf]
      %v6759 = vsel %vm364, %v6754, 0
      %v6761 = vsel %vm364, %v6756, 0
      %v6764 = vsel %vm1102, %v6758, 0
      %6766 = vmatprep.subr.mxu0 0.0
      %6767 = vmatpush1.msra.mxu0 0.0
      %6768 = vmatprep.subr.mxu0 0.0
      %6769 = vmatpush1.msra.mxu0 0.0
      %6770 = vmatprep.subr.mxu0 0.0
      %6771 = vmatpush1.msra.mxu0 0.0
      %6772 = vmatprep.subr.mxu0 0.0
      %6773 = vmatpush1.msra.mxu0 0.0
      %6774 = vmatprep.subr.mxu0 0.0
      %6775 = vmatpush1.msra.mxu0 0.0
      %6776 = vmatprep.subr.mxu0 0.0
      %6777 = vmatpush1.msra.mxu0 0.0
      %6778 = vmatprep.subr.mxu0 0.0
      %6779 = vmatpush1.msra.mxu0 0.0
      %6780 = vmatprep.subr.mxu0 0.0
      %6781 = vmatpush1.msra.mxu0 0.0
      %6782 = vmatprep.subr.mxu0 0.0
      %6783 = vmatpush1.msra.mxu0 0.0
      %6784 = vmatprep.subr.mxu0 0.0
      %6785 = vmatpush1.msra.mxu0 0.0
      %6786 = vmatprep.subr.mxu0 0.0
      %6787 = vmatpush1.msra.mxu0 0.0
      %6788 = vmatprep.subr.mxu0 0.0
      %6789 = vmatpush1.msra.mxu0 0.0
      %6790 = vmatprep.subr.mxu0 0.0
      %6791 = vmatpush1.msra.mxu0 0.0
      %6792 = vmatprep.subr.mxu0 0.0
      %6793 = vmatpush1.msra.mxu0 0.0
      %6794 = vmatprep.subr.mxu0 0.0
      %6795 = vmatpush1.msra.mxu0 0.0
      %6796 = vmatprep.subr.mxu0 0.0
      %6797 = vmatpush1.msra.mxu0 %v6764
      %6798 = vmatprep.subr.mxu0 0.0
      %6799 = vmatpush2.msra.mxu0 0.0
      %6800 = vmatprep.subr.mxu0 0.0
      %6801 = vmatpush2.msra.mxu0 0.0
      %6802 = vmatprep.subr.mxu0 0.0
      %6803 = vmatpush2.msra.mxu0 0.0
      %6804 = vmatprep.subr.mxu0 0.0
      %6805 = vmatpush2.msra.mxu0 0.0
      %6806 = vmatprep.subr.mxu0 0.0
      %6807 = vmatpush2.msra.mxu0 0.0
      %6808 = vmatprep.subr.mxu0 0.0
      %6809 = vmatpush2.msra.mxu0 0.0
      %6810 = vmatprep.subr.mxu0 0.0
      %6811 = vmatpush2.msra.mxu0 0.0
      %6812 = vmatprep.subr.mxu0 0.0
      %6813 = vmatpush2.msra.mxu0 0.0
      %6814 = vmatprep.subr.mxu0 0.0
      %6815 = vmatpush2.msra.mxu0 0.0
      %6816 = vmatprep.subr.mxu0 0.0
      %6817 = vmatpush2.msra.mxu0 0.0
      %6818 = vmatprep.subr.mxu0 0.0
      %6819 = vmatpush2.msra.mxu0 0.0
      %6820 = vmatprep.subr.mxu0 0.0
      %6821 = vmatpush2.msra.mxu0 0.0
      %6822 = vmatprep.subr.mxu0 0.0
      %6823 = vmatpush2.msra.mxu0 0.0
      %6824 = vmatprep.subr.mxu0 0.0
      %6825 = vmatpush2.msra.mxu0 0.0
      %6826 = vmatprep.subr.mxu0 0.0
      %6827 = vmatpush2.msra.mxu0 0.0
      %6828 = vmatprep.subr.mxu0 0.0
      %6829 = vmatpush2.msra.mxu0 0.0
      %6830 = vmatprep.mubr.f32.mxu0 0.0
      %6831 = vmatmul.mubr.f32.gmra.mxu0 %v5565
      %v6832 = vpop.f32.mrf.mxu0
      %v6833 = vadd.f32 0.0, %v6832
      %v6834 = vpop.f32.mrf.mxu0
      %6835 = vmatprep.mubr.f32.mxu0 0.0
      %6836 = vmatmul.mubr.f32.gmra.mxu0 %v5567
      %v6837 = vpop.f32.mrf.mxu0
      %v6838 = vadd.f32 0.0, %v6837
      %v6839 = vpop.f32.mrf.mxu0
      %6840 = vmatprep.mubr.f32.mxu0 0.0
      %6841 = vmatmul.mubr.f32.gmra.mxu0 %v5569
      %v6842 = vpop.f32.mrf.mxu0
      %v6843 = vadd.f32 0.0, %v6842
      %v6844 = vpop.f32.mrf.mxu0
      %6845 = vmatprep.mubr.f32.mxu0 0.0
      %6846 = vmatmul.mubr.f32.gmra.mxu0 %v5571
      %v6847 = vpop.f32.mrf.mxu0
      %v6848 = vadd.f32 0.0, %v6847
      %v6849 = vpop.f32.mrf.mxu0
      %6850 = vmatprep.mubr.f32.mxu0 0.0
      %6851 = vmatmul.mubr.f32.gmra.mxu0 %v5573
      %v6852 = vpop.f32.mrf.mxu0
      %v6853 = vadd.f32 0.0, %v6852
      %v6854 = vpop.f32.mrf.mxu0
      %6855 = vmatprep.mubr.f32.mxu0 0.0
      %6856 = vmatmul.mubr.f32.gmra.mxu0 %v5575
      %v6857 = vpop.f32.mrf.mxu0
      %v6858 = vadd.f32 0.0, %v6857
      %v6859 = vpop.f32.mrf.mxu0
      %6860 = vmatprep.mubr.f32.mxu0 0.0
      %6861 = vmatmul.mubr.f32.gmra.mxu0 %v5577
      %v6862 = vpop.f32.mrf.mxu0
      %v6863 = vadd.f32 0.0, %v6862
      %v6864 = vpop.f32.mrf.mxu0
      %6865 = vmatprep.mubr.f32.mxu0 0.0
      %6866 = vmatmul.mubr.f32.gmra.mxu0 %v5579
      %v6867 = vpop.f32.mrf.mxu0
      %v6868 = vadd.f32 0.0, %v6867
      %v6869 = vpop.f32.mrf.mxu0
      %6870 = vmatprep.mubr.f32.mxu0 0.0
      %6871 = vmatmul.mubr.f32.gmra.mxu0 %v5581
      %v6872 = vpop.f32.mrf.mxu0
      %v6873 = vadd.f32 0.0, %v6872
      %v6874 = vpop.f32.mrf.mxu0
      %6875 = vmatprep.mubr.f32.mxu0 0.0
      %6876 = vmatmul.mubr.f32.gmra.mxu0 %v5583
      %v6877 = vpop.f32.mrf.mxu0
      %v6878 = vadd.f32 0.0, %v6877
      %v6879 = vpop.f32.mrf.mxu0
      %6880 = vmatprep.mubr.f32.mxu0 0.0
      %6881 = vmatmul.mubr.f32.gmra.mxu0 %v5585
      %v6882 = vpop.f32.mrf.mxu0
      %v6883 = vadd.f32 0.0, %v6882
      %v6884 = vpop.f32.mrf.mxu0
      %6885 = vmatprep.mubr.f32.mxu0 0.0
      %6886 = vmatmul.mubr.f32.gmra.mxu0 %v5587
      %v6887 = vpop.f32.mrf.mxu0
      %v6888 = vadd.f32 0.0, %v6887
      %v6889 = vpop.f32.mrf.mxu0
      %6890 = vmatprep.mubr.f32.mxu0 0.0
      %6891 = vmatmul.mubr.f32.gmra.mxu0 %v5589
      %v6892 = vpop.f32.mrf.mxu0
      %v6893 = vadd.f32 0.0, %v6892
      %v6894 = vpop.f32.mrf.mxu0
      %6895 = vmatprep.mubr.f32.mxu0 0.0
      %6896 = vmatmul.mubr.f32.gmra.mxu0 %v5591
      %v6897 = vpop.f32.mrf.mxu0
      %v6898 = vadd.f32 0.0, %v6897
      %v6899 = vpop.f32.mrf.mxu0
      %6900 = vmatprep.mubr.f32.mxu0 0.0
      %6901 = vmatmul.mubr.f32.gmra.mxu0 %v5593
      %v6902 = vpop.f32.mrf.mxu0
      %v6903 = vadd.f32 0.0, %v6902
      %v6904 = vpop.f32.mrf.mxu0
      %6905 = vmatprep.mubr.f32.mxu0 0.0
      %6906 = vmatmul.mubr.f32.gmra.mxu0 %v5595
      %v6907 = vpop.f32.mrf.mxu0
      %v6908 = vadd.f32 0.0, %v6907
      %v6909 = vpop.f32.mrf.mxu0
      %6910 = vmatprep.mubr.f32.mxu0 0.0
      %6911 = vmatmul.mubr.f32.gmra.mxu0 %v5597
      %v6912 = vpop.f32.mrf.mxu0
      %v6913 = vadd.f32 0.0, %v6912
      %v6914 = vpop.f32.mrf.mxu0
      %6915 = vmatprep.mubr.f32.mxu0 0.0
      %6916 = vmatmul.mubr.f32.gmra.mxu0 %v5599
      %v6917 = vpop.f32.mrf.mxu0
      %v6918 = vadd.f32 0.0, %v6917
      %v6919 = vpop.f32.mrf.mxu0
      %6920 = vmatprep.mubr.f32.mxu0 0.0
      %6921 = vmatmul.mubr.f32.gmra.mxu0 %v5601
      %v6922 = vpop.f32.mrf.mxu0
      %v6923 = vadd.f32 0.0, %v6922
      %v6924 = vpop.f32.mrf.mxu0
      %6925 = vmatprep.mubr.f32.mxu0 0.0
      %6926 = vmatmul.mubr.f32.gmra.mxu0 %v5603
      %v6927 = vpop.f32.mrf.mxu0
      %v6928 = vadd.f32 0.0, %v6927
      %v6929 = vpop.f32.mrf.mxu0
      %6930 = vmatprep.mubr.f32.mxu0 0.0
      %6931 = vmatmul.mubr.f32.gmra.mxu0 %v5605
      %v6932 = vpop.f32.mrf.mxu0
      %v6933 = vadd.f32 0.0, %v6932
      %v6934 = vpop.f32.mrf.mxu0
      %6935 = vmatprep.mubr.f32.mxu0 0.0
      %6936 = vmatmul.mubr.f32.gmra.mxu0 %v5607
      %v6937 = vpop.f32.mrf.mxu0
      %v6938 = vadd.f32 0.0, %v6937
      %v6939 = vpop.f32.mrf.mxu0
      %6940 = vmatprep.mubr.f32.mxu0 0.0
      %6941 = vmatmul.mubr.f32.gmra.mxu0 %v5609
      %v6942 = vpop.f32.mrf.mxu0
      %v6943 = vadd.f32 0.0, %v6942
      %v6944 = vpop.f32.mrf.mxu0
      %6945 = vmatprep.mubr.f32.mxu0 0.0
      %6946 = vmatmul.mubr.f32.gmra.mxu0 %v5611
      %v6947 = vpop.f32.mrf.mxu0
      %v6948 = vadd.f32 0.0, %v6947
      %v6949 = vpop.f32.mrf.mxu0
      %6950 = vmatprep.mubr.f32.mxu0 0.0
      %6951 = vmatmul.mubr.f32.gmra.mxu0 %v5613
      %v6952 = vpop.f32.mrf.mxu0
      %v6953 = vadd.f32 0.0, %v6952
      %v6954 = vpop.f32.mrf.mxu0
      %6955 = vmatprep.mubr.f32.mxu0 0.0
      %6956 = vmatmul.mubr.f32.gmra.mxu0 %v5615
      %v6957 = vpop.f32.mrf.mxu0
      %v6958 = vadd.f32 0.0, %v6957
      %v6959 = vpop.f32.mrf.mxu0
      %6960 = vmatprep.mubr.f32.mxu0 0.0
      %6961 = vmatmul.mubr.f32.gmra.mxu0 %v5617
      %v6962 = vpop.f32.mrf.mxu0
      %v6963 = vadd.f32 0.0, %v6962
      %v6964 = vpop.f32.mrf.mxu0
      %6965 = vmatprep.mubr.f32.mxu0 0.0
      %6966 = vmatmul.mubr.f32.gmra.mxu0 %v5619
      %v6967 = vpop.f32.mrf.mxu0
      %v6968 = vadd.f32 0.0, %v6967
      %v6969 = vpop.f32.mrf.mxu0
      %6970 = vmatprep.mubr.f32.mxu0 0.0
      %6971 = vmatmul.mubr.f32.gmra.mxu0 %v5621
      %v6972 = vpop.f32.mrf.mxu0
      %v6973 = vadd.f32 0.0, %v6972
      %v6974 = vpop.f32.mrf.mxu0
      %6975 = vmatprep.mubr.f32.mxu0 0.0
      %6976 = vmatmul.mubr.f32.gmra.mxu0 %v5623
      %v6977 = vpop.f32.mrf.mxu0
      %v6978 = vadd.f32 0.0, %v6977
      %v6979 = vpop.f32.mrf.mxu0
      %6980 = vmatprep.mubr.f32.mxu0 0.0
      %6981 = vmatmul.mubr.f32.gmra.mxu0 %v6759
      %v6982 = vpop.f32.mrf.mxu0
      %v6983 = vadd.f32 0.0, %v6982
      %v6984 = vpop.f32.mrf.mxu0
      %6985 = vmatprep.mubr.f32.mxu0 0.0
      %6986 = vmatmul.mubr.f32.gmra.mxu0 %v6761
      %v6987 = vpop.f32.mrf.mxu0
      %v6988 = vadd.f32 0.0, %v6987
      %v6989 = vpop.f32.mrf.mxu0
      %6990 = vdwg.mxu0
      %v6991 = vld [vmem:[#allocation3] sm:$0xff]
      %v6992 = vld [vmem:[#allocation3 + $0x8] sm:$0xff]
      %v6993 = vld [vmem:[#allocation3 + $0x10] sm:$0xff]
      %v6994 = vld [vmem:[#allocation3 + $0x18] sm:$0xff]
      %v6995 = vld [vmem:[#allocation3 + $0x20] sm:$0xff]
      %v6996 = vld [vmem:[#allocation3 + $0x28] sm:$0xff]
      %v6997 = vld [vmem:[#allocation3 + $0x30] sm:$0xff]
      %v6998 = vld [vmem:[#allocation3 + $0x38] sm:$0xff]
      %v6999 = vld [vmem:[#allocation3 + $0x40] sm:$0xff]
      %v7000 = vld [vmem:[#allocation3 + $0x48] sm:$0xff]
      %v7001 = vld [vmem:[#allocation3 + $0x50] sm:$0xff]
      %v7002 = vld [vmem:[#allocation3 + $0x58] sm:$0xff]
      %v7003 = vld [vmem:[#allocation3 + $0x60] sm:$0xff]
      %v7004 = vld [vmem:[#allocation3 + $0x68] sm:$0xff]
      %v7005 = vld [vmem:[#allocation3 + $0x70] sm:$0xff]
      %v7006 = vld [vmem:[#allocation3 + $0x78] sm:$0xff]
      %v7007 = vld [vmem:[#allocation3 + $0x80] sm:$0xff]
      %v7008 = vld [vmem:[#allocation3 + $0x88] sm:$0xff]
      %v7009 = vld [vmem:[#allocation3 + $0x90] sm:$0xff]
      %v7010 = vld [vmem:[#allocation3 + $0x98] sm:$0xff]
      %v7011 = vld [vmem:[#allocation3 + $0xa0] sm:$0xff]
      %v7012 = vld [vmem:[#allocation3 + $0xa8] sm:$0xff]
      %v7013 = vld [vmem:[#allocation3 + $0xb0] sm:$0xff]
      %v7014 = vld [vmem:[#allocation3 + $0xb8] sm:$0xff]
      %v7015 = vld [vmem:[#allocation3 + $0xc0] sm:$0xff]
      %v7016 = vld [vmem:[#allocation3 + $0xc8] sm:$0xff]
      %v7017 = vld [vmem:[#allocation3 + $0xd0] sm:$0xff]
      %v7018 = vld [vmem:[#allocation3 + $0xd8] sm:$0xff]
      %v7019 = vld [vmem:[#allocation3 + $0xe0] sm:$0xff]
      %v7020 = vld [vmem:[#allocation3 + $0xe8] sm:$0xff]
      %v7021 = vld [vmem:[#allocation3 + $0xf0] sm:$0xff]
      %v7022 = vld [vmem:[#allocation3 + $0xf8] sm:$0xff]
      %v7023 = vadd.f32 %v6991, %v6833
      %v7024 = vadd.f32 %v6992, %v6838
      %v7025 = vadd.f32 %v6993, %v6843
      %v7026 = vadd.f32 %v6994, %v6848
      %v7027 = vadd.f32 %v6995, %v6853
      %v7028 = vadd.f32 %v6996, %v6858
      %v7029 = vadd.f32 %v6997, %v6863
      %v7030 = vadd.f32 %v6998, %v6868
      %v7031 = vadd.f32 %v6999, %v6873
      %v7032 = vadd.f32 %v7000, %v6878
      %v7033 = vadd.f32 %v7001, %v6883
      %v7034 = vadd.f32 %v7002, %v6888
      %v7035 = vadd.f32 %v7003, %v6893
      %v7036 = vadd.f32 %v7004, %v6898
      %v7037 = vadd.f32 %v7005, %v6903
      %v7038 = vadd.f32 %v7006, %v6908
      %v7039 = vadd.f32 %v7007, %v6913
      %v7040 = vadd.f32 %v7008, %v6918
      %v7041 = vadd.f32 %v7009, %v6923
      %v7042 = vadd.f32 %v7010, %v6928
      %v7043 = vadd.f32 %v7011, %v6933
      %v7044 = vadd.f32 %v7012, %v6938
      %v7045 = vadd.f32 %v7013, %v6943
      %v7046 = vadd.f32 %v7014, %v6948
      %v7047 = vadd.f32 %v7015, %v6953
      %v7048 = vadd.f32 %v7016, %v6958
      %v7049 = vadd.f32 %v7017, %v6963
      %v7050 = vadd.f32 %v7018, %v6968
      %v7051 = vadd.f32 %v7019, %v6973
      %v7052 = vadd.f32 %v7020, %v6978
      %v7053 = vadd.f32 %v7021, %v6983
      %v7054 = vadd.f32 %v7022, %v6988
      %7055 = vst.msk [vmem:[#allocation3] sm:$0xff] %vm1331, %v7023
      %7056 = vst.msk [vmem:[#allocation3 + $0x8] sm:$0xff] %vm1331, %v7024
      %7057 = vst.msk [vmem:[#allocation3 + $0x10] sm:$0xff] %vm1331, %v7025
      %7058 = vst.msk [vmem:[#allocation3 + $0x18] sm:$0xff] %vm1331, %v7026
      %7059 = vst.msk [vmem:[#allocation3 + $0x20] sm:$0xff] %vm1331, %v7027
      %7060 = vst.msk [vmem:[#allocation3 + $0x28] sm:$0xff] %vm1331, %v7028
      %7061 = vst.msk [vmem:[#allocation3 + $0x30] sm:$0xff] %vm1331, %v7029
      %7062 = vst.msk [vmem:[#allocation3 + $0x38] sm:$0xff] %vm1331, %v7030
      %7063 = vst.msk [vmem:[#allocation3 + $0x40] sm:$0xff] %vm1331, %v7031
      %7064 = vst.msk [vmem:[#allocation3 + $0x48] sm:$0xff] %vm1331, %v7032
      %7065 = vst.msk [vmem:[#allocation3 + $0x50] sm:$0xff] %vm1331, %v7033
      %7066 = vst.msk [vmem:[#allocation3 + $0x58] sm:$0xff] %vm1331, %v7034
      %7067 = vst.msk [vmem:[#allocation3 + $0x60] sm:$0xff] %vm1331, %v7035
      %7068 = vst.msk [vmem:[#allocation3 + $0x68] sm:$0xff] %vm1331, %v7036
      %7069 = vst.msk [vmem:[#allocation3 + $0x70] sm:$0xff] %vm1331, %v7037
      %7070 = vst.msk [vmem:[#allocation3 + $0x78] sm:$0xff] %vm1331, %v7038
      %7071 = vst.msk [vmem:[#allocation3 + $0x80] sm:$0xff] %vm1331, %v7039
      %7072 = vst.msk [vmem:[#allocation3 + $0x88] sm:$0xff] %vm1331, %v7040
      %7073 = vst.msk [vmem:[#allocation3 + $0x90] sm:$0xff] %vm1331, %v7041
      %7074 = vst.msk [vmem:[#allocation3 + $0x98] sm:$0xff] %vm1331, %v7042
      %7075 = vst.msk [vmem:[#allocation3 + $0xa0] sm:$0xff] %vm1331, %v7043
      %7076 = vst.msk [vmem:[#allocation3 + $0xa8] sm:$0xff] %vm1331, %v7044
      %7077 = vst.msk [vmem:[#allocation3 + $0xb0] sm:$0xff] %vm1331, %v7045
      %7078 = vst.msk [vmem:[#allocation3 + $0xb8] sm:$0xff] %vm1331, %v7046
      %7079 = vst.msk [vmem:[#allocation3 + $0xc0] sm:$0xff] %vm1331, %v7047
      %7080 = vst.msk [vmem:[#allocation3 + $0xc8] sm:$0xff] %vm1331, %v7048
      %7081 = vst.msk [vmem:[#allocation3 + $0xd0] sm:$0xff] %vm1331, %v7049
      %7082 = vst.msk [vmem:[#allocation3 + $0xd8] sm:$0xff] %vm1331, %v7050
      %7083 = vst.msk [vmem:[#allocation3 + $0xe0] sm:$0xff] %vm1331, %v7051
      %7084 = vst.msk [vmem:[#allocation3 + $0xe8] sm:$0xff] %vm1331, %v7052
      %7085 = vst.msk [vmem:[#allocation3 + $0xf0] sm:$0xff] %vm1331, %v7053
      %7086 = vst.msk [vmem:[#allocation3 + $0xf8] sm:$0xff] %vm1331, %v7054
      %v7087 = vrot.slane %v5099, 2
      %v7088 = vrot.slane %v5100, 2
      %v7089 = vsel %vm1851, %v7087, %v7088
      %v7090 = vrot.slane %v5101, 2
      %v7091 = vsel %vm1851, %v7088, %v7090
      %s7092 = scalar_lea.vmem %s4, 56
      %v7093 = vld [vmem:[%s7092] sm:$0xf]
      %v7094 = vsel %vm364, %v7089, 0
      %v7096 = vsel %vm364, %v7091, 0
      %v7099 = vsel %vm1102, %v7093, 0
      %7101 = vmatprep.subr.mxu0 0.0
      %7102 = vmatpush1.msra.mxu0 0.0
      %7103 = vmatprep.subr.mxu0 0.0
      %7104 = vmatpush1.msra.mxu0 0.0
      %7105 = vmatprep.subr.mxu0 0.0
      %7106 = vmatpush1.msra.mxu0 0.0
      %7107 = vmatprep.subr.mxu0 0.0
      %7108 = vmatpush1.msra.mxu0 0.0
      %7109 = vmatprep.subr.mxu0 0.0
      %7110 = vmatpush1.msra.mxu0 0.0
      %7111 = vmatprep.subr.mxu0 0.0
      %7112 = vmatpush1.msra.mxu0 0.0
      %7113 = vmatprep.subr.mxu0 0.0
      %7114 = vmatpush1.msra.mxu0 0.0
      %7115 = vmatprep.subr.mxu0 0.0
      %7116 = vmatpush1.msra.mxu0 0.0
      %7117 = vmatprep.subr.mxu0 0.0
      %7118 = vmatpush1.msra.mxu0 0.0
      %7119 = vmatprep.subr.mxu0 0.0
      %7120 = vmatpush1.msra.mxu0 0.0
      %7121 = vmatprep.subr.mxu0 0.0
      %7122 = vmatpush1.msra.mxu0 0.0
      %7123 = vmatprep.subr.mxu0 0.0
      %7124 = vmatpush1.msra.mxu0 0.0
      %7125 = vmatprep.subr.mxu0 0.0
      %7126 = vmatpush1.msra.mxu0 0.0
      %7127 = vmatprep.subr.mxu0 0.0
      %7128 = vmatpush1.msra.mxu0 0.0
      %7129 = vmatprep.subr.mxu0 0.0
      %7130 = vmatpush1.msra.mxu0 0.0
      %7131 = vmatprep.subr.mxu0 0.0
      %7132 = vmatpush1.msra.mxu0 %v7099
      %7133 = vmatprep.subr.mxu0 0.0
      %7134 = vmatpush2.msra.mxu0 0.0
      %7135 = vmatprep.subr.mxu0 0.0
      %7136 = vmatpush2.msra.mxu0 0.0
      %7137 = vmatprep.subr.mxu0 0.0
      %7138 = vmatpush2.msra.mxu0 0.0
      %7139 = vmatprep.subr.mxu0 0.0
      %7140 = vmatpush2.msra.mxu0 0.0
      %7141 = vmatprep.subr.mxu0 0.0
      %7142 = vmatpush2.msra.mxu0 0.0
      %7143 = vmatprep.subr.mxu0 0.0
      %7144 = vmatpush2.msra.mxu0 0.0
      %7145 = vmatprep.subr.mxu0 0.0
      %7146 = vmatpush2.msra.mxu0 0.0
      %7147 = vmatprep.subr.mxu0 0.0
      %7148 = vmatpush2.msra.mxu0 0.0
      %7149 = vmatprep.subr.mxu0 0.0
      %7150 = vmatpush2.msra.mxu0 0.0
      %7151 = vmatprep.subr.mxu0 0.0
      %7152 = vmatpush2.msra.mxu0 0.0
      %7153 = vmatprep.subr.mxu0 0.0
      %7154 = vmatpush2.msra.mxu0 0.0
      %7155 = vmatprep.subr.mxu0 0.0
      %7156 = vmatpush2.msra.mxu0 0.0
      %7157 = vmatprep.subr.mxu0 0.0
      %7158 = vmatpush2.msra.mxu0 0.0
      %7159 = vmatprep.subr.mxu0 0.0
      %7160 = vmatpush2.msra.mxu0 0.0
      %7161 = vmatprep.subr.mxu0 0.0
      %7162 = vmatpush2.msra.mxu0 0.0
      %7163 = vmatprep.subr.mxu0 0.0
      %7164 = vmatpush2.msra.mxu0 0.0
      %7165 = vmatprep.mubr.f32.mxu0 0.0
      %7166 = vmatmul.mubr.f32.gmra.mxu0 %v6035
      %v7167 = vpop.f32.mrf.mxu0
      %v7168 = vadd.f32 0.0, %v7167
      %v7169 = vpop.f32.mrf.mxu0
      %7170 = vmatprep.mubr.f32.mxu0 0.0
      %7171 = vmatmul.mubr.f32.gmra.mxu0 %v6037
      %v7172 = vpop.f32.mrf.mxu0
      %v7173 = vadd.f32 0.0, %v7172
      %v7174 = vpop.f32.mrf.mxu0
      %7175 = vmatprep.mubr.f32.mxu0 0.0
      %7176 = vmatmul.mubr.f32.gmra.mxu0 %v6039
      %v7177 = vpop.f32.mrf.mxu0
      %v7178 = vadd.f32 0.0, %v7177
      %v7179 = vpop.f32.mrf.mxu0
      %7180 = vmatprep.mubr.f32.mxu0 0.0
      %7181 = vmatmul.mubr.f32.gmra.mxu0 %v6041
      %v7182 = vpop.f32.mrf.mxu0
      %v7183 = vadd.f32 0.0, %v7182
      %v7184 = vpop.f32.mrf.mxu0
      %7185 = vmatprep.mubr.f32.mxu0 0.0
      %7186 = vmatmul.mubr.f32.gmra.mxu0 %v6043
      %v7187 = vpop.f32.mrf.mxu0
      %v7188 = vadd.f32 0.0, %v7187
      %v7189 = vpop.f32.mrf.mxu0
      %7190 = vmatprep.mubr.f32.mxu0 0.0
      %7191 = vmatmul.mubr.f32.gmra.mxu0 %v6045
      %v7192 = vpop.f32.mrf.mxu0
      %v7193 = vadd.f32 0.0, %v7192
      %v7194 = vpop.f32.mrf.mxu0
      %7195 = vmatprep.mubr.f32.mxu0 0.0
      %7196 = vmatmul.mubr.f32.gmra.mxu0 %v6047
      %v7197 = vpop.f32.mrf.mxu0
      %v7198 = vadd.f32 0.0, %v7197
      %v7199 = vpop.f32.mrf.mxu0
      %7200 = vmatprep.mubr.f32.mxu0 0.0
      %7201 = vmatmul.mubr.f32.gmra.mxu0 %v6049
      %v7202 = vpop.f32.mrf.mxu0
      %v7203 = vadd.f32 0.0, %v7202
      %v7204 = vpop.f32.mrf.mxu0
      %7205 = vmatprep.mubr.f32.mxu0 0.0
      %7206 = vmatmul.mubr.f32.gmra.mxu0 %v6051
      %v7207 = vpop.f32.mrf.mxu0
      %v7208 = vadd.f32 0.0, %v7207
      %v7209 = vpop.f32.mrf.mxu0
      %7210 = vmatprep.mubr.f32.mxu0 0.0
      %7211 = vmatmul.mubr.f32.gmra.mxu0 %v6053
      %v7212 = vpop.f32.mrf.mxu0
      %v7213 = vadd.f32 0.0, %v7212
      %v7214 = vpop.f32.mrf.mxu0
      %7215 = vmatprep.mubr.f32.mxu0 0.0
      %7216 = vmatmul.mubr.f32.gmra.mxu0 %v6055
      %v7217 = vpop.f32.mrf.mxu0
      %v7218 = vadd.f32 0.0, %v7217
      %v7219 = vpop.f32.mrf.mxu0
      %7220 = vmatprep.mubr.f32.mxu0 0.0
      %7221 = vmatmul.mubr.f32.gmra.mxu0 %v6057
      %v7222 = vpop.f32.mrf.mxu0
      %v7223 = vadd.f32 0.0, %v7222
      %v7224 = vpop.f32.mrf.mxu0
      %7225 = vmatprep.mubr.f32.mxu0 0.0
      %7226 = vmatmul.mubr.f32.gmra.mxu0 %v6059
      %v7227 = vpop.f32.mrf.mxu0
      %v7228 = vadd.f32 0.0, %v7227
      %v7229 = vpop.f32.mrf.mxu0
      %7230 = vmatprep.mubr.f32.mxu0 0.0
      %7231 = vmatmul.mubr.f32.gmra.mxu0 %v6061
      %v7232 = vpop.f32.mrf.mxu0
      %v7233 = vadd.f32 0.0, %v7232
      %v7234 = vpop.f32.mrf.mxu0
      %7235 = vmatprep.mubr.f32.mxu0 0.0
      %7236 = vmatmul.mubr.f32.gmra.mxu0 %v6063
      %v7237 = vpop.f32.mrf.mxu0
      %v7238 = vadd.f32 0.0, %v7237
      %v7239 = vpop.f32.mrf.mxu0
      %7240 = vmatprep.mubr.f32.mxu0 0.0
      %7241 = vmatmul.mubr.f32.gmra.mxu0 %v6065
      %v7242 = vpop.f32.mrf.mxu0
      %v7243 = vadd.f32 0.0, %v7242
      %v7244 = vpop.f32.mrf.mxu0
      %7245 = vmatprep.mubr.f32.mxu0 0.0
      %7246 = vmatmul.mubr.f32.gmra.mxu0 %v6067
      %v7247 = vpop.f32.mrf.mxu0
      %v7248 = vadd.f32 0.0, %v7247
      %v7249 = vpop.f32.mrf.mxu0
      %7250 = vmatprep.mubr.f32.mxu0 0.0
      %7251 = vmatmul.mubr.f32.gmra.mxu0 %v6069
      %v7252 = vpop.f32.mrf.mxu0
      %v7253 = vadd.f32 0.0, %v7252
      %v7254 = vpop.f32.mrf.mxu0
      %7255 = vmatprep.mubr.f32.mxu0 0.0
      %7256 = vmatmul.mubr.f32.gmra.mxu0 %v6071
      %v7257 = vpop.f32.mrf.mxu0
      %v7258 = vadd.f32 0.0, %v7257
      %v7259 = vpop.f32.mrf.mxu0
      %7260 = vmatprep.mubr.f32.mxu0 0.0
      %7261 = vmatmul.mubr.f32.gmra.mxu0 %v6073
      %v7262 = vpop.f32.mrf.mxu0
      %v7263 = vadd.f32 0.0, %v7262
      %v7264 = vpop.f32.mrf.mxu0
      %7265 = vmatprep.mubr.f32.mxu0 0.0
      %7266 = vmatmul.mubr.f32.gmra.mxu0 %v6075
      %v7267 = vpop.f32.mrf.mxu0
      %v7268 = vadd.f32 0.0, %v7267
      %v7269 = vpop.f32.mrf.mxu0
      %7270 = vmatprep.mubr.f32.mxu0 0.0
      %7271 = vmatmul.mubr.f32.gmra.mxu0 %v6077
      %v7272 = vpop.f32.mrf.mxu0
      %v7273 = vadd.f32 0.0, %v7272
      %v7274 = vpop.f32.mrf.mxu0
      %7275 = vmatprep.mubr.f32.mxu0 0.0
      %7276 = vmatmul.mubr.f32.gmra.mxu0 %v6079
      %v7277 = vpop.f32.mrf.mxu0
      %v7278 = vadd.f32 0.0, %v7277
      %v7279 = vpop.f32.mrf.mxu0
      %7280 = vmatprep.mubr.f32.mxu0 0.0
      %7281 = vmatmul.mubr.f32.gmra.mxu0 %v6081
      %v7282 = vpop.f32.mrf.mxu0
      %v7283 = vadd.f32 0.0, %v7282
      %v7284 = vpop.f32.mrf.mxu0
      %7285 = vmatprep.mubr.f32.mxu0 0.0
      %7286 = vmatmul.mubr.f32.gmra.mxu0 %v6083
      %v7287 = vpop.f32.mrf.mxu0
      %v7288 = vadd.f32 0.0, %v7287
      %v7289 = vpop.f32.mrf.mxu0
      %7290 = vmatprep.mubr.f32.mxu0 0.0
      %7291 = vmatmul.mubr.f32.gmra.mxu0 %v6085
      %v7292 = vpop.f32.mrf.mxu0
      %v7293 = vadd.f32 0.0, %v7292
      %v7294 = vpop.f32.mrf.mxu0
      %7295 = vmatprep.mubr.f32.mxu0 0.0
      %7296 = vmatmul.mubr.f32.gmra.mxu0 %v6087
      %v7297 = vpop.f32.mrf.mxu0
      %v7298 = vadd.f32 0.0, %v7297
      %v7299 = vpop.f32.mrf.mxu0
      %7300 = vmatprep.mubr.f32.mxu0 0.0
      %7301 = vmatmul.mubr.f32.gmra.mxu0 %v6089
      %v7302 = vpop.f32.mrf.mxu0
      %v7303 = vadd.f32 0.0, %v7302
      %v7304 = vpop.f32.mrf.mxu0
      %7305 = vmatprep.mubr.f32.mxu0 0.0
      %7306 = vmatmul.mubr.f32.gmra.mxu0 %v6091
      %v7307 = vpop.f32.mrf.mxu0
      %v7308 = vadd.f32 0.0, %v7307
      %v7309 = vpop.f32.mrf.mxu0
      %7310 = vmatprep.mubr.f32.mxu0 0.0
      %7311 = vmatmul.mubr.f32.gmra.mxu0 %v6093
      %v7312 = vpop.f32.mrf.mxu0
      %v7313 = vadd.f32 0.0, %v7312
      %v7314 = vpop.f32.mrf.mxu0
      %7315 = vmatprep.mubr.f32.mxu0 0.0
      %7316 = vmatmul.mubr.f32.gmra.mxu0 %v7094
      %v7317 = vpop.f32.mrf.mxu0
      %v7318 = vadd.f32 0.0, %v7317
      %v7319 = vpop.f32.mrf.mxu0
      %7320 = vmatprep.mubr.f32.mxu0 0.0
      %7321 = vmatmul.mubr.f32.gmra.mxu0 %v7096
      %v7322 = vpop.f32.mrf.mxu0
      %v7323 = vadd.f32 0.0, %v7322
      %v7324 = vpop.f32.mrf.mxu0
      %7325 = vdwg.mxu0
      %v7326 = vld [vmem:[#allocation3] sm:$0xff]
      %v7327 = vld [vmem:[#allocation3 + $0x8] sm:$0xff]
      %v7328 = vld [vmem:[#allocation3 + $0x10] sm:$0xff]
      %v7329 = vld [vmem:[#allocation3 + $0x18] sm:$0xff]
      %v7330 = vld [vmem:[#allocation3 + $0x20] sm:$0xff]
      %v7331 = vld [vmem:[#allocation3 + $0x28] sm:$0xff]
      %v7332 = vld [vmem:[#allocation3 + $0x30] sm:$0xff]
      %v7333 = vld [vmem:[#allocation3 + $0x38] sm:$0xff]
      %v7334 = vld [vmem:[#allocation3 + $0x40] sm:$0xff]
      %v7335 = vld [vmem:[#allocation3 + $0x48] sm:$0xff]
      %v7336 = vld [vmem:[#allocation3 + $0x50] sm:$0xff]
      %v7337 = vld [vmem:[#allocation3 + $0x58] sm:$0xff]
      %v7338 = vld [vmem:[#allocation3 + $0x60] sm:$0xff]
      %v7339 = vld [vmem:[#allocation3 + $0x68] sm:$0xff]
      %v7340 = vld [vmem:[#allocation3 + $0x70] sm:$0xff]
      %v7341 = vld [vmem:[#allocation3 + $0x78] sm:$0xff]
      %v7342 = vld [vmem:[#allocation3 + $0x80] sm:$0xff]
      %v7343 = vld [vmem:[#allocation3 + $0x88] sm:$0xff]
      %v7344 = vld [vmem:[#allocation3 + $0x90] sm:$0xff]
      %v7345 = vld [vmem:[#allocation3 + $0x98] sm:$0xff]
      %v7346 = vld [vmem:[#allocation3 + $0xa0] sm:$0xff]
      %v7347 = vld [vmem:[#allocation3 + $0xa8] sm:$0xff]
      %v7348 = vld [vmem:[#allocation3 + $0xb0] sm:$0xff]
      %v7349 = vld [vmem:[#allocation3 + $0xb8] sm:$0xff]
      %v7350 = vld [vmem:[#allocation3 + $0xc0] sm:$0xff]
      %v7351 = vld [vmem:[#allocation3 + $0xc8] sm:$0xff]
      %v7352 = vld [vmem:[#allocation3 + $0xd0] sm:$0xff]
      %v7353 = vld [vmem:[#allocation3 + $0xd8] sm:$0xff]
      %v7354 = vld [vmem:[#allocation3 + $0xe0] sm:$0xff]
      %v7355 = vld [vmem:[#allocation3 + $0xe8] sm:$0xff]
      %v7356 = vld [vmem:[#allocation3 + $0xf0] sm:$0xff]
      %v7357 = vld [vmem:[#allocation3 + $0xf8] sm:$0xff]
      %v7358 = vadd.f32 %v7326, %v7168
      %v7359 = vadd.f32 %v7327, %v7173
      %v7360 = vadd.f32 %v7328, %v7178
      %v7361 = vadd.f32 %v7329, %v7183
      %v7362 = vadd.f32 %v7330, %v7188
      %v7363 = vadd.f32 %v7331, %v7193
      %v7364 = vadd.f32 %v7332, %v7198
      %v7365 = vadd.f32 %v7333, %v7203
      %v7366 = vadd.f32 %v7334, %v7208
      %v7367 = vadd.f32 %v7335, %v7213
      %v7368 = vadd.f32 %v7336, %v7218
      %v7369 = vadd.f32 %v7337, %v7223
      %v7370 = vadd.f32 %v7338, %v7228
      %v7371 = vadd.f32 %v7339, %v7233
      %v7372 = vadd.f32 %v7340, %v7238
      %v7373 = vadd.f32 %v7341, %v7243
      %v7374 = vadd.f32 %v7342, %v7248
      %v7375 = vadd.f32 %v7343, %v7253
      %v7376 = vadd.f32 %v7344, %v7258
      %v7377 = vadd.f32 %v7345, %v7263
      %v7378 = vadd.f32 %v7346, %v7268
      %v7379 = vadd.f32 %v7347, %v7273
      %v7380 = vadd.f32 %v7348, %v7278
      %v7381 = vadd.f32 %v7349, %v7283
      %v7382 = vadd.f32 %v7350, %v7288
      %v7383 = vadd.f32 %v7351, %v7293
      %v7384 = vadd.f32 %v7352, %v7298
      %v7385 = vadd.f32 %v7353, %v7303
      %v7386 = vadd.f32 %v7354, %v7308
      %v7387 = vadd.f32 %v7355, %v7313
      %v7388 = vadd.f32 %v7356, %v7318
      %v7389 = vadd.f32 %v7357, %v7323
      %7390 = vst.msk [vmem:[#allocation3] sm:$0xff] %vm1331, %v7358
      %7391 = vst.msk [vmem:[#allocation3 + $0x8] sm:$0xff] %vm1331, %v7359
      %7392 = vst.msk [vmem:[#allocation3 + $0x10] sm:$0xff] %vm1331, %v7360
      %7393 = vst.msk [vmem:[#allocation3 + $0x18] sm:$0xff] %vm1331, %v7361
      %7394 = vst.msk [vmem:[#allocation3 + $0x20] sm:$0xff] %vm1331, %v7362
      %7395 = vst.msk [vmem:[#allocation3 + $0x28] sm:$0xff] %vm1331, %v7363
      %7396 = vst.msk [vmem:[#allocation3 + $0x30] sm:$0xff] %vm1331, %v7364
      %7397 = vst.msk [vmem:[#allocation3 + $0x38] sm:$0xff] %vm1331, %v7365
      %7398 = vst.msk [vmem:[#allocation3 + $0x40] sm:$0xff] %vm1331, %v7366
      %7399 = vst.msk [vmem:[#allocation3 + $0x48] sm:$0xff] %vm1331, %v7367
      %7400 = vst.msk [vmem:[#allocation3 + $0x50] sm:$0xff] %vm1331, %v7368
      %7401 = vst.msk [vmem:[#allocation3 + $0x58] sm:$0xff] %vm1331, %v7369
      %7402 = vst.msk [vmem:[#allocation3 + $0x60] sm:$0xff] %vm1331, %v7370
      %7403 = vst.msk [vmem:[#allocation3 + $0x68] sm:$0xff] %vm1331, %v7371
      %7404 = vst.msk [vmem:[#allocation3 + $0x70] sm:$0xff] %vm1331, %v7372
      %7405 = vst.msk [vmem:[#allocation3 + $0x78] sm:$0xff] %vm1331, %v7373
      %7406 = vst.msk [vmem:[#allocation3 + $0x80] sm:$0xff] %vm1331, %v7374
      %7407 = vst.msk [vmem:[#allocation3 + $0x88] sm:$0xff] %vm1331, %v7375
      %7408 = vst.msk [vmem:[#allocation3 + $0x90] sm:$0xff] %vm1331, %v7376
      %7409 = vst.msk [vmem:[#allocation3 + $0x98] sm:$0xff] %vm1331, %v7377
      %7410 = vst.msk [vmem:[#allocation3 + $0xa0] sm:$0xff] %vm1331, %v7378
      %7411 = vst.msk [vmem:[#allocation3 + $0xa8] sm:$0xff] %vm1331, %v7379
      %7412 = vst.msk [vmem:[#allocation3 + $0xb0] sm:$0xff] %vm1331, %v7380
      %7413 = vst.msk [vmem:[#allocation3 + $0xb8] sm:$0xff] %vm1331, %v7381
      %7414 = vst.msk [vmem:[#allocation3 + $0xc0] sm:$0xff] %vm1331, %v7382
      %7415 = vst.msk [vmem:[#allocation3 + $0xc8] sm:$0xff] %vm1331, %v7383
      %7416 = vst.msk [vmem:[#allocation3 + $0xd0] sm:$0xff] %vm1331, %v7384
      %7417 = vst.msk [vmem:[#allocation3 + $0xd8] sm:$0xff] %vm1331, %v7385
      %7418 = vst.msk [vmem:[#allocation3 + $0xe0] sm:$0xff] %vm1331, %v7386
      %7419 = vst.msk [vmem:[#allocation3 + $0xe8] sm:$0xff] %vm1331, %v7387
      %7420 = vst.msk [vmem:[#allocation3 + $0xf0] sm:$0xff] %vm1331, %v7388
      %7421 = vst.msk [vmem:[#allocation3 + $0xf8] sm:$0xff] %vm1331, %v7389
      %s7422 = scalar_lea.vmem %s4, 60
      %v7423 = vld [vmem:[%s7422] sm:$0xf]
      %v7425 = vsel %vm364, %v5102, 0
      %v7428 = vsel %vm364, %v5103, 0
      %v7431 = vsel %vm1102, %v7423, 0
      %7433 = vmatprep.subr.mxu0 0.0
      %7434 = vmatpush1.msra.mxu0 0.0
      %7435 = vmatprep.subr.mxu0 0.0
      %7436 = vmatpush1.msra.mxu0 0.0
      %7437 = vmatprep.subr.mxu0 0.0
      %7438 = vmatpush1.msra.mxu0 0.0
      %7439 = vmatprep.subr.mxu0 0.0
      %7440 = vmatpush1.msra.mxu0 0.0
      %7441 = vmatprep.subr.mxu0 0.0
      %7442 = vmatpush1.msra.mxu0 0.0
      %7443 = vmatprep.subr.mxu0 0.0
      %7444 = vmatpush1.msra.mxu0 0.0
      %7445 = vmatprep.subr.mxu0 0.0
      %7446 = vmatpush1.msra.mxu0 0.0
      %7447 = vmatprep.subr.mxu0 0.0
      %7448 = vmatpush1.msra.mxu0 0.0
      %7449 = vmatprep.subr.mxu0 0.0
      %7450 = vmatpush1.msra.mxu0 0.0
      %7451 = vmatprep.subr.mxu0 0.0
      %7452 = vmatpush1.msra.mxu0 0.0
      %7453 = vmatprep.subr.mxu0 0.0
      %7454 = vmatpush1.msra.mxu0 0.0
      %7455 = vmatprep.subr.mxu0 0.0
      %7456 = vmatpush1.msra.mxu0 0.0
      %7457 = vmatprep.subr.mxu0 0.0
      %7458 = vmatpush1.msra.mxu0 0.0
      %7459 = vmatprep.subr.mxu0 0.0
      %7460 = vmatpush1.msra.mxu0 0.0
      %7461 = vmatprep.subr.mxu0 0.0
      %7462 = vmatpush1.msra.mxu0 0.0
      %7463 = vmatprep.subr.mxu0 0.0
      %7464 = vmatpush1.msra.mxu0 %v7431
      %7465 = vmatprep.subr.mxu0 0.0
      %7466 = vmatpush2.msra.mxu0 0.0
      %7467 = vmatprep.subr.mxu0 0.0
      %7468 = vmatpush2.msra.mxu0 0.0
      %7469 = vmatprep.subr.mxu0 0.0
      %7470 = vmatpush2.msra.mxu0 0.0
      %7471 = vmatprep.subr.mxu0 0.0
      %7472 = vmatpush2.msra.mxu0 0.0
      %7473 = vmatprep.subr.mxu0 0.0
      %7474 = vmatpush2.msra.mxu0 0.0
      %7475 = vmatprep.subr.mxu0 0.0
      %7476 = vmatpush2.msra.mxu0 0.0
      %7477 = vmatprep.subr.mxu0 0.0
      %7478 = vmatpush2.msra.mxu0 0.0
      %7479 = vmatprep.subr.mxu0 0.0
      %7480 = vmatpush2.msra.mxu0 0.0
      %7481 = vmatprep.subr.mxu0 0.0
      %7482 = vmatpush2.msra.mxu0 0.0
      %7483 = vmatprep.subr.mxu0 0.0
      %7484 = vmatpush2.msra.mxu0 0.0
      %7485 = vmatprep.subr.mxu0 0.0
      %7486 = vmatpush2.msra.mxu0 0.0
      %7487 = vmatprep.subr.mxu0 0.0
      %7488 = vmatpush2.msra.mxu0 0.0
      %7489 = vmatprep.subr.mxu0 0.0
      %7490 = vmatpush2.msra.mxu0 0.0
      %7491 = vmatprep.subr.mxu0 0.0
      %7492 = vmatpush2.msra.mxu0 0.0
      %7493 = vmatprep.subr.mxu0 0.0
      %7494 = vmatpush2.msra.mxu0 0.0
      %7495 = vmatprep.subr.mxu0 0.0
      %7496 = vmatpush2.msra.mxu0 0.0
      %7497 = vmatprep.mubr.f32.mxu0 0.0
      %7498 = vmatmul.mubr.f32.gmra.mxu0 %v5120
      %v7499 = vpop.f32.mrf.mxu0
      %v7500 = vadd.f32 0.0, %v7499
      %v7501 = vpop.f32.mrf.mxu0
      %7502 = vmatprep.mubr.f32.mxu0 0.0
      %7503 = vmatmul.mubr.f32.gmra.mxu0 %v5123
      %v7504 = vpop.f32.mrf.mxu0
      %v7505 = vadd.f32 0.0, %v7504
      %v7506 = vpop.f32.mrf.mxu0
      %7507 = vmatprep.mubr.f32.mxu0 0.0
      %7508 = vmatmul.mubr.f32.gmra.mxu0 %v5126
      %v7509 = vpop.f32.mrf.mxu0
      %v7510 = vadd.f32 0.0, %v7509
      %v7511 = vpop.f32.mrf.mxu0
      %7512 = vmatprep.mubr.f32.mxu0 0.0
      %7513 = vmatmul.mubr.f32.gmra.mxu0 %v5129
      %v7514 = vpop.f32.mrf.mxu0
      %v7515 = vadd.f32 0.0, %v7514
      %v7516 = vpop.f32.mrf.mxu0
      %7517 = vmatprep.mubr.f32.mxu0 0.0
      %7518 = vmatmul.mubr.f32.gmra.mxu0 %v5132
      %v7519 = vpop.f32.mrf.mxu0
      %v7520 = vadd.f32 0.0, %v7519
      %v7521 = vpop.f32.mrf.mxu0
      %7522 = vmatprep.mubr.f32.mxu0 0.0
      %7523 = vmatmul.mubr.f32.gmra.mxu0 %v5135
      %v7524 = vpop.f32.mrf.mxu0
      %v7525 = vadd.f32 0.0, %v7524
      %v7526 = vpop.f32.mrf.mxu0
      %7527 = vmatprep.mubr.f32.mxu0 0.0
      %7528 = vmatmul.mubr.f32.gmra.mxu0 %v5138
      %v7529 = vpop.f32.mrf.mxu0
      %v7530 = vadd.f32 0.0, %v7529
      %v7531 = vpop.f32.mrf.mxu0
      %7532 = vmatprep.mubr.f32.mxu0 0.0
      %7533 = vmatmul.mubr.f32.gmra.mxu0 %v5141
      %v7534 = vpop.f32.mrf.mxu0
      %v7535 = vadd.f32 0.0, %v7534
      %v7536 = vpop.f32.mrf.mxu0
      %7537 = vmatprep.mubr.f32.mxu0 0.0
      %7538 = vmatmul.mubr.f32.gmra.mxu0 %v5144
      %v7539 = vpop.f32.mrf.mxu0
      %v7540 = vadd.f32 0.0, %v7539
      %v7541 = vpop.f32.mrf.mxu0
      %7542 = vmatprep.mubr.f32.mxu0 0.0
      %7543 = vmatmul.mubr.f32.gmra.mxu0 %v5147
      %v7544 = vpop.f32.mrf.mxu0
      %v7545 = vadd.f32 0.0, %v7544
      %v7546 = vpop.f32.mrf.mxu0
      %7547 = vmatprep.mubr.f32.mxu0 0.0
      %7548 = vmatmul.mubr.f32.gmra.mxu0 %v5150
      %v7549 = vpop.f32.mrf.mxu0
      %v7550 = vadd.f32 0.0, %v7549
      %v7551 = vpop.f32.mrf.mxu0
      %7552 = vmatprep.mubr.f32.mxu0 0.0
      %7553 = vmatmul.mubr.f32.gmra.mxu0 %v5153
      %v7554 = vpop.f32.mrf.mxu0
      %v7555 = vadd.f32 0.0, %v7554
      %v7556 = vpop.f32.mrf.mxu0
      %7557 = vmatprep.mubr.f32.mxu0 0.0
      %7558 = vmatmul.mubr.f32.gmra.mxu0 %v5156
      %v7559 = vpop.f32.mrf.mxu0
      %v7560 = vadd.f32 0.0, %v7559
      %v7561 = vpop.f32.mrf.mxu0
      %7562 = vmatprep.mubr.f32.mxu0 0.0
      %7563 = vmatmul.mubr.f32.gmra.mxu0 %v5159
      %v7564 = vpop.f32.mrf.mxu0
      %v7565 = vadd.f32 0.0, %v7564
      %v7566 = vpop.f32.mrf.mxu0
      %7567 = vmatprep.mubr.f32.mxu0 0.0
      %7568 = vmatmul.mubr.f32.gmra.mxu0 %v5162
      %v7569 = vpop.f32.mrf.mxu0
      %v7570 = vadd.f32 0.0, %v7569
      %v7571 = vpop.f32.mrf.mxu0
      %7572 = vmatprep.mubr.f32.mxu0 0.0
      %7573 = vmatmul.mubr.f32.gmra.mxu0 %v5165
      %v7574 = vpop.f32.mrf.mxu0
      %v7575 = vadd.f32 0.0, %v7574
      %v7576 = vpop.f32.mrf.mxu0
      %7577 = vmatprep.mubr.f32.mxu0 0.0
      %7578 = vmatmul.mubr.f32.gmra.mxu0 %v5168
      %v7579 = vpop.f32.mrf.mxu0
      %v7580 = vadd.f32 0.0, %v7579
      %v7581 = vpop.f32.mrf.mxu0
      %7582 = vmatprep.mubr.f32.mxu0 0.0
      %7583 = vmatmul.mubr.f32.gmra.mxu0 %v5171
      %v7584 = vpop.f32.mrf.mxu0
      %v7585 = vadd.f32 0.0, %v7584
      %v7586 = vpop.f32.mrf.mxu0
      %7587 = vmatprep.mubr.f32.mxu0 0.0
      %7588 = vmatmul.mubr.f32.gmra.mxu0 %v5174
      %v7589 = vpop.f32.mrf.mxu0
      %v7590 = vadd.f32 0.0, %v7589
      %v7591 = vpop.f32.mrf.mxu0
      %7592 = vmatprep.mubr.f32.mxu0 0.0
      %7593 = vmatmul.mubr.f32.gmra.mxu0 %v5177
      %v7594 = vpop.f32.mrf.mxu0
      %v7595 = vadd.f32 0.0, %v7594
      %v7596 = vpop.f32.mrf.mxu0
      %7597 = vmatprep.mubr.f32.mxu0 0.0
      %7598 = vmatmul.mubr.f32.gmra.mxu0 %v5180
      %v7599 = vpop.f32.mrf.mxu0
      %v7600 = vadd.f32 0.0, %v7599
      %v7601 = vpop.f32.mrf.mxu0
      %7602 = vmatprep.mubr.f32.mxu0 0.0
      %7603 = vmatmul.mubr.f32.gmra.mxu0 %v5183
      %v7604 = vpop.f32.mrf.mxu0
      %v7605 = vadd.f32 0.0, %v7604
      %v7606 = vpop.f32.mrf.mxu0
      %7607 = vmatprep.mubr.f32.mxu0 0.0
      %7608 = vmatmul.mubr.f32.gmra.mxu0 %v5186
      %v7609 = vpop.f32.mrf.mxu0
      %v7610 = vadd.f32 0.0, %v7609
      %v7611 = vpop.f32.mrf.mxu0
      %7612 = vmatprep.mubr.f32.mxu0 0.0
      %7613 = vmatmul.mubr.f32.gmra.mxu0 %v5189
      %v7614 = vpop.f32.mrf.mxu0
      %v7615 = vadd.f32 0.0, %v7614
      %v7616 = vpop.f32.mrf.mxu0
      %7617 = vmatprep.mubr.f32.mxu0 0.0
      %7618 = vmatmul.mubr.f32.gmra.mxu0 %v5192
      %v7619 = vpop.f32.mrf.mxu0
      %v7620 = vadd.f32 0.0, %v7619
      %v7621 = vpop.f32.mrf.mxu0
      %7622 = vmatprep.mubr.f32.mxu0 0.0
      %7623 = vmatmul.mubr.f32.gmra.mxu0 %v5195
      %v7624 = vpop.f32.mrf.mxu0
      %v7625 = vadd.f32 0.0, %v7624
      %v7626 = vpop.f32.mrf.mxu0
      %7627 = vmatprep.mubr.f32.mxu0 0.0
      %7628 = vmatmul.mubr.f32.gmra.mxu0 %v5198
      %v7629 = vpop.f32.mrf.mxu0
      %v7630 = vadd.f32 0.0, %v7629
      %v7631 = vpop.f32.mrf.mxu0
      %7632 = vmatprep.mubr.f32.mxu0 0.0
      %7633 = vmatmul.mubr.f32.gmra.mxu0 %v5201
      %v7634 = vpop.f32.mrf.mxu0
      %v7635 = vadd.f32 0.0, %v7634
      %v7636 = vpop.f32.mrf.mxu0
      %7637 = vmatprep.mubr.f32.mxu0 0.0
      %7638 = vmatmul.mubr.f32.gmra.mxu0 %v6422
      %v7639 = vpop.f32.mrf.mxu0
      %v7640 = vadd.f32 0.0, %v7639
      %v7641 = vpop.f32.mrf.mxu0
      %7642 = vmatprep.mubr.f32.mxu0 0.0
      %7643 = vmatmul.mubr.f32.gmra.mxu0 %v6425
      %v7644 = vpop.f32.mrf.mxu0
      %v7645 = vadd.f32 0.0, %v7644
      %v7646 = vpop.f32.mrf.mxu0
      %7647 = vmatprep.mubr.f32.mxu0 0.0
      %7648 = vmatmul.mubr.f32.gmra.mxu0 %v7425
      %v7649 = vpop.f32.mrf.mxu0
      %v7650 = vadd.f32 0.0, %v7649
      %v7651 = vpop.f32.mrf.mxu0
      %7652 = vmatprep.mubr.f32.mxu0 0.0
      %7653 = vmatmul.mubr.f32.gmra.mxu0 %v7428
      %v7654 = vpop.f32.mrf.mxu0
      %v7655 = vadd.f32 0.0, %v7654
      %v7656 = vpop.f32.mrf.mxu0
      %7657 = vdwg.mxu0
      %v7658 = vld [vmem:[#allocation3] sm:$0xff]
      %v7659 = vld [vmem:[#allocation3 + $0x8] sm:$0xff]
      %v7660 = vld [vmem:[#allocation3 + $0x10] sm:$0xff]
      %v7661 = vld [vmem:[#allocation3 + $0x18] sm:$0xff]
      %v7662 = vld [vmem:[#allocation3 + $0x20] sm:$0xff]
      %v7663 = vld [vmem:[#allocation3 + $0x28] sm:$0xff]
      %v7664 = vld [vmem:[#allocation3 + $0x30] sm:$0xff]
      %v7665 = vld [vmem:[#allocation3 + $0x38] sm:$0xff]
      %v7666 = vld [vmem:[#allocation3 + $0x40] sm:$0xff]
      %v7667 = vld [vmem:[#allocation3 + $0x48] sm:$0xff]
      %v7668 = vld [vmem:[#allocation3 + $0x50] sm:$0xff]
      %v7669 = vld [vmem:[#allocation3 + $0x58] sm:$0xff]
      %v7670 = vld [vmem:[#allocation3 + $0x60] sm:$0xff]
      %v7671 = vld [vmem:[#allocation3 + $0x68] sm:$0xff]
      %v7672 = vld [vmem:[#allocation3 + $0x70] sm:$0xff]
      %v7673 = vld [vmem:[#allocation3 + $0x78] sm:$0xff]
      %v7674 = vld [vmem:[#allocation3 + $0x80] sm:$0xff]
      %v7675 = vld [vmem:[#allocation3 + $0x88] sm:$0xff]
      %v7676 = vld [vmem:[#allocation3 + $0x90] sm:$0xff]
      %v7677 = vld [vmem:[#allocation3 + $0x98] sm:$0xff]
      %v7678 = vld [vmem:[#allocation3 + $0xa0] sm:$0xff]
      %v7679 = vld [vmem:[#allocation3 + $0xa8] sm:$0xff]
      %v7680 = vld [vmem:[#allocation3 + $0xb0] sm:$0xff]
      %v7681 = vld [vmem:[#allocation3 + $0xb8] sm:$0xff]
      %v7682 = vld [vmem:[#allocation3 + $0xc0] sm:$0xff]
      %v7683 = vld [vmem:[#allocation3 + $0xc8] sm:$0xff]
      %v7684 = vld [vmem:[#allocation3 + $0xd0] sm:$0xff]
      %v7685 = vld [vmem:[#allocation3 + $0xd8] sm:$0xff]
      %v7686 = vld [vmem:[#allocation3 + $0xe0] sm:$0xff]
      %v7687 = vld [vmem:[#allocation3 + $0xe8] sm:$0xff]
      %v7688 = vld [vmem:[#allocation3 + $0xf0] sm:$0xff]
      %v7689 = vld [vmem:[#allocation3 + $0xf8] sm:$0xff]
      %v7690 = vadd.f32 %v7658, %v7500
      %v7691 = vadd.f32 %v7659, %v7505
      %v7692 = vadd.f32 %v7660, %v7510
      %v7693 = vadd.f32 %v7661, %v7515
      %v7694 = vadd.f32 %v7662, %v7520
      %v7695 = vadd.f32 %v7663, %v7525
      %v7696 = vadd.f32 %v7664, %v7530
      %v7697 = vadd.f32 %v7665, %v7535
      %v7698 = vadd.f32 %v7666, %v7540
      %v7699 = vadd.f32 %v7667, %v7545
      %v7700 = vadd.f32 %v7668, %v7550
      %v7701 = vadd.f32 %v7669, %v7555
      %v7702 = vadd.f32 %v7670, %v7560
      %v7703 = vadd.f32 %v7671, %v7565
      %v7704 = vadd.f32 %v7672, %v7570
      %v7705 = vadd.f32 %v7673, %v7575
      %v7706 = vadd.f32 %v7674, %v7580
      %v7707 = vadd.f32 %v7675, %v7585
      %v7708 = vadd.f32 %v7676, %v7590
      %v7709 = vadd.f32 %v7677, %v7595
      %v7710 = vadd.f32 %v7678, %v7600
      %v7711 = vadd.f32 %v7679, %v7605
      %v7712 = vadd.f32 %v7680, %v7610
      %v7713 = vadd.f32 %v7681, %v7615
      %v7714 = vadd.f32 %v7682, %v7620
      %v7715 = vadd.f32 %v7683, %v7625
      %v7716 = vadd.f32 %v7684, %v7630
      %v7717 = vadd.f32 %v7685, %v7635
      %v7718 = vadd.f32 %v7686, %v7640
      %v7719 = vadd.f32 %v7687, %v7645
      %v7720 = vadd.f32 %v7688, %v7650
      %v7721 = vadd.f32 %v7689, %v7655
      %7722 = vst.msk [vmem:[#allocation3] sm:$0xff] %vm1331, %v7690
      %7723 = vst.msk [vmem:[#allocation3 + $0x8] sm:$0xff] %vm1331, %v7691
      %7724 = vst.msk [vmem:[#allocation3 + $0x10] sm:$0xff] %vm1331, %v7692
      %7725 = vst.msk [vmem:[#allocation3 + $0x18] sm:$0xff] %vm1331, %v7693
      %7726 = vst.msk [vmem:[#allocation3 + $0x20] sm:$0xff] %vm1331, %v7694
      %7727 = vst.msk [vmem:[#allocation3 + $0x28] sm:$0xff] %vm1331, %v7695
      %7728 = vst.msk [vmem:[#allocation3 + $0x30] sm:$0xff] %vm1331, %v7696
      %7729 = vst.msk [vmem:[#allocation3 + $0x38] sm:$0xff] %vm1331, %v7697
      %7730 = vst.msk [vmem:[#allocation3 + $0x40] sm:$0xff] %vm1331, %v7698
      %7731 = vst.msk [vmem:[#allocation3 + $0x48] sm:$0xff] %vm1331, %v7699
      %7732 = vst.msk [vmem:[#allocation3 + $0x50] sm:$0xff] %vm1331, %v7700
      %7733 = vst.msk [vmem:[#allocation3 + $0x58] sm:$0xff] %vm1331, %v7701
      %7734 = vst.msk [vmem:[#allocation3 + $0x60] sm:$0xff] %vm1331, %v7702
      %7735 = vst.msk [vmem:[#allocation3 + $0x68] sm:$0xff] %vm1331, %v7703
      %7736 = vst.msk [vmem:[#allocation3 + $0x70] sm:$0xff] %vm1331, %v7704
      %7737 = vst.msk [vmem:[#allocation3 + $0x78] sm:$0xff] %vm1331, %v7705
      %7738 = vst.msk [vmem:[#allocation3 + $0x80] sm:$0xff] %vm1331, %v7706
      %7739 = vst.msk [vmem:[#allocation3 + $0x88] sm:$0xff] %vm1331, %v7707
      %7740 = vst.msk [vmem:[#allocation3 + $0x90] sm:$0xff] %vm1331, %v7708
      %7741 = vst.msk [vmem:[#allocation3 + $0x98] sm:$0xff] %vm1331, %v7709
      %7742 = vst.msk [vmem:[#allocation3 + $0xa0] sm:$0xff] %vm1331, %v7710
      %7743 = vst.msk [vmem:[#allocation3 + $0xa8] sm:$0xff] %vm1331, %v7711
      %7744 = vst.msk [vmem:[#allocation3 + $0xb0] sm:$0xff] %vm1331, %v7712
      %7745 = vst.msk [vmem:[#allocation3 + $0xb8] sm:$0xff] %vm1331, %v7713
      %7746 = vst.msk [vmem:[#allocation3 + $0xc0] sm:$0xff] %vm1331, %v7714
      %7747 = vst.msk [vmem:[#allocation3 + $0xc8] sm:$0xff] %vm1331, %v7715
      %7748 = vst.msk [vmem:[#allocation3 + $0xd0] sm:$0xff] %vm1331, %v7716
      %7749 = vst.msk [vmem:[#allocation3 + $0xd8] sm:$0xff] %vm1331, %v7717
      %7750 = vst.msk [vmem:[#allocation3 + $0xe0] sm:$0xff] %vm1331, %v7718
      %7751 = vst.msk [vmem:[#allocation3 + $0xe8] sm:$0xff] %vm1331, %v7719
      %7752 = vst.msk [vmem:[#allocation3 + $0xf0] sm:$0xff] %vm1331, %v7720
      %7753 = vst.msk [vmem:[#allocation3 + $0xf8] sm:$0xff] %vm1331, %v7721
      %v7755 = vrot.slane %v5102, 1
      %v7756 = vrot.slane %v5103, 1
      %v7757 = vsel %vm1380, %v7755, %v7756
      %v7758 = vrot.slane %v5104, 1
      %v7759 = vsel %vm1380, %v7756, %v7758
      %s7760 = scalar_lea.vmem %s4, 64
      %v7761 = vld [vmem:[%s7760] sm:$0xf]
      %v7762 = vsel %vm364, %v7757, 0
      %v7764 = vsel %vm364, %v7759, 0
      %v7767 = vsel %vm1102, %v7761, 0
      %7769 = vmatprep.subr.mxu0 0.0
      %7770 = vmatpush1.msra.mxu0 0.0
      %7771 = vmatprep.subr.mxu0 0.0
      %7772 = vmatpush1.msra.mxu0 0.0
      %7773 = vmatprep.subr.mxu0 0.0
      %7774 = vmatpush1.msra.mxu0 0.0
      %7775 = vmatprep.subr.mxu0 0.0
      %7776 = vmatpush1.msra.mxu0 0.0
      %7777 = vmatprep.subr.mxu0 0.0
      %7778 = vmatpush1.msra.mxu0 0.0
      %7779 = vmatprep.subr.mxu0 0.0
      %7780 = vmatpush1.msra.mxu0 0.0
      %7781 = vmatprep.subr.mxu0 0.0
      %7782 = vmatpush1.msra.mxu0 0.0
      %7783 = vmatprep.subr.mxu0 0.0
      %7784 = vmatpush1.msra.mxu0 0.0
      %7785 = vmatprep.subr.mxu0 0.0
      %7786 = vmatpush1.msra.mxu0 0.0
      %7787 = vmatprep.subr.mxu0 0.0
      %7788 = vmatpush1.msra.mxu0 0.0
      %7789 = vmatprep.subr.mxu0 0.0
      %7790 = vmatpush1.msra.mxu0 0.0
      %7791 = vmatprep.subr.mxu0 0.0
      %7792 = vmatpush1.msra.mxu0 0.0
      %7793 = vmatprep.subr.mxu0 0.0
      %7794 = vmatpush1.msra.mxu0 0.0
      %7795 = vmatprep.subr.mxu0 0.0
      %7796 = vmatpush1.msra.mxu0 0.0
      %7797 = vmatprep.subr.mxu0 0.0
      %7798 = vmatpush1.msra.mxu0 0.0
      %7799 = vmatprep.subr.mxu0 0.0
      %7800 = vmatpush1.msra.mxu0 %v7767
      %7801 = vmatprep.subr.mxu0 0.0
      %7802 = vmatpush2.msra.mxu0 0.0
      %7803 = vmatprep.subr.mxu0 0.0
      %7804 = vmatpush2.msra.mxu0 0.0
      %7805 = vmatprep.subr.mxu0 0.0
      %7806 = vmatpush2.msra.mxu0 0.0
      %7807 = vmatprep.subr.mxu0 0.0
      %7808 = vmatpush2.msra.mxu0 0.0
      %7809 = vmatprep.subr.mxu0 0.0
      %7810 = vmatpush2.msra.mxu0 0.0
      %7811 = vmatprep.subr.mxu0 0.0
      %7812 = vmatpush2.msra.mxu0 0.0
      %7813 = vmatprep.subr.mxu0 0.0
      %7814 = vmatpush2.msra.mxu0 0.0
      %7815 = vmatprep.subr.mxu0 0.0
      %7816 = vmatpush2.msra.mxu0 0.0
      %7817 = vmatprep.subr.mxu0 0.0
      %7818 = vmatpush2.msra.mxu0 0.0
      %7819 = vmatprep.subr.mxu0 0.0
      %7820 = vmatpush2.msra.mxu0 0.0
      %7821 = vmatprep.subr.mxu0 0.0
      %7822 = vmatpush2.msra.mxu0 0.0
      %7823 = vmatprep.subr.mxu0 0.0
      %7824 = vmatpush2.msra.mxu0 0.0
      %7825 = vmatprep.subr.mxu0 0.0
      %7826 = vmatpush2.msra.mxu0 0.0
      %7827 = vmatprep.subr.mxu0 0.0
      %7828 = vmatpush2.msra.mxu0 0.0
      %7829 = vmatprep.subr.mxu0 0.0
      %7830 = vmatpush2.msra.mxu0 0.0
      %7831 = vmatprep.subr.mxu0 0.0
      %7832 = vmatpush2.msra.mxu0 0.0
      %7833 = vmatprep.mubr.f32.mxu0 0.0
      %7834 = vmatmul.mubr.f32.gmra.mxu0 %v5569
      %v7835 = vpop.f32.mrf.mxu0
      %v7836 = vadd.f32 0.0, %v7835
      %v7837 = vpop.f32.mrf.mxu0
      %7838 = vmatprep.mubr.f32.mxu0 0.0
      %7839 = vmatmul.mubr.f32.gmra.mxu0 %v5571
      %v7840 = vpop.f32.mrf.mxu0
      %v7841 = vadd.f32 0.0, %v7840
      %v7842 = vpop.f32.mrf.mxu0
      %7843 = vmatprep.mubr.f32.mxu0 0.0
      %7844 = vmatmul.mubr.f32.gmra.mxu0 %v5573
      %v7845 = vpop.f32.mrf.mxu0
      %v7846 = vadd.f32 0.0, %v7845
      %v7847 = vpop.f32.mrf.mxu0
      %7848 = vmatprep.mubr.f32.mxu0 0.0
      %7849 = vmatmul.mubr.f32.gmra.mxu0 %v5575
      %v7850 = vpop.f32.mrf.mxu0
      %v7851 = vadd.f32 0.0, %v7850
      %v7852 = vpop.f32.mrf.mxu0
      %7853 = vmatprep.mubr.f32.mxu0 0.0
      %7854 = vmatmul.mubr.f32.gmra.mxu0 %v5577
      %v7855 = vpop.f32.mrf.mxu0
      %v7856 = vadd.f32 0.0, %v7855
      %v7857 = vpop.f32.mrf.mxu0
      %7858 = vmatprep.mubr.f32.mxu0 0.0
      %7859 = vmatmul.mubr.f32.gmra.mxu0 %v5579
      %v7860 = vpop.f32.mrf.mxu0
      %v7861 = vadd.f32 0.0, %v7860
      %v7862 = vpop.f32.mrf.mxu0
      %7863 = vmatprep.mubr.f32.mxu0 0.0
      %7864 = vmatmul.mubr.f32.gmra.mxu0 %v5581
      %v7865 = vpop.f32.mrf.mxu0
      %v7866 = vadd.f32 0.0, %v7865
      %v7867 = vpop.f32.mrf.mxu0
      %7868 = vmatprep.mubr.f32.mxu0 0.0
      %7869 = vmatmul.mubr.f32.gmra.mxu0 %v5583
      %v7870 = vpop.f32.mrf.mxu0
      %v7871 = vadd.f32 0.0, %v7870
      %v7872 = vpop.f32.mrf.mxu0
      %7873 = vmatprep.mubr.f32.mxu0 0.0
      %7874 = vmatmul.mubr.f32.gmra.mxu0 %v5585
      %v7875 = vpop.f32.mrf.mxu0
      %v7876 = vadd.f32 0.0, %v7875
      %v7877 = vpop.f32.mrf.mxu0
      %7878 = vmatprep.mubr.f32.mxu0 0.0
      %7879 = vmatmul.mubr.f32.gmra.mxu0 %v5587
      %v7880 = vpop.f32.mrf.mxu0
      %v7881 = vadd.f32 0.0, %v7880
      %v7882 = vpop.f32.mrf.mxu0
      %7883 = vmatprep.mubr.f32.mxu0 0.0
      %7884 = vmatmul.mubr.f32.gmra.mxu0 %v5589
      %v7885 = vpop.f32.mrf.mxu0
      %v7886 = vadd.f32 0.0, %v7885
      %v7887 = vpop.f32.mrf.mxu0
      %7888 = vmatprep.mubr.f32.mxu0 0.0
      %7889 = vmatmul.mubr.f32.gmra.mxu0 %v5591
      %v7890 = vpop.f32.mrf.mxu0
      %v7891 = vadd.f32 0.0, %v7890
      %v7892 = vpop.f32.mrf.mxu0
      %7893 = vmatprep.mubr.f32.mxu0 0.0
      %7894 = vmatmul.mubr.f32.gmra.mxu0 %v5593
      %v7895 = vpop.f32.mrf.mxu0
      %v7896 = vadd.f32 0.0, %v7895
      %v7897 = vpop.f32.mrf.mxu0
      %7898 = vmatprep.mubr.f32.mxu0 0.0
      %7899 = vmatmul.mubr.f32.gmra.mxu0 %v5595
      %v7900 = vpop.f32.mrf.mxu0
      %v7901 = vadd.f32 0.0, %v7900
      %v7902 = vpop.f32.mrf.mxu0
      %7903 = vmatprep.mubr.f32.mxu0 0.0
      %7904 = vmatmul.mubr.f32.gmra.mxu0 %v5597
      %v7905 = vpop.f32.mrf.mxu0
      %v7906 = vadd.f32 0.0, %v7905
      %v7907 = vpop.f32.mrf.mxu0
      %7908 = vmatprep.mubr.f32.mxu0 0.0
      %7909 = vmatmul.mubr.f32.gmra.mxu0 %v5599
      %v7910 = vpop.f32.mrf.mxu0
      %v7911 = vadd.f32 0.0, %v7910
      %v7912 = vpop.f32.mrf.mxu0
      %7913 = vmatprep.mubr.f32.mxu0 0.0
      %7914 = vmatmul.mubr.f32.gmra.mxu0 %v5601
      %v7915 = vpop.f32.mrf.mxu0
      %v7916 = vadd.f32 0.0, %v7915
      %v7917 = vpop.f32.mrf.mxu0
      %7918 = vmatprep.mubr.f32.mxu0 0.0
      %7919 = vmatmul.mubr.f32.gmra.mxu0 %v5603
      %v7920 = vpop.f32.mrf.mxu0
      %v7921 = vadd.f32 0.0, %v7920
      %v7922 = vpop.f32.mrf.mxu0
      %7923 = vmatprep.mubr.f32.mxu0 0.0
      %7924 = vmatmul.mubr.f32.gmra.mxu0 %v5605
      %v7925 = vpop.f32.mrf.mxu0
      %v7926 = vadd.f32 0.0, %v7925
      %v7927 = vpop.f32.mrf.mxu0
      %7928 = vmatprep.mubr.f32.mxu0 0.0
      %7929 = vmatmul.mubr.f32.gmra.mxu0 %v5607
      %v7930 = vpop.f32.mrf.mxu0
      %v7931 = vadd.f32 0.0, %v7930
      %v7932 = vpop.f32.mrf.mxu0
      %7933 = vmatprep.mubr.f32.mxu0 0.0
      %7934 = vmatmul.mubr.f32.gmra.mxu0 %v5609
      %v7935 = vpop.f32.mrf.mxu0
      %v7936 = vadd.f32 0.0, %v7935
      %v7937 = vpop.f32.mrf.mxu0
      %7938 = vmatprep.mubr.f32.mxu0 0.0
      %7939 = vmatmul.mubr.f32.gmra.mxu0 %v5611
      %v7940 = vpop.f32.mrf.mxu0
      %v7941 = vadd.f32 0.0, %v7940
      %v7942 = vpop.f32.mrf.mxu0
      %7943 = vmatprep.mubr.f32.mxu0 0.0
      %7944 = vmatmul.mubr.f32.gmra.mxu0 %v5613
      %v7945 = vpop.f32.mrf.mxu0
      %v7946 = vadd.f32 0.0, %v7945
      %v7947 = vpop.f32.mrf.mxu0
      %7948 = vmatprep.mubr.f32.mxu0 0.0
      %7949 = vmatmul.mubr.f32.gmra.mxu0 %v5615
      %v7950 = vpop.f32.mrf.mxu0
      %v7951 = vadd.f32 0.0, %v7950
      %v7952 = vpop.f32.mrf.mxu0
      %7953 = vmatprep.mubr.f32.mxu0 0.0
      %7954 = vmatmul.mubr.f32.gmra.mxu0 %v5617
      %v7955 = vpop.f32.mrf.mxu0
      %v7956 = vadd.f32 0.0, %v7955
      %v7957 = vpop.f32.mrf.mxu0
      %7958 = vmatprep.mubr.f32.mxu0 0.0
      %7959 = vmatmul.mubr.f32.gmra.mxu0 %v5619
      %v7960 = vpop.f32.mrf.mxu0
      %v7961 = vadd.f32 0.0, %v7960
      %v7962 = vpop.f32.mrf.mxu0
      %7963 = vmatprep.mubr.f32.mxu0 0.0
      %7964 = vmatmul.mubr.f32.gmra.mxu0 %v5621
      %v7965 = vpop.f32.mrf.mxu0
      %v7966 = vadd.f32 0.0, %v7965
      %v7967 = vpop.f32.mrf.mxu0
      %7968 = vmatprep.mubr.f32.mxu0 0.0
      %7969 = vmatmul.mubr.f32.gmra.mxu0 %v5623
      %v7970 = vpop.f32.mrf.mxu0
      %v7971 = vadd.f32 0.0, %v7970
      %v7972 = vpop.f32.mrf.mxu0
      %7973 = vmatprep.mubr.f32.mxu0 0.0
      %7974 = vmatmul.mubr.f32.gmra.mxu0 %v6759
      %v7975 = vpop.f32.mrf.mxu0
      %v7976 = vadd.f32 0.0, %v7975
      %v7977 = vpop.f32.mrf.mxu0
      %7978 = vmatprep.mubr.f32.mxu0 0.0
      %7979 = vmatmul.mubr.f32.gmra.mxu0 %v6761
      %v7980 = vpop.f32.mrf.mxu0
      %v7981 = vadd.f32 0.0, %v7980
      %v7982 = vpop.f32.mrf.mxu0
      %7983 = vmatprep.mubr.f32.mxu0 0.0
      %7984 = vmatmul.mubr.f32.gmra.mxu0 %v7762
      %v7985 = vpop.f32.mrf.mxu0
      %v7986 = vadd.f32 0.0, %v7985
      %v7987 = vpop.f32.mrf.mxu0
      %7988 = vmatprep.mubr.f32.mxu0 0.0
      %7989 = vmatmul.mubr.f32.gmra.mxu0 %v7764
      %v7990 = vpop.f32.mrf.mxu0
      %v7991 = vadd.f32 0.0, %v7990
      %v7992 = vpop.f32.mrf.mxu0
      %7993 = vdwg.mxu0
      %v7994 = vld [vmem:[#allocation3] sm:$0xff]
      %v7995 = vld [vmem:[#allocation3 + $0x8] sm:$0xff]
      %v7996 = vld [vmem:[#allocation3 + $0x10] sm:$0xff]
      %v7997 = vld [vmem:[#allocation3 + $0x18] sm:$0xff]
      %v7998 = vld [vmem:[#allocation3 + $0x20] sm:$0xff]
      %v7999 = vld [vmem:[#allocation3 + $0x28] sm:$0xff]
      %v8000 = vld [vmem:[#allocation3 + $0x30] sm:$0xff]
      %v8001 = vld [vmem:[#allocation3 + $0x38] sm:$0xff]
      %v8002 = vld [vmem:[#allocation3 + $0x40] sm:$0xff]
      %v8003 = vld [vmem:[#allocation3 + $0x48] sm:$0xff]
      %v8004 = vld [vmem:[#allocation3 + $0x50] sm:$0xff]
      %v8005 = vld [vmem:[#allocation3 + $0x58] sm:$0xff]
      %v8006 = vld [vmem:[#allocation3 + $0x60] sm:$0xff]
      %v8007 = vld [vmem:[#allocation3 + $0x68] sm:$0xff]
      %v8008 = vld [vmem:[#allocation3 + $0x70] sm:$0xff]
      %v8009 = vld [vmem:[#allocation3 + $0x78] sm:$0xff]
      %v8010 = vld [vmem:[#allocation3 + $0x80] sm:$0xff]
      %v8011 = vld [vmem:[#allocation3 + $0x88] sm:$0xff]
      %v8012 = vld [vmem:[#allocation3 + $0x90] sm:$0xff]
      %v8013 = vld [vmem:[#allocation3 + $0x98] sm:$0xff]
      %v8014 = vld [vmem:[#allocation3 + $0xa0] sm:$0xff]
      %v8015 = vld [vmem:[#allocation3 + $0xa8] sm:$0xff]
      %v8016 = vld [vmem:[#allocation3 + $0xb0] sm:$0xff]
      %v8017 = vld [vmem:[#allocation3 + $0xb8] sm:$0xff]
      %v8018 = vld [vmem:[#allocation3 + $0xc0] sm:$0xff]
      %v8019 = vld [vmem:[#allocation3 + $0xc8] sm:$0xff]
      %v8020 = vld [vmem:[#allocation3 + $0xd0] sm:$0xff]
      %v8021 = vld [vmem:[#allocation3 + $0xd8] sm:$0xff]
      %v8022 = vld [vmem:[#allocation3 + $0xe0] sm:$0xff]
      %v8023 = vld [vmem:[#allocation3 + $0xe8] sm:$0xff]
      %v8024 = vld [vmem:[#allocation3 + $0xf0] sm:$0xff]
      %v8025 = vld [vmem:[#allocation3 + $0xf8] sm:$0xff]
      %v8026 = vadd.f32 %v7994, %v7836
      %v8027 = vadd.f32 %v7995, %v7841
      %v8028 = vadd.f32 %v7996, %v7846
      %v8029 = vadd.f32 %v7997, %v7851
      %v8030 = vadd.f32 %v7998, %v7856
      %v8031 = vadd.f32 %v7999, %v7861
      %v8032 = vadd.f32 %v8000, %v7866
      %v8033 = vadd.f32 %v8001, %v7871
      %v8034 = vadd.f32 %v8002, %v7876
      %v8035 = vadd.f32 %v8003, %v7881
      %v8036 = vadd.f32 %v8004, %v7886
      %v8037 = vadd.f32 %v8005, %v7891
      %v8038 = vadd.f32 %v8006, %v7896
      %v8039 = vadd.f32 %v8007, %v7901
      %v8040 = vadd.f32 %v8008, %v7906
      %v8041 = vadd.f32 %v8009, %v7911
      %v8042 = vadd.f32 %v8010, %v7916
      %v8043 = vadd.f32 %v8011, %v7921
      %v8044 = vadd.f32 %v8012, %v7926
      %v8045 = vadd.f32 %v8013, %v7931
      %v8046 = vadd.f32 %v8014, %v7936
      %v8047 = vadd.f32 %v8015, %v7941
      %v8048 = vadd.f32 %v8016, %v7946
      %v8049 = vadd.f32 %v8017, %v7951
      %v8050 = vadd.f32 %v8018, %v7956
      %v8051 = vadd.f32 %v8019, %v7961
      %v8052 = vadd.f32 %v8020, %v7966
      %v8053 = vadd.f32 %v8021, %v7971
      %v8054 = vadd.f32 %v8022, %v7976
      %v8055 = vadd.f32 %v8023, %v7981
      %v8056 = vadd.f32 %v8024, %v7986
      %v8057 = vadd.f32 %v8025, %v7991
      %8058 = vst.msk [vmem:[#allocation3] sm:$0xff] %vm1331, %v8026
      %8059 = vst.msk [vmem:[#allocation3 + $0x8] sm:$0xff] %vm1331, %v8027
      %8060 = vst.msk [vmem:[#allocation3 + $0x10] sm:$0xff] %vm1331, %v8028
      %8061 = vst.msk [vmem:[#allocation3 + $0x18] sm:$0xff] %vm1331, %v8029
      %8062 = vst.msk [vmem:[#allocation3 + $0x20] sm:$0xff] %vm1331, %v8030
      %8063 = vst.msk [vmem:[#allocation3 + $0x28] sm:$0xff] %vm1331, %v8031
      %8064 = vst.msk [vmem:[#allocation3 + $0x30] sm:$0xff] %vm1331, %v8032
      %8065 = vst.msk [vmem:[#allocation3 + $0x38] sm:$0xff] %vm1331, %v8033
      %8066 = vst.msk [vmem:[#allocation3 + $0x40] sm:$0xff] %vm1331, %v8034
      %8067 = vst.msk [vmem:[#allocation3 + $0x48] sm:$0xff] %vm1331, %v8035
      %8068 = vst.msk [vmem:[#allocation3 + $0x50] sm:$0xff] %vm1331, %v8036
      %8069 = vst.msk [vmem:[#allocation3 + $0x58] sm:$0xff] %vm1331, %v8037
      %8070 = vst.msk [vmem:[#allocation3 + $0x60] sm:$0xff] %vm1331, %v8038
      %8071 = vst.msk [vmem:[#allocation3 + $0x68] sm:$0xff] %vm1331, %v8039
      %8072 = vst.msk [vmem:[#allocation3 + $0x70] sm:$0xff] %vm1331, %v8040
      %8073 = vst.msk [vmem:[#allocation3 + $0x78] sm:$0xff] %vm1331, %v8041
      %8074 = vst.msk [vmem:[#allocation3 + $0x80] sm:$0xff] %vm1331, %v8042
      %8075 = vst.msk [vmem:[#allocation3 + $0x88] sm:$0xff] %vm1331, %v8043
      %8076 = vst.msk [vmem:[#allocation3 + $0x90] sm:$0xff] %vm1331, %v8044
      %8077 = vst.msk [vmem:[#allocation3 + $0x98] sm:$0xff] %vm1331, %v8045
      %8078 = vst.msk [vmem:[#allocation3 + $0xa0] sm:$0xff] %vm1331, %v8046
      %8079 = vst.msk [vmem:[#allocation3 + $0xa8] sm:$0xff] %vm1331, %v8047
      %8080 = vst.msk [vmem:[#allocation3 + $0xb0] sm:$0xff] %vm1331, %v8048
      %8081 = vst.msk [vmem:[#allocation3 + $0xb8] sm:$0xff] %vm1331, %v8049
      %8082 = vst.msk [vmem:[#allocation3 + $0xc0] sm:$0xff] %vm1331, %v8050
      %8083 = vst.msk [vmem:[#allocation3 + $0xc8] sm:$0xff] %vm1331, %v8051
      %8084 = vst.msk [vmem:[#allocation3 + $0xd0] sm:$0xff] %vm1331, %v8052
      %8085 = vst.msk [vmem:[#allocation3 + $0xd8] sm:$0xff] %vm1331, %v8053
      %8086 = vst.msk [vmem:[#allocation3 + $0xe0] sm:$0xff] %vm1331, %v8054
      %8087 = vst.msk [vmem:[#allocation3 + $0xe8] sm:$0xff] %vm1331, %v8055
      %8088 = vst.msk [vmem:[#allocation3 + $0xf0] sm:$0xff] %vm1331, %v8056
      %8089 = vst.msk [vmem:[#allocation3 + $0xf8] sm:$0xff] %vm1331, %v8057
      %v8090 = vrot.slane %v5102, 2
      %v8091 = vrot.slane %v5103, 2
      %v8092 = vsel %vm1851, %v8090, %v8091
      %v8093 = vrot.slane %v5104, 2
      %v8094 = vsel %vm1851, %v8091, %v8093
      %s8095 = scalar_lea.vmem %s4, 68
      %v8096 = vld [vmem:[%s8095] sm:$0xf]
      %v8097 = vsel %vm364, %v8092, 0
      %v8099 = vsel %vm364, %v8094, 0
      %v8102 = vsel %vm1102, %v8096, 0
      %8104 = vmatprep.subr.mxu0 0.0
      %8105 = vmatpush1.msra.mxu0 0.0
      %8106 = vmatprep.subr.mxu0 0.0
      %8107 = vmatpush1.msra.mxu0 0.0
      %8108 = vmatprep.subr.mxu0 0.0
      %8109 = vmatpush1.msra.mxu0 0.0
      %8110 = vmatprep.subr.mxu0 0.0
      %8111 = vmatpush1.msra.mxu0 0.0
      %8112 = vmatprep.subr.mxu0 0.0
      %8113 = vmatpush1.msra.mxu0 0.0
      %8114 = vmatprep.subr.mxu0 0.0
      %8115 = vmatpush1.msra.mxu0 0.0
      %8116 = vmatprep.subr.mxu0 0.0
      %8117 = vmatpush1.msra.mxu0 0.0
      %8118 = vmatprep.subr.mxu0 0.0
      %8119 = vmatpush1.msra.mxu0 0.0
      %8120 = vmatprep.subr.mxu0 0.0
      %8121 = vmatpush1.msra.mxu0 0.0
      %8122 = vmatprep.subr.mxu0 0.0
      %8123 = vmatpush1.msra.mxu0 0.0
      %8124 = vmatprep.subr.mxu0 0.0
      %8125 = vmatpush1.msra.mxu0 0.0
      %8126 = vmatprep.subr.mxu0 0.0
      %8127 = vmatpush1.msra.mxu0 0.0
      %8128 = vmatprep.subr.mxu0 0.0
      %8129 = vmatpush1.msra.mxu0 0.0
      %8130 = vmatprep.subr.mxu0 0.0
      %8131 = vmatpush1.msra.mxu0 0.0
      %8132 = vmatprep.subr.mxu0 0.0
      %8133 = vmatpush1.msra.mxu0 0.0
      %8134 = vmatprep.subr.mxu0 0.0
      %8135 = vmatpush1.msra.mxu0 %v8102
      %8136 = vmatprep.subr.mxu0 0.0
      %8137 = vmatpush2.msra.mxu0 0.0
      %8138 = vmatprep.subr.mxu0 0.0
      %8139 = vmatpush2.msra.mxu0 0.0
      %8140 = vmatprep.subr.mxu0 0.0
      %8141 = vmatpush2.msra.mxu0 0.0
      %8142 = vmatprep.subr.mxu0 0.0
      %8143 = vmatpush2.msra.mxu0 0.0
      %8144 = vmatprep.subr.mxu0 0.0
      %8145 = vmatpush2.msra.mxu0 0.0
      %8146 = vmatprep.subr.mxu0 0.0
      %8147 = vmatpush2.msra.mxu0 0.0
      %8148 = vmatprep.subr.mxu0 0.0
      %8149 = vmatpush2.msra.mxu0 0.0
      %8150 = vmatprep.subr.mxu0 0.0
      %8151 = vmatpush2.msra.mxu0 0.0
      %8152 = vmatprep.subr.mxu0 0.0
      %8153 = vmatpush2.msra.mxu0 0.0
      %8154 = vmatprep.subr.mxu0 0.0
      %8155 = vmatpush2.msra.mxu0 0.0
      %8156 = vmatprep.subr.mxu0 0.0
      %8157 = vmatpush2.msra.mxu0 0.0
      %8158 = vmatprep.subr.mxu0 0.0
      %8159 = vmatpush2.msra.mxu0 0.0
      %8160 = vmatprep.subr.mxu0 0.0
      %8161 = vmatpush2.msra.mxu0 0.0
      %8162 = vmatprep.subr.mxu0 0.0
      %8163 = vmatpush2.msra.mxu0 0.0
      %8164 = vmatprep.subr.mxu0 0.0
      %8165 = vmatpush2.msra.mxu0 0.0
      %8166 = vmatprep.subr.mxu0 0.0
      %8167 = vmatpush2.msra.mxu0 0.0
      %8168 = vmatprep.mubr.f32.mxu0 0.0
      %8169 = vmatmul.mubr.f32.gmra.mxu0 %v6039
      %v8170 = vpop.f32.mrf.mxu0
      %v8171 = vadd.f32 0.0, %v8170
      %v8172 = vpop.f32.mrf.mxu0
      %8173 = vmatprep.mubr.f32.mxu0 0.0
      %8174 = vmatmul.mubr.f32.gmra.mxu0 %v6041
      %v8175 = vpop.f32.mrf.mxu0
      %v8176 = vadd.f32 0.0, %v8175
      %v8177 = vpop.f32.mrf.mxu0
      %8178 = vmatprep.mubr.f32.mxu0 0.0
      %8179 = vmatmul.mubr.f32.gmra.mxu0 %v6043
      %v8180 = vpop.f32.mrf.mxu0
      %v8181 = vadd.f32 0.0, %v8180
      %v8182 = vpop.f32.mrf.mxu0
      %8183 = vmatprep.mubr.f32.mxu0 0.0
      %8184 = vmatmul.mubr.f32.gmra.mxu0 %v6045
      %v8185 = vpop.f32.mrf.mxu0
      %v8186 = vadd.f32 0.0, %v8185
      %v8187 = vpop.f32.mrf.mxu0
      %8188 = vmatprep.mubr.f32.mxu0 0.0
      %8189 = vmatmul.mubr.f32.gmra.mxu0 %v6047
      %v8190 = vpop.f32.mrf.mxu0
      %v8191 = vadd.f32 0.0, %v8190
      %v8192 = vpop.f32.mrf.mxu0
      %8193 = vmatprep.mubr.f32.mxu0 0.0
      %8194 = vmatmul.mubr.f32.gmra.mxu0 %v6049
      %v8195 = vpop.f32.mrf.mxu0
      %v8196 = vadd.f32 0.0, %v8195
      %v8197 = vpop.f32.mrf.mxu0
      %8198 = vmatprep.mubr.f32.mxu0 0.0
      %8199 = vmatmul.mubr.f32.gmra.mxu0 %v6051
      %v8200 = vpop.f32.mrf.mxu0
      %v8201 = vadd.f32 0.0, %v8200
      %v8202 = vpop.f32.mrf.mxu0
      %8203 = vmatprep.mubr.f32.mxu0 0.0
      %8204 = vmatmul.mubr.f32.gmra.mxu0 %v6053
      %v8205 = vpop.f32.mrf.mxu0
      %v8206 = vadd.f32 0.0, %v8205
      %v8207 = vpop.f32.mrf.mxu0
      %8208 = vmatprep.mubr.f32.mxu0 0.0
      %8209 = vmatmul.mubr.f32.gmra.mxu0 %v6055
      %v8210 = vpop.f32.mrf.mxu0
      %v8211 = vadd.f32 0.0, %v8210
      %v8212 = vpop.f32.mrf.mxu0
      %8213 = vmatprep.mubr.f32.mxu0 0.0
      %8214 = vmatmul.mubr.f32.gmra.mxu0 %v6057
      %v8215 = vpop.f32.mrf.mxu0
      %v8216 = vadd.f32 0.0, %v8215
      %v8217 = vpop.f32.mrf.mxu0
      %8218 = vmatprep.mubr.f32.mxu0 0.0
      %8219 = vmatmul.mubr.f32.gmra.mxu0 %v6059
      %v8220 = vpop.f32.mrf.mxu0
      %v8221 = vadd.f32 0.0, %v8220
      %v8222 = vpop.f32.mrf.mxu0
      %8223 = vmatprep.mubr.f32.mxu0 0.0
      %8224 = vmatmul.mubr.f32.gmra.mxu0 %v6061
      %v8225 = vpop.f32.mrf.mxu0
      %v8226 = vadd.f32 0.0, %v8225
      %v8227 = vpop.f32.mrf.mxu0
      %8228 = vmatprep.mubr.f32.mxu0 0.0
      %8229 = vmatmul.mubr.f32.gmra.mxu0 %v6063
      %v8230 = vpop.f32.mrf.mxu0
      %v8231 = vadd.f32 0.0, %v8230
      %v8232 = vpop.f32.mrf.mxu0
      %8233 = vmatprep.mubr.f32.mxu0 0.0
      %8234 = vmatmul.mubr.f32.gmra.mxu0 %v6065
      %v8235 = vpop.f32.mrf.mxu0
      %v8236 = vadd.f32 0.0, %v8235
      %v8237 = vpop.f32.mrf.mxu0
      %8238 = vmatprep.mubr.f32.mxu0 0.0
      %8239 = vmatmul.mubr.f32.gmra.mxu0 %v6067
      %v8240 = vpop.f32.mrf.mxu0
      %v8241 = vadd.f32 0.0, %v8240
      %v8242 = vpop.f32.mrf.mxu0
      %8243 = vmatprep.mubr.f32.mxu0 0.0
      %8244 = vmatmul.mubr.f32.gmra.mxu0 %v6069
      %v8245 = vpop.f32.mrf.mxu0
      %v8246 = vadd.f32 0.0, %v8245
      %v8247 = vpop.f32.mrf.mxu0
      %8248 = vmatprep.mubr.f32.mxu0 0.0
      %8249 = vmatmul.mubr.f32.gmra.mxu0 %v6071
      %v8250 = vpop.f32.mrf.mxu0
      %v8251 = vadd.f32 0.0, %v8250
      %v8252 = vpop.f32.mrf.mxu0
      %8253 = vmatprep.mubr.f32.mxu0 0.0
      %8254 = vmatmul.mubr.f32.gmra.mxu0 %v6073
      %v8255 = vpop.f32.mrf.mxu0
      %v8256 = vadd.f32 0.0, %v8255
      %v8257 = vpop.f32.mrf.mxu0
      %8258 = vmatprep.mubr.f32.mxu0 0.0
      %8259 = vmatmul.mubr.f32.gmra.mxu0 %v6075
      %v8260 = vpop.f32.mrf.mxu0
      %v8261 = vadd.f32 0.0, %v8260
      %v8262 = vpop.f32.mrf.mxu0
      %8263 = vmatprep.mubr.f32.mxu0 0.0
      %8264 = vmatmul.mubr.f32.gmra.mxu0 %v6077
      %v8265 = vpop.f32.mrf.mxu0
      %v8266 = vadd.f32 0.0, %v8265
      %v8267 = vpop.f32.mrf.mxu0
      %8268 = vmatprep.mubr.f32.mxu0 0.0
      %8269 = vmatmul.mubr.f32.gmra.mxu0 %v6079
      %v8270 = vpop.f32.mrf.mxu0
      %v8271 = vadd.f32 0.0, %v8270
      %v8272 = vpop.f32.mrf.mxu0
      %8273 = vmatprep.mubr.f32.mxu0 0.0
      %8274 = vmatmul.mubr.f32.gmra.mxu0 %v6081
      %v8275 = vpop.f32.mrf.mxu0
      %v8276 = vadd.f32 0.0, %v8275
      %v8277 = vpop.f32.mrf.mxu0
      %8278 = vmatprep.mubr.f32.mxu0 0.0
      %8279 = vmatmul.mubr.f32.gmra.mxu0 %v6083
      %v8280 = vpop.f32.mrf.mxu0
      %v8281 = vadd.f32 0.0, %v8280
      %v8282 = vpop.f32.mrf.mxu0
      %8283 = vmatprep.mubr.f32.mxu0 0.0
      %8284 = vmatmul.mubr.f32.gmra.mxu0 %v6085
      %v8285 = vpop.f32.mrf.mxu0
      %v8286 = vadd.f32 0.0, %v8285
      %v8287 = vpop.f32.mrf.mxu0
      %8288 = vmatprep.mubr.f32.mxu0 0.0
      %8289 = vmatmul.mubr.f32.gmra.mxu0 %v6087
      %v8290 = vpop.f32.mrf.mxu0
      %v8291 = vadd.f32 0.0, %v8290
      %v8292 = vpop.f32.mrf.mxu0
      %8293 = vmatprep.mubr.f32.mxu0 0.0
      %8294 = vmatmul.mubr.f32.gmra.mxu0 %v6089
      %v8295 = vpop.f32.mrf.mxu0
      %v8296 = vadd.f32 0.0, %v8295
      %v8297 = vpop.f32.mrf.mxu0
      %8298 = vmatprep.mubr.f32.mxu0 0.0
      %8299 = vmatmul.mubr.f32.gmra.mxu0 %v6091
      %v8300 = vpop.f32.mrf.mxu0
      %v8301 = vadd.f32 0.0, %v8300
      %v8302 = vpop.f32.mrf.mxu0
      %8303 = vmatprep.mubr.f32.mxu0 0.0
      %8304 = vmatmul.mubr.f32.gmra.mxu0 %v6093
      %v8305 = vpop.f32.mrf.mxu0
      %v8306 = vadd.f32 0.0, %v8305
      %v8307 = vpop.f32.mrf.mxu0
      %8308 = vmatprep.mubr.f32.mxu0 0.0
      %8309 = vmatmul.mubr.f32.gmra.mxu0 %v7094
      %v8310 = vpop.f32.mrf.mxu0
      %v8311 = vadd.f32 0.0, %v8310
      %v8312 = vpop.f32.mrf.mxu0
      %8313 = vmatprep.mubr.f32.mxu0 0.0
      %8314 = vmatmul.mubr.f32.gmra.mxu0 %v7096
      %v8315 = vpop.f32.mrf.mxu0
      %v8316 = vadd.f32 0.0, %v8315
      %v8317 = vpop.f32.mrf.mxu0
      %8318 = vmatprep.mubr.f32.mxu0 0.0
      %8319 = vmatmul.mubr.f32.gmra.mxu0 %v8097
      %v8320 = vpop.f32.mrf.mxu0
      %v8321 = vadd.f32 0.0, %v8320
      %v8322 = vpop.f32.mrf.mxu0
      %8323 = vmatprep.mubr.f32.mxu0 0.0
      %8324 = vmatmul.mubr.f32.gmra.mxu0 %v8099
      %v8325 = vpop.f32.mrf.mxu0
      %v8326 = vadd.f32 0.0, %v8325
      %v8327 = vpop.f32.mrf.mxu0
      %8328 = vdwg.mxu0
      %v8329 = vld [vmem:[#allocation3] sm:$0xff]
      %v8330 = vld [vmem:[#allocation3 + $0x8] sm:$0xff]
      %v8331 = vld [vmem:[#allocation3 + $0x10] sm:$0xff]
      %v8332 = vld [vmem:[#allocation3 + $0x18] sm:$0xff]
      %v8333 = vld [vmem:[#allocation3 + $0x20] sm:$0xff]
      %v8334 = vld [vmem:[#allocation3 + $0x28] sm:$0xff]
      %v8335 = vld [vmem:[#allocation3 + $0x30] sm:$0xff]
      %v8336 = vld [vmem:[#allocation3 + $0x38] sm:$0xff]
      %v8337 = vld [vmem:[#allocation3 + $0x40] sm:$0xff]
      %v8338 = vld [vmem:[#allocation3 + $0x48] sm:$0xff]
      %v8339 = vld [vmem:[#allocation3 + $0x50] sm:$0xff]
      %v8340 = vld [vmem:[#allocation3 + $0x58] sm:$0xff]
      %v8341 = vld [vmem:[#allocation3 + $0x60] sm:$0xff]
      %v8342 = vld [vmem:[#allocation3 + $0x68] sm:$0xff]
      %v8343 = vld [vmem:[#allocation3 + $0x70] sm:$0xff]
      %v8344 = vld [vmem:[#allocation3 + $0x78] sm:$0xff]
      %v8345 = vld [vmem:[#allocation3 + $0x80] sm:$0xff]
      %v8346 = vld [vmem:[#allocation3 + $0x88] sm:$0xff]
      %v8347 = vld [vmem:[#allocation3 + $0x90] sm:$0xff]
      %v8348 = vld [vmem:[#allocation3 + $0x98] sm:$0xff]
      %v8349 = vld [vmem:[#allocation3 + $0xa0] sm:$0xff]
      %v8350 = vld [vmem:[#allocation3 + $0xa8] sm:$0xff]
      %v8351 = vld [vmem:[#allocation3 + $0xb0] sm:$0xff]
      %v8352 = vld [vmem:[#allocation3 + $0xb8] sm:$0xff]
      %v8353 = vld [vmem:[#allocation3 + $0xc0] sm:$0xff]
      %v8354 = vld [vmem:[#allocation3 + $0xc8] sm:$0xff]
      %v8355 = vld [vmem:[#allocation3 + $0xd0] sm:$0xff]
      %v8356 = vld [vmem:[#allocation3 + $0xd8] sm:$0xff]
      %v8357 = vld [vmem:[#allocation3 + $0xe0] sm:$0xff]
      %v8358 = vld [vmem:[#allocation3 + $0xe8] sm:$0xff]
      %v8359 = vld [vmem:[#allocation3 + $0xf0] sm:$0xff]
      %v8360 = vld [vmem:[#allocation3 + $0xf8] sm:$0xff]
      %v8361 = vadd.f32 %v8329, %v8171
      %v8362 = vadd.f32 %v8330, %v8176
      %v8363 = vadd.f32 %v8331, %v8181
      %v8364 = vadd.f32 %v8332, %v8186
      %v8365 = vadd.f32 %v8333, %v8191
      %v8366 = vadd.f32 %v8334, %v8196
      %v8367 = vadd.f32 %v8335, %v8201
      %v8368 = vadd.f32 %v8336, %v8206
      %v8369 = vadd.f32 %v8337, %v8211
      %v8370 = vadd.f32 %v8338, %v8216
      %v8371 = vadd.f32 %v8339, %v8221
      %v8372 = vadd.f32 %v8340, %v8226
      %v8373 = vadd.f32 %v8341, %v8231
      %v8374 = vadd.f32 %v8342, %v8236
      %v8375 = vadd.f32 %v8343, %v8241
      %v8376 = vadd.f32 %v8344, %v8246
      %v8377 = vadd.f32 %v8345, %v8251
      %v8378 = vadd.f32 %v8346, %v8256
      %v8379 = vadd.f32 %v8347, %v8261
      %v8380 = vadd.f32 %v8348, %v8266
      %v8381 = vadd.f32 %v8349, %v8271
      %v8382 = vadd.f32 %v8350, %v8276
      %v8383 = vadd.f32 %v8351, %v8281
      %v8384 = vadd.f32 %v8352, %v8286
      %v8385 = vadd.f32 %v8353, %v8291
      %v8386 = vadd.f32 %v8354, %v8296
      %v8387 = vadd.f32 %v8355, %v8301
      %v8388 = vadd.f32 %v8356, %v8306
      %v8389 = vadd.f32 %v8357, %v8311
      %v8390 = vadd.f32 %v8358, %v8316
      %v8391 = vadd.f32 %v8359, %v8321
      %v8392 = vadd.f32 %v8360, %v8326
      %8393 = vst.msk [vmem:[#allocation3] sm:$0xff] %vm1331, %v8361
      %8394 = vst.msk [vmem:[#allocation3 + $0x8] sm:$0xff] %vm1331, %v8362
      %8395 = vst.msk [vmem:[#allocation3 + $0x10] sm:$0xff] %vm1331, %v8363
      %8396 = vst.msk [vmem:[#allocation3 + $0x18] sm:$0xff] %vm1331, %v8364
      %8397 = vst.msk [vmem:[#allocation3 + $0x20] sm:$0xff] %vm1331, %v8365
      %8398 = vst.msk [vmem:[#allocation3 + $0x28] sm:$0xff] %vm1331, %v8366
      %8399 = vst.msk [vmem:[#allocation3 + $0x30] sm:$0xff] %vm1331, %v8367
      %8400 = vst.msk [vmem:[#allocation3 + $0x38] sm:$0xff] %vm1331, %v8368
      %8401 = vst.msk [vmem:[#allocation3 + $0x40] sm:$0xff] %vm1331, %v8369
      %8402 = vst.msk [vmem:[#allocation3 + $0x48] sm:$0xff] %vm1331, %v8370
      %8403 = vst.msk [vmem:[#allocation3 + $0x50] sm:$0xff] %vm1331, %v8371
      %8404 = vst.msk [vmem:[#allocation3 + $0x58] sm:$0xff] %vm1331, %v8372
      %8405 = vst.msk [vmem:[#allocation3 + $0x60] sm:$0xff] %vm1331, %v8373
      %8406 = vst.msk [vmem:[#allocation3 + $0x68] sm:$0xff] %vm1331, %v8374
      %8407 = vst.msk [vmem:[#allocation3 + $0x70] sm:$0xff] %vm1331, %v8375
      %8408 = vst.msk [vmem:[#allocation3 + $0x78] sm:$0xff] %vm1331, %v8376
      %8409 = vst.msk [vmem:[#allocation3 + $0x80] sm:$0xff] %vm1331, %v8377
      %8410 = vst.msk [vmem:[#allocation3 + $0x88] sm:$0xff] %vm1331, %v8378
      %8411 = vst.msk [vmem:[#allocation3 + $0x90] sm:$0xff] %vm1331, %v8379
      %8412 = vst.msk [vmem:[#allocation3 + $0x98] sm:$0xff] %vm1331, %v8380
      %8413 = vst.msk [vmem:[#allocation3 + $0xa0] sm:$0xff] %vm1331, %v8381
      %8414 = vst.msk [vmem:[#allocation3 + $0xa8] sm:$0xff] %vm1331, %v8382
      %8415 = vst.msk [vmem:[#allocation3 + $0xb0] sm:$0xff] %vm1331, %v8383
      %8416 = vst.msk [vmem:[#allocation3 + $0xb8] sm:$0xff] %vm1331, %v8384
      %8417 = vst.msk [vmem:[#allocation3 + $0xc0] sm:$0xff] %vm1331, %v8385
      %8418 = vst.msk [vmem:[#allocation3 + $0xc8] sm:$0xff] %vm1331, %v8386
      %8419 = vst.msk [vmem:[#allocation3 + $0xd0] sm:$0xff] %vm1331, %v8387
      %8420 = vst.msk [vmem:[#allocation3 + $0xd8] sm:$0xff] %vm1331, %v8388
      %8421 = vst.msk [vmem:[#allocation3 + $0xe0] sm:$0xff] %vm1331, %v8389
      %8422 = vst.msk [vmem:[#allocation3 + $0xe8] sm:$0xff] %vm1331, %v8390
      %8423 = vst.msk [vmem:[#allocation3 + $0xf0] sm:$0xff] %vm1331, %v8391
      %8424 = vst.msk [vmem:[#allocation3 + $0xf8] sm:$0xff] %vm1331, %v8392
      %v8425 = vld [vmem:[#allocation3] sm:$0xff]
      %v8426 = vld [vmem:[#allocation3 + $0x8] sm:$0xff]
      %v8427 = vld [vmem:[#allocation3 + $0x10] sm:$0xff]
      %v8428 = vld [vmem:[#allocation3 + $0x18] sm:$0xff]
      %v8429 = vld [vmem:[#allocation3 + $0x20] sm:$0xff]
      %v8430 = vld [vmem:[#allocation3 + $0x28] sm:$0xff]
      %v8431 = vld [vmem:[#allocation3 + $0x30] sm:$0xff]
      %v8432 = vld [vmem:[#allocation3 + $0x38] sm:$0xff]
      %v8433 = vld [vmem:[#allocation3 + $0x40] sm:$0xff]
      %v8434 = vld [vmem:[#allocation3 + $0x48] sm:$0xff]
      %v8435 = vld [vmem:[#allocation3 + $0x50] sm:$0xff]
      %v8436 = vld [vmem:[#allocation3 + $0x58] sm:$0xff]
      %v8437 = vld [vmem:[#allocation3 + $0x60] sm:$0xff]
      %v8438 = vld [vmem:[#allocation3 + $0x68] sm:$0xff]
      %v8439 = vld [vmem:[#allocation3 + $0x70] sm:$0xff]
      %v8440 = vld [vmem:[#allocation3 + $0x78] sm:$0xff]
      %v8441 = vld [vmem:[#allocation3 + $0x80] sm:$0xff]
      %v8442 = vld [vmem:[#allocation3 + $0x88] sm:$0xff]
      %v8443 = vld [vmem:[#allocation3 + $0x90] sm:$0xff]
      %v8444 = vld [vmem:[#allocation3 + $0x98] sm:$0xff]
      %v8445 = vld [vmem:[#allocation3 + $0xa0] sm:$0xff]
      %v8446 = vld [vmem:[#allocation3 + $0xa8] sm:$0xff]
      %v8447 = vld [vmem:[#allocation3 + $0xb0] sm:$0xff]
      %v8448 = vld [vmem:[#allocation3 + $0xb8] sm:$0xff]
      %v8449 = vld [vmem:[#allocation3 + $0xc0] sm:$0xff]
      %v8450 = vld [vmem:[#allocation3 + $0xc8] sm:$0xff]
      %v8451 = vld [vmem:[#allocation3 + $0xd0] sm:$0xff]
      %v8452 = vld [vmem:[#allocation3 + $0xd8] sm:$0xff]
      %v8453 = vld [vmem:[#allocation3 + $0xe0] sm:$0xff]
      %v8454 = vld [vmem:[#allocation3 + $0xe8] sm:$0xff]
      %v8455 = vld [vmem:[#allocation3 + $0xf0] sm:$0xff]
      %v8456 = vld [vmem:[#allocation3 + $0xf8] sm:$0xff]
      %s8457 = scalar_lea.vmem %s5, 1
      %v8458 = vld [vmem:[%s8457] sm:$0x1]
      %v8460 = vlaneseq
      %v8461 = vshrl.u32 %v8460, 7
      %v8462 = vsub.s32 0, %v8461
      %v8463 = vrot.slane %v8458, %v8462
      %v8465 = vmul.f32 %v8425, %v8463
      %v8466 = vmul.f32 %v8426, %v8463
      %v8467 = vmul.f32 %v8427, %v8463
      %v8468 = vmul.f32 %v8428, %v8463
      %v8469 = vmul.f32 %v8429, %v8463
      %v8470 = vmul.f32 %v8430, %v8463
      %v8471 = vmul.f32 %v8431, %v8463
      %v8472 = vmul.f32 %v8432, %v8463
      %v8473 = vmul.f32 %v8433, %v8463
      %v8474 = vmul.f32 %v8434, %v8463
      %v8475 = vmul.f32 %v8435, %v8463
      %v8476 = vmul.f32 %v8436, %v8463
      %v8477 = vmul.f32 %v8437, %v8463
      %v8478 = vmul.f32 %v8438, %v8463
      %v8479 = vmul.f32 %v8439, %v8463
      %v8480 = vmul.f32 %v8440, %v8463
      %v8481 = vmul.f32 %v8441, %v8463
      %v8482 = vmul.f32 %v8442, %v8463
      %v8483 = vmul.f32 %v8443, %v8463
      %v8484 = vmul.f32 %v8444, %v8463
      %v8485 = vmul.f32 %v8445, %v8463
      %v8486 = vmul.f32 %v8446, %v8463
      %v8487 = vmul.f32 %v8447, %v8463
      %v8488 = vmul.f32 %v8448, %v8463
      %v8489 = vmul.f32 %v8449, %v8463
      %v8490 = vmul.f32 %v8450, %v8463
      %v8491 = vmul.f32 %v8451, %v8463
      %v8492 = vmul.f32 %v8452, %v8463
      %v8493 = vmul.f32 %v8453, %v8463
      %v8494 = vmul.f32 %v8454, %v8463
      %v8495 = vmul.f32 %v8455, %v8463
      %v8496 = vmul.f32 %v8456, %v8463
      %s8497 = scalar_lea.vmem %s6, 1
      %v8498 = vld [vmem:[%s8497] sm:$0x1]
      %v8500 = vlaneseq
      %v8501 = vshrl.u32 %v8500, 7
      %v8502 = vsub.s32 0, %v8501
      %v8503 = vrot.slane %v8498, %v8502
      %v8505 = vadd.f32 %v8465, %v8503
      %v8506 = vadd.f32 %v8466, %v8503
      %v8507 = vadd.f32 %v8467, %v8503
      %v8508 = vadd.f32 %v8468, %v8503
      %v8509 = vadd.f32 %v8469, %v8503
      %v8510 = vadd.f32 %v8470, %v8503
      %v8511 = vadd.f32 %v8471, %v8503
      %v8512 = vadd.f32 %v8472, %v8503
      %v8513 = vadd.f32 %v8473, %v8503
      %v8514 = vadd.f32 %v8474, %v8503
      %v8515 = vadd.f32 %v8475, %v8503
      %v8516 = vadd.f32 %v8476, %v8503
      %v8517 = vadd.f32 %v8477, %v8503
      %v8518 = vadd.f32 %v8478, %v8503
      %v8519 = vadd.f32 %v8479, %v8503
      %v8520 = vadd.f32 %v8480, %v8503
      %v8521 = vadd.f32 %v8481, %v8503
      %v8522 = vadd.f32 %v8482, %v8503
      %v8523 = vadd.f32 %v8483, %v8503
      %v8524 = vadd.f32 %v8484, %v8503
      %v8525 = vadd.f32 %v8485, %v8503
      %v8526 = vadd.f32 %v8486, %v8503
      %v8527 = vadd.f32 %v8487, %v8503
      %v8528 = vadd.f32 %v8488, %v8503
      %v8529 = vadd.f32 %v8489, %v8503
      %v8530 = vadd.f32 %v8490, %v8503
      %v8531 = vadd.f32 %v8491, %v8503
      %v8532 = vadd.f32 %v8492, %v8503
      %v8533 = vadd.f32 %v8493, %v8503
      %v8534 = vadd.f32 %v8494, %v8503
      %v8535 = vadd.f32 %v8495, %v8503
      %v8536 = vadd.f32 %v8496, %v8503
      %v8537 = vmax.f32 %v8505, 0.0
      %v8538 = vmax.f32 %v8506, 0.0
      %v8539 = vmax.f32 %v8507, 0.0
      %v8540 = vmax.f32 %v8508, 0.0
      %v8541 = vmax.f32 %v8509, 0.0
      %v8542 = vmax.f32 %v8510, 0.0
      %v8543 = vmax.f32 %v8511, 0.0
      %v8544 = vmax.f32 %v8512, 0.0
      %v8545 = vmax.f32 %v8513, 0.0
      %v8546 = vmax.f32 %v8514, 0.0
      %v8547 = vmax.f32 %v8515, 0.0
      %v8548 = vmax.f32 %v8516, 0.0
      %v8549 = vmax.f32 %v8517, 0.0
      %v8550 = vmax.f32 %v8518, 0.0
      %v8551 = vmax.f32 %v8519, 0.0
      %v8552 = vmax.f32 %v8520, 0.0
      %v8553 = vmax.f32 %v8521, 0.0
      %v8554 = vmax.f32 %v8522, 0.0
      %v8555 = vmax.f32 %v8523, 0.0
      %v8556 = vmax.f32 %v8524, 0.0
      %v8557 = vmax.f32 %v8525, 0.0
      %v8558 = vmax.f32 %v8526, 0.0
      %v8559 = vmax.f32 %v8527, 0.0
      %v8560 = vmax.f32 %v8528, 0.0
      %v8561 = vmax.f32 %v8529, 0.0
      %v8562 = vmax.f32 %v8530, 0.0
      %v8563 = vmax.f32 %v8531, 0.0
      %v8564 = vmax.f32 %v8532, 0.0
      %v8565 = vmax.f32 %v8533, 0.0
      %v8566 = vmax.f32 %v8534, 0.0
      %v8567 = vmax.f32 %v8535, 0.0
      %v8568 = vmax.f32 %v8536, 0.0
      %s8569 = scalar_lea.vmem %s7, 32
      %v8570 = vld [vmem:[%s8569] sm:$0xff]
      %v8571 = vld [vmem:[%s8569 + $0x8] sm:$0xff]
      %v8572 = vld [vmem:[%s8569 + $0x10] sm:$0xff]
      %v8573 = vld [vmem:[%s8569 + $0x18] sm:$0xff]
      %v8575 = vsel %vm1331, %v8570, 0
      %v8578 = vsel %vm1331, %v8571, 0
      %v8581 = vsel %vm1331, %v8572, 0
      %v8584 = vsel %vm1331, %v8573, 0
      %v8587 = vsel %vm1331, %v8537, 0
      %v8590 = vsel %vm1331, %v8538, 0
      %v8593 = vsel %vm1331, %v8539, 0
      %v8596 = vsel %vm1331, %v8540, 0
      %v8599 = vsel %vm1331, %v8541, 0
      %v8602 = vsel %vm1331, %v8542, 0
      %v8605 = vsel %vm1331, %v8543, 0
      %v8608 = vsel %vm1331, %v8544, 0
      %v8611 = vsel %vm1331, %v8545, 0
      %v8614 = vsel %vm1331, %v8546, 0
      %v8617 = vsel %vm1331, %v8547, 0
      %v8620 = vsel %vm1331, %v8548, 0
      %v8623 = vsel %vm1331, %v8549, 0
      %v8626 = vsel %vm1331, %v8550, 0
      %v8629 = vsel %vm1331, %v8551, 0
      %v8632 = vsel %vm1331, %v8552, 0
      %v8635 = vsel %vm1331, %v8553, 0
      %v8638 = vsel %vm1331, %v8554, 0
      %v8641 = vsel %vm1331, %v8555, 0
      %v8644 = vsel %vm1331, %v8556, 0
      %v8647 = vsel %vm1331, %v8557, 0
      %v8650 = vsel %vm1331, %v8558, 0
      %v8653 = vsel %vm1331, %v8559, 0
      %v8656 = vsel %vm1331, %v8560, 0
      %v8659 = vsel %vm1331, %v8561, 0
      %v8662 = vsel %vm1331, %v8562, 0
      %v8665 = vsel %vm1331, %v8563, 0
      %v8668 = vsel %vm1331, %v8564, 0
      %v8671 = vsel %vm1331, %v8565, 0
      %v8674 = vsel %vm1331, %v8566, 0
      %v8677 = vsel %vm1331, %v8567, 0
      %v8680 = vsel %vm1331, %v8568, 0
      %8682 = vmatprep.subr.mxu0 0.0
      %8683 = vmatpush1.xpose.msra.mxu0 %v8632
      %8684 = vmatprep.subr.mxu0 0.0
      %8685 = vmatpush1.xpose.msra.mxu0 %v8629
      %8686 = vmatprep.subr.mxu0 0.0
      %8687 = vmatpush1.xpose.msra.mxu0 %v8626
      %8688 = vmatprep.subr.mxu0 0.0
      %8689 = vmatpush1.xpose.msra.mxu0 %v8623
      %8690 = vmatprep.subr.mxu0 0.0
      %8691 = vmatpush1.xpose.msra.mxu0 %v8620
      %8692 = vmatprep.subr.mxu0 0.0
      %8693 = vmatpush1.xpose.msra.mxu0 %v8617
      %8694 = vmatprep.subr.mxu0 0.0
      %8695 = vmatpush1.xpose.msra.mxu0 %v8614
      %8696 = vmatprep.subr.mxu0 0.0
      %8697 = vmatpush1.xpose.msra.mxu0 %v8611
      %8698 = vmatprep.subr.mxu0 0.0
      %8699 = vmatpush1.xpose.msra.mxu0 %v8608
      %8700 = vmatprep.subr.mxu0 0.0
      %8701 = vmatpush1.xpose.msra.mxu0 %v8605
      %8702 = vmatprep.subr.mxu0 0.0
      %8703 = vmatpush1.xpose.msra.mxu0 %v8602
      %8704 = vmatprep.subr.mxu0 0.0
      %8705 = vmatpush1.xpose.msra.mxu0 %v8599
      %8706 = vmatprep.subr.mxu0 0.0
      %8707 = vmatpush1.xpose.msra.mxu0 %v8596
      %8708 = vmatprep.subr.mxu0 0.0
      %8709 = vmatpush1.xpose.msra.mxu0 %v8593
      %8710 = vmatprep.subr.mxu0 0.0
      %8711 = vmatpush1.xpose.msra.mxu0 %v8590
      %8712 = vmatprep.subr.mxu0 0.0
      %8713 = vmatpush1.xpose.msra.mxu0 %v8587
      %8714 = vmatprep.subr.mxu0 0.0
      %8715 = vmatpush2.xpose.msra.mxu0 %v8680
      %8716 = vmatprep.subr.mxu0 0.0
      %8717 = vmatpush2.xpose.msra.mxu0 %v8677
      %8718 = vmatprep.subr.mxu0 0.0
      %8719 = vmatpush2.xpose.msra.mxu0 %v8674
      %8720 = vmatprep.subr.mxu0 0.0
      %8721 = vmatpush2.xpose.msra.mxu0 %v8671
      %8722 = vmatprep.subr.mxu0 0.0
      %8723 = vmatpush2.xpose.msra.mxu0 %v8668
      %8724 = vmatprep.subr.mxu0 0.0
      %8725 = vmatpush2.xpose.msra.mxu0 %v8665
      %8726 = vmatprep.subr.mxu0 0.0
      %8727 = vmatpush2.xpose.msra.mxu0 %v8662
      %8728 = vmatprep.subr.mxu0 0.0
      %8729 = vmatpush2.xpose.msra.mxu0 %v8659
      %8730 = vmatprep.subr.mxu0 0.0
      %8731 = vmatpush2.xpose.msra.mxu0 %v8656
      %8732 = vmatprep.subr.mxu0 0.0
      %8733 = vmatpush2.xpose.msra.mxu0 %v8653
      %8734 = vmatprep.subr.mxu0 0.0
      %8735 = vmatpush2.xpose.msra.mxu0 %v8650
      %8736 = vmatprep.subr.mxu0 0.0
      %8737 = vmatpush2.xpose.msra.mxu0 %v8647
      %8738 = vmatprep.subr.mxu0 0.0
      %8739 = vmatpush2.xpose.msra.mxu0 %v8644
      %8740 = vmatprep.subr.mxu0 0.0
      %8741 = vmatpush2.xpose.msra.mxu0 %v8641
      %8742 = vmatprep.subr.mxu0 0.0
      %8743 = vmatpush2.xpose.msra.mxu0 %v8638
      %8744 = vmatprep.subr.mxu0 0.0
      %8745 = vmatpush2.xpose.msra.mxu0 %v8635
      %8746 = vmatprep.mubr.f32.mxu0 0.0
      %8747 = vmatmul.mubr.f32.gmra.mxu0 %v8575
      %v8748 = vpop.f32.mrf.mxu0
      %v8749 = vadd.f32 0.0, %v8748
      %v8750 = vpop.f32.mrf.mxu0
      %v8751 = vadd.f32 0.0, %v8750
      %8752 = vmatprep.mubr.f32.mxu0 0.0
      %8753 = vmatmul.mubr.f32.gmra.mxu0 %v8578
      %v8754 = vpop.f32.mrf.mxu0
      %v8755 = vadd.f32 0.0, %v8754
      %v8756 = vpop.f32.mrf.mxu0
      %v8757 = vadd.f32 0.0, %v8756
      %8758 = vmatprep.mubr.f32.mxu0 0.0
      %8759 = vmatmul.mubr.f32.gmra.mxu0 %v8581
      %v8760 = vpop.f32.mrf.mxu0
      %v8761 = vadd.f32 0.0, %v8760
      %v8762 = vpop.f32.mrf.mxu0
      %v8763 = vadd.f32 0.0, %v8762
      %8764 = vmatprep.mubr.f32.mxu0 0.0
      %8765 = vmatmul.mubr.f32.gmra.mxu0 %v8584
      %v8766 = vpop.f32.mrf.mxu0
      %v8767 = vadd.f32 0.0, %v8766
      %v8768 = vpop.f32.mrf.mxu0
      %v8769 = vadd.f32 0.0, %v8768
      %8770 = vdwg.mxu0
      %v8771 = vld [vmem:[%s359] sm:$0xff]
      %v8772 = vld [vmem:[%s359 + $0x8] sm:$0xff]
      %v8773 = vld [vmem:[%s359 + $0x10] sm:$0xff]
      %v8774 = vld [vmem:[%s359 + $0x18] sm:$0xff]
      %v8775 = vld [vmem:[%s359 + $0x20] sm:$0xff]
      %v8776 = vld [vmem:[%s359 + $0x28] sm:$0xff]
      %v8777 = vld [vmem:[%s359 + $0x30] sm:$0xff]
      %v8778 = vld [vmem:[%s359 + $0x38] sm:$0xff]
      %v8779 = vadd.f32 %v8771, %v8749
      %v8780 = vadd.f32 %v8772, %v8751
      %v8781 = vadd.f32 %v8773, %v8755
      %v8782 = vadd.f32 %v8774, %v8757
      %v8783 = vadd.f32 %v8775, %v8761
      %v8784 = vadd.f32 %v8776, %v8763
      %v8785 = vadd.f32 %v8777, %v8767
      %v8786 = vadd.f32 %v8778, %v8769
      %8787 = vst [vmem:[%s359] sm:$0xff] %v8779
      %8788 = vst [vmem:[%s359 + $0x8] sm:$0xff] %v8780
      %8789 = vst [vmem:[%s359 + $0x10] sm:$0xff] %v8781
      %8790 = vst [vmem:[%s359 + $0x18] sm:$0xff] %v8782
      %8791 = vst [vmem:[%s359 + $0x20] sm:$0xff] %v8783
      %8792 = vst [vmem:[%s359 + $0x28] sm:$0xff] %v8784
      %8793 = vst [vmem:[%s359 + $0x30] sm:$0xff] %v8785
      %8794 = vst [vmem:[%s359 + $0x38] sm:$0xff] %v8786
      %v8795 = vld [vmem:[%s359] sm:$0xff]
      %v8796 = vld [vmem:[%s359 + $0x8] sm:$0xff]
      %v8797 = vld [vmem:[%s359 + $0x10] sm:$0xff]
      %v8798 = vld [vmem:[%s359 + $0x18] sm:$0xff]
      %v8799 = vld [vmem:[%s359 + $0x20] sm:$0xff]
      %v8800 = vld [vmem:[%s359 + $0x28] sm:$0xff]
      %v8801 = vld [vmem:[%s359 + $0x30] sm:$0xff]
      %v8802 = vld [vmem:[%s359 + $0x38] sm:$0xff]
      %v8803 = vld [vmem:[%s8] sm:$0xff]
      %v8804 = vld [vmem:[%s8 + $0x8] sm:$0xff]
      %v8805 = vld [vmem:[%s8 + $0x10] sm:$0xff]
      %v8806 = vld [vmem:[%s8 + $0x18] sm:$0xff]
      %8808 = vset.pattern.permute.xlu0 0
      %8809 = vperm.xlu0 %8808, %v8803
      %v8810 = vpop.permute.xlu0 %8809
      %8813 = vset.pattern.permute.xlu0 0
      %8814 = vperm.xlu0 %8813, %v8804
      %v8815 = vpop.permute.xlu0 %8814
      %8818 = vset.pattern.permute.xlu0 0
      %8819 = vperm.xlu0 %8818, %v8805
      %v8820 = vpop.permute.xlu0 %8819
      %8823 = vset.pattern.permute.xlu0 0
      %8824 = vperm.xlu0 %8823, %v8806
      %v8825 = vpop.permute.xlu0 %8824
      %v8827 = vmul.f32 %v8795, %v8810
      %v8828 = vmul.f32 %v8796, %v8810
      %v8829 = vmul.f32 %v8797, %v8815
      %v8830 = vmul.f32 %v8798, %v8815
      %v8831 = vmul.f32 %v8799, %v8820
      %v8832 = vmul.f32 %v8800, %v8820
      %v8833 = vmul.f32 %v8801, %v8825
      %v8834 = vmul.f32 %v8802, %v8825
      %v8835 = vld [vmem:[%s9] sm:$0xff]
      %v8836 = vld [vmem:[%s9 + $0x8] sm:$0xff]
      %v8837 = vld [vmem:[%s9 + $0x10] sm:$0xff]
      %v8838 = vld [vmem:[%s9 + $0x18] sm:$0xff]
      %8840 = vset.pattern.permute.xlu0 0
      %8841 = vperm.xlu0 %8840, %v8835
      %v8842 = vpop.permute.xlu0 %8841
      %8845 = vset.pattern.permute.xlu0 0
      %8846 = vperm.xlu0 %8845, %v8836
      %v8847 = vpop.permute.xlu0 %8846
      %8850 = vset.pattern.permute.xlu0 0
      %8851 = vperm.xlu0 %8850, %v8837
      %v8852 = vpop.permute.xlu0 %8851
      %8855 = vset.pattern.permute.xlu0 0
      %8856 = vperm.xlu0 %8855, %v8838
      %v8857 = vpop.permute.xlu0 %8856
      %v8859 = vadd.f32 %v8827, %v8842
      %v8860 = vadd.f32 %v8828, %v8842
      %v8861 = vadd.f32 %v8829, %v8847
      %v8862 = vadd.f32 %v8830, %v8847
      %v8863 = vadd.f32 %v8831, %v8852
      %v8864 = vadd.f32 %v8832, %v8852
      %v8865 = vadd.f32 %v8833, %v8857
      %v8866 = vadd.f32 %v8834, %v8857
      %8867 = vst [vmem:[%s359] sm:$0xff] %v8859
      %8868 = vst [vmem:[%s359 + $0x8] sm:$0xff] %v8860
      %8869 = vst [vmem:[%s359 + $0x10] sm:$0xff] %v8861
      %8870 = vst [vmem:[%s359 + $0x18] sm:$0xff] %v8862
      %8871 = vst [vmem:[%s359 + $0x20] sm:$0xff] %v8863
      %8872 = vst [vmem:[%s359 + $0x28] sm:$0xff] %v8864
      %8873 = vst [vmem:[%s359 + $0x30] sm:$0xff] %v8865
      %8874 = vst [vmem:[%s359 + $0x38] sm:$0xff] %v8866
      %p8875 = scmp.lt.s32.totalorder %s21, 1
      %s8876 = scalar_select %p8875, %s21, 1
      %s8877 = smul.addr %s8876, 8
      %s8878 = smul.addr %s8877, 8
      %s8879 = scalar_lea.vmem %s10, %s8878
      // Predicated region
      $region61: #{_lambda_.1} parent=59 // pred_check
        %p8880 = pneg %p254
      $region62: #{_lambda_.1} parent=59 // pred_check_branch
        %8882 = sbr.rel (%p8880) target = $region64
      $region63: #{_lambda_.1} parent=59 // pred_region
        _
      $region64: #{_lambda_.1} parent=59 // pred_fallthru
        _
    $region60: #{_lambda_.1} parent=5 // pred_fallthru
      _
    %p8883 = scmp.le.s32.totalorder 2, %s16
    // Predicated region
    $region65: #{_lambda_.1} parent=5 // pred_check
      %p8884 = pneg %p8883
    $region66: #{_lambda_.1} parent=5 // pred_check_branch
      %8886 = sbr.rel (%p8884) target = $region68
    $region67: #{_lambda_.1} parent=5 // pred_region
      %s8887 = ssub.s32 %s16, 2
      // Predicated region
      $region69: #{_lambda_.1} parent=67 // pred_check
        %p8888 = pneg %p260
      $region70: #{_lambda_.1} parent=67 // pred_check_branch
        %8890 = sbr.rel (%p8888) target = $region72
      $region71: #{_lambda_.1} parent=67 // pred_region
        %p8891 = scmp.lt.s32.totalorder %s22, 1
        %s8892 = scalar_select %p8891, %s22, 1
        %s8893 = smul.addr %s8892, 8
        %s8894 = smul.addr %s8893, 8
        %s8895 = scalar_lea.vmem %s10, %s8894
      $region72: #{_lambda_.1} parent=67 // pred_fallthru
        _
    $region68: #{_lambda_.1} parent=5 // pred_fallthru
      _
  $region6: #{_lambda_.1} parent=0 // loop_footer
    %s20 = sadd.s32 1, %s16
  $region7: #{_lambda_.1} parent=0 // loop_footer_branch
    %15 = sbr.rel target = $region3
  $region8: #{_lambda_.1} parent=0 // loop_exit
    _

</llo_original>
